<compile_context>
chip_gen: v5e
topology: v5e:2x2
jax: 0.10.0
libtpu: 0.0.40
codegen_flags: <defaults>
</compile_context>

<pallas_src>
import functools

import jax
import jax.numpy as jnp
from jax.experimental import pallas as pl
from jax.experimental.pallas import tpu as pltpu

# ---------------- "args" (hyperparameters) ----------------
C_CURV = 0.01          # args.c (Poincare-ball curvature)
TEMPERATURE = 1.0      # args.temperature
SHOT = 1               # args.shot
WAY = 5                # args.way == args.validation_way (eval mode)
QUERY = 2              # queries per class
Z_DIM = 32             # args.dim (embedding dim, conv-4 output channels)
HID = 32               # hidden channels of the conv encoder
IN_CH = 4              # input image channels
SPATIAL = 16           # input H = W (16 -> 8 -> 4 -> 2 -> 1 after 4 maxpools)
EPS_BN = 1e-5
BALL_EPS_F32 = 4e-3    # hyperbolic-image-embeddings BALL_EPS[torch.float32]


# ============ Pallas kernel 1: fused conv3x3 (+folded BN) + ReLU + 2x2 maxpool ============
def _conv_block_kernel(p_ref, w_ref, b_ref, o_ref):
    # p_ref: (4, TM, K)  -- leading axis = the 4 pool-window offsets (di,dj),
    #                       TM pooled-output pixel rows, K = 9*Cin im2col features.
    # w_ref: (K, Cout)   -- conv weight with eval-mode BN scale folded in.
    # b_ref: (1, Cout)   -- conv bias + BN shift folded.
    # o_ref: (TM, Cout)  -- maxpool(relu(BN(conv))) rows.
    w = w_ref[...]
    z = jnp.dot(p_ref[0], w, preferred_element_type=jnp.float32)
    z = jnp.maximum(z, jnp.dot(p_ref[1], w, preferred_element_type=jnp.float32))
    z = jnp.maximum(z, jnp.dot(p_ref[2], w, preferred_element_type=jnp.float32))
    z = jnp.maximum(z, jnp.dot(p_ref[3], w, preferred_element_type=jnp.float32))
    # bias is identical for the 4 window offsets and ReLU is monotone, so
    # max(relu(z_q + b)) == relu(max_q(z_q) + b).
    o_ref[...] = jnp.maximum(z + b_ref[...], 0.0)


def conv_bn_relu_pool(x_nhwc, w_folded, b_row):
    """3x3 conv (stride 1, pad 1) + BatchNorm(eval, folded) + ReLU + 2x2 maxpool."""
    B, H, W, Cin = x_nhwc.shape
    K, Cout = w_folded.shape
    H2, W2 = H // 2, W // 2
    M = B * H2 * W2                                    # pooled output pixels

    # im2col (XLA glue, tiny tensors), ordered so that the 2x2 pool-window offset is the
    # leading axis: p[q, m, :] is the patch for pooled pixel m at window offset q=di*2+dj.
    xp = jnp.pad(x_nhwc, ((0, 0), (1, 1), (1, 1), (0, 0)))
    patches = jnp.concatenate(
        [xp[:, kh:kh + H, kw:kw + W, :] for kh in range(3) for kw in range(3)],
        axis=-1)                                       # (B, H, W, 9*Cin)
    p = patches.reshape(B, H2, 2, W2, 2, K)
    p = jnp.transpose(p, (2, 4, 0, 1, 3, 5)).reshape(4, M, K)

    # 2 parallel M-tiles when sizes allow (keeps both v7x TensorCores busy); otherwise a
    # single full-extent block. No zero-padding of K / Cout / M.
    grid_m = 2 if (M >= 128 and M % 16 == 0) else 1
    tm = M // grid_m

    out = pl.pallas_call(
        _conv_block_kernel,
        out_shape=jax.ShapeDtypeStruct((M, Cout), jnp.float32),
        grid=(grid_m,),
        in_specs=[
            pl.BlockSpec((4, tm, K), lambda m: (0, m, 0)),
            pl.BlockSpec((K, Cout), lambda m: (0, 0)),
            pl.BlockSpec((1, Cout), lambda m: (0, 0)),
        ],
        out_specs=pl.BlockSpec((tm, Cout), lambda m: (m, 0)),
        compiler_params=pltpu.CompilerParams(
            dimension_semantics=("parallel",)),
    )(p, w_folded, b_row)

    return out.reshape(B, H2, W2, Cout)


# ============ Pallas kernel 2: poincare_mean + hyperbolic distance logits (fused head) ============
def _head_kernel(s_ref, q_ref, o_ref, *, c, temperature, shot, way):
    # s_ref: (1, shot*way, D) shot embeddings (row order = (shot, way))
    # q_ref: (nq, 1, D)       query embeddings
    # o_ref: (nq, way, 1)     logits = -dist_matrix(query, proto, c) / temperature
    sh = s_ref[...]                                            # (1, S, D)
    q = q_ref[...]                                             # (nq, 1, D)

    # ---- poincare_mean over the shot axis (Einstein midpoint in Klein coords) ----
    sx2 = jnp.sum(sh * sh, axis=-1, keepdims=True)             # (1, S, 1)
    k = 2.0 * sh / (1.0 + c * sx2)                             # Poincare -> Klein
    k2 = jnp.sum(k * k, axis=-1, keepdims=True)
    lamb = jax.lax.rsqrt(jnp.maximum(1.0 - c * k2, 1e-10))     # Lorentz factor
    lk = lamb * k
    num = lk[:, 0:way, :]
    den = lamb[:, 0:way, :]
    for s in range(1, shot):                                   # unrolled (shot is static)
        num = num + lk[:, s * way:(s + 1) * way, :]
        den = den + lamb[:, s * way:(s + 1) * way, :]
    mean_k = num / den                                         # (1, way, D)
    mk2 = jnp.sum(mean_k * mean_k, axis=-1, keepdims=True)
    proto = mean_k / (1.0 + jnp.sqrt(jnp.maximum(1.0 - c * mk2, 0.0)))   # Klein -> Poincare

    # ---- -dist_matrix(query, proto, c) / temperature (batched Mobius addition) ----
    u = -q                                                     # reference passes -x
    xy = jnp.sum(u * proto, axis=-1, keepdims=True)            # (nq, way, 1)
    x2 = jnp.sum(u * u, axis=-1, keepdims=True)                # (nq, 1, 1)
    y2 = jnp.sum(proto * proto, axis=-1, keepdims=True)        # (1, way, 1)
    coef_u = 1.0 + 2.0 * c * xy + c * y2                       # (nq, way, 1)
    coef_p = 1.0 - c * x2                                      # (nq, 1, 1)
    # explicit Mobius-addition numerator vector (no cancellation-prone expansion)
    mob = coef_u * u + coef_p * proto                          # (nq, way, D)
    denom = 1.0 + 2.0 * c * xy + (c * c) * x2 * y2             # (nq, way, 1)
    norm = (jnp.sqrt(jnp.sum(mob * mob, axis=-1, keepdims=True))
            * pl.reciprocal(denom + 1e-5, approx=True))        # matches reference's +1e-5
    sqrt_c = c ** 0.5
    z = jnp.clip(sqrt_c * norm, -1.0 + 1e-5, 1.0 - 1e-5)
    artanh = 0.5 * (jnp.log1p(z) - jnp.log1p(-z))
    o_ref[...] = (-2.0 / (sqrt_c * temperature)) * artanh      # constants folded


def head_logits(shot_emb, query_emb, *, c, temperature, shot, way):
    nq, d = query_emb.shape
    s3 = shot_emb.reshape(1, shot * way, d)
    q3 = query_emb.reshape(nq, 1, d)
    kernel = functools.partial(_head_kernel, c=c, temperature=temperature,
                               shot=shot, way=way)
    out = pl.pallas_call(
        kernel,
        out_shape=jax.ShapeDtypeStruct((nq, way, 1), jnp.float32),
        grid=(1,),
        in_specs=[pl.BlockSpec((1, shot * way, d), lambda i: (0, 0, 0)),
                  pl.BlockSpec((nq, 1, d), lambda i: (0, 0, 0))],
        out_specs=pl.BlockSpec((nq, way, 1), lambda i: (0, 0, 0)),
    )(s3, q3)
    return out.reshape(nq, way)


# ---------------- ToPoincare (plain JAX glue, applied to raw NCHW images) ----------------
def e2p(x, c):
    """project(expmap0(x, c), c) with norms over the LAST axis (matches torch dim=-1)."""
    sqrt_c = c ** 0.5
    norm = jnp.maximum(jnp.sqrt(jnp.sum(x * x, axis=-1, keepdims=True)), 1e-5)
    g = jnp.tanh(sqrt_c * norm) * x / (sqrt_c * norm)
    gnorm = jnp.maximum(jnp.sqrt(jnp.sum(g * g, axis=-1, keepdims=True)), 1e-5)
    maxnorm = (1.0 - BALL_EPS_F32) / sqrt_c
    return jnp.where(gnorm > maxnorm, g / gnorm * maxnorm, g)


# ---------------- params (Conv-4 encoder, eval mode) ----------------
def init_params(key):
    layers = []
    cin = IN_CH
    for cout in (HID, HID, HID, Z_DIM):
        key, k1 = jax.random.split(key)
        w = jax.random.normal(k1, (cout, cin, 3, 3), jnp.float32) * 0.05
        b = jnp.zeros((cout,), jnp.float32)
        gamma = jnp.ones((cout,), jnp.float32)
        beta = jnp.zeros((cout,), jnp.float32)
        mean = jnp.zeros((cout,), jnp.float32)
        var = jnp.ones((cout,), jnp.float32)
        layers.append((w, b, gamma, beta, mean, var))
        cin = cout
    return layers


def fold_params(layers):
    """Fold eval-mode BatchNorm into the conv weights / bias once, ahead of time."""
    folded = []
    for (w, b, gamma, beta, mean, var) in layers:
        cout, cin = w.shape[0], w.shape[1]
        scale = gamma / jnp.sqrt(var + EPS_BN)                             # (Cout,)
        wmat = jnp.transpose(w, (2, 3, 1, 0)).reshape(9 * cin, cout)       # (kh,kw,Cin) x Cout
        w_folded = wmat * scale[None, :]
        b_row = ((b - mean) * scale + beta).reshape(1, cout)
        folded.append((w_folded, b_row))
    return folded


def encoder_forward(x_nchw, folded_layers):
    x = jnp.transpose(x_nchw, (0, 2, 3, 1))            # NCHW -> NHWC
    for (w_folded, b_row) in folded_layers:
        x = conv_bn_relu_pool(x, w_folded, b_row)
    return x.reshape(x.shape[0], -1)                   # spatial -> 1x1 => (B, Z_DIM)


# ---------------- HypNet.forward (hyperbolic branch, eval mode) ----------------
def hypnet_forward(data_shot, data_query, folded_layers):
    n_shot = data_shot.shape[0]
    # single encoder pass over the concatenated batch (per-sample math, eval-mode BN)
    x = jnp.concatenate([data_shot, data_query], axis=0)
    emb = encoder_forward(e2p(x, C_CURV), folded_layers)       # (n_shot + n_query, Z_DIM)
    shot_emb = emb[:n_shot]                                    # (SHOT*WAY, Z_DIM)
    query_emb = emb[n_shot:]                                   # (QUERY*WAY, Z_DIM)
    return head_logits(shot_emb, query_emb, c=C_CURV, temperature=TEMPERATURE,
                       shot=SHOT, way=WAY)


if __name__ == "__main__":
    key = jax.random.PRNGKey(0)
    k_params, k_shot, k_query = jax.random.split(key, 3)

    layers = init_params(k_params)
    folded = fold_params(layers)
    data_shot = jax.random.normal(
        k_shot, (SHOT * WAY, IN_CH, SPATIAL, SPATIAL), jnp.float32)
    data_query = jax.random.normal(
        k_query, (QUERY * WAY, IN_CH, SPATIAL, SPATIAL), jnp.float32)

    fwd = jax.jit(hypnet_forward)
    logits = jax.block_until_ready(fwd(data_shot, data_query, folded))

    assert logits.shape == (QUERY * WAY, WAY), logits.shape
    assert bool(jnp.all(jnp.isfinite(logits)))
    print("KERNEL_OK")
</pallas_src>

<mosaic_0001>
module attributes {stable_mosaic.version = 11 : i64} {
  func.func @_conv_block_kernel(%arg0: i32, %arg1: memref<4x480x36xf32, #tpu.memory_space<vmem>>, %arg2: memref<36x32xf32, #tpu.memory_space<vmem>>, %arg3: memref<1x32xf32, #tpu.memory_space<vmem>>, %arg4: memref<480x32xf32, #tpu.memory_space<vmem>>) attributes {dimension_semantics = [#tpu.dimension_semantics<parallel>], iteration_bounds = array<i64: 2>, scalar_prefetch = 0 : i64, scratch_operands = 0 : i64, tpu.core_type = #tpu.core_type<tc>, window_params = [{transform_indices = @transform_0, window_bounds = array<i64: 4, 480, 36>}, {pipeline_mode = #tpu.pipeline_mode<synchronous>, transform_indices = @transform_1, window_bounds = array<i64: 36, 32>}, {pipeline_mode = #tpu.pipeline_mode<synchronous>, transform_indices = @transform_2, window_bounds = array<i64: 1, 32>}, {transform_indices = @transform_3, window_bounds = array<i64: 480, 32>}]} {
    %c0 = arith.constant 0 : index
    %c0_0 = arith.constant 0 : index
    %0 = vector.load %arg2[%c0, %c0_0] : memref<36x32xf32, #tpu.memory_space<vmem>>, vector<36x32xf32>
    %c0_1 = arith.constant 0 : index
    %c0_2 = arith.constant 0 : index
    %c0_3 = arith.constant 0 : index
    %1 = vector.load %arg1[%c0_1, %c0_2, %c0_3] : memref<4x480x36xf32, #tpu.memory_space<vmem>>, vector<1x480x36xf32>
    %2 = vector.shape_cast %1 : vector<1x480x36xf32> to vector<480x36xf32>
    %cst = arith.constant dense<0.000000e+00> : vector<480x32xf32>
    %3 = tpu.matmul %2, %0, %cst {dimension_numbers = #tpu.dot_dimension_numbers<[1], [0], [0], [1], [0, 0, 1, 1], [], []>} : vector<480x36xf32>, vector<36x32xf32>, vector<480x32xf32> -> vector<480x32xf32>
    %c1 = arith.constant 1 : index
    %c0_4 = arith.constant 0 : index
    %c0_5 = arith.constant 0 : index
    %4 = vector.load %arg1[%c1, %c0_4, %c0_5] : memref<4x480x36xf32, #tpu.memory_space<vmem>>, vector<1x480x36xf32>
    %5 = vector.shape_cast %4 : vector<1x480x36xf32> to vector<480x36xf32>
    %cst_6 = arith.constant dense<0.000000e+00> : vector<480x32xf32>
    %6 = tpu.matmul %5, %0, %cst_6 {dimension_numbers = #tpu.dot_dimension_numbers<[1], [0], [0], [1], [0, 0, 1, 1], [], []>} : vector<480x36xf32>, vector<36x32xf32>, vector<480x32xf32> -> vector<480x32xf32>
    %7 = arith.maximumf %3, %6 : vector<480x32xf32>
    %c2 = arith.constant 2 : index
    %c0_7 = arith.constant 0 : index
    %c0_8 = arith.constant 0 : index
    %8 = vector.load %arg1[%c2, %c0_7, %c0_8] : memref<4x480x36xf32, #tpu.memory_space<vmem>>, vector<1x480x36xf32>
    %9 = vector.shape_cast %8 : vector<1x480x36xf32> to vector<480x36xf32>
    %cst_9 = arith.constant dense<0.000000e+00> : vector<480x32xf32>
    %10 = tpu.matmul %9, %0, %cst_9 {dimension_numbers = #tpu.dot_dimension_numbers<[1], [0], [0], [1], [0, 0, 1, 1], [], []>} : vector<480x36xf32>, vector<36x32xf32>, vector<480x32xf32> -> vector<480x32xf32>
    %11 = arith.maximumf %7, %10 : vector<480x32xf32>
    %c3 = arith.constant 3 : index
    %c0_10 = arith.constant 0 : index
    %c0_11 = arith.constant 0 : index
    %12 = vector.load %arg1[%c3, %c0_10, %c0_11] : memref<4x480x36xf32, #tpu.memory_space<vmem>>, vector<1x480x36xf32>
    %13 = vector.shape_cast %12 : vector<1x480x36xf32> to vector<480x36xf32>
    %cst_12 = arith.constant dense<0.000000e+00> : vector<480x32xf32>
    %14 = tpu.matmul %13, %0, %cst_12 {dimension_numbers = #tpu.dot_dimension_numbers<[1], [0], [0], [1], [0, 0, 1, 1], [], []>} : vector<480x36xf32>, vector<36x32xf32>, vector<480x32xf32> -> vector<480x32xf32>
    %15 = arith.maximumf %11, %14 : vector<480x32xf32>
    %c0_13 = arith.constant 0 : index
    %c0_14 = arith.constant 0 : index
    %16 = vector.load %arg3[%c0_13, %c0_14] : memref<1x32xf32, #tpu.memory_space<vmem>>, vector<1x32xf32>
    %17 = vector.broadcast %16 : vector<1x32xf32> to vector<480x32xf32>
    %18 = arith.addf %15, %17 : vector<480x32xf32>
    %cst_15 = arith.constant 0.000000e+00 : f32
    %19 = vector.broadcast %cst_15 : f32 to vector<480x32xf32>
    %20 = arith.maximumf %18, %19 : vector<480x32xf32>
    %c0_16 = arith.constant 0 : index
    %c0_17 = arith.constant 0 : index
    %21 = vector.load %arg4[%c0_16, %c0_17] : memref<480x32xf32, #tpu.memory_space<vmem>>, vector<480x32xf32>
    tpu.vector_store %arg4[%c0_16, %c0_17], %20 {strides = array<i32>} : memref<480x32xf32, #tpu.memory_space<vmem>>, vector<480x32xf32>,
    return
  }
  func.func @transform_0(%arg0: i32) -> (i32, i32, i32) {
    %c0_i32 = arith.constant 0 : i32
    %c0_i32_0 = arith.constant 0 : i32
    %c0_i32_1 = arith.constant 0 : i32
    return %c0_i32, %arg0, %c0_i32_0 : i32, i32, i32
  }
  func.func @transform_1(%arg0: i32) -> (i32, i32) {
    %c0_i32 = arith.constant 0 : i32
    %c0_i32_0 = arith.constant 0 : i32
    %c0_i32_1 = arith.constant 0 : i32
    return %c0_i32, %c0_i32_0 : i32, i32
  }
  func.func @transform_2(%arg0: i32) -> (i32, i32) {
    %c0_i32 = arith.constant 0 : i32
    %c0_i32_0 = arith.constant 0 : i32
    %c0_i32_1 = arith.constant 0 : i32
    return %c0_i32, %c0_i32_0 : i32, i32
  }
  func.func @transform_3(%arg0: i32) -> (i32, i32) {
    %c0_i32 = arith.constant 0 : i32
    %c0_i32_0 = arith.constant 0 : i32
    return %arg0, %c0_i32 : i32, i32
  }
}

module attributes {stable_mosaic.version = 11 : i64} {
  func.func @_conv_block_kernel(%arg0: i32, %arg1: memref<4x120x288xf32, #tpu.memory_space<vmem>>, %arg2: memref<288x32xf32, #tpu.memory_space<vmem>>, %arg3: memref<1x32xf32, #tpu.memory_space<vmem>>, %arg4: memref<120x32xf32, #tpu.memory_space<vmem>>) attributes {dimension_semantics = [#tpu.dimension_semantics<parallel>], iteration_bounds = array<i64: 2>, scalar_prefetch = 0 : i64, scratch_operands = 0 : i64, tpu.core_type = #tpu.core_type<tc>, window_params = [{transform_indices = @transform_0, window_bounds = array<i64: 4, 120, 288>}, {pipeline_mode = #tpu.pipeline_mode<synchronous>, transform_indices = @transform_1, window_bounds = array<i64: 288, 32>}, {pipeline_mode = #tpu.pipeline_mode<synchronous>, transform_indices = @transform_2, window_bounds = array<i64: 1, 32>}, {transform_indices = @transform_3, window_bounds = array<i64: 120, 32>}]} {
    %c0 = arith.constant 0 : index
    %c0_0 = arith.constant 0 : index
    %0 = vector.load %arg2[%c0, %c0_0] : memref<288x32xf32, #tpu.memory_space<vmem>>, vector<288x32xf32>
    %c0_1 = arith.constant 0 : index
    %c0_2 = arith.constant 0 : index
    %c0_3 = arith.constant 0 : index
    %1 = vector.load %arg1[%c0_1, %c0_2, %c0_3] : memref<4x120x288xf32, #tpu.memory_space<vmem>>, vector<1x120x288xf32>
    %2 = vector.shape_cast %1 : vector<1x120x288xf32> to vector<120x288xf32>
    %cst = arith.constant dense<0.000000e+00> : vector<120x32xf32>
    %3 = tpu.matmul %2, %0, %cst {dimension_numbers = #tpu.dot_dimension_numbers<[1], [0], [0], [1], [0, 0, 1, 1], [], []>} : vector<120x288xf32>, vector<288x32xf32>, vector<120x32xf32> -> vector<120x32xf32>
    %c1 = arith.constant 1 : index
    %c0_4 = arith.constant 0 : index
    %c0_5 = arith.constant 0 : index
    %4 = vector.load %arg1[%c1, %c0_4, %c0_5] : memref<4x120x288xf32, #tpu.memory_space<vmem>>, vector<1x120x288xf32>
    %5 = vector.shape_cast %4 : vector<1x120x288xf32> to vector<120x288xf32>
    %cst_6 = arith.constant dense<0.000000e+00> : vector<120x32xf32>
    %6 = tpu.matmul %5, %0, %cst_6 {dimension_numbers = #tpu.dot_dimension_numbers<[1], [0], [0], [1], [0, 0, 1, 1], [], []>} : vector<120x288xf32>, vector<288x32xf32>, vector<120x32xf32> -> vector<120x32xf32>
    %7 = arith.maximumf %3, %6 : vector<120x32xf32>
    %c2 = arith.constant 2 : index
    %c0_7 = arith.constant 0 : index
    %c0_8 = arith.constant 0 : index
    %8 = vector.load %arg1[%c2, %c0_7, %c0_8] : memref<4x120x288xf32, #tpu.memory_space<vmem>>, vector<1x120x288xf32>
    %9 = vector.shape_cast %8 : vector<1x120x288xf32> to vector<120x288xf32>
    %cst_9 = arith.constant dense<0.000000e+00> : vector<120x32xf32>
    %10 = tpu.matmul %9, %0, %cst_9 {dimension_numbers = #tpu.dot_dimension_numbers<[1], [0], [0], [1], [0, 0, 1, 1], [], []>} : vector<120x288xf32>, vector<288x32xf32>, vector<120x32xf32> -> vector<120x32xf32>
    %11 = arith.maximumf %7, %10 : vector<120x32xf32>
    %c3 = arith.constant 3 : index
    %c0_10 = arith.constant 0 : index
    %c0_11 = arith.constant 0 : index
    %12 = vector.load %arg1[%c3, %c0_10, %c0_11] : memref<4x120x288xf32, #tpu.memory_space<vmem>>, vector<1x120x288xf32>
    %13 = vector.shape_cast %12 : vector<1x120x288xf32> to vector<120x288xf32>
    %cst_12 = arith.constant dense<0.000000e+00> : vector<120x32xf32>
    %14 = tpu.matmul %13, %0, %cst_12 {dimension_numbers = #tpu.dot_dimension_numbers<[1], [0], [0], [1], [0, 0, 1, 1], [], []>} : vector<120x288xf32>, vector<288x32xf32>, vector<120x32xf32> -> vector<120x32xf32>
    %15 = arith.maximumf %11, %14 : vector<120x32xf32>
    %c0_13 = arith.constant 0 : index
    %c0_14 = arith.constant 0 : index
    %16 = vector.load %arg3[%c0_13, %c0_14] : memref<1x32xf32, #tpu.memory_space<vmem>>, vector<1x32xf32>
    %17 = vector.broadcast %16 : vector<1x32xf32> to vector<120x32xf32>
    %18 = arith.addf %15, %17 : vector<120x32xf32>
    %cst_15 = arith.constant 0.000000e+00 : f32
    %19 = vector.broadcast %cst_15 : f32 to vector<120x32xf32>
    %20 = arith.maximumf %18, %19 : vector<120x32xf32>
    %c0_16 = arith.constant 0 : index
    %c0_17 = arith.constant 0 : index
    %21 = vector.load %arg4[%c0_16, %c0_17] : memref<120x32xf32, #tpu.memory_space<vmem>>, vector<120x32xf32>
    tpu.vector_store %arg4[%c0_16, %c0_17], %20 {strides = array<i32>} : memref<120x32xf32, #tpu.memory_space<vmem>>, vector<120x32xf32>,
    return
  }
  func.func @transform_0(%arg0: i32) -> (i32, i32, i32) {
    %c0_i32 = arith.constant 0 : i32
    %c0_i32_0 = arith.constant 0 : i32
    %c0_i32_1 = arith.constant 0 : i32
    return %c0_i32, %arg0, %c0_i32_0 : i32, i32, i32
  }
  func.func @transform_1(%arg0: i32) -> (i32, i32) {
    %c0_i32 = arith.constant 0 : i32
    %c0_i32_0 = arith.constant 0 : i32
    %c0_i32_1 = arith.constant 0 : i32
    return %c0_i32, %c0_i32_0 : i32, i32
  }
  func.func @transform_2(%arg0: i32) -> (i32, i32) {
    %c0_i32 = arith.constant 0 : i32
    %c0_i32_0 = arith.constant 0 : i32
    %c0_i32_1 = arith.constant 0 : i32
    return %c0_i32, %c0_i32_0 : i32, i32
  }
  func.func @transform_3(%arg0: i32) -> (i32, i32) {
    %c0_i32 = arith.constant 0 : i32
    %c0_i32_0 = arith.constant 0 : i32
    return %arg0, %c0_i32 : i32, i32
  }
}

module attributes {stable_mosaic.version = 11 : i64} {
  func.func @_conv_block_kernel(%arg0: i32, %arg1: memref<4x60x288xf32, #tpu.memory_space<vmem>>, %arg2: memref<288x32xf32, #tpu.memory_space<vmem>>, %arg3: memref<1x32xf32, #tpu.memory_space<vmem>>, %arg4: memref<60x32xf32, #tpu.memory_space<vmem>>) attributes {dimension_semantics = [#tpu.dimension_semantics<parallel>], iteration_bounds = array<i64: 1>, scalar_prefetch = 0 : i64, scratch_operands = 0 : i64, tpu.core_type = #tpu.core_type<tc>, window_params = [{transform_indices = @transform_0, window_bounds = array<i64: 4, 60, 288>}, {pipeline_mode = #tpu.pipeline_mode<synchronous>, transform_indices = @transform_1, window_bounds = array<i64: 288, 32>}, {pipeline_mode = #tpu.pipeline_mode<synchronous>, transform_indices = @transform_2, window_bounds = array<i64: 1, 32>}, {transform_indices = @transform_3, window_bounds = array<i64: 60, 32>}]} {
    %c0 = arith.constant 0 : index
    %c0_0 = arith.constant 0 : index
    %0 = vector.load %arg2[%c0, %c0_0] : memref<288x32xf32, #tpu.memory_space<vmem>>, vector<288x32xf32>
    %c0_1 = arith.constant 0 : index
    %c0_2 = arith.constant 0 : index
    %c0_3 = arith.constant 0 : index
    %1 = vector.load %arg1[%c0_1, %c0_2, %c0_3] : memref<4x60x288xf32, #tpu.memory_space<vmem>>, vector<1x60x288xf32>
    %2 = vector.shape_cast %1 : vector<1x60x288xf32> to vector<60x288xf32>
    %cst = arith.constant dense<0.000000e+00> : vector<60x32xf32>
    %3 = tpu.matmul %2, %0, %cst {dimension_numbers = #tpu.dot_dimension_numbers<[1], [0], [0], [1], [0, 0, 1, 1], [], []>} : vector<60x288xf32>, vector<288x32xf32>, vector<60x32xf32> -> vector<60x32xf32>
    %c1 = arith.constant 1 : index
    %c0_4 = arith.constant 0 : index
    %c0_5 = arith.constant 0 : index
    %4 = vector.load %arg1[%c1, %c0_4, %c0_5] : memref<4x60x288xf32, #tpu.memory_space<vmem>>, vector<1x60x288xf32>
    %5 = vector.shape_cast %4 : vector<1x60x288xf32> to vector<60x288xf32>
    %cst_6 = arith.constant dense<0.000000e+00> : vector<60x32xf32>
    %6 = tpu.matmul %5, %0, %cst_6 {dimension_numbers = #tpu.dot_dimension_numbers<[1], [0], [0], [1], [0, 0, 1, 1], [], []>} : vector<60x288xf32>, vector<288x32xf32>, vector<60x32xf32> -> vector<60x32xf32>
    %7 = arith.maximumf %3, %6 : vector<60x32xf32>
    %c2 = arith.constant 2 : index
    %c0_7 = arith.constant 0 : index
    %c0_8 = arith.constant 0 : index
    %8 = vector.load %arg1[%c2, %c0_7, %c0_8] : memref<4x60x288xf32, #tpu.memory_space<vmem>>, vector<1x60x288xf32>
    %9 = vector.shape_cast %8 : vector<1x60x288xf32> to vector<60x288xf32>
    %cst_9 = arith.constant dense<0.000000e+00> : vector<60x32xf32>
    %10 = tpu.matmul %9, %0, %cst_9 {dimension_numbers = #tpu.dot_dimension_numbers<[1], [0], [0], [1], [0, 0, 1, 1], [], []>} : vector<60x288xf32>, vector<288x32xf32>, vector<60x32xf32> -> vector<60x32xf32>
    %11 = arith.maximumf %7, %10 : vector<60x32xf32>
    %c3 = arith.constant 3 : index
    %c0_10 = arith.constant 0 : index
    %c0_11 = arith.constant 0 : index
    %12 = vector.load %arg1[%c3, %c0_10, %c0_11] : memref<4x60x288xf32, #tpu.memory_space<vmem>>, vector<1x60x288xf32>
    %13 = vector.shape_cast %12 : vector<1x60x288xf32> to vector<60x288xf32>
    %cst_12 = arith.constant dense<0.000000e+00> : vector<60x32xf32>
    %14 = tpu.matmul %13, %0, %cst_12 {dimension_numbers = #tpu.dot_dimension_numbers<[1], [0], [0], [1], [0, 0, 1, 1], [], []>} : vector<60x288xf32>, vector<288x32xf32>, vector<60x32xf32> -> vector<60x32xf32>
    %15 = arith.maximumf %11, %14 : vector<60x32xf32>
    %c0_13 = arith.constant 0 : index
    %c0_14 = arith.constant 0 : index
    %16 = vector.load %arg3[%c0_13, %c0_14] : memref<1x32xf32, #tpu.memory_space<vmem>>, vector<1x32xf32>
    %17 = vector.broadcast %16 : vector<1x32xf32> to vector<60x32xf32>
    %18 = arith.addf %15, %17 : vector<60x32xf32>
    %cst_15 = arith.constant 0.000000e+00 : f32
    %19 = vector.broadcast %cst_15 : f32 to vector<60x32xf32>
    %20 = arith.maximumf %18, %19 : vector<60x32xf32>
    %c0_16 = arith.constant 0 : index
    %c0_17 = arith.constant 0 : index
    %21 = vector.load %arg4[%c0_16, %c0_17] : memref<60x32xf32, #tpu.memory_space<vmem>>, vector<60x32xf32>
    tpu.vector_store %arg4[%c0_16, %c0_17], %20 {strides = array<i32>} : memref<60x32xf32, #tpu.memory_space<vmem>>, vector<60x32xf32>,
    return
  }
  func.func @transform_0(%arg0: i32) -> (i32, i32, i32) {
    %c0_i32 = arith.constant 0 : i32
    %c0_i32_0 = arith.constant 0 : i32
    %c0_i32_1 = arith.constant 0 : i32
    return %c0_i32, %arg0, %c0_i32_0 : i32, i32, i32
  }
  func.func @transform_1(%arg0: i32) -> (i32, i32) {
    %c0_i32 = arith.constant 0 : i32
    %c0_i32_0 = arith.constant 0 : i32
    %c0_i32_1 = arith.constant 0 : i32
    return %c0_i32, %c0_i32_0 : i32, i32
  }
  func.func @transform_2(%arg0: i32) -> (i32, i32) {
    %c0_i32 = arith.constant 0 : i32
    %c0_i32_0 = arith.constant 0 : i32
    %c0_i32_1 = arith.constant 0 : i32
    return %c0_i32, %c0_i32_0 : i32, i32
  }
  func.func @transform_3(%arg0: i32) -> (i32, i32) {
    %c0_i32 = arith.constant 0 : i32
    %c0_i32_0 = arith.constant 0 : i32
    return %arg0, %c0_i32 : i32, i32
  }
}

module attributes {stable_mosaic.version = 11 : i64} {
  func.func @_conv_block_kernel(%arg0: i32, %arg1: memref<4x15x288xf32, #tpu.memory_space<vmem>>, %arg2: memref<288x32xf32, #tpu.memory_space<vmem>>, %arg3: memref<1x32xf32, #tpu.memory_space<vmem>>, %arg4: memref<15x32xf32, #tpu.memory_space<vmem>>) attributes {dimension_semantics = [#tpu.dimension_semantics<parallel>], iteration_bounds = array<i64: 1>, scalar_prefetch = 0 : i64, scratch_operands = 0 : i64, tpu.core_type = #tpu.core_type<tc>, window_params = [{transform_indices = @transform_0, window_bounds = array<i64: 4, 15, 288>}, {pipeline_mode = #tpu.pipeline_mode<synchronous>, transform_indices = @transform_1, window_bounds = array<i64: 288, 32>}, {pipeline_mode = #tpu.pipeline_mode<synchronous>, transform_indices = @transform_2, window_bounds = array<i64: 1, 32>}, {transform_indices = @transform_3, window_bounds = array<i64: 15, 32>}]} {
    %c0 = arith.constant 0 : index
    %c0_0 = arith.constant 0 : index
    %0 = vector.load %arg2[%c0, %c0_0] : memref<288x32xf32, #tpu.memory_space<vmem>>, vector<288x32xf32>
    %c0_1 = arith.constant 0 : index
    %c0_2 = arith.constant 0 : index
    %c0_3 = arith.constant 0 : index
    %1 = vector.load %arg1[%c0_1, %c0_2, %c0_3] : memref<4x15x288xf32, #tpu.memory_space<vmem>>, vector<1x15x288xf32>
    %2 = vector.shape_cast %1 : vector<1x15x288xf32> to vector<15x288xf32>
    %cst = arith.constant dense<0.000000e+00> : vector<15x32xf32>
    %3 = tpu.matmul %2, %0, %cst {dimension_numbers = #tpu.dot_dimension_numbers<[1], [0], [0], [1], [0, 0, 1, 1], [], []>} : vector<15x288xf32>, vector<288x32xf32>, vector<15x32xf32> -> vector<15x32xf32>
    %c1 = arith.constant 1 : index
    %c0_4 = arith.constant 0 : index
    %c0_5 = arith.constant 0 : index
    %4 = vector.load %arg1[%c1, %c0_4, %c0_5] : memref<4x15x288xf32, #tpu.memory_space<vmem>>, vector<1x15x288xf32>
    %5 = vector.shape_cast %4 : vector<1x15x288xf32> to vector<15x288xf32>
    %cst_6 = arith.constant dense<0.000000e+00> : vector<15x32xf32>
    %6 = tpu.matmul %5, %0, %cst_6 {dimension_numbers = #tpu.dot_dimension_numbers<[1], [0], [0], [1], [0, 0, 1, 1], [], []>} : vector<15x288xf32>, vector<288x32xf32>, vector<15x32xf32> -> vector<15x32xf32>
    %7 = arith.maximumf %3, %6 : vector<15x32xf32>
    %c2 = arith.constant 2 : index
    %c0_7 = arith.constant 0 : index
    %c0_8 = arith.constant 0 : index
    %8 = vector.load %arg1[%c2, %c0_7, %c0_8] : memref<4x15x288xf32, #tpu.memory_space<vmem>>, vector<1x15x288xf32>
    %9 = vector.shape_cast %8 : vector<1x15x288xf32> to vector<15x288xf32>
    %cst_9 = arith.constant dense<0.000000e+00> : vector<15x32xf32>
    %10 = tpu.matmul %9, %0, %cst_9 {dimension_numbers = #tpu.dot_dimension_numbers<[1], [0], [0], [1], [0, 0, 1, 1], [], []>} : vector<15x288xf32>, vector<288x32xf32>, vector<15x32xf32> -> vector<15x32xf32>
    %11 = arith.maximumf %7, %10 : vector<15x32xf32>
    %c3 = arith.constant 3 : index
    %c0_10 = arith.constant 0 : index
    %c0_11 = arith.constant 0 : index
    %12 = vector.load %arg1[%c3, %c0_10, %c0_11] : memref<4x15x288xf32, #tpu.memory_space<vmem>>, vector<1x15x288xf32>
    %13 = vector.shape_cast %12 : vector<1x15x288xf32> to vector<15x288xf32>
    %cst_12 = arith.constant dense<0.000000e+00> : vector<15x32xf32>
    %14 = tpu.matmul %13, %0, %cst_12 {dimension_numbers = #tpu.dot_dimension_numbers<[1], [0], [0], [1], [0, 0, 1, 1], [], []>} : vector<15x288xf32>, vector<288x32xf32>, vector<15x32xf32> -> vector<15x32xf32>
    %15 = arith.maximumf %11, %14 : vector<15x32xf32>
    %c0_13 = arith.constant 0 : index
    %c0_14 = arith.constant 0 : index
    %16 = vector.load %arg3[%c0_13, %c0_14] : memref<1x32xf32, #tpu.memory_space<vmem>>, vector<1x32xf32>
    %17 = vector.broadcast %16 : vector<1x32xf32> to vector<15x32xf32>
    %18 = arith.addf %15, %17 : vector<15x32xf32>
    %cst_15 = arith.constant 0.000000e+00 : f32
    %19 = vector.broadcast %cst_15 : f32 to vector<15x32xf32>
    %20 = arith.maximumf %18, %19 : vector<15x32xf32>
    %c0_16 = arith.constant 0 : index
    %c0_17 = arith.constant 0 : index
    %21 = vector.load %arg4[%c0_16, %c0_17] : memref<15x32xf32, #tpu.memory_space<vmem>>, vector<15x32xf32>
    tpu.vector_store %arg4[%c0_16, %c0_17], %20 {strides = array<i32>} : memref<15x32xf32, #tpu.memory_space<vmem>>, vector<15x32xf32>,
    return
  }
  func.func @transform_0(%arg0: i32) -> (i32, i32, i32) {
    %c0_i32 = arith.constant 0 : i32
    %c0_i32_0 = arith.constant 0 : i32
    %c0_i32_1 = arith.constant 0 : i32
    return %c0_i32, %arg0, %c0_i32_0 : i32, i32, i32
  }
  func.func @transform_1(%arg0: i32) -> (i32, i32) {
    %c0_i32 = arith.constant 0 : i32
    %c0_i32_0 = arith.constant 0 : i32
    %c0_i32_1 = arith.constant 0 : i32
    return %c0_i32, %c0_i32_0 : i32, i32
  }
  func.func @transform_2(%arg0: i32) -> (i32, i32) {
    %c0_i32 = arith.constant 0 : i32
    %c0_i32_0 = arith.constant 0 : i32
    %c0_i32_1 = arith.constant 0 : i32
    return %c0_i32, %c0_i32_0 : i32, i32
  }
  func.func @transform_3(%arg0: i32) -> (i32, i32) {
    %c0_i32 = arith.constant 0 : i32
    %c0_i32_0 = arith.constant 0 : i32
    return %arg0, %c0_i32 : i32, i32
  }
}

module attributes {stable_mosaic.version = 11 : i64} {
  func.func @_head_kernel(%arg0: i32, %arg1: memref<1x5x32xf32, #tpu.memory_space<vmem>>, %arg2: memref<10x1x32xf32, #tpu.memory_space<vmem>>, %arg3: memref<10x5x1xf32, #tpu.memory_space<vmem>>) attributes {dimension_semantics = [#tpu.dimension_semantics<arbitrary>], iteration_bounds = array<i64: 1>, scalar_prefetch = 0 : i64, scratch_operands = 0 : i64, tpu.core_type = #tpu.core_type<tc>, window_params = [{pipeline_mode = #tpu.pipeline_mode<synchronous>, transform_indices = @transform_0, window_bounds = array<i64: 1, 5, 32>}, {pipeline_mode = #tpu.pipeline_mode<synchronous>, transform_indices = @transform_1, window_bounds = array<i64: 10, 1, 32>}, {pipeline_mode = #tpu.pipeline_mode<synchronous>, transform_indices = @transform_2, window_bounds = array<i64: 10, 5, 1>}]} {
    %c0 = arith.constant 0 : index
    %c0_0 = arith.constant 0 : index
    %c0_1 = arith.constant 0 : index
    %0 = vector.load %arg1[%c0, %c0_0, %c0_1] : memref<1x5x32xf32, #tpu.memory_space<vmem>>, vector<1x5x32xf32>
    %c0_2 = arith.constant 0 : index
    %c0_3 = arith.constant 0 : index
    %c0_4 = arith.constant 0 : index
    %1 = vector.load %arg2[%c0_2, %c0_3, %c0_4] : memref<10x1x32xf32, #tpu.memory_space<vmem>>, vector<10x1x32xf32>
    %2 = arith.mulf %0, %0 : vector<1x5x32xf32>
    %cst = arith.constant dense<0.000000e+00> : vector<1x5xf32>
    %3 = vector.multi_reduction <add>, %2, %cst [2] : vector<1x5x32xf32> to vector<1x5xf32>
    %4 = vector.shape_cast %3 : vector<1x5xf32> to vector<1x5x1xf32>
    %cst_5 = arith.constant 2.000000e+00 : f32
    %5 = vector.broadcast %cst_5 : f32 to vector<1x5x32xf32>
    %6 = arith.mulf %5, %0 : vector<1x5x32xf32>
    %cst_6 = arith.constant 0.00999999977 : f32
    %7 = vector.broadcast %cst_6 : f32 to vector<1x5x1xf32>
    %8 = arith.mulf %7, %4 : vector<1x5x1xf32>
    %cst_7 = arith.constant 1.000000e+00 : f32
    %9 = vector.broadcast %cst_7 : f32 to vector<1x5x1xf32>
    %10 = arith.addf %9, %8 : vector<1x5x1xf32>
    %11 = vector.broadcast %10 : vector<1x5x1xf32> to vector<1x5x32xf32>
    %12 = arith.divf %6, %11 : vector<1x5x32xf32>
    %13 = arith.mulf %12, %12 : vector<1x5x32xf32>
    %cst_8 = arith.constant dense<0.000000e+00> : vector<1x5xf32>
    %14 = vector.multi_reduction <add>, %13, %cst_8 [2] : vector<1x5x32xf32> to vector<1x5xf32>
    %15 = vector.shape_cast %14 : vector<1x5xf32> to vector<1x5x1xf32>
    %cst_9 = arith.constant 0.00999999977 : f32
    %16 = vector.broadcast %cst_9 : f32 to vector<1x5x1xf32>
    %17 = arith.mulf %16, %15 : vector<1x5x1xf32>
    %cst_10 = arith.constant 1.000000e+00 : f32
    %18 = vector.broadcast %cst_10 : f32 to vector<1x5x1xf32>
    %19 = arith.subf %18, %17 : vector<1x5x1xf32>
    %cst_11 = arith.constant 1.000000e-10 : f32
    %20 = vector.broadcast %cst_11 : f32 to vector<1x5x1xf32>
    %21 = arith.maximumf %19, %20 : vector<1x5x1xf32>
    %22 = math.rsqrt %21 : vector<1x5x1xf32>
    %23 = vector.broadcast %22 : vector<1x5x1xf32> to vector<1x5x32xf32>
    %24 = arith.mulf %23, %12 : vector<1x5x32xf32>
    %25 = vector.broadcast %22 : vector<1x5x1xf32> to vector<1x5x32xf32>
    %26 = arith.divf %24, %25 : vector<1x5x32xf32>
    %27 = arith.mulf %26, %26 : vector<1x5x32xf32>
    %cst_12 = arith.constant dense<0.000000e+00> : vector<1x5xf32>
    %28 = vector.multi_reduction <add>, %27, %cst_12 [2] : vector<1x5x32xf32> to vector<1x5xf32>
    %29 = vector.shape_cast %28 : vector<1x5xf32> to vector<1x5x1xf32>
    %cst_13 = arith.constant 0.00999999977 : f32
    %30 = vector.broadcast %cst_13 : f32 to vector<1x5x1xf32>
    %31 = arith.mulf %30, %29 : vector<1x5x1xf32>
    %cst_14 = arith.constant 1.000000e+00 : f32
    %32 = vector.broadcast %cst_14 : f32 to vector<1x5x1xf32>
    %33 = arith.subf %32, %31 : vector<1x5x1xf32>
    %cst_15 = arith.constant 0.000000e+00 : f32
    %34 = vector.broadcast %cst_15 : f32 to vector<1x5x1xf32>
    %35 = arith.maximumf %33, %34 : vector<1x5x1xf32>
    %36 = math.sqrt %35 : vector<1x5x1xf32>
    %cst_16 = arith.constant 1.000000e+00 : f32
    %37 = vector.broadcast %cst_16 : f32 to vector<1x5x1xf32>
    %38 = arith.addf %37, %36 : vector<1x5x1xf32>
    %39 = vector.broadcast %38 : vector<1x5x1xf32> to vector<1x5x32xf32>
    %40 = arith.divf %26, %39 : vector<1x5x32xf32>
    %cst_17 = arith.constant 0.000000e+00 : f32
    %41 = vector.broadcast %cst_17 : f32 to vector<10x1x32xf32>
    %42 = arith.subf %41, %1 : vector<10x1x32xf32>
    %43 = vector.broadcast %42 : vector<10x1x32xf32> to vector<10x5x32xf32>
    %44 = vector.broadcast %40 : vector<1x5x32xf32> to vector<10x5x32xf32>
    %45 = arith.mulf %43, %44 : vector<10x5x32xf32>
    %cst_18 = arith.constant dense<0.000000e+00> : vector<10x5xf32>
    %46 = vector.multi_reduction <add>, %45, %cst_18 [2] : vector<10x5x32xf32> to vector<10x5xf32>
    %47 = vector.shape_cast %46 : vector<10x5xf32> to vector<10x5x1xf32>
    %48 = arith.mulf %42, %42 : vector<10x1x32xf32>
    %cst_19 = arith.constant dense<0.000000e+00> : vector<10x1xf32>
    %49 = vector.multi_reduction <add>, %48, %cst_19 [2] : vector<10x1x32xf32> to vector<10x1xf32>
    %50 = vector.shape_cast %49 : vector<10x1xf32> to vector<10x1x1xf32>
    %51 = arith.mulf %40, %40 : vector<1x5x32xf32>
    %cst_20 = arith.constant dense<0.000000e+00> : vector<1x5xf32>
    %52 = vector.multi_reduction <add>, %51, %cst_20 [2] : vector<1x5x32xf32> to vector<1x5xf32>
    %53 = vector.shape_cast %52 : vector<1x5xf32> to vector<1x5x1xf32>
    %cst_21 = arith.constant 2.000000e-02 : f32
    %54 = vector.broadcast %cst_21 : f32 to vector<10x5x1xf32>
    %55 = arith.mulf %54, %47 : vector<10x5x1xf32>
    %cst_22 = arith.constant 1.000000e+00 : f32
    %56 = vector.broadcast %cst_22 : f32 to vector<10x5x1xf32>
    %57 = arith.addf %56, %55 : vector<10x5x1xf32>
    %cst_23 = arith.constant 0.00999999977 : f32
    %58 = vector.broadcast %cst_23 : f32 to vector<1x5x1xf32>
    %59 = arith.mulf %58, %53 : vector<1x5x1xf32>
    %60 = vector.broadcast %59 : vector<1x5x1xf32> to vector<10x5x1xf32>
    %61 = arith.addf %57, %60 : vector<10x5x1xf32>
    %cst_24 = arith.constant 0.00999999977 : f32
    %62 = vector.broadcast %cst_24 : f32 to vector<10x1x1xf32>
    %63 = arith.mulf %62, %50 : vector<10x1x1xf32>
    %cst_25 = arith.constant 1.000000e+00 : f32
    %64 = vector.broadcast %cst_25 : f32 to vector<10x1x1xf32>
    %65 = arith.subf %64, %63 : vector<10x1x1xf32>
    %66 = vector.broadcast %61 : vector<10x5x1xf32> to vector<10x5x32xf32>
    %67 = vector.broadcast %42 : vector<10x1x32xf32> to vector<10x5x32xf32>
    %68 = arith.mulf %66, %67 : vector<10x5x32xf32>
    %69 = vector.broadcast %65 : vector<10x1x1xf32> to vector<10x5x32xf32>
    %70 = vector.broadcast %40 : vector<1x5x32xf32> to vector<10x5x32xf32>
    %71 = arith.mulf %69, %70 : vector<10x5x32xf32>
    %72 = arith.addf %68, %71 : vector<10x5x32xf32>
    %cst_26 = arith.constant 2.000000e-02 : f32
    %73 = vector.broadcast %cst_26 : f32 to vector<10x5x1xf32>
    %74 = arith.mulf %73, %47 : vector<10x5x1xf32>
    %cst_27 = arith.constant 1.000000e+00 : f32
    %75 = vector.broadcast %cst_27 : f32 to vector<10x5x1xf32>
    %76 = arith.addf %75, %74 : vector<10x5x1xf32>
    %cst_28 = arith.constant 9.99999974E-5 : f32
    %77 = vector.broadcast %cst_28 : f32 to vector<10x1x1xf32>
    %78 = arith.mulf %77, %50 : vector<10x1x1xf32>
    %79 = vector.broadcast %78 : vector<10x1x1xf32> to vector<10x5x1xf32>
    %80 = vector.broadcast %53 : vector<1x5x1xf32> to vector<10x5x1xf32>
    %81 = arith.mulf %79, %80 : vector<10x5x1xf32>
    %82 = arith.addf %76, %81 : vector<10x5x1xf32>
    %83 = arith.mulf %72, %72 : vector<10x5x32xf32>
    %cst_29 = arith.constant dense<0.000000e+00> : vector<10x5xf32>
    %84 = vector.multi_reduction <add>, %83, %cst_29 [2] : vector<10x5x32xf32> to vector<10x5xf32>
    %85 = vector.shape_cast %84 : vector<10x5xf32> to vector<10x5x1xf32>
    %86 = math.sqrt %85 : vector<10x5x1xf32>
    %cst_30 = arith.constant 9.99999974E-6 : f32
    %87 = vector.broadcast %cst_30 : f32 to vector<10x5x1xf32>
    %88 = arith.addf %82, %87 : vector<10x5x1xf32>
    %89 = tpu.reciprocal %88 {approx = true} : vector<10x5x1xf32> -> vector<10x5x1xf32>
    %90 = arith.mulf %86, %89 : vector<10x5x1xf32>
    %cst_31 = arith.constant 1.000000e-01 : f32
    %91 = vector.broadcast %cst_31 : f32 to vector<10x5x1xf32>
    %92 = arith.mulf %91, %90 : vector<10x5x1xf32>
    %cst_32 = arith.constant -0.999989986 : f32
    %cst_33 = arith.constant 0.999989986 : f32
    %93 = vector.broadcast %cst_32 : f32 to vector<10x5x1xf32>
    %94 = arith.maximumf %93, %92 : vector<10x5x1xf32>
    %95 = vector.broadcast %cst_33 : f32 to vector<10x5x1xf32>
    %96 = arith.minimumf %95, %94 : vector<10x5x1xf32>
    %97 = math.log1p %96 : vector<10x5x1xf32>
    %cst_34 = arith.constant 0.000000e+00 : f32
    %98 = vector.broadcast %cst_34 : f32 to vector<10x5x1xf32>
    %99 = arith.subf %98, %96 : vector<10x5x1xf32>
    %100 = math.log1p %99 : vector<10x5x1xf32>
    %101 = arith.subf %97, %100 : vector<10x5x1xf32>
    %cst_35 = arith.constant 5.000000e-01 : f32
    %102 = vector.broadcast %cst_35 : f32 to vector<10x5x1xf32>
    %103 = arith.mulf %102, %101 : vector<10x5x1xf32>
    %cst_36 = arith.constant -2.000000e+01 : f32
    %104 = vector.broadcast %cst_36 : f32 to vector<10x5x1xf32>
    %105 = arith.mulf %104, %103 : vector<10x5x1xf32>
    %c0_37 = arith.constant 0 : index
    %c0_38 = arith.constant 0 : index
    %c0_39 = arith.constant 0 : index
    %106 = vector.load %arg3[%c0_37, %c0_38, %c0_39] : memref<10x5x1xf32, #tpu.memory_space<vmem>>, vector<10x5x1xf32>
    tpu.vector_store %arg3[%c0_37, %c0_38, %c0_39], %105 {strides = array<i32>} : memref<10x5x1xf32, #tpu.memory_space<vmem>>, vector<10x5x1xf32>,
    return
  }
  func.func @transform_0(%arg0: i32) -> (i32, i32, i32) {
    %c0_i32 = arith.constant 0 : i32
    %c0_i32_0 = arith.constant 0 : i32
    %c0_i32_1 = arith.constant 0 : i32
    %c0_i32_2 = arith.constant 0 : i32
    return %c0_i32, %c0_i32_0, %c0_i32_1 : i32, i32, i32
  }
  func.func @transform_1(%arg0: i32) -> (i32, i32, i32) {
    %c0_i32 = arith.constant 0 : i32
    %c0_i32_0 = arith.constant 0 : i32
    %c0_i32_1 = arith.constant 0 : i32
    %c0_i32_2 = arith.constant 0 : i32
    return %c0_i32, %c0_i32_0, %c0_i32_1 : i32, i32, i32
  }
  func.func @transform_2(%arg0: i32) -> (i32, i32, i32) {
    %c0_i32 = arith.constant 0 : i32
    %c0_i32_0 = arith.constant 0 : i32
    %c0_i32_1 = arith.constant 0 : i32
    %c0_i32_2 = arith.constant 0 : i32
    return %c0_i32, %c0_i32_0, %c0_i32_1 : i32, i32, i32
  }
}

</mosaic_0001>

<llo_original>
// kernel: hypnet_forward.5
$region0: #{hypnet_forward.5}
  #allocation0 [shape = 'u32[]', space=smem, size = 0x4, offset = 0x4, fixed_abs, tag = 'smem constant byte address 0x4 - core index']
  #allocation1 [shape = 'u32[72,128]{1,0:T(1,128)}', space=vmem, size = 0x9000, scoped, tag = 'internal scratch']
  %s0 = inlined_call_operand.vmem [shape: f32[4,960,36], index: 0, kind: input, shape index: {}]
  %s1 = inlined_call_operand.vmem [shape: f32[36,32], index: 1, kind: input, shape index: {}]
  %s2 = inlined_call_operand.vmem [shape: f32[1,32], index: 2, kind: input, shape index: {}]
  %s3 = inlined_call_operand.vmem [shape: f32[960,32], index: 3, kind: output, shape index: {}]
  %s4 = sld [smem:[#allocation0]]
  $region83: #{hypnet_forward.5} parent=0
    _
  %s6 = ssub.s32 1, %s4
  %s7 = scalar_select 0, %s6, %s4
  $region1: #{hypnet_forward.5} parent=0
    #allocation2 [shape = 'u8[1966080]{0}', space=vmem, size = 0x1e0000, scoped, tag = 'input window, operand 0']
    loop: start=0, step=1, limit=4
    $region2: #{hypnet_forward.5} parent=1 // loop_pre_header
      _
    $region3: #{hypnet_forward.5} parent=1 // loop_header
      %s9 = sphi 0, %s13
      %p10 = scmp.ge.s32.totalorder %s9, 4
      %s19 = sphi 0, %s21
      %s22 = sphi 0, %s19
      %s23 = sphi 0, %s22
      %s39 = sphi 0, %s23
      %s43 = sphi 0, %s43
      %s45 = sphi 0, %s43
      %s46 = sphi 0, %s45
      %s60 = sphi 0, %s46
      %s64 = sphi 0, %s64
      %s66 = sphi 0, %s64
      %s67 = sphi 0, %s66
      %s81 = sphi 0, %s67
      %s87 = sphi 0, %s89
      %s90 = sphi 0, %s87
      %s91 = sphi 0, %s90
      %s107 = sphi 0, %s91
    $region4: #{hypnet_forward.5} parent=1 // loop_header_branch
      %12 = sbr.rel (%p10) target = $region8
    $region5: #{hypnet_forward.5} parent=1 // loop_body
      %s14 = ssub.s32 %s9, 1
      %s15 = ssub.s32 %s9, 2
      %s16 = sadd.s32 %s9, 1
      %s17 = ssub.s32 %s9, %s16
      %p18 = scmp.eq.s32.totalorder %s17, 0
      %s20 = sadd.s32 %s19, 1
      %s21 = scalar_select %p18, %s19, %s20
      %p24 = pneg %p18
      %p25 = scmp.eq.s32.totalorder %s9, 1
      %p26 = por %p24, %p25
      %p27 = scmp.ne.s32.totalorder %s19, %s22
      %p28 = scmp.eq.s32.totalorder %s9, 0
      %p29 = por %p27, %p28
      %p30 = scmp.ne.s32.totalorder %s19, %s22
      %p31 = scmp.eq.s32.totalorder %s14, 1
      %p32 = por %p30, %p31
      %p33 = scmp.ne.s32.totalorder %s22, %s23
      %p34 = scmp.eq.s32.totalorder %s14, 0
      %p35 = por %p33, %p34
      %p36 = scmp.ne.s32.totalorder %s22, %s23
      %p37 = scmp.eq.s32.totalorder %s15, 1
      %p38 = por %p36, %p37
      %p40 = scmp.ne.s32.totalorder %s23, %s39
      %p41 = scmp.eq.s32.totalorder %s15, 0
      %p42 = por %p40, %p41
      %s44 = sadd.s32 %s43, 1
      %p47 = scmp.eq.s32.totalorder %s9, 1
      %p48 = scmp.ne.s32.totalorder %s43, %s45
      %p49 = scmp.eq.s32.totalorder %s9, 0
      %p50 = por %p48, %p49
      %p51 = scmp.ne.s32.totalorder %s43, %s45
      %p52 = scmp.eq.s32.totalorder %s14, 1
      %p53 = por %p51, %p52
      %p54 = scmp.ne.s32.totalorder %s45, %s46
      %p55 = scmp.eq.s32.totalorder %s14, 0
      %p56 = por %p54, %p55
      %p57 = scmp.ne.s32.totalorder %s45, %s46
      %p58 = scmp.eq.s32.totalorder %s15, 1
      %p59 = por %p57, %p58
      %p61 = scmp.ne.s32.totalorder %s46, %s60
      %p62 = scmp.eq.s32.totalorder %s15, 0
      %p63 = por %p61, %p62
      %s65 = sadd.s32 %s64, 1
      %p68 = scmp.eq.s32.totalorder %s9, 1
      %p69 = scmp.ne.s32.totalorder %s64, %s66
      %p70 = scmp.eq.s32.totalorder %s9, 0
      %p71 = por %p69, %p70
      %p72 = scmp.ne.s32.totalorder %s64, %s66
      %p73 = scmp.eq.s32.totalorder %s14, 1
      %p74 = por %p72, %p73
      %p75 = scmp.ne.s32.totalorder %s66, %s67
      %p76 = scmp.eq.s32.totalorder %s14, 0
      %p77 = por %p75, %p76
      %p78 = scmp.ne.s32.totalorder %s66, %s67
      %p79 = scmp.eq.s32.totalorder %s15, 1
      %p80 = por %p78, %p79
      %p82 = scmp.ne.s32.totalorder %s67, %s81
      %p83 = scmp.eq.s32.totalorder %s15, 0
      %p84 = por %p82, %p83
      %s85 = ssub.s32 %s9, %s16
      %p86 = scmp.eq.s32.totalorder %s85, 0
      %s88 = sadd.s32 %s87, 1
      %s89 = scalar_select %p86, %s87, %s88
      %p92 = pneg %p86
      %p93 = scmp.eq.s32.totalorder %s9, 1
      %p94 = por %p92, %p93
      %p95 = scmp.ne.s32.totalorder %s87, %s90
      %p96 = scmp.eq.s32.totalorder %s9, 0
      %p97 = por %p95, %p96
      %p98 = scmp.ne.s32.totalorder %s87, %s90
      %p99 = scmp.eq.s32.totalorder %s14, 1
      %p100 = por %p98, %p99
      %p101 = scmp.ne.s32.totalorder %s90, %s91
      %p102 = scmp.eq.s32.totalorder %s14, 0
      %p103 = por %p101, %p102
      %p104 = scmp.ne.s32.totalorder %s90, %s91
      %p105 = scmp.eq.s32.totalorder %s15, 1
      %p106 = por %p104, %p105
      %p108 = scmp.ne.s32.totalorder %s91, %s107
      %p109 = scmp.eq.s32.totalorder %s15, 0
      %p110 = por %p108, %p109
      %p111 = scmp.le.s32.totalorder 1, %s9
      %p112 = scmp.lt.s32.totalorder %s9, 3
      %p113 = pnand %p111, %p112
      %p114 = pneg %p113
      // Predicated region
      $region9: #{hypnet_forward.5} parent=5 // pred_check
        _
      $region10: #{hypnet_forward.5} parent=5 // pred_check_branch
        %116 = sbr.rel (%p113) target = $region12
      $region11: #{hypnet_forward.5} parent=5 // pred_region
        %s117 = ssub.s32 %s9, 1
        // Predicated region
        $region13: #{hypnet_forward.5} parent=11 // pred_check
          %p118 = pneg %p56
        $region14: #{hypnet_forward.5} parent=11 // pred_check_branch
          %120 = sbr.rel (%p118) target = $region16
        $region15: #{hypnet_forward.5} parent=11 // pred_region
          _
        $region16: #{hypnet_forward.5} parent=11 // pred_fallthru
          _
        // Predicated region
        $region17: #{hypnet_forward.5} parent=11 // pred_check
          %p121 = pneg %p77
        $region18: #{hypnet_forward.5} parent=11 // pred_check_branch
          %123 = sbr.rel (%p121) target = $region20
        $region19: #{hypnet_forward.5} parent=11 // pred_region
          _
        $region20: #{hypnet_forward.5} parent=11 // pred_fallthru
          _
      $region12: #{hypnet_forward.5} parent=5 // pred_fallthru
        _
      %p124 = scmp.lt.s32.totalorder %s9, 2
      // Predicated region
      $region21: #{hypnet_forward.5} parent=5 // pred_check
        %p125 = pneg %p124
      $region22: #{hypnet_forward.5} parent=5 // pred_check_branch
        %127 = sbr.rel (%p125) target = $region24
      $region23: #{hypnet_forward.5} parent=5 // pred_region
        // Predicated region
        $region25: #{hypnet_forward.5} parent=23 // pred_check
          %p128 = pneg %p29
        $region26: #{hypnet_forward.5} parent=23 // pred_check_branch
          %130 = sbr.rel (%p128) target = $region28
        $region27: #{hypnet_forward.5} parent=23 // pred_region
          %s131 = sand.u32 %s19, 1
          %s132 = sand.u32 %s19, 1
          %s133 = smul.addr %s132, 1920
          %s134 = scalar_lea.vmem [#allocation2], %s133
          %s135 = smul.u32 60, %s9
          %s136 = smul.addr %s135, 8
          %s137 = scalar_lea.vmem %s0, %s136
          // Predicated region
          $region29: #{hypnet_forward.5} parent=27 // pred_check
            _
          $region30: #{hypnet_forward.5} parent=27 // pred_check_branch
            %139 = sbr.rel (0) target = $region32
          $region31: #{hypnet_forward.5} parent=27 // pred_region
            // Predicated region
            $region33: #{hypnet_forward.5} parent=31 // pred_check
              _
            $region34: #{hypnet_forward.5} parent=31 // pred_check_branch
              %141 = sbr.rel (0) target = $region36
            $region35: #{hypnet_forward.5} parent=31 // pred_region
              // Predicated region
              $region48: #{hypnet_forward.5} parent=35 // pred_check
                _
              $region49: #{hypnet_forward.5} parent=35 // pred_check_branch
                %635 = sbr.rel (0) target = $region51
              $region50: #{hypnet_forward.5} parent=35 // pred_region
                loop: start=0, step=1, limit=1
                $region52: #{hypnet_forward.5} parent=50 // loop_pre_header
                  _
                $region53: #{hypnet_forward.5} parent=50 // loop_header
                  %s637 = sphi 0, %s641
                  %p638 = scmp.ge.s32.totalorder %s637, 1
                  %s642 = sphi %s137, %s137
                  %s643 = sphi %s134, %s134
                $region54: #{hypnet_forward.5} parent=50 // loop_header_branch
                  %640 = sbr.rel (%p638) target = $region58
                $region55: #{hypnet_forward.5} parent=50 // loop_body
                  %v644 = vld [vmem:[%s642] sm:$0xff]
                  %645 = vst [vmem:[%s643] sm:$0xff] %v644
                  %v646 = vld [vmem:[%s642 + $0x8] sm:$0xff]
                  %647 = vst [vmem:[%s643 + $0x8] sm:$0xff] %v646
                  %v648 = vld [vmem:[%s642 + $0x10] sm:$0xff]
                  %649 = vst [vmem:[%s643 + $0x10] sm:$0xff] %v648
                  %v650 = vld [vmem:[%s642 + $0x18] sm:$0xff]
                  %651 = vst [vmem:[%s643 + $0x18] sm:$0xff] %v650
                  %v652 = vld [vmem:[%s642 + $0x20] sm:$0xff]
                  %653 = vst [vmem:[%s643 + $0x20] sm:$0xff] %v652
                  %v654 = vld [vmem:[%s642 + $0x28] sm:$0xff]
                  %655 = vst [vmem:[%s643 + $0x28] sm:$0xff] %v654
                  %v656 = vld [vmem:[%s642 + $0x30] sm:$0xff]
                  %657 = vst [vmem:[%s643 + $0x30] sm:$0xff] %v656
                  %v658 = vld [vmem:[%s642 + $0x38] sm:$0xff]
                  %659 = vst [vmem:[%s643 + $0x38] sm:$0xff] %v658
                  %v660 = vld [vmem:[%s642 + $0x40] sm:$0xff]
                  %661 = vst [vmem:[%s643 + $0x40] sm:$0xff] %v660
                  %v662 = vld [vmem:[%s642 + $0x48] sm:$0xff]
                  %663 = vst [vmem:[%s643 + $0x48] sm:$0xff] %v662
                  %v664 = vld [vmem:[%s642 + $0x50] sm:$0xff]
                  %665 = vst [vmem:[%s643 + $0x50] sm:$0xff] %v664
                  %v666 = vld [vmem:[%s642 + $0x58] sm:$0xff]
                  %667 = vst [vmem:[%s643 + $0x58] sm:$0xff] %v666
                  %v668 = vld [vmem:[%s642 + $0x60] sm:$0xff]
                  %669 = vst [vmem:[%s643 + $0x60] sm:$0xff] %v668
                  %v670 = vld [vmem:[%s642 + $0x68] sm:$0xff]
                  %671 = vst [vmem:[%s643 + $0x68] sm:$0xff] %v670
                  %v672 = vld [vmem:[%s642 + $0x70] sm:$0xff]
                  %673 = vst [vmem:[%s643 + $0x70] sm:$0xff] %v672
                  %v674 = vld [vmem:[%s642 + $0x78] sm:$0xff]
                  %675 = vst [vmem:[%s643 + $0x78] sm:$0xff] %v674
                  %v676 = vld [vmem:[%s642 + $0x80] sm:$0xff]
                  %677 = vst [vmem:[%s643 + $0x80] sm:$0xff] %v676
                  %v678 = vld [vmem:[%s642 + $0x88] sm:$0xff]
                  %679 = vst [vmem:[%s643 + $0x88] sm:$0xff] %v678
                  %v680 = vld [vmem:[%s642 + $0x90] sm:$0xff]
                  %681 = vst [vmem:[%s643 + $0x90] sm:$0xff] %v680
                  %v682 = vld [vmem:[%s642 + $0x98] sm:$0xff]
                  %683 = vst [vmem:[%s643 + $0x98] sm:$0xff] %v682
                  %v684 = vld [vmem:[%s642 + $0xa0] sm:$0xff]
                  %685 = vst [vmem:[%s643 + $0xa0] sm:$0xff] %v684
                  %v686 = vld [vmem:[%s642 + $0xa8] sm:$0xff]
                  %687 = vst [vmem:[%s643 + $0xa8] sm:$0xff] %v686
                  %v688 = vld [vmem:[%s642 + $0xb0] sm:$0xff]
                  %689 = vst [vmem:[%s643 + $0xb0] sm:$0xff] %v688
                  %v690 = vld [vmem:[%s642 + $0xb8] sm:$0xff]
                  %691 = vst [vmem:[%s643 + $0xb8] sm:$0xff] %v690
                  %v692 = vld [vmem:[%s642 + $0xc0] sm:$0xff]
                  %693 = vst [vmem:[%s643 + $0xc0] sm:$0xff] %v692
                  %v694 = vld [vmem:[%s642 + $0xc8] sm:$0xff]
                  %695 = vst [vmem:[%s643 + $0xc8] sm:$0xff] %v694
                  %v696 = vld [vmem:[%s642 + $0xd0] sm:$0xff]
                  %697 = vst [vmem:[%s643 + $0xd0] sm:$0xff] %v696
                  %v698 = vld [vmem:[%s642 + $0xd8] sm:$0xff]
                  %699 = vst [vmem:[%s643 + $0xd8] sm:$0xff] %v698
                  %v700 = vld [vmem:[%s642 + $0xe0] sm:$0xff]
                  %701 = vst [vmem:[%s643 + $0xe0] sm:$0xff] %v700
                  %v702 = vld [vmem:[%s642 + $0xe8] sm:$0xff]
                  %703 = vst [vmem:[%s643 + $0xe8] sm:$0xff] %v702
                  %v704 = vld [vmem:[%s642 + $0xf0] sm:$0xff]
                  %705 = vst [vmem:[%s643 + $0xf0] sm:$0xff] %v704
                  %v706 = vld [vmem:[%s642 + $0xf8] sm:$0xff]
                  %707 = vst [vmem:[%s643 + $0xf8] sm:$0xff] %v706
                  %v708 = vld [vmem:[%s642 + $0x100] sm:$0xff]
                  %709 = vst [vmem:[%s643 + $0x100] sm:$0xff] %v708
                  %v710 = vld [vmem:[%s642 + $0x108] sm:$0xff]
                  %711 = vst [vmem:[%s643 + $0x108] sm:$0xff] %v710
                  %v712 = vld [vmem:[%s642 + $0x110] sm:$0xff]
                  %713 = vst [vmem:[%s643 + $0x110] sm:$0xff] %v712
                  %v714 = vld [vmem:[%s642 + $0x118] sm:$0xff]
                  %715 = vst [vmem:[%s643 + $0x118] sm:$0xff] %v714
                  %v716 = vld [vmem:[%s642 + $0x120] sm:$0xff]
                  %717 = vst [vmem:[%s643 + $0x120] sm:$0xff] %v716
                  %v718 = vld [vmem:[%s642 + $0x128] sm:$0xff]
                  %719 = vst [vmem:[%s643 + $0x128] sm:$0xff] %v718
                  %v720 = vld [vmem:[%s642 + $0x130] sm:$0xff]
                  %721 = vst [vmem:[%s643 + $0x130] sm:$0xff] %v720
                  %v722 = vld [vmem:[%s642 + $0x138] sm:$0xff]
                  %723 = vst [vmem:[%s643 + $0x138] sm:$0xff] %v722
                  %v724 = vld [vmem:[%s642 + $0x140] sm:$0xff]
                  %725 = vst [vmem:[%s643 + $0x140] sm:$0xff] %v724
                  %v726 = vld [vmem:[%s642 + $0x148] sm:$0xff]
                  %727 = vst [vmem:[%s643 + $0x148] sm:$0xff] %v726
                  %v728 = vld [vmem:[%s642 + $0x150] sm:$0xff]
                  %729 = vst [vmem:[%s643 + $0x150] sm:$0xff] %v728
                  %v730 = vld [vmem:[%s642 + $0x158] sm:$0xff]
                  %731 = vst [vmem:[%s643 + $0x158] sm:$0xff] %v730
                  %v732 = vld [vmem:[%s642 + $0x160] sm:$0xff]
                  %733 = vst [vmem:[%s643 + $0x160] sm:$0xff] %v732
                  %v734 = vld [vmem:[%s642 + $0x168] sm:$0xff]
                  %735 = vst [vmem:[%s643 + $0x168] sm:$0xff] %v734
                  %v736 = vld [vmem:[%s642 + $0x170] sm:$0xff]
                  %737 = vst [vmem:[%s643 + $0x170] sm:$0xff] %v736
                  %v738 = vld [vmem:[%s642 + $0x178] sm:$0xff]
                  %739 = vst [vmem:[%s643 + $0x178] sm:$0xff] %v738
                  %v740 = vld [vmem:[%s642 + $0x180] sm:$0xff]
                  %741 = vst [vmem:[%s643 + $0x180] sm:$0xff] %v740
                  %v742 = vld [vmem:[%s642 + $0x188] sm:$0xff]
                  %743 = vst [vmem:[%s643 + $0x188] sm:$0xff] %v742
                  %v744 = vld [vmem:[%s642 + $0x190] sm:$0xff]
                  %745 = vst [vmem:[%s643 + $0x190] sm:$0xff] %v744
                  %v746 = vld [vmem:[%s642 + $0x198] sm:$0xff]
                  %747 = vst [vmem:[%s643 + $0x198] sm:$0xff] %v746
                  %v748 = vld [vmem:[%s642 + $0x1a0] sm:$0xff]
                  %749 = vst [vmem:[%s643 + $0x1a0] sm:$0xff] %v748
                  %v750 = vld [vmem:[%s642 + $0x1a8] sm:$0xff]
                  %751 = vst [vmem:[%s643 + $0x1a8] sm:$0xff] %v750
                  %v752 = vld [vmem:[%s642 + $0x1b0] sm:$0xff]
                  %753 = vst [vmem:[%s643 + $0x1b0] sm:$0xff] %v752
                  %v754 = vld [vmem:[%s642 + $0x1b8] sm:$0xff]
                  %755 = vst [vmem:[%s643 + $0x1b8] sm:$0xff] %v754
                  %v756 = vld [vmem:[%s642 + $0x1c0] sm:$0xff]
                  %757 = vst [vmem:[%s643 + $0x1c0] sm:$0xff] %v756
                  %v758 = vld [vmem:[%s642 + $0x1c8] sm:$0xff]
                  %759 = vst [vmem:[%s643 + $0x1c8] sm:$0xff] %v758
                  %v760 = vld [vmem:[%s642 + $0x1d0] sm:$0xff]
                  %761 = vst [vmem:[%s643 + $0x1d0] sm:$0xff] %v760
                  %v762 = vld [vmem:[%s642 + $0x1d8] sm:$0xff]
                  %763 = vst [vmem:[%s643 + $0x1d8] sm:$0xff] %v762
                  %v764 = vld [vmem:[%s642 + $0x3c0] sm:$0xff]
                  %765 = vst [vmem:[%s643 + $0x1e0] sm:$0xff] %v764
                  %v766 = vld [vmem:[%s642 + $0x3c8] sm:$0xff]
                  %767 = vst [vmem:[%s643 + $0x1e8] sm:$0xff] %v766
                  %v768 = vld [vmem:[%s642 + $0x3d0] sm:$0xff]
                  %769 = vst [vmem:[%s643 + $0x1f0] sm:$0xff] %v768
                  %v770 = vld [vmem:[%s642 + $0x3d8] sm:$0xff]
                  %771 = vst [vmem:[%s643 + $0x1f8] sm:$0xff] %v770
                  %v772 = vld [vmem:[%s642 + $0x3e0] sm:$0xff]
                  %773 = vst [vmem:[%s643 + $0x200] sm:$0xff] %v772
                  %v774 = vld [vmem:[%s642 + $0x3e8] sm:$0xff]
                  %775 = vst [vmem:[%s643 + $0x208] sm:$0xff] %v774
                  %v776 = vld [vmem:[%s642 + $0x3f0] sm:$0xff]
                  %777 = vst [vmem:[%s643 + $0x210] sm:$0xff] %v776
                  %v778 = vld [vmem:[%s642 + $0x3f8] sm:$0xff]
                  %779 = vst [vmem:[%s643 + $0x218] sm:$0xff] %v778
                  %v780 = vld [vmem:[%s642 + $0x400] sm:$0xff]
                  %781 = vst [vmem:[%s643 + $0x220] sm:$0xff] %v780
                  %v782 = vld [vmem:[%s642 + $0x408] sm:$0xff]
                  %783 = vst [vmem:[%s643 + $0x228] sm:$0xff] %v782
                  %v784 = vld [vmem:[%s642 + $0x410] sm:$0xff]
                  %785 = vst [vmem:[%s643 + $0x230] sm:$0xff] %v784
                  %v786 = vld [vmem:[%s642 + $0x418] sm:$0xff]
                  %787 = vst [vmem:[%s643 + $0x238] sm:$0xff] %v786
                  %v788 = vld [vmem:[%s642 + $0x420] sm:$0xff]
                  %789 = vst [vmem:[%s643 + $0x240] sm:$0xff] %v788
                  %v790 = vld [vmem:[%s642 + $0x428] sm:$0xff]
                  %791 = vst [vmem:[%s643 + $0x248] sm:$0xff] %v790
                  %v792 = vld [vmem:[%s642 + $0x430] sm:$0xff]
                  %793 = vst [vmem:[%s643 + $0x250] sm:$0xff] %v792
                  %v794 = vld [vmem:[%s642 + $0x438] sm:$0xff]
                  %795 = vst [vmem:[%s643 + $0x258] sm:$0xff] %v794
                  %v796 = vld [vmem:[%s642 + $0x440] sm:$0xff]
                  %797 = vst [vmem:[%s643 + $0x260] sm:$0xff] %v796
                  %v798 = vld [vmem:[%s642 + $0x448] sm:$0xff]
                  %799 = vst [vmem:[%s643 + $0x268] sm:$0xff] %v798
                  %v800 = vld [vmem:[%s642 + $0x450] sm:$0xff]
                  %801 = vst [vmem:[%s643 + $0x270] sm:$0xff] %v800
                  %v802 = vld [vmem:[%s642 + $0x458] sm:$0xff]
                  %803 = vst [vmem:[%s643 + $0x278] sm:$0xff] %v802
                  %v804 = vld [vmem:[%s642 + $0x460] sm:$0xff]
                  %805 = vst [vmem:[%s643 + $0x280] sm:$0xff] %v804
                  %v806 = vld [vmem:[%s642 + $0x468] sm:$0xff]
                  %807 = vst [vmem:[%s643 + $0x288] sm:$0xff] %v806
                  %v808 = vld [vmem:[%s642 + $0x470] sm:$0xff]
                  %809 = vst [vmem:[%s643 + $0x290] sm:$0xff] %v808
                  %v810 = vld [vmem:[%s642 + $0x478] sm:$0xff]
                  %811 = vst [vmem:[%s643 + $0x298] sm:$0xff] %v810
                  %v812 = vld [vmem:[%s642 + $0x480] sm:$0xff]
                  %813 = vst [vmem:[%s643 + $0x2a0] sm:$0xff] %v812
                  %v814 = vld [vmem:[%s642 + $0x488] sm:$0xff]
                  %815 = vst [vmem:[%s643 + $0x2a8] sm:$0xff] %v814
                  %v816 = vld [vmem:[%s642 + $0x490] sm:$0xff]
                  %817 = vst [vmem:[%s643 + $0x2b0] sm:$0xff] %v816
                  %v818 = vld [vmem:[%s642 + $0x498] sm:$0xff]
                  %819 = vst [vmem:[%s643 + $0x2b8] sm:$0xff] %v818
                  %v820 = vld [vmem:[%s642 + $0x4a0] sm:$0xff]
                  %821 = vst [vmem:[%s643 + $0x2c0] sm:$0xff] %v820
                  %v822 = vld [vmem:[%s642 + $0x4a8] sm:$0xff]
                  %823 = vst [vmem:[%s643 + $0x2c8] sm:$0xff] %v822
                  %v824 = vld [vmem:[%s642 + $0x4b0] sm:$0xff]
                  %825 = vst [vmem:[%s643 + $0x2d0] sm:$0xff] %v824
                  %v826 = vld [vmem:[%s642 + $0x4b8] sm:$0xff]
                  %827 = vst [vmem:[%s643 + $0x2d8] sm:$0xff] %v826
                  %v828 = vld [vmem:[%s642 + $0x4c0] sm:$0xff]
                  %829 = vst [vmem:[%s643 + $0x2e0] sm:$0xff] %v828
                  %v830 = vld [vmem:[%s642 + $0x4c8] sm:$0xff]
                  %831 = vst [vmem:[%s643 + $0x2e8] sm:$0xff] %v830
                  %v832 = vld [vmem:[%s642 + $0x4d0] sm:$0xff]
                  %833 = vst [vmem:[%s643 + $0x2f0] sm:$0xff] %v832
                  %v834 = vld [vmem:[%s642 + $0x4d8] sm:$0xff]
                  %835 = vst [vmem:[%s643 + $0x2f8] sm:$0xff] %v834
                  %v836 = vld [vmem:[%s642 + $0x4e0] sm:$0xff]
                  %837 = vst [vmem:[%s643 + $0x300] sm:$0xff] %v836
                  %v838 = vld [vmem:[%s642 + $0x4e8] sm:$0xff]
                  %839 = vst [vmem:[%s643 + $0x308] sm:$0xff] %v838
                  %v840 = vld [vmem:[%s642 + $0x4f0] sm:$0xff]
                  %841 = vst [vmem:[%s643 + $0x310] sm:$0xff] %v840
                  %v842 = vld [vmem:[%s642 + $0x4f8] sm:$0xff]
                  %843 = vst [vmem:[%s643 + $0x318] sm:$0xff] %v842
                  %v844 = vld [vmem:[%s642 + $0x500] sm:$0xff]
                  %845 = vst [vmem:[%s643 + $0x320] sm:$0xff] %v844
                  %v846 = vld [vmem:[%s642 + $0x508] sm:$0xff]
                  %847 = vst [vmem:[%s643 + $0x328] sm:$0xff] %v846
                  %v848 = vld [vmem:[%s642 + $0x510] sm:$0xff]
                  %849 = vst [vmem:[%s643 + $0x330] sm:$0xff] %v848
                  %v850 = vld [vmem:[%s642 + $0x518] sm:$0xff]
                  %851 = vst [vmem:[%s643 + $0x338] sm:$0xff] %v850
                  %v852 = vld [vmem:[%s642 + $0x520] sm:$0xff]
                  %853 = vst [vmem:[%s643 + $0x340] sm:$0xff] %v852
                  %v854 = vld [vmem:[%s642 + $0x528] sm:$0xff]
                  %855 = vst [vmem:[%s643 + $0x348] sm:$0xff] %v854
                  %v856 = vld [vmem:[%s642 + $0x530] sm:$0xff]
                  %857 = vst [vmem:[%s643 + $0x350] sm:$0xff] %v856
                  %v858 = vld [vmem:[%s642 + $0x538] sm:$0xff]
                  %859 = vst [vmem:[%s643 + $0x358] sm:$0xff] %v858
                  %v860 = vld [vmem:[%s642 + $0x540] sm:$0xff]
                  %861 = vst [vmem:[%s643 + $0x360] sm:$0xff] %v860
                  %v862 = vld [vmem:[%s642 + $0x548] sm:$0xff]
                  %863 = vst [vmem:[%s643 + $0x368] sm:$0xff] %v862
                  %v864 = vld [vmem:[%s642 + $0x550] sm:$0xff]
                  %865 = vst [vmem:[%s643 + $0x370] sm:$0xff] %v864
                  %v866 = vld [vmem:[%s642 + $0x558] sm:$0xff]
                  %867 = vst [vmem:[%s643 + $0x378] sm:$0xff] %v866
                  %v868 = vld [vmem:[%s642 + $0x560] sm:$0xff]
                  %869 = vst [vmem:[%s643 + $0x380] sm:$0xff] %v868
                  %v870 = vld [vmem:[%s642 + $0x568] sm:$0xff]
                  %871 = vst [vmem:[%s643 + $0x388] sm:$0xff] %v870
                  %v872 = vld [vmem:[%s642 + $0x570] sm:$0xff]
                  %873 = vst [vmem:[%s643 + $0x390] sm:$0xff] %v872
                  %v874 = vld [vmem:[%s642 + $0x578] sm:$0xff]
                  %875 = vst [vmem:[%s643 + $0x398] sm:$0xff] %v874
                  %v876 = vld [vmem:[%s642 + $0x580] sm:$0xff]
                  %877 = vst [vmem:[%s643 + $0x3a0] sm:$0xff] %v876
                  %v878 = vld [vmem:[%s642 + $0x588] sm:$0xff]
                  %879 = vst [vmem:[%s643 + $0x3a8] sm:$0xff] %v878
                  %v880 = vld [vmem:[%s642 + $0x590] sm:$0xff]
                  %881 = vst [vmem:[%s643 + $0x3b0] sm:$0xff] %v880
                  %v882 = vld [vmem:[%s642 + $0x598] sm:$0xff]
                  %883 = vst [vmem:[%s643 + $0x3b8] sm:$0xff] %v882
                  %v884 = vld [vmem:[%s642 + $0x780] sm:$0xff]
                  %885 = vst [vmem:[%s643 + $0x3c0] sm:$0xff] %v884
                  %v886 = vld [vmem:[%s642 + $0x788] sm:$0xff]
                  %887 = vst [vmem:[%s643 + $0x3c8] sm:$0xff] %v886
                  %v888 = vld [vmem:[%s642 + $0x790] sm:$0xff]
                  %889 = vst [vmem:[%s643 + $0x3d0] sm:$0xff] %v888
                  %v890 = vld [vmem:[%s642 + $0x798] sm:$0xff]
                  %891 = vst [vmem:[%s643 + $0x3d8] sm:$0xff] %v890
                  %v892 = vld [vmem:[%s642 + $0x7a0] sm:$0xff]
                  %893 = vst [vmem:[%s643 + $0x3e0] sm:$0xff] %v892
                  %v894 = vld [vmem:[%s642 + $0x7a8] sm:$0xff]
                  %895 = vst [vmem:[%s643 + $0x3e8] sm:$0xff] %v894
                  %v896 = vld [vmem:[%s642 + $0x7b0] sm:$0xff]
                  %897 = vst [vmem:[%s643 + $0x3f0] sm:$0xff] %v896
                  %v898 = vld [vmem:[%s642 + $0x7b8] sm:$0xff]
                  %899 = vst [vmem:[%s643 + $0x3f8] sm:$0xff] %v898
                  %v900 = vld [vmem:[%s642 + $0x7c0] sm:$0xff]
                  %901 = vst [vmem:[%s643 + $0x400] sm:$0xff] %v900
                  %v902 = vld [vmem:[%s642 + $0x7c8] sm:$0xff]
                  %903 = vst [vmem:[%s643 + $0x408] sm:$0xff] %v902
                  %v904 = vld [vmem:[%s642 + $0x7d0] sm:$0xff]
                  %905 = vst [vmem:[%s643 + $0x410] sm:$0xff] %v904
                  %v906 = vld [vmem:[%s642 + $0x7d8] sm:$0xff]
                  %907 = vst [vmem:[%s643 + $0x418] sm:$0xff] %v906
                  %v908 = vld [vmem:[%s642 + $0x7e0] sm:$0xff]
                  %909 = vst [vmem:[%s643 + $0x420] sm:$0xff] %v908
                  %v910 = vld [vmem:[%s642 + $0x7e8] sm:$0xff]
                  %911 = vst [vmem:[%s643 + $0x428] sm:$0xff] %v910
                  %v912 = vld [vmem:[%s642 + $0x7f0] sm:$0xff]
                  %913 = vst [vmem:[%s643 + $0x430] sm:$0xff] %v912
                  %v914 = vld [vmem:[%s642 + $0x7f8] sm:$0xff]
                  %915 = vst [vmem:[%s643 + $0x438] sm:$0xff] %v914
                  %v916 = vld [vmem:[%s642 + $0x800] sm:$0xff]
                  %917 = vst [vmem:[%s643 + $0x440] sm:$0xff] %v916
                  %v918 = vld [vmem:[%s642 + $0x808] sm:$0xff]
                  %919 = vst [vmem:[%s643 + $0x448] sm:$0xff] %v918
                  %v920 = vld [vmem:[%s642 + $0x810] sm:$0xff]
                  %921 = vst [vmem:[%s643 + $0x450] sm:$0xff] %v920
                  %v922 = vld [vmem:[%s642 + $0x818] sm:$0xff]
                  %923 = vst [vmem:[%s643 + $0x458] sm:$0xff] %v922
                  %v924 = vld [vmem:[%s642 + $0x820] sm:$0xff]
                  %925 = vst [vmem:[%s643 + $0x460] sm:$0xff] %v924
                  %v926 = vld [vmem:[%s642 + $0x828] sm:$0xff]
                  %927 = vst [vmem:[%s643 + $0x468] sm:$0xff] %v926
                  %v928 = vld [vmem:[%s642 + $0x830] sm:$0xff]
                  %929 = vst [vmem:[%s643 + $0x470] sm:$0xff] %v928
                  %v930 = vld [vmem:[%s642 + $0x838] sm:$0xff]
                  %931 = vst [vmem:[%s643 + $0x478] sm:$0xff] %v930
                  %v932 = vld [vmem:[%s642 + $0x840] sm:$0xff]
                  %933 = vst [vmem:[%s643 + $0x480] sm:$0xff] %v932
                  %v934 = vld [vmem:[%s642 + $0x848] sm:$0xff]
                  %935 = vst [vmem:[%s643 + $0x488] sm:$0xff] %v934
                  %v936 = vld [vmem:[%s642 + $0x850] sm:$0xff]
                  %937 = vst [vmem:[%s643 + $0x490] sm:$0xff] %v936
                  %v938 = vld [vmem:[%s642 + $0x858] sm:$0xff]
                  %939 = vst [vmem:[%s643 + $0x498] sm:$0xff] %v938
                  %v940 = vld [vmem:[%s642 + $0x860] sm:$0xff]
                  %941 = vst [vmem:[%s643 + $0x4a0] sm:$0xff] %v940
                  %v942 = vld [vmem:[%s642 + $0x868] sm:$0xff]
                  %943 = vst [vmem:[%s643 + $0x4a8] sm:$0xff] %v942
                  %v944 = vld [vmem:[%s642 + $0x870] sm:$0xff]
                  %945 = vst [vmem:[%s643 + $0x4b0] sm:$0xff] %v944
                  %v946 = vld [vmem:[%s642 + $0x878] sm:$0xff]
                  %947 = vst [vmem:[%s643 + $0x4b8] sm:$0xff] %v946
                  %v948 = vld [vmem:[%s642 + $0x880] sm:$0xff]
                  %949 = vst [vmem:[%s643 + $0x4c0] sm:$0xff] %v948
                  %v950 = vld [vmem:[%s642 + $0x888] sm:$0xff]
                  %951 = vst [vmem:[%s643 + $0x4c8] sm:$0xff] %v950
                  %v952 = vld [vmem:[%s642 + $0x890] sm:$0xff]
                  %953 = vst [vmem:[%s643 + $0x4d0] sm:$0xff] %v952
                  %v954 = vld [vmem:[%s642 + $0x898] sm:$0xff]
                  %955 = vst [vmem:[%s643 + $0x4d8] sm:$0xff] %v954
                  %v956 = vld [vmem:[%s642 + $0x8a0] sm:$0xff]
                  %957 = vst [vmem:[%s643 + $0x4e0] sm:$0xff] %v956
                  %v958 = vld [vmem:[%s642 + $0x8a8] sm:$0xff]
                  %959 = vst [vmem:[%s643 + $0x4e8] sm:$0xff] %v958
                  %v960 = vld [vmem:[%s642 + $0x8b0] sm:$0xff]
                  %961 = vst [vmem:[%s643 + $0x4f0] sm:$0xff] %v960
                  %v962 = vld [vmem:[%s642 + $0x8b8] sm:$0xff]
                  %963 = vst [vmem:[%s643 + $0x4f8] sm:$0xff] %v962
                  %v964 = vld [vmem:[%s642 + $0x8c0] sm:$0xff]
                  %965 = vst [vmem:[%s643 + $0x500] sm:$0xff] %v964
                  %v966 = vld [vmem:[%s642 + $0x8c8] sm:$0xff]
                  %967 = vst [vmem:[%s643 + $0x508] sm:$0xff] %v966
                  %v968 = vld [vmem:[%s642 + $0x8d0] sm:$0xff]
                  %969 = vst [vmem:[%s643 + $0x510] sm:$0xff] %v968
                  %v970 = vld [vmem:[%s642 + $0x8d8] sm:$0xff]
                  %971 = vst [vmem:[%s643 + $0x518] sm:$0xff] %v970
                  %v972 = vld [vmem:[%s642 + $0x8e0] sm:$0xff]
                  %973 = vst [vmem:[%s643 + $0x520] sm:$0xff] %v972
                  %v974 = vld [vmem:[%s642 + $0x8e8] sm:$0xff]
                  %975 = vst [vmem:[%s643 + $0x528] sm:$0xff] %v974
                  %v976 = vld [vmem:[%s642 + $0x8f0] sm:$0xff]
                  %977 = vst [vmem:[%s643 + $0x530] sm:$0xff] %v976
                  %v978 = vld [vmem:[%s642 + $0x8f8] sm:$0xff]
                  %979 = vst [vmem:[%s643 + $0x538] sm:$0xff] %v978
                  %v980 = vld [vmem:[%s642 + $0x900] sm:$0xff]
                  %981 = vst [vmem:[%s643 + $0x540] sm:$0xff] %v980
                  %v982 = vld [vmem:[%s642 + $0x908] sm:$0xff]
                  %983 = vst [vmem:[%s643 + $0x548] sm:$0xff] %v982
                  %v984 = vld [vmem:[%s642 + $0x910] sm:$0xff]
                  %985 = vst [vmem:[%s643 + $0x550] sm:$0xff] %v984
                  %v986 = vld [vmem:[%s642 + $0x918] sm:$0xff]
                  %987 = vst [vmem:[%s643 + $0x558] sm:$0xff] %v986
                  %v988 = vld [vmem:[%s642 + $0x920] sm:$0xff]
                  %989 = vst [vmem:[%s643 + $0x560] sm:$0xff] %v988
                  %v990 = vld [vmem:[%s642 + $0x928] sm:$0xff]
                  %991 = vst [vmem:[%s643 + $0x568] sm:$0xff] %v990
                  %v992 = vld [vmem:[%s642 + $0x930] sm:$0xff]
                  %993 = vst [vmem:[%s643 + $0x570] sm:$0xff] %v992
                  %v994 = vld [vmem:[%s642 + $0x938] sm:$0xff]
                  %995 = vst [vmem:[%s643 + $0x578] sm:$0xff] %v994
                  %v996 = vld [vmem:[%s642 + $0x940] sm:$0xff]
                  %997 = vst [vmem:[%s643 + $0x580] sm:$0xff] %v996
                  %v998 = vld [vmem:[%s642 + $0x948] sm:$0xff]
                  %999 = vst [vmem:[%s643 + $0x588] sm:$0xff] %v998
                  %v1000 = vld [vmem:[%s642 + $0x950] sm:$0xff]
                  %1001 = vst [vmem:[%s643 + $0x590] sm:$0xff] %v1000
                  %v1002 = vld [vmem:[%s642 + $0x958] sm:$0xff]
                  %1003 = vst [vmem:[%s643 + $0x598] sm:$0xff] %v1002
                  %v1004 = vld [vmem:[%s642 + $0xb40] sm:$0xff]
                  %1005 = vst [vmem:[%s643 + $0x5a0] sm:$0xff] %v1004
                  %v1006 = vld [vmem:[%s642 + $0xb48] sm:$0xff]
                  %1007 = vst [vmem:[%s643 + $0x5a8] sm:$0xff] %v1006
                  %v1008 = vld [vmem:[%s642 + $0xb50] sm:$0xff]
                  %1009 = vst [vmem:[%s643 + $0x5b0] sm:$0xff] %v1008
                  %v1010 = vld [vmem:[%s642 + $0xb58] sm:$0xff]
                  %1011 = vst [vmem:[%s643 + $0x5b8] sm:$0xff] %v1010
                  %v1012 = vld [vmem:[%s642 + $0xb60] sm:$0xff]
                  %1013 = vst [vmem:[%s643 + $0x5c0] sm:$0xff] %v1012
                  %v1014 = vld [vmem:[%s642 + $0xb68] sm:$0xff]
                  %1015 = vst [vmem:[%s643 + $0x5c8] sm:$0xff] %v1014
                  %v1016 = vld [vmem:[%s642 + $0xb70] sm:$0xff]
                  %1017 = vst [vmem:[%s643 + $0x5d0] sm:$0xff] %v1016
                  %v1018 = vld [vmem:[%s642 + $0xb78] sm:$0xff]
                  %1019 = vst [vmem:[%s643 + $0x5d8] sm:$0xff] %v1018
                  %v1020 = vld [vmem:[%s642 + $0xb80] sm:$0xff]
                  %1021 = vst [vmem:[%s643 + $0x5e0] sm:$0xff] %v1020
                  %v1022 = vld [vmem:[%s642 + $0xb88] sm:$0xff]
                  %1023 = vst [vmem:[%s643 + $0x5e8] sm:$0xff] %v1022
                  %v1024 = vld [vmem:[%s642 + $0xb90] sm:$0xff]
                  %1025 = vst [vmem:[%s643 + $0x5f0] sm:$0xff] %v1024
                  %v1026 = vld [vmem:[%s642 + $0xb98] sm:$0xff]
                  %1027 = vst [vmem:[%s643 + $0x5f8] sm:$0xff] %v1026
                  %v1028 = vld [vmem:[%s642 + $0xba0] sm:$0xff]
                  %1029 = vst [vmem:[%s643 + $0x600] sm:$0xff] %v1028
                  %v1030 = vld [vmem:[%s642 + $0xba8] sm:$0xff]
                  %1031 = vst [vmem:[%s643 + $0x608] sm:$0xff] %v1030
                  %v1032 = vld [vmem:[%s642 + $0xbb0] sm:$0xff]
                  %1033 = vst [vmem:[%s643 + $0x610] sm:$0xff] %v1032
                  %v1034 = vld [vmem:[%s642 + $0xbb8] sm:$0xff]
                  %1035 = vst [vmem:[%s643 + $0x618] sm:$0xff] %v1034
                  %v1036 = vld [vmem:[%s642 + $0xbc0] sm:$0xff]
                  %1037 = vst [vmem:[%s643 + $0x620] sm:$0xff] %v1036
                  %v1038 = vld [vmem:[%s642 + $0xbc8] sm:$0xff]
                  %1039 = vst [vmem:[%s643 + $0x628] sm:$0xff] %v1038
                  %v1040 = vld [vmem:[%s642 + $0xbd0] sm:$0xff]
                  %1041 = vst [vmem:[%s643 + $0x630] sm:$0xff] %v1040
                  %v1042 = vld [vmem:[%s642 + $0xbd8] sm:$0xff]
                  %1043 = vst [vmem:[%s643 + $0x638] sm:$0xff] %v1042
                  %v1044 = vld [vmem:[%s642 + $0xbe0] sm:$0xff]
                  %1045 = vst [vmem:[%s643 + $0x640] sm:$0xff] %v1044
                  %v1046 = vld [vmem:[%s642 + $0xbe8] sm:$0xff]
                  %1047 = vst [vmem:[%s643 + $0x648] sm:$0xff] %v1046
                  %v1048 = vld [vmem:[%s642 + $0xbf0] sm:$0xff]
                  %1049 = vst [vmem:[%s643 + $0x650] sm:$0xff] %v1048
                  %v1050 = vld [vmem:[%s642 + $0xbf8] sm:$0xff]
                  %1051 = vst [vmem:[%s643 + $0x658] sm:$0xff] %v1050
                  %v1052 = vld [vmem:[%s642 + $0xc00] sm:$0xff]
                  %1053 = vst [vmem:[%s643 + $0x660] sm:$0xff] %v1052
                  %v1054 = vld [vmem:[%s642 + $0xc08] sm:$0xff]
                  %1055 = vst [vmem:[%s643 + $0x668] sm:$0xff] %v1054
                  %v1056 = vld [vmem:[%s642 + $0xc10] sm:$0xff]
                  %1057 = vst [vmem:[%s643 + $0x670] sm:$0xff] %v1056
                  %v1058 = vld [vmem:[%s642 + $0xc18] sm:$0xff]
                  %1059 = vst [vmem:[%s643 + $0x678] sm:$0xff] %v1058
                  %v1060 = vld [vmem:[%s642 + $0xc20] sm:$0xff]
                  %1061 = vst [vmem:[%s643 + $0x680] sm:$0xff] %v1060
                  %v1062 = vld [vmem:[%s642 + $0xc28] sm:$0xff]
                  %1063 = vst [vmem:[%s643 + $0x688] sm:$0xff] %v1062
                  %v1064 = vld [vmem:[%s642 + $0xc30] sm:$0xff]
                  %1065 = vst [vmem:[%s643 + $0x690] sm:$0xff] %v1064
                  %v1066 = vld [vmem:[%s642 + $0xc38] sm:$0xff]
                  %1067 = vst [vmem:[%s643 + $0x698] sm:$0xff] %v1066
                  %v1068 = vld [vmem:[%s642 + $0xc40] sm:$0xff]
                  %1069 = vst [vmem:[%s643 + $0x6a0] sm:$0xff] %v1068
                  %v1070 = vld [vmem:[%s642 + $0xc48] sm:$0xff]
                  %1071 = vst [vmem:[%s643 + $0x6a8] sm:$0xff] %v1070
                  %v1072 = vld [vmem:[%s642 + $0xc50] sm:$0xff]
                  %1073 = vst [vmem:[%s643 + $0x6b0] sm:$0xff] %v1072
                  %v1074 = vld [vmem:[%s642 + $0xc58] sm:$0xff]
                  %1075 = vst [vmem:[%s643 + $0x6b8] sm:$0xff] %v1074
                  %v1076 = vld [vmem:[%s642 + $0xc60] sm:$0xff]
                  %1077 = vst [vmem:[%s643 + $0x6c0] sm:$0xff] %v1076
                  %v1078 = vld [vmem:[%s642 + $0xc68] sm:$0xff]
                  %1079 = vst [vmem:[%s643 + $0x6c8] sm:$0xff] %v1078
                  %v1080 = vld [vmem:[%s642 + $0xc70] sm:$0xff]
                  %1081 = vst [vmem:[%s643 + $0x6d0] sm:$0xff] %v1080
                  %v1082 = vld [vmem:[%s642 + $0xc78] sm:$0xff]
                  %1083 = vst [vmem:[%s643 + $0x6d8] sm:$0xff] %v1082
                  %v1084 = vld [vmem:[%s642 + $0xc80] sm:$0xff]
                  %1085 = vst [vmem:[%s643 + $0x6e0] sm:$0xff] %v1084
                  %v1086 = vld [vmem:[%s642 + $0xc88] sm:$0xff]
                  %1087 = vst [vmem:[%s643 + $0x6e8] sm:$0xff] %v1086
                  %v1088 = vld [vmem:[%s642 + $0xc90] sm:$0xff]
                  %1089 = vst [vmem:[%s643 + $0x6f0] sm:$0xff] %v1088
                  %v1090 = vld [vmem:[%s642 + $0xc98] sm:$0xff]
                  %1091 = vst [vmem:[%s643 + $0x6f8] sm:$0xff] %v1090
                  %v1092 = vld [vmem:[%s642 + $0xca0] sm:$0xff]
                  %1093 = vst [vmem:[%s643 + $0x700] sm:$0xff] %v1092
                  %v1094 = vld [vmem:[%s642 + $0xca8] sm:$0xff]
                  %1095 = vst [vmem:[%s643 + $0x708] sm:$0xff] %v1094
                  %v1096 = vld [vmem:[%s642 + $0xcb0] sm:$0xff]
                  %1097 = vst [vmem:[%s643 + $0x710] sm:$0xff] %v1096
                  %v1098 = vld [vmem:[%s642 + $0xcb8] sm:$0xff]
                  %1099 = vst [vmem:[%s643 + $0x718] sm:$0xff] %v1098
                  %v1100 = vld [vmem:[%s642 + $0xcc0] sm:$0xff]
                  %1101 = vst [vmem:[%s643 + $0x720] sm:$0xff] %v1100
                  %v1102 = vld [vmem:[%s642 + $0xcc8] sm:$0xff]
                  %1103 = vst [vmem:[%s643 + $0x728] sm:$0xff] %v1102
                  %v1104 = vld [vmem:[%s642 + $0xcd0] sm:$0xff]
                  %1105 = vst [vmem:[%s643 + $0x730] sm:$0xff] %v1104
                  %v1106 = vld [vmem:[%s642 + $0xcd8] sm:$0xff]
                  %1107 = vst [vmem:[%s643 + $0x738] sm:$0xff] %v1106
                  %v1108 = vld [vmem:[%s642 + $0xce0] sm:$0xff]
                  %1109 = vst [vmem:[%s643 + $0x740] sm:$0xff] %v1108
                  %v1110 = vld [vmem:[%s642 + $0xce8] sm:$0xff]
                  %1111 = vst [vmem:[%s643 + $0x748] sm:$0xff] %v1110
                  %v1112 = vld [vmem:[%s642 + $0xcf0] sm:$0xff]
                  %1113 = vst [vmem:[%s643 + $0x750] sm:$0xff] %v1112
                  %v1114 = vld [vmem:[%s642 + $0xcf8] sm:$0xff]
                  %1115 = vst [vmem:[%s643 + $0x758] sm:$0xff] %v1114
                  %v1116 = vld [vmem:[%s642 + $0xd00] sm:$0xff]
                  %1117 = vst [vmem:[%s643 + $0x760] sm:$0xff] %v1116
                  %v1118 = vld [vmem:[%s642 + $0xd08] sm:$0xff]
                  %1119 = vst [vmem:[%s643 + $0x768] sm:$0xff] %v1118
                  %v1120 = vld [vmem:[%s642 + $0xd10] sm:$0xff]
                  %1121 = vst [vmem:[%s643 + $0x770] sm:$0xff] %v1120
                  %v1122 = vld [vmem:[%s642 + $0xd18] sm:$0xff]
                  %1123 = vst [vmem:[%s643 + $0x778] sm:$0xff] %v1122
                $region56: #{hypnet_forward.5} parent=50 // loop_footer
                  %s641 = sadd.s32 1, %s637
                $region57: #{hypnet_forward.5} parent=50 // loop_footer_branch
                  %636 = sbr.rel target = $region53
                $region58: #{hypnet_forward.5} parent=50 // loop_exit
                  _
              $region51: #{hypnet_forward.5} parent=35 // pred_fallthru
                _
              // Predicated region
              $region59: #{hypnet_forward.5} parent=35 // pred_check
                _
              $region60: #{hypnet_forward.5} parent=35 // pred_check_branch
                %1125 = sbr.rel target = $region62
              $region61: #{hypnet_forward.5} parent=35 // pred_region
                _
              $region62: #{hypnet_forward.5} parent=35 // pred_fallthru
                _
            $region36: #{hypnet_forward.5} parent=31 // pred_fallthru
              _
            // Predicated region
            $region37: #{hypnet_forward.5} parent=31 // pred_check
              _
            $region38: #{hypnet_forward.5} parent=31 // pred_check_branch
              %143 = sbr.rel target = $region40
            $region39: #{hypnet_forward.5} parent=31 // pred_region
              %s145 = ssub.s32 256, 1
              loop: start=0, step=1, limit=1
              $region41: #{hypnet_forward.5} parent=39 // loop_pre_header
                _
              $region42: #{hypnet_forward.5} parent=39 // loop_header
                %s147 = sphi 0, %s151
                %p148 = scmp.ge.s32.totalorder %s147, 1
                %s152 = sphi %s137, %s137
                %s153 = sphi %s134, %s134
              $region43: #{hypnet_forward.5} parent=39 // loop_header_branch
                %150 = sbr.rel (%p148) target = $region47
              $region44: #{hypnet_forward.5} parent=39 // loop_body
                %v154 = vld [vmem:[%s152] sm:%s145]
                %155 = vst [vmem:[%s153] sm:%s145] %v154
                %v156 = vld [vmem:[%s152 + $0x8] sm:%s145]
                %157 = vst [vmem:[%s153 + $0x8] sm:%s145] %v156
                %v158 = vld [vmem:[%s152 + $0x10] sm:%s145]
                %159 = vst [vmem:[%s153 + $0x10] sm:%s145] %v158
                %v160 = vld [vmem:[%s152 + $0x18] sm:%s145]
                %161 = vst [vmem:[%s153 + $0x18] sm:%s145] %v160
                %v162 = vld [vmem:[%s152 + $0x20] sm:%s145]
                %163 = vst [vmem:[%s153 + $0x20] sm:%s145] %v162
                %v164 = vld [vmem:[%s152 + $0x28] sm:%s145]
                %165 = vst [vmem:[%s153 + $0x28] sm:%s145] %v164
                %v166 = vld [vmem:[%s152 + $0x30] sm:%s145]
                %167 = vst [vmem:[%s153 + $0x30] sm:%s145] %v166
                %v168 = vld [vmem:[%s152 + $0x38] sm:%s145]
                %169 = vst [vmem:[%s153 + $0x38] sm:%s145] %v168
                %v170 = vld [vmem:[%s152 + $0x40] sm:%s145]
                %171 = vst [vmem:[%s153 + $0x40] sm:%s145] %v170
                %v172 = vld [vmem:[%s152 + $0x48] sm:%s145]
                %173 = vst [vmem:[%s153 + $0x48] sm:%s145] %v172
                %v174 = vld [vmem:[%s152 + $0x50] sm:%s145]
                %175 = vst [vmem:[%s153 + $0x50] sm:%s145] %v174
                %v176 = vld [vmem:[%s152 + $0x58] sm:%s145]
                %177 = vst [vmem:[%s153 + $0x58] sm:%s145] %v176
                %v178 = vld [vmem:[%s152 + $0x60] sm:%s145]
                %179 = vst [vmem:[%s153 + $0x60] sm:%s145] %v178
                %v180 = vld [vmem:[%s152 + $0x68] sm:%s145]
                %181 = vst [vmem:[%s153 + $0x68] sm:%s145] %v180
                %v182 = vld [vmem:[%s152 + $0x70] sm:%s145]
                %183 = vst [vmem:[%s153 + $0x70] sm:%s145] %v182
                %v184 = vld [vmem:[%s152 + $0x78] sm:%s145]
                %185 = vst [vmem:[%s153 + $0x78] sm:%s145] %v184
                %v186 = vld [vmem:[%s152 + $0x80] sm:%s145]
                %187 = vst [vmem:[%s153 + $0x80] sm:%s145] %v186
                %v188 = vld [vmem:[%s152 + $0x88] sm:%s145]
                %189 = vst [vmem:[%s153 + $0x88] sm:%s145] %v188
                %v190 = vld [vmem:[%s152 + $0x90] sm:%s145]
                %191 = vst [vmem:[%s153 + $0x90] sm:%s145] %v190
                %v192 = vld [vmem:[%s152 + $0x98] sm:%s145]
                %193 = vst [vmem:[%s153 + $0x98] sm:%s145] %v192
                %v194 = vld [vmem:[%s152 + $0xa0] sm:%s145]
                %195 = vst [vmem:[%s153 + $0xa0] sm:%s145] %v194
                %v196 = vld [vmem:[%s152 + $0xa8] sm:%s145]
                %197 = vst [vmem:[%s153 + $0xa8] sm:%s145] %v196
                %v198 = vld [vmem:[%s152 + $0xb0] sm:%s145]
                %199 = vst [vmem:[%s153 + $0xb0] sm:%s145] %v198
                %v200 = vld [vmem:[%s152 + $0xb8] sm:%s145]
                %201 = vst [vmem:[%s153 + $0xb8] sm:%s145] %v200
                %v202 = vld [vmem:[%s152 + $0xc0] sm:%s145]
                %203 = vst [vmem:[%s153 + $0xc0] sm:%s145] %v202
                %v204 = vld [vmem:[%s152 + $0xc8] sm:%s145]
                %205 = vst [vmem:[%s153 + $0xc8] sm:%s145] %v204
                %v206 = vld [vmem:[%s152 + $0xd0] sm:%s145]
                %207 = vst [vmem:[%s153 + $0xd0] sm:%s145] %v206
                %v208 = vld [vmem:[%s152 + $0xd8] sm:%s145]
                %209 = vst [vmem:[%s153 + $0xd8] sm:%s145] %v208
                %v210 = vld [vmem:[%s152 + $0xe0] sm:%s145]
                %211 = vst [vmem:[%s153 + $0xe0] sm:%s145] %v210
                %v212 = vld [vmem:[%s152 + $0xe8] sm:%s145]
                %213 = vst [vmem:[%s153 + $0xe8] sm:%s145] %v212
                %v214 = vld [vmem:[%s152 + $0xf0] sm:%s145]
                %215 = vst [vmem:[%s153 + $0xf0] sm:%s145] %v214
                %v216 = vld [vmem:[%s152 + $0xf8] sm:%s145]
                %217 = vst [vmem:[%s153 + $0xf8] sm:%s145] %v216
                %v218 = vld [vmem:[%s152 + $0x100] sm:%s145]
                %219 = vst [vmem:[%s153 + $0x100] sm:%s145] %v218
                %v220 = vld [vmem:[%s152 + $0x108] sm:%s145]
                %221 = vst [vmem:[%s153 + $0x108] sm:%s145] %v220
                %v222 = vld [vmem:[%s152 + $0x110] sm:%s145]
                %223 = vst [vmem:[%s153 + $0x110] sm:%s145] %v222
                %v224 = vld [vmem:[%s152 + $0x118] sm:%s145]
                %225 = vst [vmem:[%s153 + $0x118] sm:%s145] %v224
                %v226 = vld [vmem:[%s152 + $0x120] sm:%s145]
                %227 = vst [vmem:[%s153 + $0x120] sm:%s145] %v226
                %v228 = vld [vmem:[%s152 + $0x128] sm:%s145]
                %229 = vst [vmem:[%s153 + $0x128] sm:%s145] %v228
                %v230 = vld [vmem:[%s152 + $0x130] sm:%s145]
                %231 = vst [vmem:[%s153 + $0x130] sm:%s145] %v230
                %v232 = vld [vmem:[%s152 + $0x138] sm:%s145]
                %233 = vst [vmem:[%s153 + $0x138] sm:%s145] %v232
                %v234 = vld [vmem:[%s152 + $0x140] sm:%s145]
                %235 = vst [vmem:[%s153 + $0x140] sm:%s145] %v234
                %v236 = vld [vmem:[%s152 + $0x148] sm:%s145]
                %237 = vst [vmem:[%s153 + $0x148] sm:%s145] %v236
                %v238 = vld [vmem:[%s152 + $0x150] sm:%s145]
                %239 = vst [vmem:[%s153 + $0x150] sm:%s145] %v238
                %v240 = vld [vmem:[%s152 + $0x158] sm:%s145]
                %241 = vst [vmem:[%s153 + $0x158] sm:%s145] %v240
                %v242 = vld [vmem:[%s152 + $0x160] sm:%s145]
                %243 = vst [vmem:[%s153 + $0x160] sm:%s145] %v242
                %v244 = vld [vmem:[%s152 + $0x168] sm:%s145]
                %245 = vst [vmem:[%s153 + $0x168] sm:%s145] %v244
                %v246 = vld [vmem:[%s152 + $0x170] sm:%s145]
                %247 = vst [vmem:[%s153 + $0x170] sm:%s145] %v246
                %v248 = vld [vmem:[%s152 + $0x178] sm:%s145]
                %249 = vst [vmem:[%s153 + $0x178] sm:%s145] %v248
                %v250 = vld [vmem:[%s152 + $0x180] sm:%s145]
                %251 = vst [vmem:[%s153 + $0x180] sm:%s145] %v250
                %v252 = vld [vmem:[%s152 + $0x188] sm:%s145]
                %253 = vst [vmem:[%s153 + $0x188] sm:%s145] %v252
                %v254 = vld [vmem:[%s152 + $0x190] sm:%s145]
                %255 = vst [vmem:[%s153 + $0x190] sm:%s145] %v254
                %v256 = vld [vmem:[%s152 + $0x198] sm:%s145]
                %257 = vst [vmem:[%s153 + $0x198] sm:%s145] %v256
                %v258 = vld [vmem:[%s152 + $0x1a0] sm:%s145]
                %259 = vst [vmem:[%s153 + $0x1a0] sm:%s145] %v258
                %v260 = vld [vmem:[%s152 + $0x1a8] sm:%s145]
                %261 = vst [vmem:[%s153 + $0x1a8] sm:%s145] %v260
                %v262 = vld [vmem:[%s152 + $0x1b0] sm:%s145]
                %263 = vst [vmem:[%s153 + $0x1b0] sm:%s145] %v262
                %v264 = vld [vmem:[%s152 + $0x1b8] sm:%s145]
                %265 = vst [vmem:[%s153 + $0x1b8] sm:%s145] %v264
                %v266 = vld [vmem:[%s152 + $0x1c0] sm:%s145]
                %267 = vst [vmem:[%s153 + $0x1c0] sm:%s145] %v266
                %v268 = vld [vmem:[%s152 + $0x1c8] sm:%s145]
                %269 = vst [vmem:[%s153 + $0x1c8] sm:%s145] %v268
                %v270 = vld [vmem:[%s152 + $0x1d0] sm:%s145]
                %271 = vst [vmem:[%s153 + $0x1d0] sm:%s145] %v270
                %v272 = vld [vmem:[%s152 + $0x1d8] sm:%s145]
                %273 = vst [vmem:[%s153 + $0x1d8] sm:%s145] %v272
                %v274 = vld [vmem:[%s152 + $0x3c0] sm:%s145]
                %275 = vst [vmem:[%s153 + $0x1e0] sm:%s145] %v274
                %v276 = vld [vmem:[%s152 + $0x3c8] sm:%s145]
                %277 = vst [vmem:[%s153 + $0x1e8] sm:%s145] %v276
                %v278 = vld [vmem:[%s152 + $0x3d0] sm:%s145]
                %279 = vst [vmem:[%s153 + $0x1f0] sm:%s145] %v278
                %v280 = vld [vmem:[%s152 + $0x3d8] sm:%s145]
                %281 = vst [vmem:[%s153 + $0x1f8] sm:%s145] %v280
                %v282 = vld [vmem:[%s152 + $0x3e0] sm:%s145]
                %283 = vst [vmem:[%s153 + $0x200] sm:%s145] %v282
                %v284 = vld [vmem:[%s152 + $0x3e8] sm:%s145]
                %285 = vst [vmem:[%s153 + $0x208] sm:%s145] %v284
                %v286 = vld [vmem:[%s152 + $0x3f0] sm:%s145]
                %287 = vst [vmem:[%s153 + $0x210] sm:%s145] %v286
                %v288 = vld [vmem:[%s152 + $0x3f8] sm:%s145]
                %289 = vst [vmem:[%s153 + $0x218] sm:%s145] %v288
                %v290 = vld [vmem:[%s152 + $0x400] sm:%s145]
                %291 = vst [vmem:[%s153 + $0x220] sm:%s145] %v290
                %v292 = vld [vmem:[%s152 + $0x408] sm:%s145]
                %293 = vst [vmem:[%s153 + $0x228] sm:%s145] %v292
                %v294 = vld [vmem:[%s152 + $0x410] sm:%s145]
                %295 = vst [vmem:[%s153 + $0x230] sm:%s145] %v294
                %v296 = vld [vmem:[%s152 + $0x418] sm:%s145]
                %297 = vst [vmem:[%s153 + $0x238] sm:%s145] %v296
                %v298 = vld [vmem:[%s152 + $0x420] sm:%s145]
                %299 = vst [vmem:[%s153 + $0x240] sm:%s145] %v298
                %v300 = vld [vmem:[%s152 + $0x428] sm:%s145]
                %301 = vst [vmem:[%s153 + $0x248] sm:%s145] %v300
                %v302 = vld [vmem:[%s152 + $0x430] sm:%s145]
                %303 = vst [vmem:[%s153 + $0x250] sm:%s145] %v302
                %v304 = vld [vmem:[%s152 + $0x438] sm:%s145]
                %305 = vst [vmem:[%s153 + $0x258] sm:%s145] %v304
                %v306 = vld [vmem:[%s152 + $0x440] sm:%s145]
                %307 = vst [vmem:[%s153 + $0x260] sm:%s145] %v306
                %v308 = vld [vmem:[%s152 + $0x448] sm:%s145]
                %309 = vst [vmem:[%s153 + $0x268] sm:%s145] %v308
                %v310 = vld [vmem:[%s152 + $0x450] sm:%s145]
                %311 = vst [vmem:[%s153 + $0x270] sm:%s145] %v310
                %v312 = vld [vmem:[%s152 + $0x458] sm:%s145]
                %313 = vst [vmem:[%s153 + $0x278] sm:%s145] %v312
                %v314 = vld [vmem:[%s152 + $0x460] sm:%s145]
                %315 = vst [vmem:[%s153 + $0x280] sm:%s145] %v314
                %v316 = vld [vmem:[%s152 + $0x468] sm:%s145]
                %317 = vst [vmem:[%s153 + $0x288] sm:%s145] %v316
                %v318 = vld [vmem:[%s152 + $0x470] sm:%s145]
                %319 = vst [vmem:[%s153 + $0x290] sm:%s145] %v318
                %v320 = vld [vmem:[%s152 + $0x478] sm:%s145]
                %321 = vst [vmem:[%s153 + $0x298] sm:%s145] %v320
                %v322 = vld [vmem:[%s152 + $0x480] sm:%s145]
                %323 = vst [vmem:[%s153 + $0x2a0] sm:%s145] %v322
                %v324 = vld [vmem:[%s152 + $0x488] sm:%s145]
                %325 = vst [vmem:[%s153 + $0x2a8] sm:%s145] %v324
                %v326 = vld [vmem:[%s152 + $0x490] sm:%s145]
                %327 = vst [vmem:[%s153 + $0x2b0] sm:%s145] %v326
                %v328 = vld [vmem:[%s152 + $0x498] sm:%s145]
                %329 = vst [vmem:[%s153 + $0x2b8] sm:%s145] %v328
                %v330 = vld [vmem:[%s152 + $0x4a0] sm:%s145]
                %331 = vst [vmem:[%s153 + $0x2c0] sm:%s145] %v330
                %v332 = vld [vmem:[%s152 + $0x4a8] sm:%s145]
                %333 = vst [vmem:[%s153 + $0x2c8] sm:%s145] %v332
                %v334 = vld [vmem:[%s152 + $0x4b0] sm:%s145]
                %335 = vst [vmem:[%s153 + $0x2d0] sm:%s145] %v334
                %v336 = vld [vmem:[%s152 + $0x4b8] sm:%s145]
                %337 = vst [vmem:[%s153 + $0x2d8] sm:%s145] %v336
                %v338 = vld [vmem:[%s152 + $0x4c0] sm:%s145]
                %339 = vst [vmem:[%s153 + $0x2e0] sm:%s145] %v338
                %v340 = vld [vmem:[%s152 + $0x4c8] sm:%s145]
                %341 = vst [vmem:[%s153 + $0x2e8] sm:%s145] %v340
                %v342 = vld [vmem:[%s152 + $0x4d0] sm:%s145]
                %343 = vst [vmem:[%s153 + $0x2f0] sm:%s145] %v342
                %v344 = vld [vmem:[%s152 + $0x4d8] sm:%s145]
                %345 = vst [vmem:[%s153 + $0x2f8] sm:%s145] %v344
                %v346 = vld [vmem:[%s152 + $0x4e0] sm:%s145]
                %347 = vst [vmem:[%s153 + $0x300] sm:%s145] %v346
                %v348 = vld [vmem:[%s152 + $0x4e8] sm:%s145]
                %349 = vst [vmem:[%s153 + $0x308] sm:%s145] %v348
                %v350 = vld [vmem:[%s152 + $0x4f0] sm:%s145]
                %351 = vst [vmem:[%s153 + $0x310] sm:%s145] %v350
                %v352 = vld [vmem:[%s152 + $0x4f8] sm:%s145]
                %353 = vst [vmem:[%s153 + $0x318] sm:%s145] %v352
                %v354 = vld [vmem:[%s152 + $0x500] sm:%s145]
                %355 = vst [vmem:[%s153 + $0x320] sm:%s145] %v354
                %v356 = vld [vmem:[%s152 + $0x508] sm:%s145]
                %357 = vst [vmem:[%s153 + $0x328] sm:%s145] %v356
                %v358 = vld [vmem:[%s152 + $0x510] sm:%s145]
                %359 = vst [vmem:[%s153 + $0x330] sm:%s145] %v358
                %v360 = vld [vmem:[%s152 + $0x518] sm:%s145]
                %361 = vst [vmem:[%s153 + $0x338] sm:%s145] %v360
                %v362 = vld [vmem:[%s152 + $0x520] sm:%s145]
                %363 = vst [vmem:[%s153 + $0x340] sm:%s145] %v362
                %v364 = vld [vmem:[%s152 + $0x528] sm:%s145]
                %365 = vst [vmem:[%s153 + $0x348] sm:%s145] %v364
                %v366 = vld [vmem:[%s152 + $0x530] sm:%s145]
                %367 = vst [vmem:[%s153 + $0x350] sm:%s145] %v366
                %v368 = vld [vmem:[%s152 + $0x538] sm:%s145]
                %369 = vst [vmem:[%s153 + $0x358] sm:%s145] %v368
                %v370 = vld [vmem:[%s152 + $0x540] sm:%s145]
                %371 = vst [vmem:[%s153 + $0x360] sm:%s145] %v370
                %v372 = vld [vmem:[%s152 + $0x548] sm:%s145]
                %373 = vst [vmem:[%s153 + $0x368] sm:%s145] %v372
                %v374 = vld [vmem:[%s152 + $0x550] sm:%s145]
                %375 = vst [vmem:[%s153 + $0x370] sm:%s145] %v374
                %v376 = vld [vmem:[%s152 + $0x558] sm:%s145]
                %377 = vst [vmem:[%s153 + $0x378] sm:%s145] %v376
                %v378 = vld [vmem:[%s152 + $0x560] sm:%s145]
                %379 = vst [vmem:[%s153 + $0x380] sm:%s145] %v378
                %v380 = vld [vmem:[%s152 + $0x568] sm:%s145]
                %381 = vst [vmem:[%s153 + $0x388] sm:%s145] %v380
                %v382 = vld [vmem:[%s152 + $0x570] sm:%s145]
                %383 = vst [vmem:[%s153 + $0x390] sm:%s145] %v382
                %v384 = vld [vmem:[%s152 + $0x578] sm:%s145]
                %385 = vst [vmem:[%s153 + $0x398] sm:%s145] %v384
                %v386 = vld [vmem:[%s152 + $0x580] sm:%s145]
                %387 = vst [vmem:[%s153 + $0x3a0] sm:%s145] %v386
                %v388 = vld [vmem:[%s152 + $0x588] sm:%s145]
                %389 = vst [vmem:[%s153 + $0x3a8] sm:%s145] %v388
                %v390 = vld [vmem:[%s152 + $0x590] sm:%s145]
                %391 = vst [vmem:[%s153 + $0x3b0] sm:%s145] %v390
                %v392 = vld [vmem:[%s152 + $0x598] sm:%s145]
                %393 = vst [vmem:[%s153 + $0x3b8] sm:%s145] %v392
                %v394 = vld [vmem:[%s152 + $0x780] sm:%s145]
                %395 = vst [vmem:[%s153 + $0x3c0] sm:%s145] %v394
                %v396 = vld [vmem:[%s152 + $0x788] sm:%s145]
                %397 = vst [vmem:[%s153 + $0x3c8] sm:%s145] %v396
                %v398 = vld [vmem:[%s152 + $0x790] sm:%s145]
                %399 = vst [vmem:[%s153 + $0x3d0] sm:%s145] %v398
                %v400 = vld [vmem:[%s152 + $0x798] sm:%s145]
                %401 = vst [vmem:[%s153 + $0x3d8] sm:%s145] %v400
                %v402 = vld [vmem:[%s152 + $0x7a0] sm:%s145]
                %403 = vst [vmem:[%s153 + $0x3e0] sm:%s145] %v402
                %v404 = vld [vmem:[%s152 + $0x7a8] sm:%s145]
                %405 = vst [vmem:[%s153 + $0x3e8] sm:%s145] %v404
                %v406 = vld [vmem:[%s152 + $0x7b0] sm:%s145]
                %407 = vst [vmem:[%s153 + $0x3f0] sm:%s145] %v406
                %v408 = vld [vmem:[%s152 + $0x7b8] sm:%s145]
                %409 = vst [vmem:[%s153 + $0x3f8] sm:%s145] %v408
                %v410 = vld [vmem:[%s152 + $0x7c0] sm:%s145]
                %411 = vst [vmem:[%s153 + $0x400] sm:%s145] %v410
                %v412 = vld [vmem:[%s152 + $0x7c8] sm:%s145]
                %413 = vst [vmem:[%s153 + $0x408] sm:%s145] %v412
                %v414 = vld [vmem:[%s152 + $0x7d0] sm:%s145]
                %415 = vst [vmem:[%s153 + $0x410] sm:%s145] %v414
                %v416 = vld [vmem:[%s152 + $0x7d8] sm:%s145]
                %417 = vst [vmem:[%s153 + $0x418] sm:%s145] %v416
                %v418 = vld [vmem:[%s152 + $0x7e0] sm:%s145]
                %419 = vst [vmem:[%s153 + $0x420] sm:%s145] %v418
                %v420 = vld [vmem:[%s152 + $0x7e8] sm:%s145]
                %421 = vst [vmem:[%s153 + $0x428] sm:%s145] %v420
                %v422 = vld [vmem:[%s152 + $0x7f0] sm:%s145]
                %423 = vst [vmem:[%s153 + $0x430] sm:%s145] %v422
                %v424 = vld [vmem:[%s152 + $0x7f8] sm:%s145]
                %425 = vst [vmem:[%s153 + $0x438] sm:%s145] %v424
                %v426 = vld [vmem:[%s152 + $0x800] sm:%s145]
                %427 = vst [vmem:[%s153 + $0x440] sm:%s145] %v426
                %v428 = vld [vmem:[%s152 + $0x808] sm:%s145]
                %429 = vst [vmem:[%s153 + $0x448] sm:%s145] %v428
                %v430 = vld [vmem:[%s152 + $0x810] sm:%s145]
                %431 = vst [vmem:[%s153 + $0x450] sm:%s145] %v430
                %v432 = vld [vmem:[%s152 + $0x818] sm:%s145]
                %433 = vst [vmem:[%s153 + $0x458] sm:%s145] %v432
                %v434 = vld [vmem:[%s152 + $0x820] sm:%s145]
                %435 = vst [vmem:[%s153 + $0x460] sm:%s145] %v434
                %v436 = vld [vmem:[%s152 + $0x828] sm:%s145]
                %437 = vst [vmem:[%s153 + $0x468] sm:%s145] %v436
                %v438 = vld [vmem:[%s152 + $0x830] sm:%s145]
                %439 = vst [vmem:[%s153 + $0x470] sm:%s145] %v438
                %v440 = vld [vmem:[%s152 + $0x838] sm:%s145]
                %441 = vst [vmem:[%s153 + $0x478] sm:%s145] %v440
                %v442 = vld [vmem:[%s152 + $0x840] sm:%s145]
                %443 = vst [vmem:[%s153 + $0x480] sm:%s145] %v442
                %v444 = vld [vmem:[%s152 + $0x848] sm:%s145]
                %445 = vst [vmem:[%s153 + $0x488] sm:%s145] %v444
                %v446 = vld [vmem:[%s152 + $0x850] sm:%s145]
                %447 = vst [vmem:[%s153 + $0x490] sm:%s145] %v446
                %v448 = vld [vmem:[%s152 + $0x858] sm:%s145]
                %449 = vst [vmem:[%s153 + $0x498] sm:%s145] %v448
                %v450 = vld [vmem:[%s152 + $0x860] sm:%s145]
                %451 = vst [vmem:[%s153 + $0x4a0] sm:%s145] %v450
                %v452 = vld [vmem:[%s152 + $0x868] sm:%s145]
                %453 = vst [vmem:[%s153 + $0x4a8] sm:%s145] %v452
                %v454 = vld [vmem:[%s152 + $0x870] sm:%s145]
                %455 = vst [vmem:[%s153 + $0x4b0] sm:%s145] %v454
                %v456 = vld [vmem:[%s152 + $0x878] sm:%s145]
                %457 = vst [vmem:[%s153 + $0x4b8] sm:%s145] %v456
                %v458 = vld [vmem:[%s152 + $0x880] sm:%s145]
                %459 = vst [vmem:[%s153 + $0x4c0] sm:%s145] %v458
                %v460 = vld [vmem:[%s152 + $0x888] sm:%s145]
                %461 = vst [vmem:[%s153 + $0x4c8] sm:%s145] %v460
                %v462 = vld [vmem:[%s152 + $0x890] sm:%s145]
                %463 = vst [vmem:[%s153 + $0x4d0] sm:%s145] %v462
                %v464 = vld [vmem:[%s152 + $0x898] sm:%s145]
                %465 = vst [vmem:[%s153 + $0x4d8] sm:%s145] %v464
                %v466 = vld [vmem:[%s152 + $0x8a0] sm:%s145]
                %467 = vst [vmem:[%s153 + $0x4e0] sm:%s145] %v466
                %v468 = vld [vmem:[%s152 + $0x8a8] sm:%s145]
                %469 = vst [vmem:[%s153 + $0x4e8] sm:%s145] %v468
                %v470 = vld [vmem:[%s152 + $0x8b0] sm:%s145]
                %471 = vst [vmem:[%s153 + $0x4f0] sm:%s145] %v470
                %v472 = vld [vmem:[%s152 + $0x8b8] sm:%s145]
                %473 = vst [vmem:[%s153 + $0x4f8] sm:%s145] %v472
                %v474 = vld [vmem:[%s152 + $0x8c0] sm:%s145]
                %475 = vst [vmem:[%s153 + $0x500] sm:%s145] %v474
                %v476 = vld [vmem:[%s152 + $0x8c8] sm:%s145]
                %477 = vst [vmem:[%s153 + $0x508] sm:%s145] %v476
                %v478 = vld [vmem:[%s152 + $0x8d0] sm:%s145]
                %479 = vst [vmem:[%s153 + $0x510] sm:%s145] %v478
                %v480 = vld [vmem:[%s152 + $0x8d8] sm:%s145]
                %481 = vst [vmem:[%s153 + $0x518] sm:%s145] %v480
                %v482 = vld [vmem:[%s152 + $0x8e0] sm:%s145]
                %483 = vst [vmem:[%s153 + $0x520] sm:%s145] %v482
                %v484 = vld [vmem:[%s152 + $0x8e8] sm:%s145]
                %485 = vst [vmem:[%s153 + $0x528] sm:%s145] %v484
                %v486 = vld [vmem:[%s152 + $0x8f0] sm:%s145]
                %487 = vst [vmem:[%s153 + $0x530] sm:%s145] %v486
                %v488 = vld [vmem:[%s152 + $0x8f8] sm:%s145]
                %489 = vst [vmem:[%s153 + $0x538] sm:%s145] %v488
                %v490 = vld [vmem:[%s152 + $0x900] sm:%s145]
                %491 = vst [vmem:[%s153 + $0x540] sm:%s145] %v490
                %v492 = vld [vmem:[%s152 + $0x908] sm:%s145]
                %493 = vst [vmem:[%s153 + $0x548] sm:%s145] %v492
                %v494 = vld [vmem:[%s152 + $0x910] sm:%s145]
                %495 = vst [vmem:[%s153 + $0x550] sm:%s145] %v494
                %v496 = vld [vmem:[%s152 + $0x918] sm:%s145]
                %497 = vst [vmem:[%s153 + $0x558] sm:%s145] %v496
                %v498 = vld [vmem:[%s152 + $0x920] sm:%s145]
                %499 = vst [vmem:[%s153 + $0x560] sm:%s145] %v498
                %v500 = vld [vmem:[%s152 + $0x928] sm:%s145]
                %501 = vst [vmem:[%s153 + $0x568] sm:%s145] %v500
                %v502 = vld [vmem:[%s152 + $0x930] sm:%s145]
                %503 = vst [vmem:[%s153 + $0x570] sm:%s145] %v502
                %v504 = vld [vmem:[%s152 + $0x938] sm:%s145]
                %505 = vst [vmem:[%s153 + $0x578] sm:%s145] %v504
                %v506 = vld [vmem:[%s152 + $0x940] sm:%s145]
                %507 = vst [vmem:[%s153 + $0x580] sm:%s145] %v506
                %v508 = vld [vmem:[%s152 + $0x948] sm:%s145]
                %509 = vst [vmem:[%s153 + $0x588] sm:%s145] %v508
                %v510 = vld [vmem:[%s152 + $0x950] sm:%s145]
                %511 = vst [vmem:[%s153 + $0x590] sm:%s145] %v510
                %v512 = vld [vmem:[%s152 + $0x958] sm:%s145]
                %513 = vst [vmem:[%s153 + $0x598] sm:%s145] %v512
                %v514 = vld [vmem:[%s152 + $0xb40] sm:%s145]
                %515 = vst [vmem:[%s153 + $0x5a0] sm:%s145] %v514
                %v516 = vld [vmem:[%s152 + $0xb48] sm:%s145]
                %517 = vst [vmem:[%s153 + $0x5a8] sm:%s145] %v516
                %v518 = vld [vmem:[%s152 + $0xb50] sm:%s145]
                %519 = vst [vmem:[%s153 + $0x5b0] sm:%s145] %v518
                %v520 = vld [vmem:[%s152 + $0xb58] sm:%s145]
                %521 = vst [vmem:[%s153 + $0x5b8] sm:%s145] %v520
                %v522 = vld [vmem:[%s152 + $0xb60] sm:%s145]
                %523 = vst [vmem:[%s153 + $0x5c0] sm:%s145] %v522
                %v524 = vld [vmem:[%s152 + $0xb68] sm:%s145]
                %525 = vst [vmem:[%s153 + $0x5c8] sm:%s145] %v524
                %v526 = vld [vmem:[%s152 + $0xb70] sm:%s145]
                %527 = vst [vmem:[%s153 + $0x5d0] sm:%s145] %v526
                %v528 = vld [vmem:[%s152 + $0xb78] sm:%s145]
                %529 = vst [vmem:[%s153 + $0x5d8] sm:%s145] %v528
                %v530 = vld [vmem:[%s152 + $0xb80] sm:%s145]
                %531 = vst [vmem:[%s153 + $0x5e0] sm:%s145] %v530
                %v532 = vld [vmem:[%s152 + $0xb88] sm:%s145]
                %533 = vst [vmem:[%s153 + $0x5e8] sm:%s145] %v532
                %v534 = vld [vmem:[%s152 + $0xb90] sm:%s145]
                %535 = vst [vmem:[%s153 + $0x5f0] sm:%s145] %v534
                %v536 = vld [vmem:[%s152 + $0xb98] sm:%s145]
                %537 = vst [vmem:[%s153 + $0x5f8] sm:%s145] %v536
                %v538 = vld [vmem:[%s152 + $0xba0] sm:%s145]
                %539 = vst [vmem:[%s153 + $0x600] sm:%s145] %v538
                %v540 = vld [vmem:[%s152 + $0xba8] sm:%s145]
                %541 = vst [vmem:[%s153 + $0x608] sm:%s145] %v540
                %v542 = vld [vmem:[%s152 + $0xbb0] sm:%s145]
                %543 = vst [vmem:[%s153 + $0x610] sm:%s145] %v542
                %v544 = vld [vmem:[%s152 + $0xbb8] sm:%s145]
                %545 = vst [vmem:[%s153 + $0x618] sm:%s145] %v544
                %v546 = vld [vmem:[%s152 + $0xbc0] sm:%s145]
                %547 = vst [vmem:[%s153 + $0x620] sm:%s145] %v546
                %v548 = vld [vmem:[%s152 + $0xbc8] sm:%s145]
                %549 = vst [vmem:[%s153 + $0x628] sm:%s145] %v548
                %v550 = vld [vmem:[%s152 + $0xbd0] sm:%s145]
                %551 = vst [vmem:[%s153 + $0x630] sm:%s145] %v550
                %v552 = vld [vmem:[%s152 + $0xbd8] sm:%s145]
                %553 = vst [vmem:[%s153 + $0x638] sm:%s145] %v552
                %v554 = vld [vmem:[%s152 + $0xbe0] sm:%s145]
                %555 = vst [vmem:[%s153 + $0x640] sm:%s145] %v554
                %v556 = vld [vmem:[%s152 + $0xbe8] sm:%s145]
                %557 = vst [vmem:[%s153 + $0x648] sm:%s145] %v556
                %v558 = vld [vmem:[%s152 + $0xbf0] sm:%s145]
                %559 = vst [vmem:[%s153 + $0x650] sm:%s145] %v558
                %v560 = vld [vmem:[%s152 + $0xbf8] sm:%s145]
                %561 = vst [vmem:[%s153 + $0x658] sm:%s145] %v560
                %v562 = vld [vmem:[%s152 + $0xc00] sm:%s145]
                %563 = vst [vmem:[%s153 + $0x660] sm:%s145] %v562
                %v564 = vld [vmem:[%s152 + $0xc08] sm:%s145]
                %565 = vst [vmem:[%s153 + $0x668] sm:%s145] %v564
                %v566 = vld [vmem:[%s152 + $0xc10] sm:%s145]
                %567 = vst [vmem:[%s153 + $0x670] sm:%s145] %v566
                %v568 = vld [vmem:[%s152 + $0xc18] sm:%s145]
                %569 = vst [vmem:[%s153 + $0x678] sm:%s145] %v568
                %v570 = vld [vmem:[%s152 + $0xc20] sm:%s145]
                %571 = vst [vmem:[%s153 + $0x680] sm:%s145] %v570
                %v572 = vld [vmem:[%s152 + $0xc28] sm:%s145]
                %573 = vst [vmem:[%s153 + $0x688] sm:%s145] %v572
                %v574 = vld [vmem:[%s152 + $0xc30] sm:%s145]
                %575 = vst [vmem:[%s153 + $0x690] sm:%s145] %v574
                %v576 = vld [vmem:[%s152 + $0xc38] sm:%s145]
                %577 = vst [vmem:[%s153 + $0x698] sm:%s145] %v576
                %v578 = vld [vmem:[%s152 + $0xc40] sm:%s145]
                %579 = vst [vmem:[%s153 + $0x6a0] sm:%s145] %v578
                %v580 = vld [vmem:[%s152 + $0xc48] sm:%s145]
                %581 = vst [vmem:[%s153 + $0x6a8] sm:%s145] %v580
                %v582 = vld [vmem:[%s152 + $0xc50] sm:%s145]
                %583 = vst [vmem:[%s153 + $0x6b0] sm:%s145] %v582
                %v584 = vld [vmem:[%s152 + $0xc58] sm:%s145]
                %585 = vst [vmem:[%s153 + $0x6b8] sm:%s145] %v584
                %v586 = vld [vmem:[%s152 + $0xc60] sm:%s145]
                %587 = vst [vmem:[%s153 + $0x6c0] sm:%s145] %v586
                %v588 = vld [vmem:[%s152 + $0xc68] sm:%s145]
                %589 = vst [vmem:[%s153 + $0x6c8] sm:%s145] %v588
                %v590 = vld [vmem:[%s152 + $0xc70] sm:%s145]
                %591 = vst [vmem:[%s153 + $0x6d0] sm:%s145] %v590
                %v592 = vld [vmem:[%s152 + $0xc78] sm:%s145]
                %593 = vst [vmem:[%s153 + $0x6d8] sm:%s145] %v592
                %v594 = vld [vmem:[%s152 + $0xc80] sm:%s145]
                %595 = vst [vmem:[%s153 + $0x6e0] sm:%s145] %v594
                %v596 = vld [vmem:[%s152 + $0xc88] sm:%s145]
                %597 = vst [vmem:[%s153 + $0x6e8] sm:%s145] %v596
                %v598 = vld [vmem:[%s152 + $0xc90] sm:%s145]
                %599 = vst [vmem:[%s153 + $0x6f0] sm:%s145] %v598
                %v600 = vld [vmem:[%s152 + $0xc98] sm:%s145]
                %601 = vst [vmem:[%s153 + $0x6f8] sm:%s145] %v600
                %v602 = vld [vmem:[%s152 + $0xca0] sm:%s145]
                %603 = vst [vmem:[%s153 + $0x700] sm:%s145] %v602
                %v604 = vld [vmem:[%s152 + $0xca8] sm:%s145]
                %605 = vst [vmem:[%s153 + $0x708] sm:%s145] %v604
                %v606 = vld [vmem:[%s152 + $0xcb0] sm:%s145]
                %607 = vst [vmem:[%s153 + $0x710] sm:%s145] %v606
                %v608 = vld [vmem:[%s152 + $0xcb8] sm:%s145]
                %609 = vst [vmem:[%s153 + $0x718] sm:%s145] %v608
                %v610 = vld [vmem:[%s152 + $0xcc0] sm:%s145]
                %611 = vst [vmem:[%s153 + $0x720] sm:%s145] %v610
                %v612 = vld [vmem:[%s152 + $0xcc8] sm:%s145]
                %613 = vst [vmem:[%s153 + $0x728] sm:%s145] %v612
                %v614 = vld [vmem:[%s152 + $0xcd0] sm:%s145]
                %615 = vst [vmem:[%s153 + $0x730] sm:%s145] %v614
                %v616 = vld [vmem:[%s152 + $0xcd8] sm:%s145]
                %617 = vst [vmem:[%s153 + $0x738] sm:%s145] %v616
                %v618 = vld [vmem:[%s152 + $0xce0] sm:%s145]
                %619 = vst [vmem:[%s153 + $0x740] sm:%s145] %v618
                %v620 = vld [vmem:[%s152 + $0xce8] sm:%s145]
                %621 = vst [vmem:[%s153 + $0x748] sm:%s145] %v620
                %v622 = vld [vmem:[%s152 + $0xcf0] sm:%s145]
                %623 = vst [vmem:[%s153 + $0x750] sm:%s145] %v622
                %v624 = vld [vmem:[%s152 + $0xcf8] sm:%s145]
                %625 = vst [vmem:[%s153 + $0x758] sm:%s145] %v624
                %v626 = vld [vmem:[%s152 + $0xd00] sm:%s145]
                %627 = vst [vmem:[%s153 + $0x760] sm:%s145] %v626
                %v628 = vld [vmem:[%s152 + $0xd08] sm:%s145]
                %629 = vst [vmem:[%s153 + $0x768] sm:%s145] %v628
                %v630 = vld [vmem:[%s152 + $0xd10] sm:%s145]
                %631 = vst [vmem:[%s153 + $0x770] sm:%s145] %v630
                %v632 = vld [vmem:[%s152 + $0xd18] sm:%s145]
                %633 = vst [vmem:[%s153 + $0x778] sm:%s145] %v632
              $region45: #{hypnet_forward.5} parent=39 // loop_footer
                %s151 = sadd.s32 1, %s147
              $region46: #{hypnet_forward.5} parent=39 // loop_footer_branch
                %146 = sbr.rel target = $region42
              $region47: #{hypnet_forward.5} parent=39 // loop_exit
                _
            $region40: #{hypnet_forward.5} parent=31 // pred_fallthru
              _
          $region32: #{hypnet_forward.5} parent=27 // pred_fallthru
            _
          %1126 = vnop
        $region28: #{hypnet_forward.5} parent=23 // pred_fallthru
          _
      $region24: #{hypnet_forward.5} parent=5 // pred_fallthru
        _
      %p1127 = scmp.le.s32.totalorder 1, %s9
      %p1128 = scmp.lt.s32.totalorder %s9, 3
      %p1129 = pnand %p1127, %p1128
      %p1130 = pneg %p1129
      // Predicated region
      $region63: #{hypnet_forward.5} parent=5 // pred_check
        _
      $region64: #{hypnet_forward.5} parent=5 // pred_check_branch
        %1132 = sbr.rel (%p1129) target = $region66
      $region65: #{hypnet_forward.5} parent=5 // pred_region
        %s1133 = ssub.s32 %s9, 1
        %s1134 = sand.u32 %s22, 1
        %s1135 = sand.u32 %s22, 1
        %s1136 = smul.addr %s1135, 1920
        %s1137 = scalar_lea.vmem [#allocation2], %s1136
        // Predicated region
        $region67: #{hypnet_forward.5} parent=65 // pred_check
          %p1138 = pneg %p35
        $region68: #{hypnet_forward.5} parent=65 // pred_check_branch
          %1140 = sbr.rel (%p1138) target = $region70
        $region69: #{hypnet_forward.5} parent=65 // pred_region
          _
        $region70: #{hypnet_forward.5} parent=65 // pred_fallthru
          _
        %s1141 = sand.u32 %s22, 1
        %s1142 = sand.u32 %s22, 1
        %s1143 = smul.addr %s1142, 1920
        %s1144 = scalar_lea.vmem [#allocation2], %s1143
        %p1145 = pneg %p35
        %p1146 = pneg %p32
        %p1147 = pneg %p56
        %p1148 = pneg %p53
        %p1149 = pneg %p77
        %p1150 = pneg %p74
        %p1151 = pneg %p103
        %p1152 = pneg %p100
        %s1153 = smul.u32 60, %s14
        %p1154 = scmp.lt.s32.totalorder %s1153, 119
        %s1155 = scalar_select %p1154, %s1153, 119
        %s1156 = smul.addr %s1155, 8
        %s1157 = scalar_lea.vmem %s3, %s1156
        %s1158 = smul.u32 60, %s14
        %s1159 = smul.u32 60, %s14
        %p1160 = scmp.lt.s32.totalorder %s1159, 119
        %s1161 = scalar_select %p1160, %s1159, 119
        %s1162 = smul.addr %s1161, 8
        %s1163 = scalar_lea.vmem %s3, %s1162
        %s1164 = smul.u32 60, %s14
        %v1165 = vld [vmem:[%s1] sm:$0xff]
        %v1166 = vld [vmem:[%s1 + $0x8] sm:$0xff]
        %v1167 = vld [vmem:[%s1 + $0x10] sm:$0xff]
        %v1168 = vld [vmem:[%s1 + $0x18] sm:$0xff]
        %v1169 = vld [vmem:[%s1 + $0x20] sm:$0xf]
        %v1170 = vld [vmem:[%s1137] sm:$0xff]
        %v1171 = vld [vmem:[%s1137 + $0x8] sm:$0xff]
        %v1172 = vld [vmem:[%s1137 + $0x10] sm:$0xff]
        %v1173 = vld [vmem:[%s1137 + $0x18] sm:$0xff]
        %v1174 = vld [vmem:[%s1137 + $0x20] sm:$0xff]
        %v1175 = vld [vmem:[%s1137 + $0x28] sm:$0xff]
        %v1176 = vld [vmem:[%s1137 + $0x30] sm:$0xff]
        %v1177 = vld [vmem:[%s1137 + $0x38] sm:$0xff]
        %v1178 = vld [vmem:[%s1137 + $0x40] sm:$0xff]
        %v1179 = vld [vmem:[%s1137 + $0x48] sm:$0xff]
        %v1180 = vld [vmem:[%s1137 + $0x50] sm:$0xff]
        %v1181 = vld [vmem:[%s1137 + $0x58] sm:$0xff]
        %v1182 = vld [vmem:[%s1137 + $0x60] sm:$0xff]
        %v1183 = vld [vmem:[%s1137 + $0x68] sm:$0xff]
        %v1184 = vld [vmem:[%s1137 + $0x70] sm:$0xff]
        %v1185 = vld [vmem:[%s1137 + $0x78] sm:$0xff]
        %v1186 = vld [vmem:[%s1137 + $0x80] sm:$0xff]
        %v1187 = vld [vmem:[%s1137 + $0x88] sm:$0xff]
        %v1188 = vld [vmem:[%s1137 + $0x90] sm:$0xff]
        %v1189 = vld [vmem:[%s1137 + $0x98] sm:$0xff]
        %v1190 = vld [vmem:[%s1137 + $0xa0] sm:$0xff]
        %v1191 = vld [vmem:[%s1137 + $0xa8] sm:$0xff]
        %v1192 = vld [vmem:[%s1137 + $0xb0] sm:$0xff]
        %v1193 = vld [vmem:[%s1137 + $0xb8] sm:$0xff]
        %v1194 = vld [vmem:[%s1137 + $0xc0] sm:$0xff]
        %v1195 = vld [vmem:[%s1137 + $0xc8] sm:$0xff]
        %v1196 = vld [vmem:[%s1137 + $0xd0] sm:$0xff]
        %v1197 = vld [vmem:[%s1137 + $0xd8] sm:$0xff]
        %v1198 = vld [vmem:[%s1137 + $0xe0] sm:$0xff]
        %v1199 = vld [vmem:[%s1137 + $0xe8] sm:$0xff]
        %v1200 = vld [vmem:[%s1137 + $0xf0] sm:$0xff]
        %v1201 = vld [vmem:[%s1137 + $0xf8] sm:$0xff]
        %v1202 = vld [vmem:[%s1137 + $0x100] sm:$0xff]
        %v1203 = vld [vmem:[%s1137 + $0x108] sm:$0xff]
        %v1204 = vld [vmem:[%s1137 + $0x110] sm:$0xff]
        %v1205 = vld [vmem:[%s1137 + $0x118] sm:$0xff]
        %v1206 = vld [vmem:[%s1137 + $0x120] sm:$0xff]
        %v1207 = vld [vmem:[%s1137 + $0x128] sm:$0xff]
        %v1208 = vld [vmem:[%s1137 + $0x130] sm:$0xff]
        %v1209 = vld [vmem:[%s1137 + $0x138] sm:$0xff]
        %v1210 = vld [vmem:[%s1137 + $0x140] sm:$0xff]
        %v1211 = vld [vmem:[%s1137 + $0x148] sm:$0xff]
        %v1212 = vld [vmem:[%s1137 + $0x150] sm:$0xff]
        %v1213 = vld [vmem:[%s1137 + $0x158] sm:$0xff]
        %v1214 = vld [vmem:[%s1137 + $0x160] sm:$0xff]
        %v1215 = vld [vmem:[%s1137 + $0x168] sm:$0xff]
        %v1216 = vld [vmem:[%s1137 + $0x170] sm:$0xff]
        %v1217 = vld [vmem:[%s1137 + $0x178] sm:$0xff]
        %v1218 = vld [vmem:[%s1137 + $0x180] sm:$0xff]
        %v1219 = vld [vmem:[%s1137 + $0x188] sm:$0xff]
        %v1220 = vld [vmem:[%s1137 + $0x190] sm:$0xff]
        %v1221 = vld [vmem:[%s1137 + $0x198] sm:$0xff]
        %v1222 = vld [vmem:[%s1137 + $0x1a0] sm:$0xff]
        %v1223 = vld [vmem:[%s1137 + $0x1a8] sm:$0xff]
        %v1224 = vld [vmem:[%s1137 + $0x1b0] sm:$0xff]
        %v1225 = vld [vmem:[%s1137 + $0x1b8] sm:$0xff]
        %v1226 = vld [vmem:[%s1137 + $0x1c0] sm:$0xff]
        %v1227 = vld [vmem:[%s1137 + $0x1c8] sm:$0xff]
        %v1228 = vld [vmem:[%s1137 + $0x1d0] sm:$0xff]
        %v1229 = vld [vmem:[%s1137 + $0x1d8] sm:$0xff]
        %vm1230 = vcmask 293888
        %v1232 = vsel %vm1230, %v1170, 0
        %v1235 = vsel %vm1230, %v1171, 0
        %v1238 = vsel %vm1230, %v1172, 0
        %v1241 = vsel %vm1230, %v1173, 0
        %v1244 = vsel %vm1230, %v1174, 0
        %v1247 = vsel %vm1230, %v1175, 0
        %v1250 = vsel %vm1230, %v1176, 0
        %v1253 = vsel %vm1230, %v1177, 0
        %v1256 = vsel %vm1230, %v1178, 0
        %v1259 = vsel %vm1230, %v1179, 0
        %v1262 = vsel %vm1230, %v1180, 0
        %v1265 = vsel %vm1230, %v1181, 0
        %v1268 = vsel %vm1230, %v1182, 0
        %v1271 = vsel %vm1230, %v1183, 0
        %v1274 = vsel %vm1230, %v1184, 0
        %v1277 = vsel %vm1230, %v1185, 0
        %v1280 = vsel %vm1230, %v1186, 0
        %v1283 = vsel %vm1230, %v1187, 0
        %v1286 = vsel %vm1230, %v1188, 0
        %v1289 = vsel %vm1230, %v1189, 0
        %v1292 = vsel %vm1230, %v1190, 0
        %v1295 = vsel %vm1230, %v1191, 0
        %v1298 = vsel %vm1230, %v1192, 0
        %v1301 = vsel %vm1230, %v1193, 0
        %v1304 = vsel %vm1230, %v1194, 0
        %v1307 = vsel %vm1230, %v1195, 0
        %v1310 = vsel %vm1230, %v1196, 0
        %v1313 = vsel %vm1230, %v1197, 0
        %v1316 = vsel %vm1230, %v1198, 0
        %v1319 = vsel %vm1230, %v1199, 0
        %v1322 = vsel %vm1230, %v1200, 0
        %v1325 = vsel %vm1230, %v1201, 0
        %v1328 = vsel %vm1230, %v1202, 0
        %v1331 = vsel %vm1230, %v1203, 0
        %v1334 = vsel %vm1230, %v1204, 0
        %v1337 = vsel %vm1230, %v1205, 0
        %v1340 = vsel %vm1230, %v1206, 0
        %v1343 = vsel %vm1230, %v1207, 0
        %v1346 = vsel %vm1230, %v1208, 0
        %v1349 = vsel %vm1230, %v1209, 0
        %v1352 = vsel %vm1230, %v1210, 0
        %v1355 = vsel %vm1230, %v1211, 0
        %v1358 = vsel %vm1230, %v1212, 0
        %v1361 = vsel %vm1230, %v1213, 0
        %v1364 = vsel %vm1230, %v1214, 0
        %v1367 = vsel %vm1230, %v1215, 0
        %v1370 = vsel %vm1230, %v1216, 0
        %v1373 = vsel %vm1230, %v1217, 0
        %v1376 = vsel %vm1230, %v1218, 0
        %v1379 = vsel %vm1230, %v1219, 0
        %v1382 = vsel %vm1230, %v1220, 0
        %v1385 = vsel %vm1230, %v1221, 0
        %v1388 = vsel %vm1230, %v1222, 0
        %v1391 = vsel %vm1230, %v1223, 0
        %v1394 = vsel %vm1230, %v1224, 0
        %v1397 = vsel %vm1230, %v1225, 0
        %v1400 = vsel %vm1230, %v1226, 0
        %v1403 = vsel %vm1230, %v1227, 0
        %v1406 = vsel %vm1230, %v1228, 0
        %v1409 = vsel %vm1230, %v1229, 0
        %vm1411 = vcmask 1043456
        %v1413 = vsel %vm1411, %v1169, 0
        %1415 = vmatpush.msra.mxu0 0.0
        %1416 = vmatpush.msra.mxu0 0.0
        %1417 = vmatpush.msra.mxu0 0.0
        %1418 = vmatpush.msra.mxu0 0.0
        %1419 = vmatpush.msra.mxu0 0.0
        %1420 = vmatpush.msra.mxu0 0.0
        %1421 = vmatpush.msra.mxu0 0.0
        %1422 = vmatpush.msra.mxu0 0.0
        %1423 = vmatpush.msra.mxu0 0.0
        %1424 = vmatpush.msra.mxu0 0.0
        %1425 = vmatpush.msra.mxu0 0.0
        %1426 = vmatpush.msra.mxu0 %v1413
        %1427 = vmatpush.msra.mxu0 %v1168
        %1428 = vmatpush.msra.mxu0 %v1167
        %1429 = vmatpush.msra.mxu0 %v1166
        %1430 = vmatpush.msra.mxu0 %v1165
        %1431 = vmatmul.f32.gmra.mxu0 %v1232
        %v1432 = vpop.f32.mrf.mxu0
        %v1433 = vadd.f32 0.0, %v1432
        %1434 = vmatmul.f32.gmra.mxu0 %v1235
        %v1435 = vpop.f32.mrf.mxu0
        %v1436 = vadd.f32 0.0, %v1435
        %1437 = vmatmul.f32.gmra.mxu0 %v1238
        %v1438 = vpop.f32.mrf.mxu0
        %v1439 = vadd.f32 0.0, %v1438
        %1440 = vmatmul.f32.gmra.mxu0 %v1241
        %v1441 = vpop.f32.mrf.mxu0
        %v1442 = vadd.f32 0.0, %v1441
        %1443 = vmatmul.f32.gmra.mxu0 %v1244
        %v1444 = vpop.f32.mrf.mxu0
        %v1445 = vadd.f32 0.0, %v1444
        %1446 = vmatmul.f32.gmra.mxu0 %v1247
        %v1447 = vpop.f32.mrf.mxu0
        %v1448 = vadd.f32 0.0, %v1447
        %1449 = vmatmul.f32.gmra.mxu0 %v1250
        %v1450 = vpop.f32.mrf.mxu0
        %v1451 = vadd.f32 0.0, %v1450
        %1452 = vmatmul.f32.gmra.mxu0 %v1253
        %v1453 = vpop.f32.mrf.mxu0
        %v1454 = vadd.f32 0.0, %v1453
        %1455 = vmatmul.f32.gmra.mxu0 %v1256
        %v1456 = vpop.f32.mrf.mxu0
        %v1457 = vadd.f32 0.0, %v1456
        %1458 = vmatmul.f32.gmra.mxu0 %v1259
        %v1459 = vpop.f32.mrf.mxu0
        %v1460 = vadd.f32 0.0, %v1459
        %1461 = vmatmul.f32.gmra.mxu0 %v1262
        %v1462 = vpop.f32.mrf.mxu0
        %v1463 = vadd.f32 0.0, %v1462
        %1464 = vmatmul.f32.gmra.mxu0 %v1265
        %v1465 = vpop.f32.mrf.mxu0
        %v1466 = vadd.f32 0.0, %v1465
        %1467 = vmatmul.f32.gmra.mxu0 %v1268
        %v1468 = vpop.f32.mrf.mxu0
        %v1469 = vadd.f32 0.0, %v1468
        %1470 = vmatmul.f32.gmra.mxu0 %v1271
        %v1471 = vpop.f32.mrf.mxu0
        %v1472 = vadd.f32 0.0, %v1471
        %1473 = vmatmul.f32.gmra.mxu0 %v1274
        %v1474 = vpop.f32.mrf.mxu0
        %v1475 = vadd.f32 0.0, %v1474
        %1476 = vmatmul.f32.gmra.mxu0 %v1277
        %v1477 = vpop.f32.mrf.mxu0
        %v1478 = vadd.f32 0.0, %v1477
        %1479 = vmatmul.f32.gmra.mxu0 %v1280
        %v1480 = vpop.f32.mrf.mxu0
        %v1481 = vadd.f32 0.0, %v1480
        %1482 = vmatmul.f32.gmra.mxu0 %v1283
        %v1483 = vpop.f32.mrf.mxu0
        %v1484 = vadd.f32 0.0, %v1483
        %1485 = vmatmul.f32.gmra.mxu0 %v1286
        %v1486 = vpop.f32.mrf.mxu0
        %v1487 = vadd.f32 0.0, %v1486
        %1488 = vmatmul.f32.gmra.mxu0 %v1289
        %v1489 = vpop.f32.mrf.mxu0
        %v1490 = vadd.f32 0.0, %v1489
        %1491 = vmatmul.f32.gmra.mxu0 %v1292
        %v1492 = vpop.f32.mrf.mxu0
        %v1493 = vadd.f32 0.0, %v1492
        %1494 = vmatmul.f32.gmra.mxu0 %v1295
        %v1495 = vpop.f32.mrf.mxu0
        %v1496 = vadd.f32 0.0, %v1495
        %1497 = vmatmul.f32.gmra.mxu0 %v1298
        %v1498 = vpop.f32.mrf.mxu0
        %v1499 = vadd.f32 0.0, %v1498
        %1500 = vmatmul.f32.gmra.mxu0 %v1301
        %v1501 = vpop.f32.mrf.mxu0
        %v1502 = vadd.f32 0.0, %v1501
        %1503 = vmatmul.f32.gmra.mxu0 %v1304
        %v1504 = vpop.f32.mrf.mxu0
        %v1505 = vadd.f32 0.0, %v1504
        %1506 = vmatmul.f32.gmra.mxu0 %v1307
        %v1507 = vpop.f32.mrf.mxu0
        %v1508 = vadd.f32 0.0, %v1507
        %1509 = vmatmul.f32.gmra.mxu0 %v1310
        %v1510 = vpop.f32.mrf.mxu0
        %v1511 = vadd.f32 0.0, %v1510
        %1512 = vmatmul.f32.gmra.mxu0 %v1313
        %v1513 = vpop.f32.mrf.mxu0
        %v1514 = vadd.f32 0.0, %v1513
        %1515 = vmatmul.f32.gmra.mxu0 %v1316
        %v1516 = vpop.f32.mrf.mxu0
        %v1517 = vadd.f32 0.0, %v1516
        %1518 = vmatmul.f32.gmra.mxu0 %v1319
        %v1519 = vpop.f32.mrf.mxu0
        %v1520 = vadd.f32 0.0, %v1519
        %1521 = vmatmul.f32.gmra.mxu0 %v1322
        %v1522 = vpop.f32.mrf.mxu0
        %v1523 = vadd.f32 0.0, %v1522
        %1524 = vmatmul.f32.gmra.mxu0 %v1325
        %v1525 = vpop.f32.mrf.mxu0
        %v1526 = vadd.f32 0.0, %v1525
        %1527 = vmatmul.f32.gmra.mxu0 %v1328
        %v1528 = vpop.f32.mrf.mxu0
        %v1529 = vadd.f32 0.0, %v1528
        %1530 = vmatmul.f32.gmra.mxu0 %v1331
        %v1531 = vpop.f32.mrf.mxu0
        %v1532 = vadd.f32 0.0, %v1531
        %1533 = vmatmul.f32.gmra.mxu0 %v1334
        %v1534 = vpop.f32.mrf.mxu0
        %v1535 = vadd.f32 0.0, %v1534
        %1536 = vmatmul.f32.gmra.mxu0 %v1337
        %v1537 = vpop.f32.mrf.mxu0
        %v1538 = vadd.f32 0.0, %v1537
        %1539 = vmatmul.f32.gmra.mxu0 %v1340
        %v1540 = vpop.f32.mrf.mxu0
        %v1541 = vadd.f32 0.0, %v1540
        %1542 = vmatmul.f32.gmra.mxu0 %v1343
        %v1543 = vpop.f32.mrf.mxu0
        %v1544 = vadd.f32 0.0, %v1543
        %1545 = vmatmul.f32.gmra.mxu0 %v1346
        %v1546 = vpop.f32.mrf.mxu0
        %v1547 = vadd.f32 0.0, %v1546
        %1548 = vmatmul.f32.gmra.mxu0 %v1349
        %v1549 = vpop.f32.mrf.mxu0
        %v1550 = vadd.f32 0.0, %v1549
        %1551 = vmatmul.f32.gmra.mxu0 %v1352
        %v1552 = vpop.f32.mrf.mxu0
        %v1553 = vadd.f32 0.0, %v1552
        %1554 = vmatmul.f32.gmra.mxu0 %v1355
        %v1555 = vpop.f32.mrf.mxu0
        %v1556 = vadd.f32 0.0, %v1555
        %1557 = vmatmul.f32.gmra.mxu0 %v1358
        %v1558 = vpop.f32.mrf.mxu0
        %v1559 = vadd.f32 0.0, %v1558
        %1560 = vmatmul.f32.gmra.mxu0 %v1361
        %v1561 = vpop.f32.mrf.mxu0
        %v1562 = vadd.f32 0.0, %v1561
        %1563 = vmatmul.f32.gmra.mxu0 %v1364
        %v1564 = vpop.f32.mrf.mxu0
        %v1565 = vadd.f32 0.0, %v1564
        %1566 = vmatmul.f32.gmra.mxu0 %v1367
        %v1567 = vpop.f32.mrf.mxu0
        %v1568 = vadd.f32 0.0, %v1567
        %1569 = vmatmul.f32.gmra.mxu0 %v1370
        %v1570 = vpop.f32.mrf.mxu0
        %v1571 = vadd.f32 0.0, %v1570
        %1572 = vmatmul.f32.gmra.mxu0 %v1373
        %v1573 = vpop.f32.mrf.mxu0
        %v1574 = vadd.f32 0.0, %v1573
        %1575 = vmatmul.f32.gmra.mxu0 %v1376
        %v1576 = vpop.f32.mrf.mxu0
        %v1577 = vadd.f32 0.0, %v1576
        %1578 = vmatmul.f32.gmra.mxu0 %v1379
        %v1579 = vpop.f32.mrf.mxu0
        %v1580 = vadd.f32 0.0, %v1579
        %1581 = vmatmul.f32.gmra.mxu0 %v1382
        %v1582 = vpop.f32.mrf.mxu0
        %v1583 = vadd.f32 0.0, %v1582
        %1584 = vmatmul.f32.gmra.mxu0 %v1385
        %v1585 = vpop.f32.mrf.mxu0
        %v1586 = vadd.f32 0.0, %v1585
        %1587 = vmatmul.f32.gmra.mxu0 %v1388
        %v1588 = vpop.f32.mrf.mxu0
        %v1589 = vadd.f32 0.0, %v1588
        %1590 = vmatmul.f32.gmra.mxu0 %v1391
        %v1591 = vpop.f32.mrf.mxu0
        %v1592 = vadd.f32 0.0, %v1591
        %1593 = vmatmul.f32.gmra.mxu0 %v1394
        %v1594 = vpop.f32.mrf.mxu0
        %v1595 = vadd.f32 0.0, %v1594
        %1596 = vmatmul.f32.gmra.mxu0 %v1397
        %v1597 = vpop.f32.mrf.mxu0
        %v1598 = vadd.f32 0.0, %v1597
        %1599 = vmatmul.f32.gmra.mxu0 %v1400
        %v1600 = vpop.f32.mrf.mxu0
        %v1601 = vadd.f32 0.0, %v1600
        %1602 = vmatmul.f32.gmra.mxu0 %v1403
        %v1603 = vpop.f32.mrf.mxu0
        %v1604 = vadd.f32 0.0, %v1603
        %1605 = vmatmul.f32.gmra.mxu0 %v1406
        %v1606 = vpop.f32.mrf.mxu0
        %v1607 = vadd.f32 0.0, %v1606
        %1608 = vmatmul.f32.gmra.mxu0 %v1409
        %v1609 = vpop.f32.mrf.mxu0
        %v1610 = vadd.f32 0.0, %v1609
        %1611 = vdwg.mxu0
        %s1612 = scalar_lea.vmem %s1137, 480 [#allocation2]
        %v1613 = vld [vmem:[%s1612] sm:$0xff]
        %v1614 = vld [vmem:[%s1612 + $0x8] sm:$0xff]
        %v1615 = vld [vmem:[%s1612 + $0x10] sm:$0xff]
        %v1616 = vld [vmem:[%s1612 + $0x18] sm:$0xff]
        %v1617 = vld [vmem:[%s1612 + $0x20] sm:$0xff]
        %v1618 = vld [vmem:[%s1612 + $0x28] sm:$0xff]
        %v1619 = vld [vmem:[%s1612 + $0x30] sm:$0xff]
        %v1620 = vld [vmem:[%s1612 + $0x38] sm:$0xff]
        %v1621 = vld [vmem:[%s1612 + $0x40] sm:$0xff]
        %v1622 = vld [vmem:[%s1612 + $0x48] sm:$0xff]
        %v1623 = vld [vmem:[%s1612 + $0x50] sm:$0xff]
        %v1624 = vld [vmem:[%s1612 + $0x58] sm:$0xff]
        %v1625 = vld [vmem:[%s1612 + $0x60] sm:$0xff]
        %v1626 = vld [vmem:[%s1612 + $0x68] sm:$0xff]
        %v1627 = vld [vmem:[%s1612 + $0x70] sm:$0xff]
        %v1628 = vld [vmem:[%s1612 + $0x78] sm:$0xff]
        %v1629 = vld [vmem:[%s1612 + $0x80] sm:$0xff]
        %v1630 = vld [vmem:[%s1612 + $0x88] sm:$0xff]
        %v1631 = vld [vmem:[%s1612 + $0x90] sm:$0xff]
        %v1632 = vld [vmem:[%s1612 + $0x98] sm:$0xff]
        %v1633 = vld [vmem:[%s1612 + $0xa0] sm:$0xff]
        %v1634 = vld [vmem:[%s1612 + $0xa8] sm:$0xff]
        %v1635 = vld [vmem:[%s1612 + $0xb0] sm:$0xff]
        %v1636 = vld [vmem:[%s1612 + $0xb8] sm:$0xff]
        %v1637 = vld [vmem:[%s1612 + $0xc0] sm:$0xff]
        %v1638 = vld [vmem:[%s1612 + $0xc8] sm:$0xff]
        %v1639 = vld [vmem:[%s1612 + $0xd0] sm:$0xff]
        %v1640 = vld [vmem:[%s1612 + $0xd8] sm:$0xff]
        %v1641 = vld [vmem:[%s1612 + $0xe0] sm:$0xff]
        %v1642 = vld [vmem:[%s1612 + $0xe8] sm:$0xff]
        %v1643 = vld [vmem:[%s1612 + $0xf0] sm:$0xff]
        %v1644 = vld [vmem:[%s1612 + $0xf8] sm:$0xff]
        %v1645 = vld [vmem:[%s1612 + $0x100] sm:$0xff]
        %v1646 = vld [vmem:[%s1612 + $0x108] sm:$0xff]
        %v1647 = vld [vmem:[%s1612 + $0x110] sm:$0xff]
        %v1648 = vld [vmem:[%s1612 + $0x118] sm:$0xff]
        %v1649 = vld [vmem:[%s1612 + $0x120] sm:$0xff]
        %v1650 = vld [vmem:[%s1612 + $0x128] sm:$0xff]
        %v1651 = vld [vmem:[%s1612 + $0x130] sm:$0xff]
        %v1652 = vld [vmem:[%s1612 + $0x138] sm:$0xff]
        %v1653 = vld [vmem:[%s1612 + $0x140] sm:$0xff]
        %v1654 = vld [vmem:[%s1612 + $0x148] sm:$0xff]
        %v1655 = vld [vmem:[%s1612 + $0x150] sm:$0xff]
        %v1656 = vld [vmem:[%s1612 + $0x158] sm:$0xff]
        %v1657 = vld [vmem:[%s1612 + $0x160] sm:$0xff]
        %v1658 = vld [vmem:[%s1612 + $0x168] sm:$0xff]
        %v1659 = vld [vmem:[%s1612 + $0x170] sm:$0xff]
        %v1660 = vld [vmem:[%s1612 + $0x178] sm:$0xff]
        %v1661 = vld [vmem:[%s1612 + $0x180] sm:$0xff]
        %v1662 = vld [vmem:[%s1612 + $0x188] sm:$0xff]
        %v1663 = vld [vmem:[%s1612 + $0x190] sm:$0xff]
        %v1664 = vld [vmem:[%s1612 + $0x198] sm:$0xff]
        %v1665 = vld [vmem:[%s1612 + $0x1a0] sm:$0xff]
        %v1666 = vld [vmem:[%s1612 + $0x1a8] sm:$0xff]
        %v1667 = vld [vmem:[%s1612 + $0x1b0] sm:$0xff]
        %v1668 = vld [vmem:[%s1612 + $0x1b8] sm:$0xff]
        %v1669 = vld [vmem:[%s1612 + $0x1c0] sm:$0xff]
        %v1670 = vld [vmem:[%s1612 + $0x1c8] sm:$0xff]
        %v1671 = vld [vmem:[%s1612 + $0x1d0] sm:$0xff]
        %v1672 = vld [vmem:[%s1612 + $0x1d8] sm:$0xff]
        %v1674 = vsel %vm1230, %v1613, 0
        %v1677 = vsel %vm1230, %v1614, 0
        %v1680 = vsel %vm1230, %v1615, 0
        %v1683 = vsel %vm1230, %v1616, 0
        %v1686 = vsel %vm1230, %v1617, 0
        %v1689 = vsel %vm1230, %v1618, 0
        %v1692 = vsel %vm1230, %v1619, 0
        %v1695 = vsel %vm1230, %v1620, 0
        %v1698 = vsel %vm1230, %v1621, 0
        %v1701 = vsel %vm1230, %v1622, 0
        %v1704 = vsel %vm1230, %v1623, 0
        %v1707 = vsel %vm1230, %v1624, 0
        %v1710 = vsel %vm1230, %v1625, 0
        %v1713 = vsel %vm1230, %v1626, 0
        %v1716 = vsel %vm1230, %v1627, 0
        %v1719 = vsel %vm1230, %v1628, 0
        %v1722 = vsel %vm1230, %v1629, 0
        %v1725 = vsel %vm1230, %v1630, 0
        %v1728 = vsel %vm1230, %v1631, 0
        %v1731 = vsel %vm1230, %v1632, 0
        %v1734 = vsel %vm1230, %v1633, 0
        %v1737 = vsel %vm1230, %v1634, 0
        %v1740 = vsel %vm1230, %v1635, 0
        %v1743 = vsel %vm1230, %v1636, 0
        %v1746 = vsel %vm1230, %v1637, 0
        %v1749 = vsel %vm1230, %v1638, 0
        %v1752 = vsel %vm1230, %v1639, 0
        %v1755 = vsel %vm1230, %v1640, 0
        %v1758 = vsel %vm1230, %v1641, 0
        %v1761 = vsel %vm1230, %v1642, 0
        %v1764 = vsel %vm1230, %v1643, 0
        %v1767 = vsel %vm1230, %v1644, 0
        %v1770 = vsel %vm1230, %v1645, 0
        %v1773 = vsel %vm1230, %v1646, 0
        %v1776 = vsel %vm1230, %v1647, 0
        %v1779 = vsel %vm1230, %v1648, 0
        %v1782 = vsel %vm1230, %v1649, 0
        %v1785 = vsel %vm1230, %v1650, 0
        %v1788 = vsel %vm1230, %v1651, 0
        %v1791 = vsel %vm1230, %v1652, 0
        %v1794 = vsel %vm1230, %v1653, 0
        %v1797 = vsel %vm1230, %v1654, 0
        %v1800 = vsel %vm1230, %v1655, 0
        %v1803 = vsel %vm1230, %v1656, 0
        %v1806 = vsel %vm1230, %v1657, 0
        %v1809 = vsel %vm1230, %v1658, 0
        %v1812 = vsel %vm1230, %v1659, 0
        %v1815 = vsel %vm1230, %v1660, 0
        %v1818 = vsel %vm1230, %v1661, 0
        %v1821 = vsel %vm1230, %v1662, 0
        %v1824 = vsel %vm1230, %v1663, 0
        %v1827 = vsel %vm1230, %v1664, 0
        %v1830 = vsel %vm1230, %v1665, 0
        %v1833 = vsel %vm1230, %v1666, 0
        %v1836 = vsel %vm1230, %v1667, 0
        %v1839 = vsel %vm1230, %v1668, 0
        %v1842 = vsel %vm1230, %v1669, 0
        %v1845 = vsel %vm1230, %v1670, 0
        %v1848 = vsel %vm1230, %v1671, 0
        %v1851 = vsel %vm1230, %v1672, 0
        %1853 = vmatpush.msra.mxu0 0.0
        %1854 = vmatpush.msra.mxu0 0.0
        %1855 = vmatpush.msra.mxu0 0.0
        %1856 = vmatpush.msra.mxu0 0.0
        %1857 = vmatpush.msra.mxu0 0.0
        %1858 = vmatpush.msra.mxu0 0.0
        %1859 = vmatpush.msra.mxu0 0.0
        %1860 = vmatpush.msra.mxu0 0.0
        %1861 = vmatpush.msra.mxu0 0.0
        %1862 = vmatpush.msra.mxu0 0.0
        %1863 = vmatpush.msra.mxu0 0.0
        %1864 = vmatpush.msra.mxu0 %v1413
        %1865 = vmatpush.msra.mxu0 %v1168
        %1866 = vmatpush.msra.mxu0 %v1167
        %1867 = vmatpush.msra.mxu0 %v1166
        %1868 = vmatpush.msra.mxu0 %v1165
        %1869 = vmatmul.f32.gmra.mxu0 %v1674
        %v1870 = vpop.f32.mrf.mxu0
        %v1871 = vadd.f32 0.0, %v1870
        %1872 = vmatmul.f32.gmra.mxu0 %v1677
        %v1873 = vpop.f32.mrf.mxu0
        %v1874 = vadd.f32 0.0, %v1873
        %1875 = vmatmul.f32.gmra.mxu0 %v1680
        %v1876 = vpop.f32.mrf.mxu0
        %v1877 = vadd.f32 0.0, %v1876
        %1878 = vmatmul.f32.gmra.mxu0 %v1683
        %v1879 = vpop.f32.mrf.mxu0
        %v1880 = vadd.f32 0.0, %v1879
        %1881 = vmatmul.f32.gmra.mxu0 %v1686
        %v1882 = vpop.f32.mrf.mxu0
        %v1883 = vadd.f32 0.0, %v1882
        %1884 = vmatmul.f32.gmra.mxu0 %v1689
        %v1885 = vpop.f32.mrf.mxu0
        %v1886 = vadd.f32 0.0, %v1885
        %1887 = vmatmul.f32.gmra.mxu0 %v1692
        %v1888 = vpop.f32.mrf.mxu0
        %v1889 = vadd.f32 0.0, %v1888
        %1890 = vmatmul.f32.gmra.mxu0 %v1695
        %v1891 = vpop.f32.mrf.mxu0
        %v1892 = vadd.f32 0.0, %v1891
        %1893 = vmatmul.f32.gmra.mxu0 %v1698
        %v1894 = vpop.f32.mrf.mxu0
        %v1895 = vadd.f32 0.0, %v1894
        %1896 = vmatmul.f32.gmra.mxu0 %v1701
        %v1897 = vpop.f32.mrf.mxu0
        %v1898 = vadd.f32 0.0, %v1897
        %1899 = vmatmul.f32.gmra.mxu0 %v1704
        %v1900 = vpop.f32.mrf.mxu0
        %v1901 = vadd.f32 0.0, %v1900
        %1902 = vmatmul.f32.gmra.mxu0 %v1707
        %v1903 = vpop.f32.mrf.mxu0
        %v1904 = vadd.f32 0.0, %v1903
        %1905 = vmatmul.f32.gmra.mxu0 %v1710
        %v1906 = vpop.f32.mrf.mxu0
        %v1907 = vadd.f32 0.0, %v1906
        %1908 = vmatmul.f32.gmra.mxu0 %v1713
        %v1909 = vpop.f32.mrf.mxu0
        %v1910 = vadd.f32 0.0, %v1909
        %1911 = vmatmul.f32.gmra.mxu0 %v1716
        %v1912 = vpop.f32.mrf.mxu0
        %v1913 = vadd.f32 0.0, %v1912
        %1914 = vmatmul.f32.gmra.mxu0 %v1719
        %v1915 = vpop.f32.mrf.mxu0
        %v1916 = vadd.f32 0.0, %v1915
        %1917 = vmatmul.f32.gmra.mxu0 %v1722
        %v1918 = vpop.f32.mrf.mxu0
        %v1919 = vadd.f32 0.0, %v1918
        %1920 = vmatmul.f32.gmra.mxu0 %v1725
        %v1921 = vpop.f32.mrf.mxu0
        %v1922 = vadd.f32 0.0, %v1921
        %1923 = vmatmul.f32.gmra.mxu0 %v1728
        %v1924 = vpop.f32.mrf.mxu0
        %v1925 = vadd.f32 0.0, %v1924
        %1926 = vmatmul.f32.gmra.mxu0 %v1731
        %v1927 = vpop.f32.mrf.mxu0
        %v1928 = vadd.f32 0.0, %v1927
        %1929 = vmatmul.f32.gmra.mxu0 %v1734
        %v1930 = vpop.f32.mrf.mxu0
        %v1931 = vadd.f32 0.0, %v1930
        %1932 = vmatmul.f32.gmra.mxu0 %v1737
        %v1933 = vpop.f32.mrf.mxu0
        %v1934 = vadd.f32 0.0, %v1933
        %1935 = vmatmul.f32.gmra.mxu0 %v1740
        %v1936 = vpop.f32.mrf.mxu0
        %v1937 = vadd.f32 0.0, %v1936
        %1938 = vmatmul.f32.gmra.mxu0 %v1743
        %v1939 = vpop.f32.mrf.mxu0
        %v1940 = vadd.f32 0.0, %v1939
        %1941 = vmatmul.f32.gmra.mxu0 %v1746
        %v1942 = vpop.f32.mrf.mxu0
        %v1943 = vadd.f32 0.0, %v1942
        %1944 = vmatmul.f32.gmra.mxu0 %v1749
        %v1945 = vpop.f32.mrf.mxu0
        %v1946 = vadd.f32 0.0, %v1945
        %1947 = vmatmul.f32.gmra.mxu0 %v1752
        %v1948 = vpop.f32.mrf.mxu0
        %v1949 = vadd.f32 0.0, %v1948
        %1950 = vmatmul.f32.gmra.mxu0 %v1755
        %v1951 = vpop.f32.mrf.mxu0
        %v1952 = vadd.f32 0.0, %v1951
        %1953 = vmatmul.f32.gmra.mxu0 %v1758
        %v1954 = vpop.f32.mrf.mxu0
        %v1955 = vadd.f32 0.0, %v1954
        %1956 = vmatmul.f32.gmra.mxu0 %v1761
        %v1957 = vpop.f32.mrf.mxu0
        %v1958 = vadd.f32 0.0, %v1957
        %1959 = vmatmul.f32.gmra.mxu0 %v1764
        %v1960 = vpop.f32.mrf.mxu0
        %v1961 = vadd.f32 0.0, %v1960
        %1962 = vmatmul.f32.gmra.mxu0 %v1767
        %v1963 = vpop.f32.mrf.mxu0
        %v1964 = vadd.f32 0.0, %v1963
        %1965 = vmatmul.f32.gmra.mxu0 %v1770
        %v1966 = vpop.f32.mrf.mxu0
        %v1967 = vadd.f32 0.0, %v1966
        %1968 = vmatmul.f32.gmra.mxu0 %v1773
        %v1969 = vpop.f32.mrf.mxu0
        %v1970 = vadd.f32 0.0, %v1969
        %1971 = vmatmul.f32.gmra.mxu0 %v1776
        %v1972 = vpop.f32.mrf.mxu0
        %v1973 = vadd.f32 0.0, %v1972
        %1974 = vmatmul.f32.gmra.mxu0 %v1779
        %v1975 = vpop.f32.mrf.mxu0
        %v1976 = vadd.f32 0.0, %v1975
        %1977 = vmatmul.f32.gmra.mxu0 %v1782
        %v1978 = vpop.f32.mrf.mxu0
        %v1979 = vadd.f32 0.0, %v1978
        %1980 = vmatmul.f32.gmra.mxu0 %v1785
        %v1981 = vpop.f32.mrf.mxu0
        %v1982 = vadd.f32 0.0, %v1981
        %1983 = vmatmul.f32.gmra.mxu0 %v1788
        %v1984 = vpop.f32.mrf.mxu0
        %v1985 = vadd.f32 0.0, %v1984
        %1986 = vmatmul.f32.gmra.mxu0 %v1791
        %v1987 = vpop.f32.mrf.mxu0
        %v1988 = vadd.f32 0.0, %v1987
        %1989 = vmatmul.f32.gmra.mxu0 %v1794
        %v1990 = vpop.f32.mrf.mxu0
        %v1991 = vadd.f32 0.0, %v1990
        %1992 = vmatmul.f32.gmra.mxu0 %v1797
        %v1993 = vpop.f32.mrf.mxu0
        %v1994 = vadd.f32 0.0, %v1993
        %1995 = vmatmul.f32.gmra.mxu0 %v1800
        %v1996 = vpop.f32.mrf.mxu0
        %v1997 = vadd.f32 0.0, %v1996
        %1998 = vmatmul.f32.gmra.mxu0 %v1803
        %v1999 = vpop.f32.mrf.mxu0
        %v2000 = vadd.f32 0.0, %v1999
        %2001 = vmatmul.f32.gmra.mxu0 %v1806
        %v2002 = vpop.f32.mrf.mxu0
        %v2003 = vadd.f32 0.0, %v2002
        %2004 = vmatmul.f32.gmra.mxu0 %v1809
        %v2005 = vpop.f32.mrf.mxu0
        %v2006 = vadd.f32 0.0, %v2005
        %2007 = vmatmul.f32.gmra.mxu0 %v1812
        %v2008 = vpop.f32.mrf.mxu0
        %v2009 = vadd.f32 0.0, %v2008
        %2010 = vmatmul.f32.gmra.mxu0 %v1815
        %v2011 = vpop.f32.mrf.mxu0
        %v2012 = vadd.f32 0.0, %v2011
        %2013 = vmatmul.f32.gmra.mxu0 %v1818
        %v2014 = vpop.f32.mrf.mxu0
        %v2015 = vadd.f32 0.0, %v2014
        %2016 = vmatmul.f32.gmra.mxu0 %v1821
        %v2017 = vpop.f32.mrf.mxu0
        %v2018 = vadd.f32 0.0, %v2017
        %2019 = vmatmul.f32.gmra.mxu0 %v1824
        %v2020 = vpop.f32.mrf.mxu0
        %v2021 = vadd.f32 0.0, %v2020
        %2022 = vmatmul.f32.gmra.mxu0 %v1827
        %v2023 = vpop.f32.mrf.mxu0
        %v2024 = vadd.f32 0.0, %v2023
        %2025 = vmatmul.f32.gmra.mxu0 %v1830
        %v2026 = vpop.f32.mrf.mxu0
        %v2027 = vadd.f32 0.0, %v2026
        %2028 = vmatmul.f32.gmra.mxu0 %v1833
        %v2029 = vpop.f32.mrf.mxu0
        %v2030 = vadd.f32 0.0, %v2029
        %2031 = vmatmul.f32.gmra.mxu0 %v1836
        %v2032 = vpop.f32.mrf.mxu0
        %v2033 = vadd.f32 0.0, %v2032
        %2034 = vmatmul.f32.gmra.mxu0 %v1839
        %v2035 = vpop.f32.mrf.mxu0
        %v2036 = vadd.f32 0.0, %v2035
        %2037 = vmatmul.f32.gmra.mxu0 %v1842
        %v2038 = vpop.f32.mrf.mxu0
        %v2039 = vadd.f32 0.0, %v2038
        %2040 = vmatmul.f32.gmra.mxu0 %v1845
        %v2041 = vpop.f32.mrf.mxu0
        %v2042 = vadd.f32 0.0, %v2041
        %2043 = vmatmul.f32.gmra.mxu0 %v1848
        %v2044 = vpop.f32.mrf.mxu0
        %v2045 = vadd.f32 0.0, %v2044
        %2046 = vmatmul.f32.gmra.mxu0 %v1851
        %v2047 = vpop.f32.mrf.mxu0
        %v2048 = vadd.f32 0.0, %v2047
        %2049 = vdwg.mxu0
        %v2050 = vmax.f32 %v1433, %v1871
        %v2051 = vmax.f32 %v1436, %v1874
        %v2052 = vmax.f32 %v1439, %v1877
        %v2053 = vmax.f32 %v1442, %v1880
        %v2054 = vmax.f32 %v1445, %v1883
        %v2055 = vmax.f32 %v1448, %v1886
        %v2056 = vmax.f32 %v1451, %v1889
        %v2057 = vmax.f32 %v1454, %v1892
        %v2058 = vmax.f32 %v1457, %v1895
        %v2059 = vmax.f32 %v1460, %v1898
        %v2060 = vmax.f32 %v1463, %v1901
        %v2061 = vmax.f32 %v1466, %v1904
        %v2062 = vmax.f32 %v1469, %v1907
        %v2063 = vmax.f32 %v1472, %v1910
        %v2064 = vmax.f32 %v1475, %v1913
        %v2065 = vmax.f32 %v1478, %v1916
        %v2066 = vmax.f32 %v1481, %v1919
        %v2067 = vmax.f32 %v1484, %v1922
        %v2068 = vmax.f32 %v1487, %v1925
        %v2069 = vmax.f32 %v1490, %v1928
        %v2070 = vmax.f32 %v1493, %v1931
        %v2071 = vmax.f32 %v1496, %v1934
        %v2072 = vmax.f32 %v1499, %v1937
        %v2073 = vmax.f32 %v1502, %v1940
        %v2074 = vmax.f32 %v1505, %v1943
        %v2075 = vmax.f32 %v1508, %v1946
        %v2076 = vmax.f32 %v1511, %v1949
        %v2077 = vmax.f32 %v1514, %v1952
        %v2078 = vmax.f32 %v1517, %v1955
        %v2079 = vmax.f32 %v1520, %v1958
        %v2080 = vmax.f32 %v1523, %v1961
        %v2081 = vmax.f32 %v1526, %v1964
        %v2082 = vmax.f32 %v1529, %v1967
        %v2083 = vmax.f32 %v1532, %v1970
        %v2084 = vmax.f32 %v1535, %v1973
        %v2085 = vmax.f32 %v1538, %v1976
        %v2086 = vmax.f32 %v1541, %v1979
        %v2087 = vmax.f32 %v1544, %v1982
        %v2088 = vmax.f32 %v1547, %v1985
        %v2089 = vmax.f32 %v1550, %v1988
        %v2090 = vmax.f32 %v1553, %v1991
        %v2091 = vmax.f32 %v1556, %v1994
        %v2092 = vmax.f32 %v1559, %v1997
        %v2093 = vmax.f32 %v1562, %v2000
        %v2094 = vmax.f32 %v1565, %v2003
        %v2095 = vmax.f32 %v1568, %v2006
        %v2096 = vmax.f32 %v1571, %v2009
        %v2097 = vmax.f32 %v1574, %v2012
        %v2098 = vmax.f32 %v1577, %v2015
        %v2099 = vmax.f32 %v1580, %v2018
        %v2100 = vmax.f32 %v1583, %v2021
        %v2101 = vmax.f32 %v1586, %v2024
        %v2102 = vmax.f32 %v1589, %v2027
        %v2103 = vmax.f32 %v1592, %v2030
        %v2104 = vmax.f32 %v1595, %v2033
        %v2105 = vmax.f32 %v1598, %v2036
        %v2106 = vmax.f32 %v1601, %v2039
        %v2107 = vmax.f32 %v1604, %v2042
        %v2108 = vmax.f32 %v1607, %v2045
        %v2109 = vmax.f32 %v1610, %v2048
        %s2110 = scalar_lea.vmem %s1137, 960 [#allocation2]
        %v2111 = vld [vmem:[%s2110] sm:$0xff]
        %v2112 = vld [vmem:[%s2110 + $0x8] sm:$0xff]
        %v2113 = vld [vmem:[%s2110 + $0x10] sm:$0xff]
        %v2114 = vld [vmem:[%s2110 + $0x18] sm:$0xff]
        %v2115 = vld [vmem:[%s2110 + $0x20] sm:$0xff]
        %v2116 = vld [vmem:[%s2110 + $0x28] sm:$0xff]
        %v2117 = vld [vmem:[%s2110 + $0x30] sm:$0xff]
        %v2118 = vld [vmem:[%s2110 + $0x38] sm:$0xff]
        %v2119 = vld [vmem:[%s2110 + $0x40] sm:$0xff]
        %v2120 = vld [vmem:[%s2110 + $0x48] sm:$0xff]
        %v2121 = vld [vmem:[%s2110 + $0x50] sm:$0xff]
        %v2122 = vld [vmem:[%s2110 + $0x58] sm:$0xff]
        %v2123 = vld [vmem:[%s2110 + $0x60] sm:$0xff]
        %v2124 = vld [vmem:[%s2110 + $0x68] sm:$0xff]
        %v2125 = vld [vmem:[%s2110 + $0x70] sm:$0xff]
        %v2126 = vld [vmem:[%s2110 + $0x78] sm:$0xff]
        %v2127 = vld [vmem:[%s2110 + $0x80] sm:$0xff]
        %v2128 = vld [vmem:[%s2110 + $0x88] sm:$0xff]
        %v2129 = vld [vmem:[%s2110 + $0x90] sm:$0xff]
        %v2130 = vld [vmem:[%s2110 + $0x98] sm:$0xff]
        %v2131 = vld [vmem:[%s2110 + $0xa0] sm:$0xff]
        %v2132 = vld [vmem:[%s2110 + $0xa8] sm:$0xff]
        %v2133 = vld [vmem:[%s2110 + $0xb0] sm:$0xff]
        %v2134 = vld [vmem:[%s2110 + $0xb8] sm:$0xff]
        %v2135 = vld [vmem:[%s2110 + $0xc0] sm:$0xff]
        %v2136 = vld [vmem:[%s2110 + $0xc8] sm:$0xff]
        %v2137 = vld [vmem:[%s2110 + $0xd0] sm:$0xff]
        %v2138 = vld [vmem:[%s2110 + $0xd8] sm:$0xff]
        %v2139 = vld [vmem:[%s2110 + $0xe0] sm:$0xff]
        %v2140 = vld [vmem:[%s2110 + $0xe8] sm:$0xff]
        %v2141 = vld [vmem:[%s2110 + $0xf0] sm:$0xff]
        %v2142 = vld [vmem:[%s2110 + $0xf8] sm:$0xff]
        %v2143 = vld [vmem:[%s2110 + $0x100] sm:$0xff]
        %v2144 = vld [vmem:[%s2110 + $0x108] sm:$0xff]
        %v2145 = vld [vmem:[%s2110 + $0x110] sm:$0xff]
        %v2146 = vld [vmem:[%s2110 + $0x118] sm:$0xff]
        %v2147 = vld [vmem:[%s2110 + $0x120] sm:$0xff]
        %v2148 = vld [vmem:[%s2110 + $0x128] sm:$0xff]
        %v2149 = vld [vmem:[%s2110 + $0x130] sm:$0xff]
        %v2150 = vld [vmem:[%s2110 + $0x138] sm:$0xff]
        %v2151 = vld [vmem:[%s2110 + $0x140] sm:$0xff]
        %v2152 = vld [vmem:[%s2110 + $0x148] sm:$0xff]
        %v2153 = vld [vmem:[%s2110 + $0x150] sm:$0xff]
        %v2154 = vld [vmem:[%s2110 + $0x158] sm:$0xff]
        %v2155 = vld [vmem:[%s2110 + $0x160] sm:$0xff]
        %v2156 = vld [vmem:[%s2110 + $0x168] sm:$0xff]
        %v2157 = vld [vmem:[%s2110 + $0x170] sm:$0xff]
        %v2158 = vld [vmem:[%s2110 + $0x178] sm:$0xff]
        %v2159 = vld [vmem:[%s2110 + $0x180] sm:$0xff]
        %v2160 = vld [vmem:[%s2110 + $0x188] sm:$0xff]
        %v2161 = vld [vmem:[%s2110 + $0x190] sm:$0xff]
        %v2162 = vld [vmem:[%s2110 + $0x198] sm:$0xff]
        %v2163 = vld [vmem:[%s2110 + $0x1a0] sm:$0xff]
        %v2164 = vld [vmem:[%s2110 + $0x1a8] sm:$0xff]
        %v2165 = vld [vmem:[%s2110 + $0x1b0] sm:$0xff]
        %v2166 = vld [vmem:[%s2110 + $0x1b8] sm:$0xff]
        %v2167 = vld [vmem:[%s2110 + $0x1c0] sm:$0xff]
        %v2168 = vld [vmem:[%s2110 + $0x1c8] sm:$0xff]
        %v2169 = vld [vmem:[%s2110 + $0x1d0] sm:$0xff]
        %v2170 = vld [vmem:[%s2110 + $0x1d8] sm:$0xff]
        %v2172 = vsel %vm1230, %v2111, 0
        %v2175 = vsel %vm1230, %v2112, 0
        %v2178 = vsel %vm1230, %v2113, 0
        %v2181 = vsel %vm1230, %v2114, 0
        %v2184 = vsel %vm1230, %v2115, 0
        %v2187 = vsel %vm1230, %v2116, 0
        %v2190 = vsel %vm1230, %v2117, 0
        %v2193 = vsel %vm1230, %v2118, 0
        %v2196 = vsel %vm1230, %v2119, 0
        %v2199 = vsel %vm1230, %v2120, 0
        %v2202 = vsel %vm1230, %v2121, 0
        %v2205 = vsel %vm1230, %v2122, 0
        %v2208 = vsel %vm1230, %v2123, 0
        %v2211 = vsel %vm1230, %v2124, 0
        %v2214 = vsel %vm1230, %v2125, 0
        %v2217 = vsel %vm1230, %v2126, 0
        %v2220 = vsel %vm1230, %v2127, 0
        %v2223 = vsel %vm1230, %v2128, 0
        %v2226 = vsel %vm1230, %v2129, 0
        %v2229 = vsel %vm1230, %v2130, 0
        %v2232 = vsel %vm1230, %v2131, 0
        %v2235 = vsel %vm1230, %v2132, 0
        %v2238 = vsel %vm1230, %v2133, 0
        %v2241 = vsel %vm1230, %v2134, 0
        %v2244 = vsel %vm1230, %v2135, 0
        %v2247 = vsel %vm1230, %v2136, 0
        %v2250 = vsel %vm1230, %v2137, 0
        %v2253 = vsel %vm1230, %v2138, 0
        %v2256 = vsel %vm1230, %v2139, 0
        %v2259 = vsel %vm1230, %v2140, 0
        %v2262 = vsel %vm1230, %v2141, 0
        %v2265 = vsel %vm1230, %v2142, 0
        %v2268 = vsel %vm1230, %v2143, 0
        %v2271 = vsel %vm1230, %v2144, 0
        %v2274 = vsel %vm1230, %v2145, 0
        %v2277 = vsel %vm1230, %v2146, 0
        %v2280 = vsel %vm1230, %v2147, 0
        %v2283 = vsel %vm1230, %v2148, 0
        %v2286 = vsel %vm1230, %v2149, 0
        %v2289 = vsel %vm1230, %v2150, 0
        %v2292 = vsel %vm1230, %v2151, 0
        %v2295 = vsel %vm1230, %v2152, 0
        %v2298 = vsel %vm1230, %v2153, 0
        %v2301 = vsel %vm1230, %v2154, 0
        %v2304 = vsel %vm1230, %v2155, 0
        %v2307 = vsel %vm1230, %v2156, 0
        %v2310 = vsel %vm1230, %v2157, 0
        %v2313 = vsel %vm1230, %v2158, 0
        %v2316 = vsel %vm1230, %v2159, 0
        %v2319 = vsel %vm1230, %v2160, 0
        %v2322 = vsel %vm1230, %v2161, 0
        %v2325 = vsel %vm1230, %v2162, 0
        %v2328 = vsel %vm1230, %v2163, 0
        %v2331 = vsel %vm1230, %v2164, 0
        %v2334 = vsel %vm1230, %v2165, 0
        %v2337 = vsel %vm1230, %v2166, 0
        %v2340 = vsel %vm1230, %v2167, 0
        %v2343 = vsel %vm1230, %v2168, 0
        %v2346 = vsel %vm1230, %v2169, 0
        %v2349 = vsel %vm1230, %v2170, 0
        %2351 = vmatpush.msra.mxu0 0.0
        %2352 = vmatpush.msra.mxu0 0.0
        %2353 = vmatpush.msra.mxu0 0.0
        %2354 = vmatpush.msra.mxu0 0.0
        %2355 = vmatpush.msra.mxu0 0.0
        %2356 = vmatpush.msra.mxu0 0.0
        %2357 = vmatpush.msra.mxu0 0.0
        %2358 = vmatpush.msra.mxu0 0.0
        %2359 = vmatpush.msra.mxu0 0.0
        %2360 = vmatpush.msra.mxu0 0.0
        %2361 = vmatpush.msra.mxu0 0.0
        %2362 = vmatpush.msra.mxu0 %v1413
        %2363 = vmatpush.msra.mxu0 %v1168
        %2364 = vmatpush.msra.mxu0 %v1167
        %2365 = vmatpush.msra.mxu0 %v1166
        %2366 = vmatpush.msra.mxu0 %v1165
        %2367 = vmatmul.f32.gmra.mxu0 %v2172
        %v2368 = vpop.f32.mrf.mxu0
        %v2369 = vadd.f32 0.0, %v2368
        %2370 = vmatmul.f32.gmra.mxu0 %v2175
        %v2371 = vpop.f32.mrf.mxu0
        %v2372 = vadd.f32 0.0, %v2371
        %2373 = vmatmul.f32.gmra.mxu0 %v2178
        %v2374 = vpop.f32.mrf.mxu0
        %v2375 = vadd.f32 0.0, %v2374
        %2376 = vmatmul.f32.gmra.mxu0 %v2181
        %v2377 = vpop.f32.mrf.mxu0
        %v2378 = vadd.f32 0.0, %v2377
        %2379 = vmatmul.f32.gmra.mxu0 %v2184
        %v2380 = vpop.f32.mrf.mxu0
        %v2381 = vadd.f32 0.0, %v2380
        %2382 = vmatmul.f32.gmra.mxu0 %v2187
        %v2383 = vpop.f32.mrf.mxu0
        %v2384 = vadd.f32 0.0, %v2383
        %2385 = vmatmul.f32.gmra.mxu0 %v2190
        %v2386 = vpop.f32.mrf.mxu0
        %v2387 = vadd.f32 0.0, %v2386
        %2388 = vmatmul.f32.gmra.mxu0 %v2193
        %v2389 = vpop.f32.mrf.mxu0
        %v2390 = vadd.f32 0.0, %v2389
        %2391 = vmatmul.f32.gmra.mxu0 %v2196
        %v2392 = vpop.f32.mrf.mxu0
        %v2393 = vadd.f32 0.0, %v2392
        %2394 = vmatmul.f32.gmra.mxu0 %v2199
        %v2395 = vpop.f32.mrf.mxu0
        %v2396 = vadd.f32 0.0, %v2395
        %2397 = vmatmul.f32.gmra.mxu0 %v2202
        %v2398 = vpop.f32.mrf.mxu0
        %v2399 = vadd.f32 0.0, %v2398
        %2400 = vmatmul.f32.gmra.mxu0 %v2205
        %v2401 = vpop.f32.mrf.mxu0
        %v2402 = vadd.f32 0.0, %v2401
        %2403 = vmatmul.f32.gmra.mxu0 %v2208
        %v2404 = vpop.f32.mrf.mxu0
        %v2405 = vadd.f32 0.0, %v2404
        %2406 = vmatmul.f32.gmra.mxu0 %v2211
        %v2407 = vpop.f32.mrf.mxu0
        %v2408 = vadd.f32 0.0, %v2407
        %2409 = vmatmul.f32.gmra.mxu0 %v2214
        %v2410 = vpop.f32.mrf.mxu0
        %v2411 = vadd.f32 0.0, %v2410
        %2412 = vmatmul.f32.gmra.mxu0 %v2217
        %v2413 = vpop.f32.mrf.mxu0
        %v2414 = vadd.f32 0.0, %v2413
        %2415 = vmatmul.f32.gmra.mxu0 %v2220
        %v2416 = vpop.f32.mrf.mxu0
        %v2417 = vadd.f32 0.0, %v2416
        %2418 = vmatmul.f32.gmra.mxu0 %v2223
        %v2419 = vpop.f32.mrf.mxu0
        %v2420 = vadd.f32 0.0, %v2419
        %2421 = vmatmul.f32.gmra.mxu0 %v2226
        %v2422 = vpop.f32.mrf.mxu0
        %v2423 = vadd.f32 0.0, %v2422
        %2424 = vmatmul.f32.gmra.mxu0 %v2229
        %v2425 = vpop.f32.mrf.mxu0
        %v2426 = vadd.f32 0.0, %v2425
        %2427 = vmatmul.f32.gmra.mxu0 %v2232
        %v2428 = vpop.f32.mrf.mxu0
        %v2429 = vadd.f32 0.0, %v2428
        %2430 = vmatmul.f32.gmra.mxu0 %v2235
        %v2431 = vpop.f32.mrf.mxu0
        %v2432 = vadd.f32 0.0, %v2431
        %2433 = vmatmul.f32.gmra.mxu0 %v2238
        %v2434 = vpop.f32.mrf.mxu0
        %v2435 = vadd.f32 0.0, %v2434
        %2436 = vmatmul.f32.gmra.mxu0 %v2241
        %v2437 = vpop.f32.mrf.mxu0
        %v2438 = vadd.f32 0.0, %v2437
        %2439 = vmatmul.f32.gmra.mxu0 %v2244
        %v2440 = vpop.f32.mrf.mxu0
        %v2441 = vadd.f32 0.0, %v2440
        %2442 = vmatmul.f32.gmra.mxu0 %v2247
        %v2443 = vpop.f32.mrf.mxu0
        %v2444 = vadd.f32 0.0, %v2443
        %2445 = vmatmul.f32.gmra.mxu0 %v2250
        %v2446 = vpop.f32.mrf.mxu0
        %v2447 = vadd.f32 0.0, %v2446
        %2448 = vmatmul.f32.gmra.mxu0 %v2253
        %v2449 = vpop.f32.mrf.mxu0
        %v2450 = vadd.f32 0.0, %v2449
        %2451 = vmatmul.f32.gmra.mxu0 %v2256
        %v2452 = vpop.f32.mrf.mxu0
        %v2453 = vadd.f32 0.0, %v2452
        %2454 = vmatmul.f32.gmra.mxu0 %v2259
        %v2455 = vpop.f32.mrf.mxu0
        %v2456 = vadd.f32 0.0, %v2455
        %2457 = vmatmul.f32.gmra.mxu0 %v2262
        %v2458 = vpop.f32.mrf.mxu0
        %v2459 = vadd.f32 0.0, %v2458
        %2460 = vmatmul.f32.gmra.mxu0 %v2265
        %v2461 = vpop.f32.mrf.mxu0
        %v2462 = vadd.f32 0.0, %v2461
        %2463 = vmatmul.f32.gmra.mxu0 %v2268
        %v2464 = vpop.f32.mrf.mxu0
        %v2465 = vadd.f32 0.0, %v2464
        %2466 = vmatmul.f32.gmra.mxu0 %v2271
        %v2467 = vpop.f32.mrf.mxu0
        %v2468 = vadd.f32 0.0, %v2467
        %2469 = vmatmul.f32.gmra.mxu0 %v2274
        %v2470 = vpop.f32.mrf.mxu0
        %v2471 = vadd.f32 0.0, %v2470
        %2472 = vmatmul.f32.gmra.mxu0 %v2277
        %v2473 = vpop.f32.mrf.mxu0
        %v2474 = vadd.f32 0.0, %v2473
        %2475 = vmatmul.f32.gmra.mxu0 %v2280
        %v2476 = vpop.f32.mrf.mxu0
        %v2477 = vadd.f32 0.0, %v2476
        %2478 = vmatmul.f32.gmra.mxu0 %v2283
        %v2479 = vpop.f32.mrf.mxu0
        %v2480 = vadd.f32 0.0, %v2479
        %2481 = vmatmul.f32.gmra.mxu0 %v2286
        %v2482 = vpop.f32.mrf.mxu0
        %v2483 = vadd.f32 0.0, %v2482
        %2484 = vmatmul.f32.gmra.mxu0 %v2289
        %v2485 = vpop.f32.mrf.mxu0
        %v2486 = vadd.f32 0.0, %v2485
        %2487 = vmatmul.f32.gmra.mxu0 %v2292
        %v2488 = vpop.f32.mrf.mxu0
        %v2489 = vadd.f32 0.0, %v2488
        %2490 = vmatmul.f32.gmra.mxu0 %v2295
        %v2491 = vpop.f32.mrf.mxu0
        %v2492 = vadd.f32 0.0, %v2491
        %2493 = vmatmul.f32.gmra.mxu0 %v2298
        %v2494 = vpop.f32.mrf.mxu0
        %v2495 = vadd.f32 0.0, %v2494
        %2496 = vmatmul.f32.gmra.mxu0 %v2301
        %v2497 = vpop.f32.mrf.mxu0
        %v2498 = vadd.f32 0.0, %v2497
        %2499 = vmatmul.f32.gmra.mxu0 %v2304
        %v2500 = vpop.f32.mrf.mxu0
        %v2501 = vadd.f32 0.0, %v2500
        %2502 = vmatmul.f32.gmra.mxu0 %v2307
        %v2503 = vpop.f32.mrf.mxu0
        %v2504 = vadd.f32 0.0, %v2503
        %2505 = vmatmul.f32.gmra.mxu0 %v2310
        %v2506 = vpop.f32.mrf.mxu0
        %v2507 = vadd.f32 0.0, %v2506
        %2508 = vmatmul.f32.gmra.mxu0 %v2313
        %v2509 = vpop.f32.mrf.mxu0
        %v2510 = vadd.f32 0.0, %v2509
        %2511 = vmatmul.f32.gmra.mxu0 %v2316
        %v2512 = vpop.f32.mrf.mxu0
        %v2513 = vadd.f32 0.0, %v2512
        %2514 = vmatmul.f32.gmra.mxu0 %v2319
        %v2515 = vpop.f32.mrf.mxu0
        %v2516 = vadd.f32 0.0, %v2515
        %2517 = vmatmul.f32.gmra.mxu0 %v2322
        %v2518 = vpop.f32.mrf.mxu0
        %v2519 = vadd.f32 0.0, %v2518
        %2520 = vmatmul.f32.gmra.mxu0 %v2325
        %v2521 = vpop.f32.mrf.mxu0
        %v2522 = vadd.f32 0.0, %v2521
        %2523 = vmatmul.f32.gmra.mxu0 %v2328
        %v2524 = vpop.f32.mrf.mxu0
        %v2525 = vadd.f32 0.0, %v2524
        %2526 = vmatmul.f32.gmra.mxu0 %v2331
        %v2527 = vpop.f32.mrf.mxu0
        %v2528 = vadd.f32 0.0, %v2527
        %2529 = vmatmul.f32.gmra.mxu0 %v2334
        %v2530 = vpop.f32.mrf.mxu0
        %v2531 = vadd.f32 0.0, %v2530
        %2532 = vmatmul.f32.gmra.mxu0 %v2337
        %v2533 = vpop.f32.mrf.mxu0
        %v2534 = vadd.f32 0.0, %v2533
        %2535 = vmatmul.f32.gmra.mxu0 %v2340
        %v2536 = vpop.f32.mrf.mxu0
        %v2537 = vadd.f32 0.0, %v2536
        %2538 = vmatmul.f32.gmra.mxu0 %v2343
        %v2539 = vpop.f32.mrf.mxu0
        %v2540 = vadd.f32 0.0, %v2539
        %2541 = vmatmul.f32.gmra.mxu0 %v2346
        %v2542 = vpop.f32.mrf.mxu0
        %v2543 = vadd.f32 0.0, %v2542
        %2544 = vmatmul.f32.gmra.mxu0 %v2349
        %v2545 = vpop.f32.mrf.mxu0
        %v2546 = vadd.f32 0.0, %v2545
        %2547 = vdwg.mxu0
        %v2548 = vmax.f32 %v2050, %v2369
        %v2549 = vmax.f32 %v2051, %v2372
        %v2550 = vmax.f32 %v2052, %v2375
        %v2551 = vmax.f32 %v2053, %v2378
        %v2552 = vmax.f32 %v2054, %v2381
        %v2553 = vmax.f32 %v2055, %v2384
        %v2554 = vmax.f32 %v2056, %v2387
        %v2555 = vmax.f32 %v2057, %v2390
        %v2556 = vmax.f32 %v2058, %v2393
        %v2557 = vmax.f32 %v2059, %v2396
        %v2558 = vmax.f32 %v2060, %v2399
        %v2559 = vmax.f32 %v2061, %v2402
        %v2560 = vmax.f32 %v2062, %v2405
        %v2561 = vmax.f32 %v2063, %v2408
        %v2562 = vmax.f32 %v2064, %v2411
        %v2563 = vmax.f32 %v2065, %v2414
        %v2564 = vmax.f32 %v2066, %v2417
        %v2565 = vmax.f32 %v2067, %v2420
        %v2566 = vmax.f32 %v2068, %v2423
        %v2567 = vmax.f32 %v2069, %v2426
        %v2568 = vmax.f32 %v2070, %v2429
        %v2569 = vmax.f32 %v2071, %v2432
        %v2570 = vmax.f32 %v2072, %v2435
        %v2571 = vmax.f32 %v2073, %v2438
        %v2572 = vmax.f32 %v2074, %v2441
        %v2573 = vmax.f32 %v2075, %v2444
        %v2574 = vmax.f32 %v2076, %v2447
        %v2575 = vmax.f32 %v2077, %v2450
        %v2576 = vmax.f32 %v2078, %v2453
        %v2577 = vmax.f32 %v2079, %v2456
        %v2578 = vmax.f32 %v2080, %v2459
        %v2579 = vmax.f32 %v2081, %v2462
        %v2580 = vmax.f32 %v2082, %v2465
        %v2581 = vmax.f32 %v2083, %v2468
        %v2582 = vmax.f32 %v2084, %v2471
        %v2583 = vmax.f32 %v2085, %v2474
        %v2584 = vmax.f32 %v2086, %v2477
        %v2585 = vmax.f32 %v2087, %v2480
        %v2586 = vmax.f32 %v2088, %v2483
        %v2587 = vmax.f32 %v2089, %v2486
        %v2588 = vmax.f32 %v2090, %v2489
        %v2589 = vmax.f32 %v2091, %v2492
        %v2590 = vmax.f32 %v2092, %v2495
        %v2591 = vmax.f32 %v2093, %v2498
        %v2592 = vmax.f32 %v2094, %v2501
        %v2593 = vmax.f32 %v2095, %v2504
        %v2594 = vmax.f32 %v2096, %v2507
        %v2595 = vmax.f32 %v2097, %v2510
        %v2596 = vmax.f32 %v2098, %v2513
        %v2597 = vmax.f32 %v2099, %v2516
        %v2598 = vmax.f32 %v2100, %v2519
        %v2599 = vmax.f32 %v2101, %v2522
        %v2600 = vmax.f32 %v2102, %v2525
        %v2601 = vmax.f32 %v2103, %v2528
        %v2602 = vmax.f32 %v2104, %v2531
        %v2603 = vmax.f32 %v2105, %v2534
        %v2604 = vmax.f32 %v2106, %v2537
        %v2605 = vmax.f32 %v2107, %v2540
        %v2606 = vmax.f32 %v2108, %v2543
        %v2607 = vmax.f32 %v2109, %v2546
        %s2608 = scalar_lea.vmem %s1137, 1440 [#allocation2]
        %v2609 = vld [vmem:[%s2608] sm:$0xff]
        %v2610 = vld [vmem:[%s2608 + $0x8] sm:$0xff]
        %v2611 = vld [vmem:[%s2608 + $0x10] sm:$0xff]
        %v2612 = vld [vmem:[%s2608 + $0x18] sm:$0xff]
        %v2613 = vld [vmem:[%s2608 + $0x20] sm:$0xff]
        %v2614 = vld [vmem:[%s2608 + $0x28] sm:$0xff]
        %v2615 = vld [vmem:[%s2608 + $0x30] sm:$0xff]
        %v2616 = vld [vmem:[%s2608 + $0x38] sm:$0xff]
        %v2617 = vld [vmem:[%s2608 + $0x40] sm:$0xff]
        %v2618 = vld [vmem:[%s2608 + $0x48] sm:$0xff]
        %v2619 = vld [vmem:[%s2608 + $0x50] sm:$0xff]
        %v2620 = vld [vmem:[%s2608 + $0x58] sm:$0xff]
        %v2621 = vld [vmem:[%s2608 + $0x60] sm:$0xff]
        %v2622 = vld [vmem:[%s2608 + $0x68] sm:$0xff]
        %v2623 = vld [vmem:[%s2608 + $0x70] sm:$0xff]
        %v2624 = vld [vmem:[%s2608 + $0x78] sm:$0xff]
        %v2625 = vld [vmem:[%s2608 + $0x80] sm:$0xff]
        %v2626 = vld [vmem:[%s2608 + $0x88] sm:$0xff]
        %v2627 = vld [vmem:[%s2608 + $0x90] sm:$0xff]
        %v2628 = vld [vmem:[%s2608 + $0x98] sm:$0xff]
        %v2629 = vld [vmem:[%s2608 + $0xa0] sm:$0xff]
        %v2630 = vld [vmem:[%s2608 + $0xa8] sm:$0xff]
        %v2631 = vld [vmem:[%s2608 + $0xb0] sm:$0xff]
        %v2632 = vld [vmem:[%s2608 + $0xb8] sm:$0xff]
        %v2633 = vld [vmem:[%s2608 + $0xc0] sm:$0xff]
        %v2634 = vld [vmem:[%s2608 + $0xc8] sm:$0xff]
        %v2635 = vld [vmem:[%s2608 + $0xd0] sm:$0xff]
        %v2636 = vld [vmem:[%s2608 + $0xd8] sm:$0xff]
        %v2637 = vld [vmem:[%s2608 + $0xe0] sm:$0xff]
        %v2638 = vld [vmem:[%s2608 + $0xe8] sm:$0xff]
        %v2639 = vld [vmem:[%s2608 + $0xf0] sm:$0xff]
        %v2640 = vld [vmem:[%s2608 + $0xf8] sm:$0xff]
        %v2641 = vld [vmem:[%s2608 + $0x100] sm:$0xff]
        %v2642 = vld [vmem:[%s2608 + $0x108] sm:$0xff]
        %v2643 = vld [vmem:[%s2608 + $0x110] sm:$0xff]
        %v2644 = vld [vmem:[%s2608 + $0x118] sm:$0xff]
        %v2645 = vld [vmem:[%s2608 + $0x120] sm:$0xff]
        %v2646 = vld [vmem:[%s2608 + $0x128] sm:$0xff]
        %v2647 = vld [vmem:[%s2608 + $0x130] sm:$0xff]
        %v2648 = vld [vmem:[%s2608 + $0x138] sm:$0xff]
        %v2649 = vld [vmem:[%s2608 + $0x140] sm:$0xff]
        %v2650 = vld [vmem:[%s2608 + $0x148] sm:$0xff]
        %v2651 = vld [vmem:[%s2608 + $0x150] sm:$0xff]
        %v2652 = vld [vmem:[%s2608 + $0x158] sm:$0xff]
        %v2653 = vld [vmem:[%s2608 + $0x160] sm:$0xff]
        %v2654 = vld [vmem:[%s2608 + $0x168] sm:$0xff]
        %v2655 = vld [vmem:[%s2608 + $0x170] sm:$0xff]
        %v2656 = vld [vmem:[%s2608 + $0x178] sm:$0xff]
        %v2657 = vld [vmem:[%s2608 + $0x180] sm:$0xff]
        %v2658 = vld [vmem:[%s2608 + $0x188] sm:$0xff]
        %v2659 = vld [vmem:[%s2608 + $0x190] sm:$0xff]
        %v2660 = vld [vmem:[%s2608 + $0x198] sm:$0xff]
        %v2661 = vld [vmem:[%s2608 + $0x1a0] sm:$0xff]
        %v2662 = vld [vmem:[%s2608 + $0x1a8] sm:$0xff]
        %v2663 = vld [vmem:[%s2608 + $0x1b0] sm:$0xff]
        %v2664 = vld [vmem:[%s2608 + $0x1b8] sm:$0xff]
        %v2665 = vld [vmem:[%s2608 + $0x1c0] sm:$0xff]
        %v2666 = vld [vmem:[%s2608 + $0x1c8] sm:$0xff]
        %v2667 = vld [vmem:[%s2608 + $0x1d0] sm:$0xff]
        %v2668 = vld [vmem:[%s2608 + $0x1d8] sm:$0xff]
        %v2670 = vsel %vm1230, %v2609, 0
        %v2673 = vsel %vm1230, %v2610, 0
        %v2676 = vsel %vm1230, %v2611, 0
        %v2679 = vsel %vm1230, %v2612, 0
        %v2682 = vsel %vm1230, %v2613, 0
        %v2685 = vsel %vm1230, %v2614, 0
        %v2688 = vsel %vm1230, %v2615, 0
        %v2691 = vsel %vm1230, %v2616, 0
        %v2694 = vsel %vm1230, %v2617, 0
        %v2697 = vsel %vm1230, %v2618, 0
        %v2700 = vsel %vm1230, %v2619, 0
        %v2703 = vsel %vm1230, %v2620, 0
        %v2706 = vsel %vm1230, %v2621, 0
        %v2709 = vsel %vm1230, %v2622, 0
        %v2712 = vsel %vm1230, %v2623, 0
        %v2715 = vsel %vm1230, %v2624, 0
        %v2718 = vsel %vm1230, %v2625, 0
        %v2721 = vsel %vm1230, %v2626, 0
        %v2724 = vsel %vm1230, %v2627, 0
        %v2727 = vsel %vm1230, %v2628, 0
        %v2730 = vsel %vm1230, %v2629, 0
        %v2733 = vsel %vm1230, %v2630, 0
        %v2736 = vsel %vm1230, %v2631, 0
        %v2739 = vsel %vm1230, %v2632, 0
        %v2742 = vsel %vm1230, %v2633, 0
        %v2745 = vsel %vm1230, %v2634, 0
        %v2748 = vsel %vm1230, %v2635, 0
        %v2751 = vsel %vm1230, %v2636, 0
        %v2754 = vsel %vm1230, %v2637, 0
        %v2757 = vsel %vm1230, %v2638, 0
        %v2760 = vsel %vm1230, %v2639, 0
        %v2763 = vsel %vm1230, %v2640, 0
        %v2766 = vsel %vm1230, %v2641, 0
        %v2769 = vsel %vm1230, %v2642, 0
        %v2772 = vsel %vm1230, %v2643, 0
        %v2775 = vsel %vm1230, %v2644, 0
        %v2778 = vsel %vm1230, %v2645, 0
        %v2781 = vsel %vm1230, %v2646, 0
        %v2784 = vsel %vm1230, %v2647, 0
        %v2787 = vsel %vm1230, %v2648, 0
        %v2790 = vsel %vm1230, %v2649, 0
        %v2793 = vsel %vm1230, %v2650, 0
        %v2796 = vsel %vm1230, %v2651, 0
        %v2799 = vsel %vm1230, %v2652, 0
        %v2802 = vsel %vm1230, %v2653, 0
        %v2805 = vsel %vm1230, %v2654, 0
        %v2808 = vsel %vm1230, %v2655, 0
        %v2811 = vsel %vm1230, %v2656, 0
        %v2814 = vsel %vm1230, %v2657, 0
        %v2817 = vsel %vm1230, %v2658, 0
        %v2820 = vsel %vm1230, %v2659, 0
        %v2823 = vsel %vm1230, %v2660, 0
        %v2826 = vsel %vm1230, %v2661, 0
        %v2829 = vsel %vm1230, %v2662, 0
        %v2832 = vsel %vm1230, %v2663, 0
        %v2835 = vsel %vm1230, %v2664, 0
        %v2838 = vsel %vm1230, %v2665, 0
        %v2841 = vsel %vm1230, %v2666, 0
        %v2844 = vsel %vm1230, %v2667, 0
        %v2847 = vsel %vm1230, %v2668, 0
        %2849 = vmatpush.msra.mxu0 0.0
        %2850 = vmatpush.msra.mxu0 0.0
        %2851 = vmatpush.msra.mxu0 0.0
        %2852 = vmatpush.msra.mxu0 0.0
        %2853 = vmatpush.msra.mxu0 0.0
        %2854 = vmatpush.msra.mxu0 0.0
        %2855 = vmatpush.msra.mxu0 0.0
        %2856 = vmatpush.msra.mxu0 0.0
        %2857 = vmatpush.msra.mxu0 0.0
        %2858 = vmatpush.msra.mxu0 0.0
        %2859 = vmatpush.msra.mxu0 0.0
        %2860 = vmatpush.msra.mxu0 %v1413
        %2861 = vmatpush.msra.mxu0 %v1168
        %2862 = vmatpush.msra.mxu0 %v1167
        %2863 = vmatpush.msra.mxu0 %v1166
        %2864 = vmatpush.msra.mxu0 %v1165
        %2865 = vmatmul.f32.gmra.mxu0 %v2670
        %v2866 = vpop.f32.mrf.mxu0
        %v2867 = vadd.f32 0.0, %v2866
        %2868 = vmatmul.f32.gmra.mxu0 %v2673
        %v2869 = vpop.f32.mrf.mxu0
        %v2870 = vadd.f32 0.0, %v2869
        %2871 = vmatmul.f32.gmra.mxu0 %v2676
        %v2872 = vpop.f32.mrf.mxu0
        %v2873 = vadd.f32 0.0, %v2872
        %2874 = vmatmul.f32.gmra.mxu0 %v2679
        %v2875 = vpop.f32.mrf.mxu0
        %v2876 = vadd.f32 0.0, %v2875
        %2877 = vmatmul.f32.gmra.mxu0 %v2682
        %v2878 = vpop.f32.mrf.mxu0
        %v2879 = vadd.f32 0.0, %v2878
        %2880 = vmatmul.f32.gmra.mxu0 %v2685
        %v2881 = vpop.f32.mrf.mxu0
        %v2882 = vadd.f32 0.0, %v2881
        %2883 = vmatmul.f32.gmra.mxu0 %v2688
        %v2884 = vpop.f32.mrf.mxu0
        %v2885 = vadd.f32 0.0, %v2884
        %2886 = vmatmul.f32.gmra.mxu0 %v2691
        %v2887 = vpop.f32.mrf.mxu0
        %v2888 = vadd.f32 0.0, %v2887
        %2889 = vmatmul.f32.gmra.mxu0 %v2694
        %v2890 = vpop.f32.mrf.mxu0
        %v2891 = vadd.f32 0.0, %v2890
        %2892 = vmatmul.f32.gmra.mxu0 %v2697
        %v2893 = vpop.f32.mrf.mxu0
        %v2894 = vadd.f32 0.0, %v2893
        %2895 = vmatmul.f32.gmra.mxu0 %v2700
        %v2896 = vpop.f32.mrf.mxu0
        %v2897 = vadd.f32 0.0, %v2896
        %2898 = vmatmul.f32.gmra.mxu0 %v2703
        %v2899 = vpop.f32.mrf.mxu0
        %v2900 = vadd.f32 0.0, %v2899
        %2901 = vmatmul.f32.gmra.mxu0 %v2706
        %v2902 = vpop.f32.mrf.mxu0
        %v2903 = vadd.f32 0.0, %v2902
        %2904 = vmatmul.f32.gmra.mxu0 %v2709
        %v2905 = vpop.f32.mrf.mxu0
        %v2906 = vadd.f32 0.0, %v2905
        %2907 = vmatmul.f32.gmra.mxu0 %v2712
        %v2908 = vpop.f32.mrf.mxu0
        %v2909 = vadd.f32 0.0, %v2908
        %2910 = vmatmul.f32.gmra.mxu0 %v2715
        %v2911 = vpop.f32.mrf.mxu0
        %v2912 = vadd.f32 0.0, %v2911
        %2913 = vmatmul.f32.gmra.mxu0 %v2718
        %v2914 = vpop.f32.mrf.mxu0
        %v2915 = vadd.f32 0.0, %v2914
        %2916 = vmatmul.f32.gmra.mxu0 %v2721
        %v2917 = vpop.f32.mrf.mxu0
        %v2918 = vadd.f32 0.0, %v2917
        %2919 = vmatmul.f32.gmra.mxu0 %v2724
        %v2920 = vpop.f32.mrf.mxu0
        %v2921 = vadd.f32 0.0, %v2920
        %2922 = vmatmul.f32.gmra.mxu0 %v2727
        %v2923 = vpop.f32.mrf.mxu0
        %v2924 = vadd.f32 0.0, %v2923
        %2925 = vmatmul.f32.gmra.mxu0 %v2730
        %v2926 = vpop.f32.mrf.mxu0
        %v2927 = vadd.f32 0.0, %v2926
        %2928 = vmatmul.f32.gmra.mxu0 %v2733
        %v2929 = vpop.f32.mrf.mxu0
        %v2930 = vadd.f32 0.0, %v2929
        %2931 = vmatmul.f32.gmra.mxu0 %v2736
        %v2932 = vpop.f32.mrf.mxu0
        %v2933 = vadd.f32 0.0, %v2932
        %2934 = vmatmul.f32.gmra.mxu0 %v2739
        %v2935 = vpop.f32.mrf.mxu0
        %v2936 = vadd.f32 0.0, %v2935
        %2937 = vmatmul.f32.gmra.mxu0 %v2742
        %v2938 = vpop.f32.mrf.mxu0
        %v2939 = vadd.f32 0.0, %v2938
        %2940 = vmatmul.f32.gmra.mxu0 %v2745
        %v2941 = vpop.f32.mrf.mxu0
        %v2942 = vadd.f32 0.0, %v2941
        %2943 = vmatmul.f32.gmra.mxu0 %v2748
        %v2944 = vpop.f32.mrf.mxu0
        %v2945 = vadd.f32 0.0, %v2944
        %2946 = vmatmul.f32.gmra.mxu0 %v2751
        %v2947 = vpop.f32.mrf.mxu0
        %v2948 = vadd.f32 0.0, %v2947
        %2949 = vmatmul.f32.gmra.mxu0 %v2754
        %v2950 = vpop.f32.mrf.mxu0
        %v2951 = vadd.f32 0.0, %v2950
        %2952 = vmatmul.f32.gmra.mxu0 %v2757
        %v2953 = vpop.f32.mrf.mxu0
        %v2954 = vadd.f32 0.0, %v2953
        %2955 = vmatmul.f32.gmra.mxu0 %v2760
        %v2956 = vpop.f32.mrf.mxu0
        %v2957 = vadd.f32 0.0, %v2956
        %2958 = vmatmul.f32.gmra.mxu0 %v2763
        %v2959 = vpop.f32.mrf.mxu0
        %v2960 = vadd.f32 0.0, %v2959
        %2961 = vmatmul.f32.gmra.mxu0 %v2766
        %v2962 = vpop.f32.mrf.mxu0
        %v2963 = vadd.f32 0.0, %v2962
        %2964 = vmatmul.f32.gmra.mxu0 %v2769
        %v2965 = vpop.f32.mrf.mxu0
        %v2966 = vadd.f32 0.0, %v2965
        %2967 = vmatmul.f32.gmra.mxu0 %v2772
        %v2968 = vpop.f32.mrf.mxu0
        %v2969 = vadd.f32 0.0, %v2968
        %2970 = vmatmul.f32.gmra.mxu0 %v2775
        %v2971 = vpop.f32.mrf.mxu0
        %v2972 = vadd.f32 0.0, %v2971
        %2973 = vmatmul.f32.gmra.mxu0 %v2778
        %v2974 = vpop.f32.mrf.mxu0
        %v2975 = vadd.f32 0.0, %v2974
        %2976 = vmatmul.f32.gmra.mxu0 %v2781
        %v2977 = vpop.f32.mrf.mxu0
        %v2978 = vadd.f32 0.0, %v2977
        %2979 = vmatmul.f32.gmra.mxu0 %v2784
        %v2980 = vpop.f32.mrf.mxu0
        %v2981 = vadd.f32 0.0, %v2980
        %2982 = vmatmul.f32.gmra.mxu0 %v2787
        %v2983 = vpop.f32.mrf.mxu0
        %v2984 = vadd.f32 0.0, %v2983
        %2985 = vmatmul.f32.gmra.mxu0 %v2790
        %v2986 = vpop.f32.mrf.mxu0
        %v2987 = vadd.f32 0.0, %v2986
        %2988 = vmatmul.f32.gmra.mxu0 %v2793
        %v2989 = vpop.f32.mrf.mxu0
        %v2990 = vadd.f32 0.0, %v2989
        %2991 = vmatmul.f32.gmra.mxu0 %v2796
        %v2992 = vpop.f32.mrf.mxu0
        %v2993 = vadd.f32 0.0, %v2992
        %2994 = vmatmul.f32.gmra.mxu0 %v2799
        %v2995 = vpop.f32.mrf.mxu0
        %v2996 = vadd.f32 0.0, %v2995
        %2997 = vmatmul.f32.gmra.mxu0 %v2802
        %v2998 = vpop.f32.mrf.mxu0
        %v2999 = vadd.f32 0.0, %v2998
        %3000 = vmatmul.f32.gmra.mxu0 %v2805
        %v3001 = vpop.f32.mrf.mxu0
        %v3002 = vadd.f32 0.0, %v3001
        %3003 = vmatmul.f32.gmra.mxu0 %v2808
        %v3004 = vpop.f32.mrf.mxu0
        %v3005 = vadd.f32 0.0, %v3004
        %3006 = vmatmul.f32.gmra.mxu0 %v2811
        %v3007 = vpop.f32.mrf.mxu0
        %v3008 = vadd.f32 0.0, %v3007
        %3009 = vmatmul.f32.gmra.mxu0 %v2814
        %v3010 = vpop.f32.mrf.mxu0
        %v3011 = vadd.f32 0.0, %v3010
        %3012 = vmatmul.f32.gmra.mxu0 %v2817
        %v3013 = vpop.f32.mrf.mxu0
        %v3014 = vadd.f32 0.0, %v3013
        %3015 = vmatmul.f32.gmra.mxu0 %v2820
        %v3016 = vpop.f32.mrf.mxu0
        %v3017 = vadd.f32 0.0, %v3016
        %3018 = vmatmul.f32.gmra.mxu0 %v2823
        %v3019 = vpop.f32.mrf.mxu0
        %v3020 = vadd.f32 0.0, %v3019
        %3021 = vmatmul.f32.gmra.mxu0 %v2826
        %v3022 = vpop.f32.mrf.mxu0
        %v3023 = vadd.f32 0.0, %v3022
        %3024 = vmatmul.f32.gmra.mxu0 %v2829
        %v3025 = vpop.f32.mrf.mxu0
        %v3026 = vadd.f32 0.0, %v3025
        %3027 = vmatmul.f32.gmra.mxu0 %v2832
        %v3028 = vpop.f32.mrf.mxu0
        %v3029 = vadd.f32 0.0, %v3028
        %3030 = vmatmul.f32.gmra.mxu0 %v2835
        %v3031 = vpop.f32.mrf.mxu0
        %v3032 = vadd.f32 0.0, %v3031
        %3033 = vmatmul.f32.gmra.mxu0 %v2838
        %v3034 = vpop.f32.mrf.mxu0
        %v3035 = vadd.f32 0.0, %v3034
        %3036 = vmatmul.f32.gmra.mxu0 %v2841
        %v3037 = vpop.f32.mrf.mxu0
        %v3038 = vadd.f32 0.0, %v3037
        %3039 = vmatmul.f32.gmra.mxu0 %v2844
        %v3040 = vpop.f32.mrf.mxu0
        %v3041 = vadd.f32 0.0, %v3040
        %3042 = vmatmul.f32.gmra.mxu0 %v2847
        %v3043 = vpop.f32.mrf.mxu0
        %v3044 = vadd.f32 0.0, %v3043
        %3045 = vdwg.mxu0
        %v3046 = vmax.f32 %v2548, %v2867
        %v3047 = vmax.f32 %v2549, %v2870
        %v3048 = vmax.f32 %v2550, %v2873
        %v3049 = vmax.f32 %v2551, %v2876
        %v3050 = vmax.f32 %v2552, %v2879
        %v3051 = vmax.f32 %v2553, %v2882
        %v3052 = vmax.f32 %v2554, %v2885
        %v3053 = vmax.f32 %v2555, %v2888
        %v3054 = vmax.f32 %v2556, %v2891
        %v3055 = vmax.f32 %v2557, %v2894
        %v3056 = vmax.f32 %v2558, %v2897
        %v3057 = vmax.f32 %v2559, %v2900
        %v3058 = vmax.f32 %v2560, %v2903
        %v3059 = vmax.f32 %v2561, %v2906
        %v3060 = vmax.f32 %v2562, %v2909
        %v3061 = vmax.f32 %v2563, %v2912
        %v3062 = vmax.f32 %v2564, %v2915
        %v3063 = vmax.f32 %v2565, %v2918
        %v3064 = vmax.f32 %v2566, %v2921
        %v3065 = vmax.f32 %v2567, %v2924
        %v3066 = vmax.f32 %v2568, %v2927
        %v3067 = vmax.f32 %v2569, %v2930
        %v3068 = vmax.f32 %v2570, %v2933
        %v3069 = vmax.f32 %v2571, %v2936
        %v3070 = vmax.f32 %v2572, %v2939
        %v3071 = vmax.f32 %v2573, %v2942
        %v3072 = vmax.f32 %v2574, %v2945
        %v3073 = vmax.f32 %v2575, %v2948
        %v3074 = vmax.f32 %v2576, %v2951
        %v3075 = vmax.f32 %v2577, %v2954
        %v3076 = vmax.f32 %v2578, %v2957
        %v3077 = vmax.f32 %v2579, %v2960
        %v3078 = vmax.f32 %v2580, %v2963
        %v3079 = vmax.f32 %v2581, %v2966
        %v3080 = vmax.f32 %v2582, %v2969
        %v3081 = vmax.f32 %v2583, %v2972
        %v3082 = vmax.f32 %v2584, %v2975
        %v3083 = vmax.f32 %v2585, %v2978
        %v3084 = vmax.f32 %v2586, %v2981
        %v3085 = vmax.f32 %v2587, %v2984
        %v3086 = vmax.f32 %v2588, %v2987
        %v3087 = vmax.f32 %v2589, %v2990
        %v3088 = vmax.f32 %v2590, %v2993
        %v3089 = vmax.f32 %v2591, %v2996
        %v3090 = vmax.f32 %v2592, %v2999
        %v3091 = vmax.f32 %v2593, %v3002
        %v3092 = vmax.f32 %v2594, %v3005
        %v3093 = vmax.f32 %v2595, %v3008
        %v3094 = vmax.f32 %v2596, %v3011
        %v3095 = vmax.f32 %v2597, %v3014
        %v3096 = vmax.f32 %v2598, %v3017
        %v3097 = vmax.f32 %v2599, %v3020
        %v3098 = vmax.f32 %v2600, %v3023
        %v3099 = vmax.f32 %v2601, %v3026
        %v3100 = vmax.f32 %v2602, %v3029
        %v3101 = vmax.f32 %v2603, %v3032
        %v3102 = vmax.f32 %v2604, %v3035
        %v3103 = vmax.f32 %v2605, %v3038
        %v3104 = vmax.f32 %v2606, %v3041
        %v3105 = vmax.f32 %v2607, %v3044
        %v3106 = vld [vmem:[%s2] sm:$0x1]
        %v3108 = vperm.slane %v3106, 0
        %v3110 = vadd.f32 %v3046, %v3108
        %v3111 = vadd.f32 %v3047, %v3108
        %v3112 = vadd.f32 %v3048, %v3108
        %v3113 = vadd.f32 %v3049, %v3108
        %v3114 = vadd.f32 %v3050, %v3108
        %v3115 = vadd.f32 %v3051, %v3108
        %v3116 = vadd.f32 %v3052, %v3108
        %v3117 = vadd.f32 %v3053, %v3108
        %v3118 = vadd.f32 %v3054, %v3108
        %v3119 = vadd.f32 %v3055, %v3108
        %v3120 = vadd.f32 %v3056, %v3108
        %v3121 = vadd.f32 %v3057, %v3108
        %v3122 = vadd.f32 %v3058, %v3108
        %v3123 = vadd.f32 %v3059, %v3108
        %v3124 = vadd.f32 %v3060, %v3108
        %v3125 = vadd.f32 %v3061, %v3108
        %v3126 = vadd.f32 %v3062, %v3108
        %v3127 = vadd.f32 %v3063, %v3108
        %v3128 = vadd.f32 %v3064, %v3108
        %v3129 = vadd.f32 %v3065, %v3108
        %v3130 = vadd.f32 %v3066, %v3108
        %v3131 = vadd.f32 %v3067, %v3108
        %v3132 = vadd.f32 %v3068, %v3108
        %v3133 = vadd.f32 %v3069, %v3108
        %v3134 = vadd.f32 %v3070, %v3108
        %v3135 = vadd.f32 %v3071, %v3108
        %v3136 = vadd.f32 %v3072, %v3108
        %v3137 = vadd.f32 %v3073, %v3108
        %v3138 = vadd.f32 %v3074, %v3108
        %v3139 = vadd.f32 %v3075, %v3108
        %v3140 = vadd.f32 %v3076, %v3108
        %v3141 = vadd.f32 %v3077, %v3108
        %v3142 = vadd.f32 %v3078, %v3108
        %v3143 = vadd.f32 %v3079, %v3108
        %v3144 = vadd.f32 %v3080, %v3108
        %v3145 = vadd.f32 %v3081, %v3108
        %v3146 = vadd.f32 %v3082, %v3108
        %v3147 = vadd.f32 %v3083, %v3108
        %v3148 = vadd.f32 %v3084, %v3108
        %v3149 = vadd.f32 %v3085, %v3108
        %v3150 = vadd.f32 %v3086, %v3108
        %v3151 = vadd.f32 %v3087, %v3108
        %v3152 = vadd.f32 %v3088, %v3108
        %v3153 = vadd.f32 %v3089, %v3108
        %v3154 = vadd.f32 %v3090, %v3108
        %v3155 = vadd.f32 %v3091, %v3108
        %v3156 = vadd.f32 %v3092, %v3108
        %v3157 = vadd.f32 %v3093, %v3108
        %v3158 = vadd.f32 %v3094, %v3108
        %v3159 = vadd.f32 %v3095, %v3108
        %v3160 = vadd.f32 %v3096, %v3108
        %v3161 = vadd.f32 %v3097, %v3108
        %v3162 = vadd.f32 %v3098, %v3108
        %v3163 = vadd.f32 %v3099, %v3108
        %v3164 = vadd.f32 %v3100, %v3108
        %v3165 = vadd.f32 %v3101, %v3108
        %v3166 = vadd.f32 %v3102, %v3108
        %v3167 = vadd.f32 %v3103, %v3108
        %v3168 = vadd.f32 %v3104, %v3108
        %v3169 = vadd.f32 %v3105, %v3108
        %v3170 = vmax.f32 %v3110, 0.0
        %v3171 = vmax.f32 %v3111, 0.0
        %v3172 = vmax.f32 %v3112, 0.0
        %v3173 = vmax.f32 %v3113, 0.0
        %v3174 = vmax.f32 %v3114, 0.0
        %v3175 = vmax.f32 %v3115, 0.0
        %v3176 = vmax.f32 %v3116, 0.0
        %v3177 = vmax.f32 %v3117, 0.0
        %v3178 = vmax.f32 %v3118, 0.0
        %v3179 = vmax.f32 %v3119, 0.0
        %v3180 = vmax.f32 %v3120, 0.0
        %v3181 = vmax.f32 %v3121, 0.0
        %v3182 = vmax.f32 %v3122, 0.0
        %v3183 = vmax.f32 %v3123, 0.0
        %v3184 = vmax.f32 %v3124, 0.0
        %v3185 = vmax.f32 %v3125, 0.0
        %v3186 = vmax.f32 %v3126, 0.0
        %v3187 = vmax.f32 %v3127, 0.0
        %v3188 = vmax.f32 %v3128, 0.0
        %v3189 = vmax.f32 %v3129, 0.0
        %v3190 = vmax.f32 %v3130, 0.0
        %v3191 = vmax.f32 %v3131, 0.0
        %v3192 = vmax.f32 %v3132, 0.0
        %v3193 = vmax.f32 %v3133, 0.0
        %v3194 = vmax.f32 %v3134, 0.0
        %v3195 = vmax.f32 %v3135, 0.0
        %v3196 = vmax.f32 %v3136, 0.0
        %v3197 = vmax.f32 %v3137, 0.0
        %v3198 = vmax.f32 %v3138, 0.0
        %v3199 = vmax.f32 %v3139, 0.0
        %v3200 = vmax.f32 %v3140, 0.0
        %v3201 = vmax.f32 %v3141, 0.0
        %v3202 = vmax.f32 %v3142, 0.0
        %v3203 = vmax.f32 %v3143, 0.0
        %v3204 = vmax.f32 %v3144, 0.0
        %v3205 = vmax.f32 %v3145, 0.0
        %v3206 = vmax.f32 %v3146, 0.0
        %v3207 = vmax.f32 %v3147, 0.0
        %v3208 = vmax.f32 %v3148, 0.0
        %v3209 = vmax.f32 %v3149, 0.0
        %v3210 = vmax.f32 %v3150, 0.0
        %v3211 = vmax.f32 %v3151, 0.0
        %v3212 = vmax.f32 %v3152, 0.0
        %v3213 = vmax.f32 %v3153, 0.0
        %v3214 = vmax.f32 %v3154, 0.0
        %v3215 = vmax.f32 %v3155, 0.0
        %v3216 = vmax.f32 %v3156, 0.0
        %v3217 = vmax.f32 %v3157, 0.0
        %v3218 = vmax.f32 %v3158, 0.0
        %v3219 = vmax.f32 %v3159, 0.0
        %v3220 = vmax.f32 %v3160, 0.0
        %v3221 = vmax.f32 %v3161, 0.0
        %v3222 = vmax.f32 %v3162, 0.0
        %v3223 = vmax.f32 %v3163, 0.0
        %v3224 = vmax.f32 %v3164, 0.0
        %v3225 = vmax.f32 %v3165, 0.0
        %v3226 = vmax.f32 %v3166, 0.0
        %v3227 = vmax.f32 %v3167, 0.0
        %v3228 = vmax.f32 %v3168, 0.0
        %v3229 = vmax.f32 %v3169, 0.0
        %vm3230 = vcmask 261120
        %3231 = vst.msk [vmem:[%s1163] sm:$0xff] %vm3230, %v3170
        %3232 = vst.msk [vmem:[%s1163 + $0x8] sm:$0xff] %vm3230, %v3171
        %3233 = vst.msk [vmem:[%s1163 + $0x10] sm:$0xff] %vm3230, %v3172
        %3234 = vst.msk [vmem:[%s1163 + $0x18] sm:$0xff] %vm3230, %v3173
        %3235 = vst.msk [vmem:[%s1163 + $0x20] sm:$0xff] %vm3230, %v3174
        %3236 = vst.msk [vmem:[%s1163 + $0x28] sm:$0xff] %vm3230, %v3175
        %3237 = vst.msk [vmem:[%s1163 + $0x30] sm:$0xff] %vm3230, %v3176
        %3238 = vst.msk [vmem:[%s1163 + $0x38] sm:$0xff] %vm3230, %v3177
        %3239 = vst.msk [vmem:[%s1163 + $0x40] sm:$0xff] %vm3230, %v3178
        %3240 = vst.msk [vmem:[%s1163 + $0x48] sm:$0xff] %vm3230, %v3179
        %3241 = vst.msk [vmem:[%s1163 + $0x50] sm:$0xff] %vm3230, %v3180
        %3242 = vst.msk [vmem:[%s1163 + $0x58] sm:$0xff] %vm3230, %v3181
        %3243 = vst.msk [vmem:[%s1163 + $0x60] sm:$0xff] %vm3230, %v3182
        %3244 = vst.msk [vmem:[%s1163 + $0x68] sm:$0xff] %vm3230, %v3183
        %3245 = vst.msk [vmem:[%s1163 + $0x70] sm:$0xff] %vm3230, %v3184
        %3246 = vst.msk [vmem:[%s1163 + $0x78] sm:$0xff] %vm3230, %v3185
        %3247 = vst.msk [vmem:[%s1163 + $0x80] sm:$0xff] %vm3230, %v3186
        %3248 = vst.msk [vmem:[%s1163 + $0x88] sm:$0xff] %vm3230, %v3187
        %3249 = vst.msk [vmem:[%s1163 + $0x90] sm:$0xff] %vm3230, %v3188
        %3250 = vst.msk [vmem:[%s1163 + $0x98] sm:$0xff] %vm3230, %v3189
        %3251 = vst.msk [vmem:[%s1163 + $0xa0] sm:$0xff] %vm3230, %v3190
        %3252 = vst.msk [vmem:[%s1163 + $0xa8] sm:$0xff] %vm3230, %v3191
        %3253 = vst.msk [vmem:[%s1163 + $0xb0] sm:$0xff] %vm3230, %v3192
        %3254 = vst.msk [vmem:[%s1163 + $0xb8] sm:$0xff] %vm3230, %v3193
        %3255 = vst.msk [vmem:[%s1163 + $0xc0] sm:$0xff] %vm3230, %v3194
        %3256 = vst.msk [vmem:[%s1163 + $0xc8] sm:$0xff] %vm3230, %v3195
        %3257 = vst.msk [vmem:[%s1163 + $0xd0] sm:$0xff] %vm3230, %v3196
        %3258 = vst.msk [vmem:[%s1163 + $0xd8] sm:$0xff] %vm3230, %v3197
        %3259 = vst.msk [vmem:[%s1163 + $0xe0] sm:$0xff] %vm3230, %v3198
        %3260 = vst.msk [vmem:[%s1163 + $0xe8] sm:$0xff] %vm3230, %v3199
        %3261 = vst.msk [vmem:[%s1163 + $0xf0] sm:$0xff] %vm3230, %v3200
        %3262 = vst.msk [vmem:[%s1163 + $0xf8] sm:$0xff] %vm3230, %v3201
        %3263 = vst.msk [vmem:[%s1163 + $0x100] sm:$0xff] %vm3230, %v3202
        %3264 = vst.msk [vmem:[%s1163 + $0x108] sm:$0xff] %vm3230, %v3203
        %3265 = vst.msk [vmem:[%s1163 + $0x110] sm:$0xff] %vm3230, %v3204
        %3266 = vst.msk [vmem:[%s1163 + $0x118] sm:$0xff] %vm3230, %v3205
        %3267 = vst.msk [vmem:[%s1163 + $0x120] sm:$0xff] %vm3230, %v3206
        %3268 = vst.msk [vmem:[%s1163 + $0x128] sm:$0xff] %vm3230, %v3207
        %3269 = vst.msk [vmem:[%s1163 + $0x130] sm:$0xff] %vm3230, %v3208
        %3270 = vst.msk [vmem:[%s1163 + $0x138] sm:$0xff] %vm3230, %v3209
        %3271 = vst.msk [vmem:[%s1163 + $0x140] sm:$0xff] %vm3230, %v3210
        %3272 = vst.msk [vmem:[%s1163 + $0x148] sm:$0xff] %vm3230, %v3211
        %3273 = vst.msk [vmem:[%s1163 + $0x150] sm:$0xff] %vm3230, %v3212
        %3274 = vst.msk [vmem:[%s1163 + $0x158] sm:$0xff] %vm3230, %v3213
        %3275 = vst.msk [vmem:[%s1163 + $0x160] sm:$0xff] %vm3230, %v3214
        %3276 = vst.msk [vmem:[%s1163 + $0x168] sm:$0xff] %vm3230, %v3215
        %3277 = vst.msk [vmem:[%s1163 + $0x170] sm:$0xff] %vm3230, %v3216
        %3278 = vst.msk [vmem:[%s1163 + $0x178] sm:$0xff] %vm3230, %v3217
        %3279 = vst.msk [vmem:[%s1163 + $0x180] sm:$0xff] %vm3230, %v3218
        %3280 = vst.msk [vmem:[%s1163 + $0x188] sm:$0xff] %vm3230, %v3219
        %3281 = vst.msk [vmem:[%s1163 + $0x190] sm:$0xff] %vm3230, %v3220
        %3282 = vst.msk [vmem:[%s1163 + $0x198] sm:$0xff] %vm3230, %v3221
        %3283 = vst.msk [vmem:[%s1163 + $0x1a0] sm:$0xff] %vm3230, %v3222
        %3284 = vst.msk [vmem:[%s1163 + $0x1a8] sm:$0xff] %vm3230, %v3223
        %3285 = vst.msk [vmem:[%s1163 + $0x1b0] sm:$0xff] %vm3230, %v3224
        %3286 = vst.msk [vmem:[%s1163 + $0x1b8] sm:$0xff] %vm3230, %v3225
        %3287 = vst.msk [vmem:[%s1163 + $0x1c0] sm:$0xff] %vm3230, %v3226
        %3288 = vst.msk [vmem:[%s1163 + $0x1c8] sm:$0xff] %vm3230, %v3227
        %3289 = vst.msk [vmem:[%s1163 + $0x1d0] sm:$0xff] %vm3230, %v3228
        %3290 = vst.msk [vmem:[%s1163 + $0x1d8] sm:$0xff] %vm3230, %v3229
        %s3291 = smul.u32 60, %s14
        %p3292 = scmp.lt.s32.totalorder %s3291, 119
        %s3293 = scalar_select %p3292, %s3291, 119
        %s3294 = smul.addr %s3293, 8
        %s3295 = scalar_lea.vmem %s3, %s3294
        // Predicated region
        $region71: #{hypnet_forward.5} parent=65 // pred_check
          %p3296 = pneg %p100
        $region72: #{hypnet_forward.5} parent=65 // pred_check_branch
          %3298 = sbr.rel (%p3296) target = $region74
        $region73: #{hypnet_forward.5} parent=65 // pred_region
          %s3299 = smul.u32 60, %s14
        $region74: #{hypnet_forward.5} parent=65 // pred_fallthru
          _
      $region66: #{hypnet_forward.5} parent=5 // pred_fallthru
        _
      %p3300 = scmp.le.s32.totalorder 2, %s9
      // Predicated region
      $region75: #{hypnet_forward.5} parent=5 // pred_check
        %p3301 = pneg %p3300
      $region76: #{hypnet_forward.5} parent=5 // pred_check_branch
        %3303 = sbr.rel (%p3301) target = $region78
      $region77: #{hypnet_forward.5} parent=5 // pred_region
        %s3304 = ssub.s32 %s9, 2
        // Predicated region
        $region79: #{hypnet_forward.5} parent=77 // pred_check
          %p3305 = pneg %p106
        $region80: #{hypnet_forward.5} parent=77 // pred_check_branch
          %3307 = sbr.rel (%p3305) target = $region82
        $region81: #{hypnet_forward.5} parent=77 // pred_region
          %s3308 = smul.u32 60, %s15
          %p3309 = scmp.lt.s32.totalorder %s3308, 119
          %s3310 = scalar_select %p3309, %s3308, 119
          %s3311 = smul.addr %s3310, 8
          %s3312 = scalar_lea.vmem %s3, %s3311
        $region82: #{hypnet_forward.5} parent=77 // pred_fallthru
          _
      $region78: #{hypnet_forward.5} parent=5 // pred_fallthru
        _
    $region6: #{hypnet_forward.5} parent=1 // loop_footer
      %s13 = sadd.s32 1, %s9
    $region7: #{hypnet_forward.5} parent=1 // loop_footer_branch
      %8 = sbr.rel target = $region3
    $region8: #{hypnet_forward.5} parent=1 // loop_exit
      _

// kernel: hypnet_forward.6
$region0: #{hypnet_forward.6}
  #allocation0 [shape = 'u32[]', space=smem, size = 0x4, offset = 0x4, fixed_abs, tag = 'smem constant byte address 0x4 - core index']
  #allocation1 [shape = 'u32[72,128]{1,0:T(1,128)}', space=vmem, size = 0x9000, scoped, tag = 'internal scratch']
  %s0 = inlined_call_operand.vmem [shape: f32[4,240,288], index: 0, kind: input, shape index: {}]
  %s1 = inlined_call_operand.vmem [shape: f32[288,32], index: 1, kind: input, shape index: {}]
  %s2 = inlined_call_operand.vmem [shape: f32[1,32], index: 2, kind: input, shape index: {}]
  %s3 = inlined_call_operand.vmem [shape: f32[240,32], index: 3, kind: output, shape index: {}]
  %s4 = sld [smem:[#allocation0]]
  $region68: #{hypnet_forward.6} parent=0
    _
  %s6 = ssub.s32 1, %s4
  %s7 = scalar_select 0, %s6, %s4
  $region1: #{hypnet_forward.6} parent=0
    #allocation2 [shape = 'u8[1474560]{0}', space=vmem, size = 0x168000, scoped, tag = 'input window, operand 0']
    loop: start=0, step=1, limit=4
    $region2: #{hypnet_forward.6} parent=1 // loop_pre_header
      _
    $region3: #{hypnet_forward.6} parent=1 // loop_header
      %s9 = sphi 0, %s13
      %p10 = scmp.ge.s32.totalorder %s9, 4
      %s19 = sphi 0, %s21
      %s22 = sphi 0, %s19
      %s23 = sphi 0, %s22
      %s39 = sphi 0, %s23
      %s43 = sphi 0, %s43
      %s45 = sphi 0, %s43
      %s46 = sphi 0, %s45
      %s60 = sphi 0, %s46
      %s64 = sphi 0, %s64
      %s66 = sphi 0, %s64
      %s67 = sphi 0, %s66
      %s81 = sphi 0, %s67
      %s87 = sphi 0, %s89
      %s90 = sphi 0, %s87
      %s91 = sphi 0, %s90
      %s107 = sphi 0, %s91
    $region4: #{hypnet_forward.6} parent=1 // loop_header_branch
      %12 = sbr.rel (%p10) target = $region8
    $region5: #{hypnet_forward.6} parent=1 // loop_body
      %s14 = ssub.s32 %s9, 1
      %s15 = ssub.s32 %s9, 2
      %s16 = sadd.s32 %s9, 1
      %s17 = ssub.s32 %s9, %s16
      %p18 = scmp.eq.s32.totalorder %s17, 0
      %s20 = sadd.s32 %s19, 1
      %s21 = scalar_select %p18, %s19, %s20
      %p24 = pneg %p18
      %p25 = scmp.eq.s32.totalorder %s9, 1
      %p26 = por %p24, %p25
      %p27 = scmp.ne.s32.totalorder %s19, %s22
      %p28 = scmp.eq.s32.totalorder %s9, 0
      %p29 = por %p27, %p28
      %p30 = scmp.ne.s32.totalorder %s19, %s22
      %p31 = scmp.eq.s32.totalorder %s14, 1
      %p32 = por %p30, %p31
      %p33 = scmp.ne.s32.totalorder %s22, %s23
      %p34 = scmp.eq.s32.totalorder %s14, 0
      %p35 = por %p33, %p34
      %p36 = scmp.ne.s32.totalorder %s22, %s23
      %p37 = scmp.eq.s32.totalorder %s15, 1
      %p38 = por %p36, %p37
      %p40 = scmp.ne.s32.totalorder %s23, %s39
      %p41 = scmp.eq.s32.totalorder %s15, 0
      %p42 = por %p40, %p41
      %s44 = sadd.s32 %s43, 1
      %p47 = scmp.eq.s32.totalorder %s9, 1
      %p48 = scmp.ne.s32.totalorder %s43, %s45
      %p49 = scmp.eq.s32.totalorder %s9, 0
      %p50 = por %p48, %p49
      %p51 = scmp.ne.s32.totalorder %s43, %s45
      %p52 = scmp.eq.s32.totalorder %s14, 1
      %p53 = por %p51, %p52
      %p54 = scmp.ne.s32.totalorder %s45, %s46
      %p55 = scmp.eq.s32.totalorder %s14, 0
      %p56 = por %p54, %p55
      %p57 = scmp.ne.s32.totalorder %s45, %s46
      %p58 = scmp.eq.s32.totalorder %s15, 1
      %p59 = por %p57, %p58
      %p61 = scmp.ne.s32.totalorder %s46, %s60
      %p62 = scmp.eq.s32.totalorder %s15, 0
      %p63 = por %p61, %p62
      %s65 = sadd.s32 %s64, 1
      %p68 = scmp.eq.s32.totalorder %s9, 1
      %p69 = scmp.ne.s32.totalorder %s64, %s66
      %p70 = scmp.eq.s32.totalorder %s9, 0
      %p71 = por %p69, %p70
      %p72 = scmp.ne.s32.totalorder %s64, %s66
      %p73 = scmp.eq.s32.totalorder %s14, 1
      %p74 = por %p72, %p73
      %p75 = scmp.ne.s32.totalorder %s66, %s67
      %p76 = scmp.eq.s32.totalorder %s14, 0
      %p77 = por %p75, %p76
      %p78 = scmp.ne.s32.totalorder %s66, %s67
      %p79 = scmp.eq.s32.totalorder %s15, 1
      %p80 = por %p78, %p79
      %p82 = scmp.ne.s32.totalorder %s67, %s81
      %p83 = scmp.eq.s32.totalorder %s15, 0
      %p84 = por %p82, %p83
      %s85 = ssub.s32 %s9, %s16
      %p86 = scmp.eq.s32.totalorder %s85, 0
      %s88 = sadd.s32 %s87, 1
      %s89 = scalar_select %p86, %s87, %s88
      %p92 = pneg %p86
      %p93 = scmp.eq.s32.totalorder %s9, 1
      %p94 = por %p92, %p93
      %p95 = scmp.ne.s32.totalorder %s87, %s90
      %p96 = scmp.eq.s32.totalorder %s9, 0
      %p97 = por %p95, %p96
      %p98 = scmp.ne.s32.totalorder %s87, %s90
      %p99 = scmp.eq.s32.totalorder %s14, 1
      %p100 = por %p98, %p99
      %p101 = scmp.ne.s32.totalorder %s90, %s91
      %p102 = scmp.eq.s32.totalorder %s14, 0
      %p103 = por %p101, %p102
      %p104 = scmp.ne.s32.totalorder %s90, %s91
      %p105 = scmp.eq.s32.totalorder %s15, 1
      %p106 = por %p104, %p105
      %p108 = scmp.ne.s32.totalorder %s91, %s107
      %p109 = scmp.eq.s32.totalorder %s15, 0
      %p110 = por %p108, %p109
      %p111 = scmp.le.s32.totalorder 1, %s9
      %p112 = scmp.lt.s32.totalorder %s9, 3
      %p113 = pnand %p111, %p112
      %p114 = pneg %p113
      // Predicated region
      $region9: #{hypnet_forward.6} parent=5 // pred_check
        _
      $region10: #{hypnet_forward.6} parent=5 // pred_check_branch
        %116 = sbr.rel (%p113) target = $region12
      $region11: #{hypnet_forward.6} parent=5 // pred_region
        %s117 = ssub.s32 %s9, 1
        // Predicated region
        $region13: #{hypnet_forward.6} parent=11 // pred_check
          %p118 = pneg %p56
        $region14: #{hypnet_forward.6} parent=11 // pred_check_branch
          %120 = sbr.rel (%p118) target = $region16
        $region15: #{hypnet_forward.6} parent=11 // pred_region
          _
        $region16: #{hypnet_forward.6} parent=11 // pred_fallthru
          _
        // Predicated region
        $region17: #{hypnet_forward.6} parent=11 // pred_check
          %p121 = pneg %p77
        $region18: #{hypnet_forward.6} parent=11 // pred_check_branch
          %123 = sbr.rel (%p121) target = $region20
        $region19: #{hypnet_forward.6} parent=11 // pred_region
          _
        $region20: #{hypnet_forward.6} parent=11 // pred_fallthru
          _
      $region12: #{hypnet_forward.6} parent=5 // pred_fallthru
        _
      %p124 = scmp.lt.s32.totalorder %s9, 2
      // Predicated region
      $region21: #{hypnet_forward.6} parent=5 // pred_check
        %p125 = pneg %p124
      $region22: #{hypnet_forward.6} parent=5 // pred_check_branch
        %127 = sbr.rel (%p125) target = $region24
      $region23: #{hypnet_forward.6} parent=5 // pred_region
        // Predicated region
        $region25: #{hypnet_forward.6} parent=23 // pred_check
          %p128 = pneg %p29
        $region26: #{hypnet_forward.6} parent=23 // pred_check_branch
          %130 = sbr.rel (%p128) target = $region28
        $region27: #{hypnet_forward.6} parent=23 // pred_region
          %s131 = sand.u32 %s19, 1
          %s132 = sand.u32 %s19, 1
          %s133 = smul.addr %s132, 1440
          %s134 = scalar_lea.vmem [#allocation2], %s133
          %s135 = smul.u32 15, %s9
          %s136 = smul.addr %s135, 3
          %s137 = smul.addr %s136, 8
          %s138 = scalar_lea.vmem %s0, %s137
          // Predicated region
          $region29: #{hypnet_forward.6} parent=27 // pred_check
            _
          $region30: #{hypnet_forward.6} parent=27 // pred_check_branch
            %140 = sbr.rel (0) target = $region32
          $region31: #{hypnet_forward.6} parent=27 // pred_region
            // Predicated region
            $region33: #{hypnet_forward.6} parent=31 // pred_check
              _
            $region34: #{hypnet_forward.6} parent=31 // pred_check_branch
              %142 = sbr.rel (0) target = $region36
            $region35: #{hypnet_forward.6} parent=31 // pred_region
              loop: start=0, step=1, limit=1
              $region37: #{hypnet_forward.6} parent=35 // loop_pre_header
                _
              $region38: #{hypnet_forward.6} parent=35 // loop_header
                %s144 = sphi 0, %s148
                %p145 = scmp.ge.s32.totalorder %s144, 1
                %s149 = sphi %s138, %s138
                %s150 = sphi %s134, %s134
              $region39: #{hypnet_forward.6} parent=35 // loop_header_branch
                %147 = sbr.rel (%p145) target = $region43
              $region40: #{hypnet_forward.6} parent=35 // loop_body
                %v151 = vld [vmem:[%s149] sm:$0xff]
                %152 = vst [vmem:[%s150] sm:$0xff] %v151
                %v153 = vld [vmem:[%s149 + $0x8] sm:$0xff]
                %154 = vst [vmem:[%s150 + $0x8] sm:$0xff] %v153
                %v155 = vld [vmem:[%s149 + $0x10] sm:$0xff]
                %156 = vst [vmem:[%s150 + $0x10] sm:$0xff] %v155
                %v157 = vld [vmem:[%s149 + $0x18] sm:$0xff]
                %158 = vst [vmem:[%s150 + $0x18] sm:$0xff] %v157
                %v159 = vld [vmem:[%s149 + $0x20] sm:$0xff]
                %160 = vst [vmem:[%s150 + $0x20] sm:$0xff] %v159
                %v161 = vld [vmem:[%s149 + $0x28] sm:$0xff]
                %162 = vst [vmem:[%s150 + $0x28] sm:$0xff] %v161
                %v163 = vld [vmem:[%s149 + $0x30] sm:$0xff]
                %164 = vst [vmem:[%s150 + $0x30] sm:$0xff] %v163
                %v165 = vld [vmem:[%s149 + $0x38] sm:$0xff]
                %166 = vst [vmem:[%s150 + $0x38] sm:$0xff] %v165
                %v167 = vld [vmem:[%s149 + $0x40] sm:$0xff]
                %168 = vst [vmem:[%s150 + $0x40] sm:$0xff] %v167
                %v169 = vld [vmem:[%s149 + $0x48] sm:$0xff]
                %170 = vst [vmem:[%s150 + $0x48] sm:$0xff] %v169
                %v171 = vld [vmem:[%s149 + $0x50] sm:$0xff]
                %172 = vst [vmem:[%s150 + $0x50] sm:$0xff] %v171
                %v173 = vld [vmem:[%s149 + $0x58] sm:$0xff]
                %174 = vst [vmem:[%s150 + $0x58] sm:$0xff] %v173
                %v175 = vld [vmem:[%s149 + $0x60] sm:$0xff]
                %176 = vst [vmem:[%s150 + $0x60] sm:$0xff] %v175
                %v177 = vld [vmem:[%s149 + $0x68] sm:$0xff]
                %178 = vst [vmem:[%s150 + $0x68] sm:$0xff] %v177
                %v179 = vld [vmem:[%s149 + $0x70] sm:$0xff]
                %180 = vst [vmem:[%s150 + $0x70] sm:$0xff] %v179
                %v181 = vld [vmem:[%s149 + $0x78] sm:$0xff]
                %182 = vst [vmem:[%s150 + $0x78] sm:$0xff] %v181
                %v183 = vld [vmem:[%s149 + $0x80] sm:$0xff]
                %184 = vst [vmem:[%s150 + $0x80] sm:$0xff] %v183
                %v185 = vld [vmem:[%s149 + $0x88] sm:$0xff]
                %186 = vst [vmem:[%s150 + $0x88] sm:$0xff] %v185
                %v187 = vld [vmem:[%s149 + $0x90] sm:$0xff]
                %188 = vst [vmem:[%s150 + $0x90] sm:$0xff] %v187
                %v189 = vld [vmem:[%s149 + $0x98] sm:$0xff]
                %190 = vst [vmem:[%s150 + $0x98] sm:$0xff] %v189
                %v191 = vld [vmem:[%s149 + $0xa0] sm:$0xff]
                %192 = vst [vmem:[%s150 + $0xa0] sm:$0xff] %v191
                %v193 = vld [vmem:[%s149 + $0xa8] sm:$0xff]
                %194 = vst [vmem:[%s150 + $0xa8] sm:$0xff] %v193
                %v195 = vld [vmem:[%s149 + $0xb0] sm:$0xff]
                %196 = vst [vmem:[%s150 + $0xb0] sm:$0xff] %v195
                %v197 = vld [vmem:[%s149 + $0xb8] sm:$0xff]
                %198 = vst [vmem:[%s150 + $0xb8] sm:$0xff] %v197
                %v199 = vld [vmem:[%s149 + $0xc0] sm:$0xff]
                %200 = vst [vmem:[%s150 + $0xc0] sm:$0xff] %v199
                %v201 = vld [vmem:[%s149 + $0xc8] sm:$0xff]
                %202 = vst [vmem:[%s150 + $0xc8] sm:$0xff] %v201
                %v203 = vld [vmem:[%s149 + $0xd0] sm:$0xff]
                %204 = vst [vmem:[%s150 + $0xd0] sm:$0xff] %v203
                %v205 = vld [vmem:[%s149 + $0xd8] sm:$0xff]
                %206 = vst [vmem:[%s150 + $0xd8] sm:$0xff] %v205
                %v207 = vld [vmem:[%s149 + $0xe0] sm:$0xff]
                %208 = vst [vmem:[%s150 + $0xe0] sm:$0xff] %v207
                %v209 = vld [vmem:[%s149 + $0xe8] sm:$0xff]
                %210 = vst [vmem:[%s150 + $0xe8] sm:$0xff] %v209
                %v211 = vld [vmem:[%s149 + $0xf0] sm:$0xff]
                %212 = vst [vmem:[%s150 + $0xf0] sm:$0xff] %v211
                %v213 = vld [vmem:[%s149 + $0xf8] sm:$0xff]
                %214 = vst [vmem:[%s150 + $0xf8] sm:$0xff] %v213
                %v215 = vld [vmem:[%s149 + $0x100] sm:$0xff]
                %216 = vst [vmem:[%s150 + $0x100] sm:$0xff] %v215
                %v217 = vld [vmem:[%s149 + $0x108] sm:$0xff]
                %218 = vst [vmem:[%s150 + $0x108] sm:$0xff] %v217
                %v219 = vld [vmem:[%s149 + $0x110] sm:$0xff]
                %220 = vst [vmem:[%s150 + $0x110] sm:$0xff] %v219
                %v221 = vld [vmem:[%s149 + $0x118] sm:$0xff]
                %222 = vst [vmem:[%s150 + $0x118] sm:$0xff] %v221
                %v223 = vld [vmem:[%s149 + $0x120] sm:$0xff]
                %224 = vst [vmem:[%s150 + $0x120] sm:$0xff] %v223
                %v225 = vld [vmem:[%s149 + $0x128] sm:$0xff]
                %226 = vst [vmem:[%s150 + $0x128] sm:$0xff] %v225
                %v227 = vld [vmem:[%s149 + $0x130] sm:$0xff]
                %228 = vst [vmem:[%s150 + $0x130] sm:$0xff] %v227
                %v229 = vld [vmem:[%s149 + $0x138] sm:$0xff]
                %230 = vst [vmem:[%s150 + $0x138] sm:$0xff] %v229
                %v231 = vld [vmem:[%s149 + $0x140] sm:$0xff]
                %232 = vst [vmem:[%s150 + $0x140] sm:$0xff] %v231
                %v233 = vld [vmem:[%s149 + $0x148] sm:$0xff]
                %234 = vst [vmem:[%s150 + $0x148] sm:$0xff] %v233
                %v235 = vld [vmem:[%s149 + $0x150] sm:$0xff]
                %236 = vst [vmem:[%s150 + $0x150] sm:$0xff] %v235
                %v237 = vld [vmem:[%s149 + $0x158] sm:$0xff]
                %238 = vst [vmem:[%s150 + $0x158] sm:$0xff] %v237
                %v239 = vld [vmem:[%s149 + $0x160] sm:$0xff]
                %240 = vst [vmem:[%s150 + $0x160] sm:$0xff] %v239
                %v241 = vld [vmem:[%s149 + $0x2d0] sm:$0xff]
                %242 = vst [vmem:[%s150 + $0x168] sm:$0xff] %v241
                %v243 = vld [vmem:[%s149 + $0x2d8] sm:$0xff]
                %244 = vst [vmem:[%s150 + $0x170] sm:$0xff] %v243
                %v245 = vld [vmem:[%s149 + $0x2e0] sm:$0xff]
                %246 = vst [vmem:[%s150 + $0x178] sm:$0xff] %v245
                %v247 = vld [vmem:[%s149 + $0x2e8] sm:$0xff]
                %248 = vst [vmem:[%s150 + $0x180] sm:$0xff] %v247
                %v249 = vld [vmem:[%s149 + $0x2f0] sm:$0xff]
                %250 = vst [vmem:[%s150 + $0x188] sm:$0xff] %v249
                %v251 = vld [vmem:[%s149 + $0x2f8] sm:$0xff]
                %252 = vst [vmem:[%s150 + $0x190] sm:$0xff] %v251
                %v253 = vld [vmem:[%s149 + $0x300] sm:$0xff]
                %254 = vst [vmem:[%s150 + $0x198] sm:$0xff] %v253
                %v255 = vld [vmem:[%s149 + $0x308] sm:$0xff]
                %256 = vst [vmem:[%s150 + $0x1a0] sm:$0xff] %v255
                %v257 = vld [vmem:[%s149 + $0x310] sm:$0xff]
                %258 = vst [vmem:[%s150 + $0x1a8] sm:$0xff] %v257
                %v259 = vld [vmem:[%s149 + $0x318] sm:$0xff]
                %260 = vst [vmem:[%s150 + $0x1b0] sm:$0xff] %v259
                %v261 = vld [vmem:[%s149 + $0x320] sm:$0xff]
                %262 = vst [vmem:[%s150 + $0x1b8] sm:$0xff] %v261
                %v263 = vld [vmem:[%s149 + $0x328] sm:$0xff]
                %264 = vst [vmem:[%s150 + $0x1c0] sm:$0xff] %v263
                %v265 = vld [vmem:[%s149 + $0x330] sm:$0xff]
                %266 = vst [vmem:[%s150 + $0x1c8] sm:$0xff] %v265
                %v267 = vld [vmem:[%s149 + $0x338] sm:$0xff]
                %268 = vst [vmem:[%s150 + $0x1d0] sm:$0xff] %v267
                %v269 = vld [vmem:[%s149 + $0x340] sm:$0xff]
                %270 = vst [vmem:[%s150 + $0x1d8] sm:$0xff] %v269
                %v271 = vld [vmem:[%s149 + $0x348] sm:$0xff]
                %272 = vst [vmem:[%s150 + $0x1e0] sm:$0xff] %v271
                %v273 = vld [vmem:[%s149 + $0x350] sm:$0xff]
                %274 = vst [vmem:[%s150 + $0x1e8] sm:$0xff] %v273
                %v275 = vld [vmem:[%s149 + $0x358] sm:$0xff]
                %276 = vst [vmem:[%s150 + $0x1f0] sm:$0xff] %v275
                %v277 = vld [vmem:[%s149 + $0x360] sm:$0xff]
                %278 = vst [vmem:[%s150 + $0x1f8] sm:$0xff] %v277
                %v279 = vld [vmem:[%s149 + $0x368] sm:$0xff]
                %280 = vst [vmem:[%s150 + $0x200] sm:$0xff] %v279
                %v281 = vld [vmem:[%s149 + $0x370] sm:$0xff]
                %282 = vst [vmem:[%s150 + $0x208] sm:$0xff] %v281
                %v283 = vld [vmem:[%s149 + $0x378] sm:$0xff]
                %284 = vst [vmem:[%s150 + $0x210] sm:$0xff] %v283
                %v285 = vld [vmem:[%s149 + $0x380] sm:$0xff]
                %286 = vst [vmem:[%s150 + $0x218] sm:$0xff] %v285
                %v287 = vld [vmem:[%s149 + $0x388] sm:$0xff]
                %288 = vst [vmem:[%s150 + $0x220] sm:$0xff] %v287
                %v289 = vld [vmem:[%s149 + $0x390] sm:$0xff]
                %290 = vst [vmem:[%s150 + $0x228] sm:$0xff] %v289
                %v291 = vld [vmem:[%s149 + $0x398] sm:$0xff]
                %292 = vst [vmem:[%s150 + $0x230] sm:$0xff] %v291
                %v293 = vld [vmem:[%s149 + $0x3a0] sm:$0xff]
                %294 = vst [vmem:[%s150 + $0x238] sm:$0xff] %v293
                %v295 = vld [vmem:[%s149 + $0x3a8] sm:$0xff]
                %296 = vst [vmem:[%s150 + $0x240] sm:$0xff] %v295
                %v297 = vld [vmem:[%s149 + $0x3b0] sm:$0xff]
                %298 = vst [vmem:[%s150 + $0x248] sm:$0xff] %v297
                %v299 = vld [vmem:[%s149 + $0x3b8] sm:$0xff]
                %300 = vst [vmem:[%s150 + $0x250] sm:$0xff] %v299
                %v301 = vld [vmem:[%s149 + $0x3c0] sm:$0xff]
                %302 = vst [vmem:[%s150 + $0x258] sm:$0xff] %v301
                %v303 = vld [vmem:[%s149 + $0x3c8] sm:$0xff]
                %304 = vst [vmem:[%s150 + $0x260] sm:$0xff] %v303
                %v305 = vld [vmem:[%s149 + $0x3d0] sm:$0xff]
                %306 = vst [vmem:[%s150 + $0x268] sm:$0xff] %v305
                %v307 = vld [vmem:[%s149 + $0x3d8] sm:$0xff]
                %308 = vst [vmem:[%s150 + $0x270] sm:$0xff] %v307
                %v309 = vld [vmem:[%s149 + $0x3e0] sm:$0xff]
                %310 = vst [vmem:[%s150 + $0x278] sm:$0xff] %v309
                %v311 = vld [vmem:[%s149 + $0x3e8] sm:$0xff]
                %312 = vst [vmem:[%s150 + $0x280] sm:$0xff] %v311
                %v313 = vld [vmem:[%s149 + $0x3f0] sm:$0xff]
                %314 = vst [vmem:[%s150 + $0x288] sm:$0xff] %v313
                %v315 = vld [vmem:[%s149 + $0x3f8] sm:$0xff]
                %316 = vst [vmem:[%s150 + $0x290] sm:$0xff] %v315
                %v317 = vld [vmem:[%s149 + $0x400] sm:$0xff]
                %318 = vst [vmem:[%s150 + $0x298] sm:$0xff] %v317
                %v319 = vld [vmem:[%s149 + $0x408] sm:$0xff]
                %320 = vst [vmem:[%s150 + $0x2a0] sm:$0xff] %v319
                %v321 = vld [vmem:[%s149 + $0x410] sm:$0xff]
                %322 = vst [vmem:[%s150 + $0x2a8] sm:$0xff] %v321
                %v323 = vld [vmem:[%s149 + $0x418] sm:$0xff]
                %324 = vst [vmem:[%s150 + $0x2b0] sm:$0xff] %v323
                %v325 = vld [vmem:[%s149 + $0x420] sm:$0xff]
                %326 = vst [vmem:[%s150 + $0x2b8] sm:$0xff] %v325
                %v327 = vld [vmem:[%s149 + $0x428] sm:$0xff]
                %328 = vst [vmem:[%s150 + $0x2c0] sm:$0xff] %v327
                %v329 = vld [vmem:[%s149 + $0x430] sm:$0xff]
                %330 = vst [vmem:[%s150 + $0x2c8] sm:$0xff] %v329
                %v331 = vld [vmem:[%s149 + $0x5a0] sm:$0xff]
                %332 = vst [vmem:[%s150 + $0x2d0] sm:$0xff] %v331
                %v333 = vld [vmem:[%s149 + $0x5a8] sm:$0xff]
                %334 = vst [vmem:[%s150 + $0x2d8] sm:$0xff] %v333
                %v335 = vld [vmem:[%s149 + $0x5b0] sm:$0xff]
                %336 = vst [vmem:[%s150 + $0x2e0] sm:$0xff] %v335
                %v337 = vld [vmem:[%s149 + $0x5b8] sm:$0xff]
                %338 = vst [vmem:[%s150 + $0x2e8] sm:$0xff] %v337
                %v339 = vld [vmem:[%s149 + $0x5c0] sm:$0xff]
                %340 = vst [vmem:[%s150 + $0x2f0] sm:$0xff] %v339
                %v341 = vld [vmem:[%s149 + $0x5c8] sm:$0xff]
                %342 = vst [vmem:[%s150 + $0x2f8] sm:$0xff] %v341
                %v343 = vld [vmem:[%s149 + $0x5d0] sm:$0xff]
                %344 = vst [vmem:[%s150 + $0x300] sm:$0xff] %v343
                %v345 = vld [vmem:[%s149 + $0x5d8] sm:$0xff]
                %346 = vst [vmem:[%s150 + $0x308] sm:$0xff] %v345
                %v347 = vld [vmem:[%s149 + $0x5e0] sm:$0xff]
                %348 = vst [vmem:[%s150 + $0x310] sm:$0xff] %v347
                %v349 = vld [vmem:[%s149 + $0x5e8] sm:$0xff]
                %350 = vst [vmem:[%s150 + $0x318] sm:$0xff] %v349
                %v351 = vld [vmem:[%s149 + $0x5f0] sm:$0xff]
                %352 = vst [vmem:[%s150 + $0x320] sm:$0xff] %v351
                %v353 = vld [vmem:[%s149 + $0x5f8] sm:$0xff]
                %354 = vst [vmem:[%s150 + $0x328] sm:$0xff] %v353
                %v355 = vld [vmem:[%s149 + $0x600] sm:$0xff]
                %356 = vst [vmem:[%s150 + $0x330] sm:$0xff] %v355
                %v357 = vld [vmem:[%s149 + $0x608] sm:$0xff]
                %358 = vst [vmem:[%s150 + $0x338] sm:$0xff] %v357
                %v359 = vld [vmem:[%s149 + $0x610] sm:$0xff]
                %360 = vst [vmem:[%s150 + $0x340] sm:$0xff] %v359
                %v361 = vld [vmem:[%s149 + $0x618] sm:$0xff]
                %362 = vst [vmem:[%s150 + $0x348] sm:$0xff] %v361
                %v363 = vld [vmem:[%s149 + $0x620] sm:$0xff]
                %364 = vst [vmem:[%s150 + $0x350] sm:$0xff] %v363
                %v365 = vld [vmem:[%s149 + $0x628] sm:$0xff]
                %366 = vst [vmem:[%s150 + $0x358] sm:$0xff] %v365
                %v367 = vld [vmem:[%s149 + $0x630] sm:$0xff]
                %368 = vst [vmem:[%s150 + $0x360] sm:$0xff] %v367
                %v369 = vld [vmem:[%s149 + $0x638] sm:$0xff]
                %370 = vst [vmem:[%s150 + $0x368] sm:$0xff] %v369
                %v371 = vld [vmem:[%s149 + $0x640] sm:$0xff]
                %372 = vst [vmem:[%s150 + $0x370] sm:$0xff] %v371
                %v373 = vld [vmem:[%s149 + $0x648] sm:$0xff]
                %374 = vst [vmem:[%s150 + $0x378] sm:$0xff] %v373
                %v375 = vld [vmem:[%s149 + $0x650] sm:$0xff]
                %376 = vst [vmem:[%s150 + $0x380] sm:$0xff] %v375
                %v377 = vld [vmem:[%s149 + $0x658] sm:$0xff]
                %378 = vst [vmem:[%s150 + $0x388] sm:$0xff] %v377
                %v379 = vld [vmem:[%s149 + $0x660] sm:$0xff]
                %380 = vst [vmem:[%s150 + $0x390] sm:$0xff] %v379
                %v381 = vld [vmem:[%s149 + $0x668] sm:$0xff]
                %382 = vst [vmem:[%s150 + $0x398] sm:$0xff] %v381
                %v383 = vld [vmem:[%s149 + $0x670] sm:$0xff]
                %384 = vst [vmem:[%s150 + $0x3a0] sm:$0xff] %v383
                %v385 = vld [vmem:[%s149 + $0x678] sm:$0xff]
                %386 = vst [vmem:[%s150 + $0x3a8] sm:$0xff] %v385
                %v387 = vld [vmem:[%s149 + $0x680] sm:$0xff]
                %388 = vst [vmem:[%s150 + $0x3b0] sm:$0xff] %v387
                %v389 = vld [vmem:[%s149 + $0x688] sm:$0xff]
                %390 = vst [vmem:[%s150 + $0x3b8] sm:$0xff] %v389
                %v391 = vld [vmem:[%s149 + $0x690] sm:$0xff]
                %392 = vst [vmem:[%s150 + $0x3c0] sm:$0xff] %v391
                %v393 = vld [vmem:[%s149 + $0x698] sm:$0xff]
                %394 = vst [vmem:[%s150 + $0x3c8] sm:$0xff] %v393
                %v395 = vld [vmem:[%s149 + $0x6a0] sm:$0xff]
                %396 = vst [vmem:[%s150 + $0x3d0] sm:$0xff] %v395
                %v397 = vld [vmem:[%s149 + $0x6a8] sm:$0xff]
                %398 = vst [vmem:[%s150 + $0x3d8] sm:$0xff] %v397
                %v399 = vld [vmem:[%s149 + $0x6b0] sm:$0xff]
                %400 = vst [vmem:[%s150 + $0x3e0] sm:$0xff] %v399
                %v401 = vld [vmem:[%s149 + $0x6b8] sm:$0xff]
                %402 = vst [vmem:[%s150 + $0x3e8] sm:$0xff] %v401
                %v403 = vld [vmem:[%s149 + $0x6c0] sm:$0xff]
                %404 = vst [vmem:[%s150 + $0x3f0] sm:$0xff] %v403
                %v405 = vld [vmem:[%s149 + $0x6c8] sm:$0xff]
                %406 = vst [vmem:[%s150 + $0x3f8] sm:$0xff] %v405
                %v407 = vld [vmem:[%s149 + $0x6d0] sm:$0xff]
                %408 = vst [vmem:[%s150 + $0x400] sm:$0xff] %v407
                %v409 = vld [vmem:[%s149 + $0x6d8] sm:$0xff]
                %410 = vst [vmem:[%s150 + $0x408] sm:$0xff] %v409
                %v411 = vld [vmem:[%s149 + $0x6e0] sm:$0xff]
                %412 = vst [vmem:[%s150 + $0x410] sm:$0xff] %v411
                %v413 = vld [vmem:[%s149 + $0x6e8] sm:$0xff]
                %414 = vst [vmem:[%s150 + $0x418] sm:$0xff] %v413
                %v415 = vld [vmem:[%s149 + $0x6f0] sm:$0xff]
                %416 = vst [vmem:[%s150 + $0x420] sm:$0xff] %v415
                %v417 = vld [vmem:[%s149 + $0x6f8] sm:$0xff]
                %418 = vst [vmem:[%s150 + $0x428] sm:$0xff] %v417
                %v419 = vld [vmem:[%s149 + $0x700] sm:$0xff]
                %420 = vst [vmem:[%s150 + $0x430] sm:$0xff] %v419
                %v421 = vld [vmem:[%s149 + $0x870] sm:$0xff]
                %422 = vst [vmem:[%s150 + $0x438] sm:$0xff] %v421
                %v423 = vld [vmem:[%s149 + $0x878] sm:$0xff]
                %424 = vst [vmem:[%s150 + $0x440] sm:$0xff] %v423
                %v425 = vld [vmem:[%s149 + $0x880] sm:$0xff]
                %426 = vst [vmem:[%s150 + $0x448] sm:$0xff] %v425
                %v427 = vld [vmem:[%s149 + $0x888] sm:$0xff]
                %428 = vst [vmem:[%s150 + $0x450] sm:$0xff] %v427
                %v429 = vld [vmem:[%s149 + $0x890] sm:$0xff]
                %430 = vst [vmem:[%s150 + $0x458] sm:$0xff] %v429
                %v431 = vld [vmem:[%s149 + $0x898] sm:$0xff]
                %432 = vst [vmem:[%s150 + $0x460] sm:$0xff] %v431
                %v433 = vld [vmem:[%s149 + $0x8a0] sm:$0xff]
                %434 = vst [vmem:[%s150 + $0x468] sm:$0xff] %v433
                %v435 = vld [vmem:[%s149 + $0x8a8] sm:$0xff]
                %436 = vst [vmem:[%s150 + $0x470] sm:$0xff] %v435
                %v437 = vld [vmem:[%s149 + $0x8b0] sm:$0xff]
                %438 = vst [vmem:[%s150 + $0x478] sm:$0xff] %v437
                %v439 = vld [vmem:[%s149 + $0x8b8] sm:$0xff]
                %440 = vst [vmem:[%s150 + $0x480] sm:$0xff] %v439
                %v441 = vld [vmem:[%s149 + $0x8c0] sm:$0xff]
                %442 = vst [vmem:[%s150 + $0x488] sm:$0xff] %v441
                %v443 = vld [vmem:[%s149 + $0x8c8] sm:$0xff]
                %444 = vst [vmem:[%s150 + $0x490] sm:$0xff] %v443
                %v445 = vld [vmem:[%s149 + $0x8d0] sm:$0xff]
                %446 = vst [vmem:[%s150 + $0x498] sm:$0xff] %v445
                %v447 = vld [vmem:[%s149 + $0x8d8] sm:$0xff]
                %448 = vst [vmem:[%s150 + $0x4a0] sm:$0xff] %v447
                %v449 = vld [vmem:[%s149 + $0x8e0] sm:$0xff]
                %450 = vst [vmem:[%s150 + $0x4a8] sm:$0xff] %v449
                %v451 = vld [vmem:[%s149 + $0x8e8] sm:$0xff]
                %452 = vst [vmem:[%s150 + $0x4b0] sm:$0xff] %v451
                %v453 = vld [vmem:[%s149 + $0x8f0] sm:$0xff]
                %454 = vst [vmem:[%s150 + $0x4b8] sm:$0xff] %v453
                %v455 = vld [vmem:[%s149 + $0x8f8] sm:$0xff]
                %456 = vst [vmem:[%s150 + $0x4c0] sm:$0xff] %v455
                %v457 = vld [vmem:[%s149 + $0x900] sm:$0xff]
                %458 = vst [vmem:[%s150 + $0x4c8] sm:$0xff] %v457
                %v459 = vld [vmem:[%s149 + $0x908] sm:$0xff]
                %460 = vst [vmem:[%s150 + $0x4d0] sm:$0xff] %v459
                %v461 = vld [vmem:[%s149 + $0x910] sm:$0xff]
                %462 = vst [vmem:[%s150 + $0x4d8] sm:$0xff] %v461
                %v463 = vld [vmem:[%s149 + $0x918] sm:$0xff]
                %464 = vst [vmem:[%s150 + $0x4e0] sm:$0xff] %v463
                %v465 = vld [vmem:[%s149 + $0x920] sm:$0xff]
                %466 = vst [vmem:[%s150 + $0x4e8] sm:$0xff] %v465
                %v467 = vld [vmem:[%s149 + $0x928] sm:$0xff]
                %468 = vst [vmem:[%s150 + $0x4f0] sm:$0xff] %v467
                %v469 = vld [vmem:[%s149 + $0x930] sm:$0xff]
                %470 = vst [vmem:[%s150 + $0x4f8] sm:$0xff] %v469
                %v471 = vld [vmem:[%s149 + $0x938] sm:$0xff]
                %472 = vst [vmem:[%s150 + $0x500] sm:$0xff] %v471
                %v473 = vld [vmem:[%s149 + $0x940] sm:$0xff]
                %474 = vst [vmem:[%s150 + $0x508] sm:$0xff] %v473
                %v475 = vld [vmem:[%s149 + $0x948] sm:$0xff]
                %476 = vst [vmem:[%s150 + $0x510] sm:$0xff] %v475
                %v477 = vld [vmem:[%s149 + $0x950] sm:$0xff]
                %478 = vst [vmem:[%s150 + $0x518] sm:$0xff] %v477
                %v479 = vld [vmem:[%s149 + $0x958] sm:$0xff]
                %480 = vst [vmem:[%s150 + $0x520] sm:$0xff] %v479
                %v481 = vld [vmem:[%s149 + $0x960] sm:$0xff]
                %482 = vst [vmem:[%s150 + $0x528] sm:$0xff] %v481
                %v483 = vld [vmem:[%s149 + $0x968] sm:$0xff]
                %484 = vst [vmem:[%s150 + $0x530] sm:$0xff] %v483
                %v485 = vld [vmem:[%s149 + $0x970] sm:$0xff]
                %486 = vst [vmem:[%s150 + $0x538] sm:$0xff] %v485
                %v487 = vld [vmem:[%s149 + $0x978] sm:$0xff]
                %488 = vst [vmem:[%s150 + $0x540] sm:$0xff] %v487
                %v489 = vld [vmem:[%s149 + $0x980] sm:$0xff]
                %490 = vst [vmem:[%s150 + $0x548] sm:$0xff] %v489
                %v491 = vld [vmem:[%s149 + $0x988] sm:$0xff]
                %492 = vst [vmem:[%s150 + $0x550] sm:$0xff] %v491
                %v493 = vld [vmem:[%s149 + $0x990] sm:$0xff]
                %494 = vst [vmem:[%s150 + $0x558] sm:$0xff] %v493
                %v495 = vld [vmem:[%s149 + $0x998] sm:$0xff]
                %496 = vst [vmem:[%s150 + $0x560] sm:$0xff] %v495
                %v497 = vld [vmem:[%s149 + $0x9a0] sm:$0xff]
                %498 = vst [vmem:[%s150 + $0x568] sm:$0xff] %v497
                %v499 = vld [vmem:[%s149 + $0x9a8] sm:$0xff]
                %500 = vst [vmem:[%s150 + $0x570] sm:$0xff] %v499
                %v501 = vld [vmem:[%s149 + $0x9b0] sm:$0xff]
                %502 = vst [vmem:[%s150 + $0x578] sm:$0xff] %v501
                %v503 = vld [vmem:[%s149 + $0x9b8] sm:$0xff]
                %504 = vst [vmem:[%s150 + $0x580] sm:$0xff] %v503
                %v505 = vld [vmem:[%s149 + $0x9c0] sm:$0xff]
                %506 = vst [vmem:[%s150 + $0x588] sm:$0xff] %v505
                %v507 = vld [vmem:[%s149 + $0x9c8] sm:$0xff]
                %508 = vst [vmem:[%s150 + $0x590] sm:$0xff] %v507
                %v509 = vld [vmem:[%s149 + $0x9d0] sm:$0xff]
                %510 = vst [vmem:[%s150 + $0x598] sm:$0xff] %v509
              $region41: #{hypnet_forward.6} parent=35 // loop_footer
                %s148 = sadd.s32 1, %s144
              $region42: #{hypnet_forward.6} parent=35 // loop_footer_branch
                %143 = sbr.rel target = $region38
              $region43: #{hypnet_forward.6} parent=35 // loop_exit
                _
            $region36: #{hypnet_forward.6} parent=31 // pred_fallthru
              _
            // Predicated region
            $region44: #{hypnet_forward.6} parent=31 // pred_check
              _
            $region45: #{hypnet_forward.6} parent=31 // pred_check_branch
              %512 = sbr.rel target = $region47
            $region46: #{hypnet_forward.6} parent=31 // pred_region
              _
            $region47: #{hypnet_forward.6} parent=31 // pred_fallthru
              _
          $region32: #{hypnet_forward.6} parent=27 // pred_fallthru
            _
          %513 = vnop
        $region28: #{hypnet_forward.6} parent=23 // pred_fallthru
          _
      $region24: #{hypnet_forward.6} parent=5 // pred_fallthru
        _
      %p514 = scmp.le.s32.totalorder 1, %s9
      %p515 = scmp.lt.s32.totalorder %s9, 3
      %p516 = pnand %p514, %p515
      %p517 = pneg %p516
      // Predicated region
      $region48: #{hypnet_forward.6} parent=5 // pred_check
        _
      $region49: #{hypnet_forward.6} parent=5 // pred_check_branch
        %519 = sbr.rel (%p516) target = $region51
      $region50: #{hypnet_forward.6} parent=5 // pred_region
        %s520 = ssub.s32 %s9, 1
        %s521 = sand.u32 %s22, 1
        %s522 = sand.u32 %s22, 1
        %s523 = smul.addr %s522, 1440
        %s524 = scalar_lea.vmem [#allocation2], %s523
        // Predicated region
        $region52: #{hypnet_forward.6} parent=50 // pred_check
          %p525 = pneg %p35
        $region53: #{hypnet_forward.6} parent=50 // pred_check_branch
          %527 = sbr.rel (%p525) target = $region55
        $region54: #{hypnet_forward.6} parent=50 // pred_region
          _
        $region55: #{hypnet_forward.6} parent=50 // pred_fallthru
          _
        %s528 = sand.u32 %s22, 1
        %s529 = sand.u32 %s22, 1
        %s530 = smul.addr %s529, 1440
        %s531 = scalar_lea.vmem [#allocation2], %s530
        %p532 = pneg %p35
        %p533 = pneg %p32
        %p534 = pneg %p56
        %p535 = pneg %p53
        %p536 = pneg %p77
        %p537 = pneg %p74
        %p538 = pneg %p103
        %p539 = pneg %p100
        %s540 = smul.u32 15, %s14
        %p541 = scmp.lt.s32.totalorder %s540, 29
        %s542 = scalar_select %p541, %s540, 29
        %s543 = smul.addr %s542, 8
        %s544 = scalar_lea.vmem %s3, %s543
        %s545 = smul.u32 15, %s14
        %s546 = smul.u32 15, %s14
        %p547 = scmp.lt.s32.totalorder %s546, 29
        %s548 = scalar_select %p547, %s546, 29
        %s549 = smul.addr %s548, 8
        %s550 = scalar_lea.vmem %s3, %s549
        %s551 = smul.u32 15, %s14
        %v552 = vld [vmem:[%s1] sm:$0xff]
        %v553 = vld [vmem:[%s1 + $0x8] sm:$0xff]
        %v554 = vld [vmem:[%s1 + $0x10] sm:$0xff]
        %v555 = vld [vmem:[%s1 + $0x18] sm:$0xff]
        %v556 = vld [vmem:[%s1 + $0x20] sm:$0xff]
        %v557 = vld [vmem:[%s1 + $0x28] sm:$0xff]
        %v558 = vld [vmem:[%s1 + $0x30] sm:$0xff]
        %v559 = vld [vmem:[%s1 + $0x38] sm:$0xff]
        %v560 = vld [vmem:[%s1 + $0x40] sm:$0xff]
        %v561 = vld [vmem:[%s1 + $0x48] sm:$0xff]
        %v562 = vld [vmem:[%s1 + $0x50] sm:$0xff]
        %v563 = vld [vmem:[%s1 + $0x58] sm:$0xff]
        %v564 = vld [vmem:[%s1 + $0x60] sm:$0xff]
        %v565 = vld [vmem:[%s1 + $0x68] sm:$0xff]
        %v566 = vld [vmem:[%s1 + $0x70] sm:$0xff]
        %v567 = vld [vmem:[%s1 + $0x78] sm:$0xff]
        %v568 = vld [vmem:[%s1 + $0x80] sm:$0xff]
        %v569 = vld [vmem:[%s1 + $0x88] sm:$0xff]
        %v570 = vld [vmem:[%s1 + $0x90] sm:$0xff]
        %v571 = vld [vmem:[%s1 + $0x98] sm:$0xff]
        %v572 = vld [vmem:[%s1 + $0xa0] sm:$0xff]
        %v573 = vld [vmem:[%s1 + $0xa8] sm:$0xff]
        %v574 = vld [vmem:[%s1 + $0xb0] sm:$0xff]
        %v575 = vld [vmem:[%s1 + $0xb8] sm:$0xff]
        %v576 = vld [vmem:[%s1 + $0xc0] sm:$0xff]
        %v577 = vld [vmem:[%s1 + $0xc8] sm:$0xff]
        %v578 = vld [vmem:[%s1 + $0xd0] sm:$0xff]
        %v579 = vld [vmem:[%s1 + $0xd8] sm:$0xff]
        %v580 = vld [vmem:[%s1 + $0xe0] sm:$0xff]
        %v581 = vld [vmem:[%s1 + $0xe8] sm:$0xff]
        %v582 = vld [vmem:[%s1 + $0xf0] sm:$0xff]
        %v583 = vld [vmem:[%s1 + $0xf8] sm:$0xff]
        %v584 = vld [vmem:[%s1 + $0x100] sm:$0xff]
        %v585 = vld [vmem:[%s1 + $0x108] sm:$0xff]
        %v586 = vld [vmem:[%s1 + $0x110] sm:$0xff]
        %v587 = vld [vmem:[%s1 + $0x118] sm:$0xff]
        %v588 = vld [vmem:[%s524] sm:$0xff]
        %v589 = vld [vmem:[%s524 + $0x8] sm:$0xff]
        %v590 = vld [vmem:[%s524 + $0x10] sm:$0xff]
        %v591 = vld [vmem:[%s524 + $0x18] sm:$0xff]
        %v592 = vld [vmem:[%s524 + $0x20] sm:$0xff]
        %v593 = vld [vmem:[%s524 + $0x28] sm:$0xff]
        %v594 = vld [vmem:[%s524 + $0x30] sm:$0xff]
        %v595 = vld [vmem:[%s524 + $0x38] sm:$0xff]
        %v596 = vld [vmem:[%s524 + $0x40] sm:$0xff]
        %v597 = vld [vmem:[%s524 + $0x48] sm:$0xff]
        %v598 = vld [vmem:[%s524 + $0x50] sm:$0xff]
        %v599 = vld [vmem:[%s524 + $0x58] sm:$0xff]
        %v600 = vld [vmem:[%s524 + $0x60] sm:$0xff]
        %v601 = vld [vmem:[%s524 + $0x68] sm:$0xff]
        %v602 = vld [vmem:[%s524 + $0x70] sm:$0xff]
        %v603 = vld [vmem:[%s524 + $0x78] sm:$0xff]
        %v604 = vld [vmem:[%s524 + $0x80] sm:$0xff]
        %v605 = vld [vmem:[%s524 + $0x88] sm:$0xff]
        %v606 = vld [vmem:[%s524 + $0x90] sm:$0xff]
        %v607 = vld [vmem:[%s524 + $0x98] sm:$0xff]
        %v608 = vld [vmem:[%s524 + $0xa0] sm:$0xff]
        %v609 = vld [vmem:[%s524 + $0xa8] sm:$0xff]
        %v610 = vld [vmem:[%s524 + $0xb0] sm:$0xff]
        %v611 = vld [vmem:[%s524 + $0xb8] sm:$0xff]
        %v612 = vld [vmem:[%s524 + $0xc0] sm:$0xff]
        %v613 = vld [vmem:[%s524 + $0xc8] sm:$0xff]
        %v614 = vld [vmem:[%s524 + $0xd0] sm:$0xff]
        %v615 = vld [vmem:[%s524 + $0xd8] sm:$0xff]
        %v616 = vld [vmem:[%s524 + $0xe0] sm:$0xff]
        %v617 = vld [vmem:[%s524 + $0xe8] sm:$0xff]
        %v618 = vld [vmem:[%s524 + $0xf0] sm:$0xff]
        %v619 = vld [vmem:[%s524 + $0xf8] sm:$0xff]
        %v620 = vld [vmem:[%s524 + $0x100] sm:$0xff]
        %v621 = vld [vmem:[%s524 + $0x108] sm:$0xff]
        %v622 = vld [vmem:[%s524 + $0x110] sm:$0xff]
        %v623 = vld [vmem:[%s524 + $0x118] sm:$0xff]
        %v624 = vld [vmem:[%s524 + $0x120] sm:$0xff]
        %v625 = vld [vmem:[%s524 + $0x128] sm:$0xff]
        %v626 = vld [vmem:[%s524 + $0x130] sm:$0xff]
        %v627 = vld [vmem:[%s524 + $0x138] sm:$0xff]
        %v628 = vld [vmem:[%s524 + $0x140] sm:$0xff]
        %v629 = vld [vmem:[%s524 + $0x148] sm:$0xff]
        %v630 = vld [vmem:[%s524 + $0x150] sm:$0xff]
        %v631 = vld [vmem:[%s524 + $0x158] sm:$0xff]
        %v632 = vld [vmem:[%s524 + $0x160] sm:$0xff]
        %vm633 = vcmask 261120
        %v635 = vsel %vm633, %v590, 0
        %v638 = vsel %vm633, %v593, 0
        %v641 = vsel %vm633, %v596, 0
        %v644 = vsel %vm633, %v599, 0
        %v647 = vsel %vm633, %v602, 0
        %v650 = vsel %vm633, %v605, 0
        %v653 = vsel %vm633, %v608, 0
        %v656 = vsel %vm633, %v611, 0
        %v659 = vsel %vm633, %v614, 0
        %v662 = vsel %vm633, %v617, 0
        %v665 = vsel %vm633, %v620, 0
        %v668 = vsel %vm633, %v623, 0
        %v671 = vsel %vm633, %v626, 0
        %v674 = vsel %vm633, %v629, 0
        %v677 = vsel %vm633, %v632, 0
        %679 = vmatpush.msra.mxu0 %v567
        %680 = vmatpush.msra.mxu0 %v566
        %681 = vmatpush.msra.mxu0 %v565
        %682 = vmatpush.msra.mxu0 %v564
        %683 = vmatpush.msra.mxu0 %v563
        %684 = vmatpush.msra.mxu0 %v562
        %685 = vmatpush.msra.mxu0 %v561
        %686 = vmatpush.msra.mxu0 %v560
        %687 = vmatpush.msra.mxu0 %v559
        %688 = vmatpush.msra.mxu0 %v558
        %689 = vmatpush.msra.mxu0 %v557
        %690 = vmatpush.msra.mxu0 %v556
        %691 = vmatpush.msra.mxu0 %v555
        %692 = vmatpush.msra.mxu0 %v554
        %693 = vmatpush.msra.mxu0 %v553
        %694 = vmatpush.msra.mxu0 %v552
        %695 = vmatmul.f32.gmra.mxu0 %v588
        %v696 = vpop.f32.mrf.mxu0
        %v697 = vadd.f32 0.0, %v696
        %698 = vmatmul.f32.gmra.mxu0 %v591
        %v699 = vpop.f32.mrf.mxu0
        %v700 = vadd.f32 0.0, %v699
        %701 = vmatmul.f32.gmra.mxu0 %v594
        %v702 = vpop.f32.mrf.mxu0
        %v703 = vadd.f32 0.0, %v702
        %704 = vmatmul.f32.gmra.mxu0 %v597
        %v705 = vpop.f32.mrf.mxu0
        %v706 = vadd.f32 0.0, %v705
        %707 = vmatmul.f32.gmra.mxu0 %v600
        %v708 = vpop.f32.mrf.mxu0
        %v709 = vadd.f32 0.0, %v708
        %710 = vmatmul.f32.gmra.mxu0 %v603
        %v711 = vpop.f32.mrf.mxu0
        %v712 = vadd.f32 0.0, %v711
        %713 = vmatmul.f32.gmra.mxu0 %v606
        %v714 = vpop.f32.mrf.mxu0
        %v715 = vadd.f32 0.0, %v714
        %716 = vmatmul.f32.gmra.mxu0 %v609
        %v717 = vpop.f32.mrf.mxu0
        %v718 = vadd.f32 0.0, %v717
        %719 = vmatmul.f32.gmra.mxu0 %v612
        %v720 = vpop.f32.mrf.mxu0
        %v721 = vadd.f32 0.0, %v720
        %722 = vmatmul.f32.gmra.mxu0 %v615
        %v723 = vpop.f32.mrf.mxu0
        %v724 = vadd.f32 0.0, %v723
        %725 = vmatmul.f32.gmra.mxu0 %v618
        %v726 = vpop.f32.mrf.mxu0
        %v727 = vadd.f32 0.0, %v726
        %728 = vmatmul.f32.gmra.mxu0 %v621
        %v729 = vpop.f32.mrf.mxu0
        %v730 = vadd.f32 0.0, %v729
        %731 = vmatmul.f32.gmra.mxu0 %v624
        %v732 = vpop.f32.mrf.mxu0
        %v733 = vadd.f32 0.0, %v732
        %734 = vmatmul.f32.gmra.mxu0 %v627
        %v735 = vpop.f32.mrf.mxu0
        %v736 = vadd.f32 0.0, %v735
        %737 = vmatmul.f32.gmra.mxu0 %v630
        %v738 = vpop.f32.mrf.mxu0
        %v739 = vadd.f32 0.0, %v738
        %740 = vdwg.mxu0
        %741 = vmatpush.msra.mxu0 %v583
        %742 = vmatpush.msra.mxu0 %v582
        %743 = vmatpush.msra.mxu0 %v581
        %744 = vmatpush.msra.mxu0 %v580
        %745 = vmatpush.msra.mxu0 %v579
        %746 = vmatpush.msra.mxu0 %v578
        %747 = vmatpush.msra.mxu0 %v577
        %748 = vmatpush.msra.mxu0 %v576
        %749 = vmatpush.msra.mxu0 %v575
        %750 = vmatpush.msra.mxu0 %v574
        %751 = vmatpush.msra.mxu0 %v573
        %752 = vmatpush.msra.mxu0 %v572
        %753 = vmatpush.msra.mxu0 %v571
        %754 = vmatpush.msra.mxu0 %v570
        %755 = vmatpush.msra.mxu0 %v569
        %756 = vmatpush.msra.mxu0 %v568
        %757 = vmatmul.f32.gmra.mxu0 %v589
        %v758 = vpop.f32.mrf.mxu0
        %v759 = vadd.f32 %v697, %v758
        %760 = vmatmul.f32.gmra.mxu0 %v592
        %v761 = vpop.f32.mrf.mxu0
        %v762 = vadd.f32 %v700, %v761
        %763 = vmatmul.f32.gmra.mxu0 %v595
        %v764 = vpop.f32.mrf.mxu0
        %v765 = vadd.f32 %v703, %v764
        %766 = vmatmul.f32.gmra.mxu0 %v598
        %v767 = vpop.f32.mrf.mxu0
        %v768 = vadd.f32 %v706, %v767
        %769 = vmatmul.f32.gmra.mxu0 %v601
        %v770 = vpop.f32.mrf.mxu0
        %v771 = vadd.f32 %v709, %v770
        %772 = vmatmul.f32.gmra.mxu0 %v604
        %v773 = vpop.f32.mrf.mxu0
        %v774 = vadd.f32 %v712, %v773
        %775 = vmatmul.f32.gmra.mxu0 %v607
        %v776 = vpop.f32.mrf.mxu0
        %v777 = vadd.f32 %v715, %v776
        %778 = vmatmul.f32.gmra.mxu0 %v610
        %v779 = vpop.f32.mrf.mxu0
        %v780 = vadd.f32 %v718, %v779
        %781 = vmatmul.f32.gmra.mxu0 %v613
        %v782 = vpop.f32.mrf.mxu0
        %v783 = vadd.f32 %v721, %v782
        %784 = vmatmul.f32.gmra.mxu0 %v616
        %v785 = vpop.f32.mrf.mxu0
        %v786 = vadd.f32 %v724, %v785
        %787 = vmatmul.f32.gmra.mxu0 %v619
        %v788 = vpop.f32.mrf.mxu0
        %v789 = vadd.f32 %v727, %v788
        %790 = vmatmul.f32.gmra.mxu0 %v622
        %v791 = vpop.f32.mrf.mxu0
        %v792 = vadd.f32 %v730, %v791
        %793 = vmatmul.f32.gmra.mxu0 %v625
        %v794 = vpop.f32.mrf.mxu0
        %v795 = vadd.f32 %v733, %v794
        %796 = vmatmul.f32.gmra.mxu0 %v628
        %v797 = vpop.f32.mrf.mxu0
        %v798 = vadd.f32 %v736, %v797
        %799 = vmatmul.f32.gmra.mxu0 %v631
        %v800 = vpop.f32.mrf.mxu0
        %v801 = vadd.f32 %v739, %v800
        %802 = vdwg.mxu0
        %803 = vmatpush.msra.mxu0 0.0
        %804 = vmatpush.msra.mxu0 0.0
        %805 = vmatpush.msra.mxu0 0.0
        %806 = vmatpush.msra.mxu0 0.0
        %807 = vmatpush.msra.mxu0 0.0
        %808 = vmatpush.msra.mxu0 0.0
        %809 = vmatpush.msra.mxu0 0.0
        %810 = vmatpush.msra.mxu0 0.0
        %811 = vmatpush.msra.mxu0 0.0
        %812 = vmatpush.msra.mxu0 0.0
        %813 = vmatpush.msra.mxu0 0.0
        %814 = vmatpush.msra.mxu0 0.0
        %815 = vmatpush.msra.mxu0 %v587
        %816 = vmatpush.msra.mxu0 %v586
        %817 = vmatpush.msra.mxu0 %v585
        %818 = vmatpush.msra.mxu0 %v584
        %819 = vmatmul.f32.gmra.mxu0 %v635
        %v820 = vpop.f32.mrf.mxu0
        %v821 = vadd.f32 %v759, %v820
        %822 = vmatmul.f32.gmra.mxu0 %v638
        %v823 = vpop.f32.mrf.mxu0
        %v824 = vadd.f32 %v762, %v823
        %825 = vmatmul.f32.gmra.mxu0 %v641
        %v826 = vpop.f32.mrf.mxu0
        %v827 = vadd.f32 %v765, %v826
        %828 = vmatmul.f32.gmra.mxu0 %v644
        %v829 = vpop.f32.mrf.mxu0
        %v830 = vadd.f32 %v768, %v829
        %831 = vmatmul.f32.gmra.mxu0 %v647
        %v832 = vpop.f32.mrf.mxu0
        %v833 = vadd.f32 %v771, %v832
        %834 = vmatmul.f32.gmra.mxu0 %v650
        %v835 = vpop.f32.mrf.mxu0
        %v836 = vadd.f32 %v774, %v835
        %837 = vmatmul.f32.gmra.mxu0 %v653
        %v838 = vpop.f32.mrf.mxu0
        %v839 = vadd.f32 %v777, %v838
        %840 = vmatmul.f32.gmra.mxu0 %v656
        %v841 = vpop.f32.mrf.mxu0
        %v842 = vadd.f32 %v780, %v841
        %843 = vmatmul.f32.gmra.mxu0 %v659
        %v844 = vpop.f32.mrf.mxu0
        %v845 = vadd.f32 %v783, %v844
        %846 = vmatmul.f32.gmra.mxu0 %v662
        %v847 = vpop.f32.mrf.mxu0
        %v848 = vadd.f32 %v786, %v847
        %849 = vmatmul.f32.gmra.mxu0 %v665
        %v850 = vpop.f32.mrf.mxu0
        %v851 = vadd.f32 %v789, %v850
        %852 = vmatmul.f32.gmra.mxu0 %v668
        %v853 = vpop.f32.mrf.mxu0
        %v854 = vadd.f32 %v792, %v853
        %855 = vmatmul.f32.gmra.mxu0 %v671
        %v856 = vpop.f32.mrf.mxu0
        %v857 = vadd.f32 %v795, %v856
        %858 = vmatmul.f32.gmra.mxu0 %v674
        %v859 = vpop.f32.mrf.mxu0
        %v860 = vadd.f32 %v798, %v859
        %861 = vmatmul.f32.gmra.mxu0 %v677
        %v862 = vpop.f32.mrf.mxu0
        %v863 = vadd.f32 %v801, %v862
        %864 = vdwg.mxu0
        %s865 = scalar_lea.vmem %s524, 360 [#allocation2]
        %v866 = vld [vmem:[%s865] sm:$0xff]
        %v867 = vld [vmem:[%s865 + $0x8] sm:$0xff]
        %v868 = vld [vmem:[%s865 + $0x10] sm:$0xff]
        %v869 = vld [vmem:[%s865 + $0x18] sm:$0xff]
        %v870 = vld [vmem:[%s865 + $0x20] sm:$0xff]
        %v871 = vld [vmem:[%s865 + $0x28] sm:$0xff]
        %v872 = vld [vmem:[%s865 + $0x30] sm:$0xff]
        %v873 = vld [vmem:[%s865 + $0x38] sm:$0xff]
        %v874 = vld [vmem:[%s865 + $0x40] sm:$0xff]
        %v875 = vld [vmem:[%s865 + $0x48] sm:$0xff]
        %v876 = vld [vmem:[%s865 + $0x50] sm:$0xff]
        %v877 = vld [vmem:[%s865 + $0x58] sm:$0xff]
        %v878 = vld [vmem:[%s865 + $0x60] sm:$0xff]
        %v879 = vld [vmem:[%s865 + $0x68] sm:$0xff]
        %v880 = vld [vmem:[%s865 + $0x70] sm:$0xff]
        %v881 = vld [vmem:[%s865 + $0x78] sm:$0xff]
        %v882 = vld [vmem:[%s865 + $0x80] sm:$0xff]
        %v883 = vld [vmem:[%s865 + $0x88] sm:$0xff]
        %v884 = vld [vmem:[%s865 + $0x90] sm:$0xff]
        %v885 = vld [vmem:[%s865 + $0x98] sm:$0xff]
        %v886 = vld [vmem:[%s865 + $0xa0] sm:$0xff]
        %v887 = vld [vmem:[%s865 + $0xa8] sm:$0xff]
        %v888 = vld [vmem:[%s865 + $0xb0] sm:$0xff]
        %v889 = vld [vmem:[%s865 + $0xb8] sm:$0xff]
        %v890 = vld [vmem:[%s865 + $0xc0] sm:$0xff]
        %v891 = vld [vmem:[%s865 + $0xc8] sm:$0xff]
        %v892 = vld [vmem:[%s865 + $0xd0] sm:$0xff]
        %v893 = vld [vmem:[%s865 + $0xd8] sm:$0xff]
        %v894 = vld [vmem:[%s865 + $0xe0] sm:$0xff]
        %v895 = vld [vmem:[%s865 + $0xe8] sm:$0xff]
        %v896 = vld [vmem:[%s865 + $0xf0] sm:$0xff]
        %v897 = vld [vmem:[%s865 + $0xf8] sm:$0xff]
        %v898 = vld [vmem:[%s865 + $0x100] sm:$0xff]
        %v899 = vld [vmem:[%s865 + $0x108] sm:$0xff]
        %v900 = vld [vmem:[%s865 + $0x110] sm:$0xff]
        %v901 = vld [vmem:[%s865 + $0x118] sm:$0xff]
        %v902 = vld [vmem:[%s865 + $0x120] sm:$0xff]
        %v903 = vld [vmem:[%s865 + $0x128] sm:$0xff]
        %v904 = vld [vmem:[%s865 + $0x130] sm:$0xff]
        %v905 = vld [vmem:[%s865 + $0x138] sm:$0xff]
        %v906 = vld [vmem:[%s865 + $0x140] sm:$0xff]
        %v907 = vld [vmem:[%s865 + $0x148] sm:$0xff]
        %v908 = vld [vmem:[%s865 + $0x150] sm:$0xff]
        %v909 = vld [vmem:[%s865 + $0x158] sm:$0xff]
        %v910 = vld [vmem:[%s865 + $0x160] sm:$0xff]
        %v912 = vsel %vm633, %v868, 0
        %v915 = vsel %vm633, %v871, 0
        %v918 = vsel %vm633, %v874, 0
        %v921 = vsel %vm633, %v877, 0
        %v924 = vsel %vm633, %v880, 0
        %v927 = vsel %vm633, %v883, 0
        %v930 = vsel %vm633, %v886, 0
        %v933 = vsel %vm633, %v889, 0
        %v936 = vsel %vm633, %v892, 0
        %v939 = vsel %vm633, %v895, 0
        %v942 = vsel %vm633, %v898, 0
        %v945 = vsel %vm633, %v901, 0
        %v948 = vsel %vm633, %v904, 0
        %v951 = vsel %vm633, %v907, 0
        %v954 = vsel %vm633, %v910, 0
        %956 = vmatpush.msra.mxu0 %v567
        %957 = vmatpush.msra.mxu0 %v566
        %958 = vmatpush.msra.mxu0 %v565
        %959 = vmatpush.msra.mxu0 %v564
        %960 = vmatpush.msra.mxu0 %v563
        %961 = vmatpush.msra.mxu0 %v562
        %962 = vmatpush.msra.mxu0 %v561
        %963 = vmatpush.msra.mxu0 %v560
        %964 = vmatpush.msra.mxu0 %v559
        %965 = vmatpush.msra.mxu0 %v558
        %966 = vmatpush.msra.mxu0 %v557
        %967 = vmatpush.msra.mxu0 %v556
        %968 = vmatpush.msra.mxu0 %v555
        %969 = vmatpush.msra.mxu0 %v554
        %970 = vmatpush.msra.mxu0 %v553
        %971 = vmatpush.msra.mxu0 %v552
        %972 = vmatmul.f32.gmra.mxu0 %v866
        %v973 = vpop.f32.mrf.mxu0
        %v974 = vadd.f32 0.0, %v973
        %975 = vmatmul.f32.gmra.mxu0 %v869
        %v976 = vpop.f32.mrf.mxu0
        %v977 = vadd.f32 0.0, %v976
        %978 = vmatmul.f32.gmra.mxu0 %v872
        %v979 = vpop.f32.mrf.mxu0
        %v980 = vadd.f32 0.0, %v979
        %981 = vmatmul.f32.gmra.mxu0 %v875
        %v982 = vpop.f32.mrf.mxu0
        %v983 = vadd.f32 0.0, %v982
        %984 = vmatmul.f32.gmra.mxu0 %v878
        %v985 = vpop.f32.mrf.mxu0
        %v986 = vadd.f32 0.0, %v985
        %987 = vmatmul.f32.gmra.mxu0 %v881
        %v988 = vpop.f32.mrf.mxu0
        %v989 = vadd.f32 0.0, %v988
        %990 = vmatmul.f32.gmra.mxu0 %v884
        %v991 = vpop.f32.mrf.mxu0
        %v992 = vadd.f32 0.0, %v991
        %993 = vmatmul.f32.gmra.mxu0 %v887
        %v994 = vpop.f32.mrf.mxu0
        %v995 = vadd.f32 0.0, %v994
        %996 = vmatmul.f32.gmra.mxu0 %v890
        %v997 = vpop.f32.mrf.mxu0
        %v998 = vadd.f32 0.0, %v997
        %999 = vmatmul.f32.gmra.mxu0 %v893
        %v1000 = vpop.f32.mrf.mxu0
        %v1001 = vadd.f32 0.0, %v1000
        %1002 = vmatmul.f32.gmra.mxu0 %v896
        %v1003 = vpop.f32.mrf.mxu0
        %v1004 = vadd.f32 0.0, %v1003
        %1005 = vmatmul.f32.gmra.mxu0 %v899
        %v1006 = vpop.f32.mrf.mxu0
        %v1007 = vadd.f32 0.0, %v1006
        %1008 = vmatmul.f32.gmra.mxu0 %v902
        %v1009 = vpop.f32.mrf.mxu0
        %v1010 = vadd.f32 0.0, %v1009
        %1011 = vmatmul.f32.gmra.mxu0 %v905
        %v1012 = vpop.f32.mrf.mxu0
        %v1013 = vadd.f32 0.0, %v1012
        %1014 = vmatmul.f32.gmra.mxu0 %v908
        %v1015 = vpop.f32.mrf.mxu0
        %v1016 = vadd.f32 0.0, %v1015
        %1017 = vdwg.mxu0
        %1018 = vmatpush.msra.mxu0 %v583
        %1019 = vmatpush.msra.mxu0 %v582
        %1020 = vmatpush.msra.mxu0 %v581
        %1021 = vmatpush.msra.mxu0 %v580
        %1022 = vmatpush.msra.mxu0 %v579
        %1023 = vmatpush.msra.mxu0 %v578
        %1024 = vmatpush.msra.mxu0 %v577
        %1025 = vmatpush.msra.mxu0 %v576
        %1026 = vmatpush.msra.mxu0 %v575
        %1027 = vmatpush.msra.mxu0 %v574
        %1028 = vmatpush.msra.mxu0 %v573
        %1029 = vmatpush.msra.mxu0 %v572
        %1030 = vmatpush.msra.mxu0 %v571
        %1031 = vmatpush.msra.mxu0 %v570
        %1032 = vmatpush.msra.mxu0 %v569
        %1033 = vmatpush.msra.mxu0 %v568
        %1034 = vmatmul.f32.gmra.mxu0 %v867
        %v1035 = vpop.f32.mrf.mxu0
        %v1036 = vadd.f32 %v974, %v1035
        %1037 = vmatmul.f32.gmra.mxu0 %v870
        %v1038 = vpop.f32.mrf.mxu0
        %v1039 = vadd.f32 %v977, %v1038
        %1040 = vmatmul.f32.gmra.mxu0 %v873
        %v1041 = vpop.f32.mrf.mxu0
        %v1042 = vadd.f32 %v980, %v1041
        %1043 = vmatmul.f32.gmra.mxu0 %v876
        %v1044 = vpop.f32.mrf.mxu0
        %v1045 = vadd.f32 %v983, %v1044
        %1046 = vmatmul.f32.gmra.mxu0 %v879
        %v1047 = vpop.f32.mrf.mxu0
        %v1048 = vadd.f32 %v986, %v1047
        %1049 = vmatmul.f32.gmra.mxu0 %v882
        %v1050 = vpop.f32.mrf.mxu0
        %v1051 = vadd.f32 %v989, %v1050
        %1052 = vmatmul.f32.gmra.mxu0 %v885
        %v1053 = vpop.f32.mrf.mxu0
        %v1054 = vadd.f32 %v992, %v1053
        %1055 = vmatmul.f32.gmra.mxu0 %v888
        %v1056 = vpop.f32.mrf.mxu0
        %v1057 = vadd.f32 %v995, %v1056
        %1058 = vmatmul.f32.gmra.mxu0 %v891
        %v1059 = vpop.f32.mrf.mxu0
        %v1060 = vadd.f32 %v998, %v1059
        %1061 = vmatmul.f32.gmra.mxu0 %v894
        %v1062 = vpop.f32.mrf.mxu0
        %v1063 = vadd.f32 %v1001, %v1062
        %1064 = vmatmul.f32.gmra.mxu0 %v897
        %v1065 = vpop.f32.mrf.mxu0
        %v1066 = vadd.f32 %v1004, %v1065
        %1067 = vmatmul.f32.gmra.mxu0 %v900
        %v1068 = vpop.f32.mrf.mxu0
        %v1069 = vadd.f32 %v1007, %v1068
        %1070 = vmatmul.f32.gmra.mxu0 %v903
        %v1071 = vpop.f32.mrf.mxu0
        %v1072 = vadd.f32 %v1010, %v1071
        %1073 = vmatmul.f32.gmra.mxu0 %v906
        %v1074 = vpop.f32.mrf.mxu0
        %v1075 = vadd.f32 %v1013, %v1074
        %1076 = vmatmul.f32.gmra.mxu0 %v909
        %v1077 = vpop.f32.mrf.mxu0
        %v1078 = vadd.f32 %v1016, %v1077
        %1079 = vdwg.mxu0
        %1080 = vmatpush.msra.mxu0 0.0
        %1081 = vmatpush.msra.mxu0 0.0
        %1082 = vmatpush.msra.mxu0 0.0
        %1083 = vmatpush.msra.mxu0 0.0
        %1084 = vmatpush.msra.mxu0 0.0
        %1085 = vmatpush.msra.mxu0 0.0
        %1086 = vmatpush.msra.mxu0 0.0
        %1087 = vmatpush.msra.mxu0 0.0
        %1088 = vmatpush.msra.mxu0 0.0
        %1089 = vmatpush.msra.mxu0 0.0
        %1090 = vmatpush.msra.mxu0 0.0
        %1091 = vmatpush.msra.mxu0 0.0
        %1092 = vmatpush.msra.mxu0 %v587
        %1093 = vmatpush.msra.mxu0 %v586
        %1094 = vmatpush.msra.mxu0 %v585
        %1095 = vmatpush.msra.mxu0 %v584
        %1096 = vmatmul.f32.gmra.mxu0 %v912
        %v1097 = vpop.f32.mrf.mxu0
        %v1098 = vadd.f32 %v1036, %v1097
        %1099 = vmatmul.f32.gmra.mxu0 %v915
        %v1100 = vpop.f32.mrf.mxu0
        %v1101 = vadd.f32 %v1039, %v1100
        %1102 = vmatmul.f32.gmra.mxu0 %v918
        %v1103 = vpop.f32.mrf.mxu0
        %v1104 = vadd.f32 %v1042, %v1103
        %1105 = vmatmul.f32.gmra.mxu0 %v921
        %v1106 = vpop.f32.mrf.mxu0
        %v1107 = vadd.f32 %v1045, %v1106
        %1108 = vmatmul.f32.gmra.mxu0 %v924
        %v1109 = vpop.f32.mrf.mxu0
        %v1110 = vadd.f32 %v1048, %v1109
        %1111 = vmatmul.f32.gmra.mxu0 %v927
        %v1112 = vpop.f32.mrf.mxu0
        %v1113 = vadd.f32 %v1051, %v1112
        %1114 = vmatmul.f32.gmra.mxu0 %v930
        %v1115 = vpop.f32.mrf.mxu0
        %v1116 = vadd.f32 %v1054, %v1115
        %1117 = vmatmul.f32.gmra.mxu0 %v933
        %v1118 = vpop.f32.mrf.mxu0
        %v1119 = vadd.f32 %v1057, %v1118
        %1120 = vmatmul.f32.gmra.mxu0 %v936
        %v1121 = vpop.f32.mrf.mxu0
        %v1122 = vadd.f32 %v1060, %v1121
        %1123 = vmatmul.f32.gmra.mxu0 %v939
        %v1124 = vpop.f32.mrf.mxu0
        %v1125 = vadd.f32 %v1063, %v1124
        %1126 = vmatmul.f32.gmra.mxu0 %v942
        %v1127 = vpop.f32.mrf.mxu0
        %v1128 = vadd.f32 %v1066, %v1127
        %1129 = vmatmul.f32.gmra.mxu0 %v945
        %v1130 = vpop.f32.mrf.mxu0
        %v1131 = vadd.f32 %v1069, %v1130
        %1132 = vmatmul.f32.gmra.mxu0 %v948
        %v1133 = vpop.f32.mrf.mxu0
        %v1134 = vadd.f32 %v1072, %v1133
        %1135 = vmatmul.f32.gmra.mxu0 %v951
        %v1136 = vpop.f32.mrf.mxu0
        %v1137 = vadd.f32 %v1075, %v1136
        %1138 = vmatmul.f32.gmra.mxu0 %v954
        %v1139 = vpop.f32.mrf.mxu0
        %v1140 = vadd.f32 %v1078, %v1139
        %1141 = vdwg.mxu0
        %v1142 = vmax.f32 %v821, %v1098
        %v1143 = vmax.f32 %v824, %v1101
        %v1144 = vmax.f32 %v827, %v1104
        %v1145 = vmax.f32 %v830, %v1107
        %v1146 = vmax.f32 %v833, %v1110
        %v1147 = vmax.f32 %v836, %v1113
        %v1148 = vmax.f32 %v839, %v1116
        %v1149 = vmax.f32 %v842, %v1119
        %v1150 = vmax.f32 %v845, %v1122
        %v1151 = vmax.f32 %v848, %v1125
        %v1152 = vmax.f32 %v851, %v1128
        %v1153 = vmax.f32 %v854, %v1131
        %v1154 = vmax.f32 %v857, %v1134
        %v1155 = vmax.f32 %v860, %v1137
        %v1156 = vmax.f32 %v863, %v1140
        %s1157 = scalar_lea.vmem %s524, 720 [#allocation2]
        %v1158 = vld [vmem:[%s1157] sm:$0xff]
        %v1159 = vld [vmem:[%s1157 + $0x8] sm:$0xff]
        %v1160 = vld [vmem:[%s1157 + $0x10] sm:$0xff]
        %v1161 = vld [vmem:[%s1157 + $0x18] sm:$0xff]
        %v1162 = vld [vmem:[%s1157 + $0x20] sm:$0xff]
        %v1163 = vld [vmem:[%s1157 + $0x28] sm:$0xff]
        %v1164 = vld [vmem:[%s1157 + $0x30] sm:$0xff]
        %v1165 = vld [vmem:[%s1157 + $0x38] sm:$0xff]
        %v1166 = vld [vmem:[%s1157 + $0x40] sm:$0xff]
        %v1167 = vld [vmem:[%s1157 + $0x48] sm:$0xff]
        %v1168 = vld [vmem:[%s1157 + $0x50] sm:$0xff]
        %v1169 = vld [vmem:[%s1157 + $0x58] sm:$0xff]
        %v1170 = vld [vmem:[%s1157 + $0x60] sm:$0xff]
        %v1171 = vld [vmem:[%s1157 + $0x68] sm:$0xff]
        %v1172 = vld [vmem:[%s1157 + $0x70] sm:$0xff]
        %v1173 = vld [vmem:[%s1157 + $0x78] sm:$0xff]
        %v1174 = vld [vmem:[%s1157 + $0x80] sm:$0xff]
        %v1175 = vld [vmem:[%s1157 + $0x88] sm:$0xff]
        %v1176 = vld [vmem:[%s1157 + $0x90] sm:$0xff]
        %v1177 = vld [vmem:[%s1157 + $0x98] sm:$0xff]
        %v1178 = vld [vmem:[%s1157 + $0xa0] sm:$0xff]
        %v1179 = vld [vmem:[%s1157 + $0xa8] sm:$0xff]
        %v1180 = vld [vmem:[%s1157 + $0xb0] sm:$0xff]
        %v1181 = vld [vmem:[%s1157 + $0xb8] sm:$0xff]
        %v1182 = vld [vmem:[%s1157 + $0xc0] sm:$0xff]
        %v1183 = vld [vmem:[%s1157 + $0xc8] sm:$0xff]
        %v1184 = vld [vmem:[%s1157 + $0xd0] sm:$0xff]
        %v1185 = vld [vmem:[%s1157 + $0xd8] sm:$0xff]
        %v1186 = vld [vmem:[%s1157 + $0xe0] sm:$0xff]
        %v1187 = vld [vmem:[%s1157 + $0xe8] sm:$0xff]
        %v1188 = vld [vmem:[%s1157 + $0xf0] sm:$0xff]
        %v1189 = vld [vmem:[%s1157 + $0xf8] sm:$0xff]
        %v1190 = vld [vmem:[%s1157 + $0x100] sm:$0xff]
        %v1191 = vld [vmem:[%s1157 + $0x108] sm:$0xff]
        %v1192 = vld [vmem:[%s1157 + $0x110] sm:$0xff]
        %v1193 = vld [vmem:[%s1157 + $0x118] sm:$0xff]
        %v1194 = vld [vmem:[%s1157 + $0x120] sm:$0xff]
        %v1195 = vld [vmem:[%s1157 + $0x128] sm:$0xff]
        %v1196 = vld [vmem:[%s1157 + $0x130] sm:$0xff]
        %v1197 = vld [vmem:[%s1157 + $0x138] sm:$0xff]
        %v1198 = vld [vmem:[%s1157 + $0x140] sm:$0xff]
        %v1199 = vld [vmem:[%s1157 + $0x148] sm:$0xff]
        %v1200 = vld [vmem:[%s1157 + $0x150] sm:$0xff]
        %v1201 = vld [vmem:[%s1157 + $0x158] sm:$0xff]
        %v1202 = vld [vmem:[%s1157 + $0x160] sm:$0xff]
        %v1204 = vsel %vm633, %v1160, 0
        %v1207 = vsel %vm633, %v1163, 0
        %v1210 = vsel %vm633, %v1166, 0
        %v1213 = vsel %vm633, %v1169, 0
        %v1216 = vsel %vm633, %v1172, 0
        %v1219 = vsel %vm633, %v1175, 0
        %v1222 = vsel %vm633, %v1178, 0
        %v1225 = vsel %vm633, %v1181, 0
        %v1228 = vsel %vm633, %v1184, 0
        %v1231 = vsel %vm633, %v1187, 0
        %v1234 = vsel %vm633, %v1190, 0
        %v1237 = vsel %vm633, %v1193, 0
        %v1240 = vsel %vm633, %v1196, 0
        %v1243 = vsel %vm633, %v1199, 0
        %v1246 = vsel %vm633, %v1202, 0
        %1248 = vmatpush.msra.mxu0 %v567
        %1249 = vmatpush.msra.mxu0 %v566
        %1250 = vmatpush.msra.mxu0 %v565
        %1251 = vmatpush.msra.mxu0 %v564
        %1252 = vmatpush.msra.mxu0 %v563
        %1253 = vmatpush.msra.mxu0 %v562
        %1254 = vmatpush.msra.mxu0 %v561
        %1255 = vmatpush.msra.mxu0 %v560
        %1256 = vmatpush.msra.mxu0 %v559
        %1257 = vmatpush.msra.mxu0 %v558
        %1258 = vmatpush.msra.mxu0 %v557
        %1259 = vmatpush.msra.mxu0 %v556
        %1260 = vmatpush.msra.mxu0 %v555
        %1261 = vmatpush.msra.mxu0 %v554
        %1262 = vmatpush.msra.mxu0 %v553
        %1263 = vmatpush.msra.mxu0 %v552
        %1264 = vmatmul.f32.gmra.mxu0 %v1158
        %v1265 = vpop.f32.mrf.mxu0
        %v1266 = vadd.f32 0.0, %v1265
        %1267 = vmatmul.f32.gmra.mxu0 %v1161
        %v1268 = vpop.f32.mrf.mxu0
        %v1269 = vadd.f32 0.0, %v1268
        %1270 = vmatmul.f32.gmra.mxu0 %v1164
        %v1271 = vpop.f32.mrf.mxu0
        %v1272 = vadd.f32 0.0, %v1271
        %1273 = vmatmul.f32.gmra.mxu0 %v1167
        %v1274 = vpop.f32.mrf.mxu0
        %v1275 = vadd.f32 0.0, %v1274
        %1276 = vmatmul.f32.gmra.mxu0 %v1170
        %v1277 = vpop.f32.mrf.mxu0
        %v1278 = vadd.f32 0.0, %v1277
        %1279 = vmatmul.f32.gmra.mxu0 %v1173
        %v1280 = vpop.f32.mrf.mxu0
        %v1281 = vadd.f32 0.0, %v1280
        %1282 = vmatmul.f32.gmra.mxu0 %v1176
        %v1283 = vpop.f32.mrf.mxu0
        %v1284 = vadd.f32 0.0, %v1283
        %1285 = vmatmul.f32.gmra.mxu0 %v1179
        %v1286 = vpop.f32.mrf.mxu0
        %v1287 = vadd.f32 0.0, %v1286
        %1288 = vmatmul.f32.gmra.mxu0 %v1182
        %v1289 = vpop.f32.mrf.mxu0
        %v1290 = vadd.f32 0.0, %v1289
        %1291 = vmatmul.f32.gmra.mxu0 %v1185
        %v1292 = vpop.f32.mrf.mxu0
        %v1293 = vadd.f32 0.0, %v1292
        %1294 = vmatmul.f32.gmra.mxu0 %v1188
        %v1295 = vpop.f32.mrf.mxu0
        %v1296 = vadd.f32 0.0, %v1295
        %1297 = vmatmul.f32.gmra.mxu0 %v1191
        %v1298 = vpop.f32.mrf.mxu0
        %v1299 = vadd.f32 0.0, %v1298
        %1300 = vmatmul.f32.gmra.mxu0 %v1194
        %v1301 = vpop.f32.mrf.mxu0
        %v1302 = vadd.f32 0.0, %v1301
        %1303 = vmatmul.f32.gmra.mxu0 %v1197
        %v1304 = vpop.f32.mrf.mxu0
        %v1305 = vadd.f32 0.0, %v1304
        %1306 = vmatmul.f32.gmra.mxu0 %v1200
        %v1307 = vpop.f32.mrf.mxu0
        %v1308 = vadd.f32 0.0, %v1307
        %1309 = vdwg.mxu0
        %1310 = vmatpush.msra.mxu0 %v583
        %1311 = vmatpush.msra.mxu0 %v582
        %1312 = vmatpush.msra.mxu0 %v581
        %1313 = vmatpush.msra.mxu0 %v580
        %1314 = vmatpush.msra.mxu0 %v579
        %1315 = vmatpush.msra.mxu0 %v578
        %1316 = vmatpush.msra.mxu0 %v577
        %1317 = vmatpush.msra.mxu0 %v576
        %1318 = vmatpush.msra.mxu0 %v575
        %1319 = vmatpush.msra.mxu0 %v574
        %1320 = vmatpush.msra.mxu0 %v573
        %1321 = vmatpush.msra.mxu0 %v572
        %1322 = vmatpush.msra.mxu0 %v571
        %1323 = vmatpush.msra.mxu0 %v570
        %1324 = vmatpush.msra.mxu0 %v569
        %1325 = vmatpush.msra.mxu0 %v568
        %1326 = vmatmul.f32.gmra.mxu0 %v1159
        %v1327 = vpop.f32.mrf.mxu0
        %v1328 = vadd.f32 %v1266, %v1327
        %1329 = vmatmul.f32.gmra.mxu0 %v1162
        %v1330 = vpop.f32.mrf.mxu0
        %v1331 = vadd.f32 %v1269, %v1330
        %1332 = vmatmul.f32.gmra.mxu0 %v1165
        %v1333 = vpop.f32.mrf.mxu0
        %v1334 = vadd.f32 %v1272, %v1333
        %1335 = vmatmul.f32.gmra.mxu0 %v1168
        %v1336 = vpop.f32.mrf.mxu0
        %v1337 = vadd.f32 %v1275, %v1336
        %1338 = vmatmul.f32.gmra.mxu0 %v1171
        %v1339 = vpop.f32.mrf.mxu0
        %v1340 = vadd.f32 %v1278, %v1339
        %1341 = vmatmul.f32.gmra.mxu0 %v1174
        %v1342 = vpop.f32.mrf.mxu0
        %v1343 = vadd.f32 %v1281, %v1342
        %1344 = vmatmul.f32.gmra.mxu0 %v1177
        %v1345 = vpop.f32.mrf.mxu0
        %v1346 = vadd.f32 %v1284, %v1345
        %1347 = vmatmul.f32.gmra.mxu0 %v1180
        %v1348 = vpop.f32.mrf.mxu0
        %v1349 = vadd.f32 %v1287, %v1348
        %1350 = vmatmul.f32.gmra.mxu0 %v1183
        %v1351 = vpop.f32.mrf.mxu0
        %v1352 = vadd.f32 %v1290, %v1351
        %1353 = vmatmul.f32.gmra.mxu0 %v1186
        %v1354 = vpop.f32.mrf.mxu0
        %v1355 = vadd.f32 %v1293, %v1354
        %1356 = vmatmul.f32.gmra.mxu0 %v1189
        %v1357 = vpop.f32.mrf.mxu0
        %v1358 = vadd.f32 %v1296, %v1357
        %1359 = vmatmul.f32.gmra.mxu0 %v1192
        %v1360 = vpop.f32.mrf.mxu0
        %v1361 = vadd.f32 %v1299, %v1360
        %1362 = vmatmul.f32.gmra.mxu0 %v1195
        %v1363 = vpop.f32.mrf.mxu0
        %v1364 = vadd.f32 %v1302, %v1363
        %1365 = vmatmul.f32.gmra.mxu0 %v1198
        %v1366 = vpop.f32.mrf.mxu0
        %v1367 = vadd.f32 %v1305, %v1366
        %1368 = vmatmul.f32.gmra.mxu0 %v1201
        %v1369 = vpop.f32.mrf.mxu0
        %v1370 = vadd.f32 %v1308, %v1369
        %1371 = vdwg.mxu0
        %1372 = vmatpush.msra.mxu0 0.0
        %1373 = vmatpush.msra.mxu0 0.0
        %1374 = vmatpush.msra.mxu0 0.0
        %1375 = vmatpush.msra.mxu0 0.0
        %1376 = vmatpush.msra.mxu0 0.0
        %1377 = vmatpush.msra.mxu0 0.0
        %1378 = vmatpush.msra.mxu0 0.0
        %1379 = vmatpush.msra.mxu0 0.0
        %1380 = vmatpush.msra.mxu0 0.0
        %1381 = vmatpush.msra.mxu0 0.0
        %1382 = vmatpush.msra.mxu0 0.0
        %1383 = vmatpush.msra.mxu0 0.0
        %1384 = vmatpush.msra.mxu0 %v587
        %1385 = vmatpush.msra.mxu0 %v586
        %1386 = vmatpush.msra.mxu0 %v585
        %1387 = vmatpush.msra.mxu0 %v584
        %1388 = vmatmul.f32.gmra.mxu0 %v1204
        %v1389 = vpop.f32.mrf.mxu0
        %v1390 = vadd.f32 %v1328, %v1389
        %1391 = vmatmul.f32.gmra.mxu0 %v1207
        %v1392 = vpop.f32.mrf.mxu0
        %v1393 = vadd.f32 %v1331, %v1392
        %1394 = vmatmul.f32.gmra.mxu0 %v1210
        %v1395 = vpop.f32.mrf.mxu0
        %v1396 = vadd.f32 %v1334, %v1395
        %1397 = vmatmul.f32.gmra.mxu0 %v1213
        %v1398 = vpop.f32.mrf.mxu0
        %v1399 = vadd.f32 %v1337, %v1398
        %1400 = vmatmul.f32.gmra.mxu0 %v1216
        %v1401 = vpop.f32.mrf.mxu0
        %v1402 = vadd.f32 %v1340, %v1401
        %1403 = vmatmul.f32.gmra.mxu0 %v1219
        %v1404 = vpop.f32.mrf.mxu0
        %v1405 = vadd.f32 %v1343, %v1404
        %1406 = vmatmul.f32.gmra.mxu0 %v1222
        %v1407 = vpop.f32.mrf.mxu0
        %v1408 = vadd.f32 %v1346, %v1407
        %1409 = vmatmul.f32.gmra.mxu0 %v1225
        %v1410 = vpop.f32.mrf.mxu0
        %v1411 = vadd.f32 %v1349, %v1410
        %1412 = vmatmul.f32.gmra.mxu0 %v1228
        %v1413 = vpop.f32.mrf.mxu0
        %v1414 = vadd.f32 %v1352, %v1413
        %1415 = vmatmul.f32.gmra.mxu0 %v1231
        %v1416 = vpop.f32.mrf.mxu0
        %v1417 = vadd.f32 %v1355, %v1416
        %1418 = vmatmul.f32.gmra.mxu0 %v1234
        %v1419 = vpop.f32.mrf.mxu0
        %v1420 = vadd.f32 %v1358, %v1419
        %1421 = vmatmul.f32.gmra.mxu0 %v1237
        %v1422 = vpop.f32.mrf.mxu0
        %v1423 = vadd.f32 %v1361, %v1422
        %1424 = vmatmul.f32.gmra.mxu0 %v1240
        %v1425 = vpop.f32.mrf.mxu0
        %v1426 = vadd.f32 %v1364, %v1425
        %1427 = vmatmul.f32.gmra.mxu0 %v1243
        %v1428 = vpop.f32.mrf.mxu0
        %v1429 = vadd.f32 %v1367, %v1428
        %1430 = vmatmul.f32.gmra.mxu0 %v1246
        %v1431 = vpop.f32.mrf.mxu0
        %v1432 = vadd.f32 %v1370, %v1431
        %1433 = vdwg.mxu0
        %v1434 = vmax.f32 %v1142, %v1390
        %v1435 = vmax.f32 %v1143, %v1393
        %v1436 = vmax.f32 %v1144, %v1396
        %v1437 = vmax.f32 %v1145, %v1399
        %v1438 = vmax.f32 %v1146, %v1402
        %v1439 = vmax.f32 %v1147, %v1405
        %v1440 = vmax.f32 %v1148, %v1408
        %v1441 = vmax.f32 %v1149, %v1411
        %v1442 = vmax.f32 %v1150, %v1414
        %v1443 = vmax.f32 %v1151, %v1417
        %v1444 = vmax.f32 %v1152, %v1420
        %v1445 = vmax.f32 %v1153, %v1423
        %v1446 = vmax.f32 %v1154, %v1426
        %v1447 = vmax.f32 %v1155, %v1429
        %v1448 = vmax.f32 %v1156, %v1432
        %s1449 = scalar_lea.vmem %s524, 1080 [#allocation2]
        %v1450 = vld [vmem:[%s1449] sm:$0xff]
        %v1451 = vld [vmem:[%s1449 + $0x8] sm:$0xff]
        %v1452 = vld [vmem:[%s1449 + $0x10] sm:$0xff]
        %v1453 = vld [vmem:[%s1449 + $0x18] sm:$0xff]
        %v1454 = vld [vmem:[%s1449 + $0x20] sm:$0xff]
        %v1455 = vld [vmem:[%s1449 + $0x28] sm:$0xff]
        %v1456 = vld [vmem:[%s1449 + $0x30] sm:$0xff]
        %v1457 = vld [vmem:[%s1449 + $0x38] sm:$0xff]
        %v1458 = vld [vmem:[%s1449 + $0x40] sm:$0xff]
        %v1459 = vld [vmem:[%s1449 + $0x48] sm:$0xff]
        %v1460 = vld [vmem:[%s1449 + $0x50] sm:$0xff]
        %v1461 = vld [vmem:[%s1449 + $0x58] sm:$0xff]
        %v1462 = vld [vmem:[%s1449 + $0x60] sm:$0xff]
        %v1463 = vld [vmem:[%s1449 + $0x68] sm:$0xff]
        %v1464 = vld [vmem:[%s1449 + $0x70] sm:$0xff]
        %v1465 = vld [vmem:[%s1449 + $0x78] sm:$0xff]
        %v1466 = vld [vmem:[%s1449 + $0x80] sm:$0xff]
        %v1467 = vld [vmem:[%s1449 + $0x88] sm:$0xff]
        %v1468 = vld [vmem:[%s1449 + $0x90] sm:$0xff]
        %v1469 = vld [vmem:[%s1449 + $0x98] sm:$0xff]
        %v1470 = vld [vmem:[%s1449 + $0xa0] sm:$0xff]
        %v1471 = vld [vmem:[%s1449 + $0xa8] sm:$0xff]
        %v1472 = vld [vmem:[%s1449 + $0xb0] sm:$0xff]
        %v1473 = vld [vmem:[%s1449 + $0xb8] sm:$0xff]
        %v1474 = vld [vmem:[%s1449 + $0xc0] sm:$0xff]
        %v1475 = vld [vmem:[%s1449 + $0xc8] sm:$0xff]
        %v1476 = vld [vmem:[%s1449 + $0xd0] sm:$0xff]
        %v1477 = vld [vmem:[%s1449 + $0xd8] sm:$0xff]
        %v1478 = vld [vmem:[%s1449 + $0xe0] sm:$0xff]
        %v1479 = vld [vmem:[%s1449 + $0xe8] sm:$0xff]
        %v1480 = vld [vmem:[%s1449 + $0xf0] sm:$0xff]
        %v1481 = vld [vmem:[%s1449 + $0xf8] sm:$0xff]
        %v1482 = vld [vmem:[%s1449 + $0x100] sm:$0xff]
        %v1483 = vld [vmem:[%s1449 + $0x108] sm:$0xff]
        %v1484 = vld [vmem:[%s1449 + $0x110] sm:$0xff]
        %v1485 = vld [vmem:[%s1449 + $0x118] sm:$0xff]
        %v1486 = vld [vmem:[%s1449 + $0x120] sm:$0xff]
        %v1487 = vld [vmem:[%s1449 + $0x128] sm:$0xff]
        %v1488 = vld [vmem:[%s1449 + $0x130] sm:$0xff]
        %v1489 = vld [vmem:[%s1449 + $0x138] sm:$0xff]
        %v1490 = vld [vmem:[%s1449 + $0x140] sm:$0xff]
        %v1491 = vld [vmem:[%s1449 + $0x148] sm:$0xff]
        %v1492 = vld [vmem:[%s1449 + $0x150] sm:$0xff]
        %v1493 = vld [vmem:[%s1449 + $0x158] sm:$0xff]
        %v1494 = vld [vmem:[%s1449 + $0x160] sm:$0xff]
        %v1496 = vsel %vm633, %v1452, 0
        %v1499 = vsel %vm633, %v1455, 0
        %v1502 = vsel %vm633, %v1458, 0
        %v1505 = vsel %vm633, %v1461, 0
        %v1508 = vsel %vm633, %v1464, 0
        %v1511 = vsel %vm633, %v1467, 0
        %v1514 = vsel %vm633, %v1470, 0
        %v1517 = vsel %vm633, %v1473, 0
        %v1520 = vsel %vm633, %v1476, 0
        %v1523 = vsel %vm633, %v1479, 0
        %v1526 = vsel %vm633, %v1482, 0
        %v1529 = vsel %vm633, %v1485, 0
        %v1532 = vsel %vm633, %v1488, 0
        %v1535 = vsel %vm633, %v1491, 0
        %v1538 = vsel %vm633, %v1494, 0
        %1540 = vmatpush.msra.mxu0 %v567
        %1541 = vmatpush.msra.mxu0 %v566
        %1542 = vmatpush.msra.mxu0 %v565
        %1543 = vmatpush.msra.mxu0 %v564
        %1544 = vmatpush.msra.mxu0 %v563
        %1545 = vmatpush.msra.mxu0 %v562
        %1546 = vmatpush.msra.mxu0 %v561
        %1547 = vmatpush.msra.mxu0 %v560
        %1548 = vmatpush.msra.mxu0 %v559
        %1549 = vmatpush.msra.mxu0 %v558
        %1550 = vmatpush.msra.mxu0 %v557
        %1551 = vmatpush.msra.mxu0 %v556
        %1552 = vmatpush.msra.mxu0 %v555
        %1553 = vmatpush.msra.mxu0 %v554
        %1554 = vmatpush.msra.mxu0 %v553
        %1555 = vmatpush.msra.mxu0 %v552
        %1556 = vmatmul.f32.gmra.mxu0 %v1450
        %v1557 = vpop.f32.mrf.mxu0
        %v1558 = vadd.f32 0.0, %v1557
        %1559 = vmatmul.f32.gmra.mxu0 %v1453
        %v1560 = vpop.f32.mrf.mxu0
        %v1561 = vadd.f32 0.0, %v1560
        %1562 = vmatmul.f32.gmra.mxu0 %v1456
        %v1563 = vpop.f32.mrf.mxu0
        %v1564 = vadd.f32 0.0, %v1563
        %1565 = vmatmul.f32.gmra.mxu0 %v1459
        %v1566 = vpop.f32.mrf.mxu0
        %v1567 = vadd.f32 0.0, %v1566
        %1568 = vmatmul.f32.gmra.mxu0 %v1462
        %v1569 = vpop.f32.mrf.mxu0
        %v1570 = vadd.f32 0.0, %v1569
        %1571 = vmatmul.f32.gmra.mxu0 %v1465
        %v1572 = vpop.f32.mrf.mxu0
        %v1573 = vadd.f32 0.0, %v1572
        %1574 = vmatmul.f32.gmra.mxu0 %v1468
        %v1575 = vpop.f32.mrf.mxu0
        %v1576 = vadd.f32 0.0, %v1575
        %1577 = vmatmul.f32.gmra.mxu0 %v1471
        %v1578 = vpop.f32.mrf.mxu0
        %v1579 = vadd.f32 0.0, %v1578
        %1580 = vmatmul.f32.gmra.mxu0 %v1474
        %v1581 = vpop.f32.mrf.mxu0
        %v1582 = vadd.f32 0.0, %v1581
        %1583 = vmatmul.f32.gmra.mxu0 %v1477
        %v1584 = vpop.f32.mrf.mxu0
        %v1585 = vadd.f32 0.0, %v1584
        %1586 = vmatmul.f32.gmra.mxu0 %v1480
        %v1587 = vpop.f32.mrf.mxu0
        %v1588 = vadd.f32 0.0, %v1587
        %1589 = vmatmul.f32.gmra.mxu0 %v1483
        %v1590 = vpop.f32.mrf.mxu0
        %v1591 = vadd.f32 0.0, %v1590
        %1592 = vmatmul.f32.gmra.mxu0 %v1486
        %v1593 = vpop.f32.mrf.mxu0
        %v1594 = vadd.f32 0.0, %v1593
        %1595 = vmatmul.f32.gmra.mxu0 %v1489
        %v1596 = vpop.f32.mrf.mxu0
        %v1597 = vadd.f32 0.0, %v1596
        %1598 = vmatmul.f32.gmra.mxu0 %v1492
        %v1599 = vpop.f32.mrf.mxu0
        %v1600 = vadd.f32 0.0, %v1599
        %1601 = vdwg.mxu0
        %1602 = vmatpush.msra.mxu0 %v583
        %1603 = vmatpush.msra.mxu0 %v582
        %1604 = vmatpush.msra.mxu0 %v581
        %1605 = vmatpush.msra.mxu0 %v580
        %1606 = vmatpush.msra.mxu0 %v579
        %1607 = vmatpush.msra.mxu0 %v578
        %1608 = vmatpush.msra.mxu0 %v577
        %1609 = vmatpush.msra.mxu0 %v576
        %1610 = vmatpush.msra.mxu0 %v575
        %1611 = vmatpush.msra.mxu0 %v574
        %1612 = vmatpush.msra.mxu0 %v573
        %1613 = vmatpush.msra.mxu0 %v572
        %1614 = vmatpush.msra.mxu0 %v571
        %1615 = vmatpush.msra.mxu0 %v570
        %1616 = vmatpush.msra.mxu0 %v569
        %1617 = vmatpush.msra.mxu0 %v568
        %1618 = vmatmul.f32.gmra.mxu0 %v1451
        %v1619 = vpop.f32.mrf.mxu0
        %v1620 = vadd.f32 %v1558, %v1619
        %1621 = vmatmul.f32.gmra.mxu0 %v1454
        %v1622 = vpop.f32.mrf.mxu0
        %v1623 = vadd.f32 %v1561, %v1622
        %1624 = vmatmul.f32.gmra.mxu0 %v1457
        %v1625 = vpop.f32.mrf.mxu0
        %v1626 = vadd.f32 %v1564, %v1625
        %1627 = vmatmul.f32.gmra.mxu0 %v1460
        %v1628 = vpop.f32.mrf.mxu0
        %v1629 = vadd.f32 %v1567, %v1628
        %1630 = vmatmul.f32.gmra.mxu0 %v1463
        %v1631 = vpop.f32.mrf.mxu0
        %v1632 = vadd.f32 %v1570, %v1631
        %1633 = vmatmul.f32.gmra.mxu0 %v1466
        %v1634 = vpop.f32.mrf.mxu0
        %v1635 = vadd.f32 %v1573, %v1634
        %1636 = vmatmul.f32.gmra.mxu0 %v1469
        %v1637 = vpop.f32.mrf.mxu0
        %v1638 = vadd.f32 %v1576, %v1637
        %1639 = vmatmul.f32.gmra.mxu0 %v1472
        %v1640 = vpop.f32.mrf.mxu0
        %v1641 = vadd.f32 %v1579, %v1640
        %1642 = vmatmul.f32.gmra.mxu0 %v1475
        %v1643 = vpop.f32.mrf.mxu0
        %v1644 = vadd.f32 %v1582, %v1643
        %1645 = vmatmul.f32.gmra.mxu0 %v1478
        %v1646 = vpop.f32.mrf.mxu0
        %v1647 = vadd.f32 %v1585, %v1646
        %1648 = vmatmul.f32.gmra.mxu0 %v1481
        %v1649 = vpop.f32.mrf.mxu0
        %v1650 = vadd.f32 %v1588, %v1649
        %1651 = vmatmul.f32.gmra.mxu0 %v1484
        %v1652 = vpop.f32.mrf.mxu0
        %v1653 = vadd.f32 %v1591, %v1652
        %1654 = vmatmul.f32.gmra.mxu0 %v1487
        %v1655 = vpop.f32.mrf.mxu0
        %v1656 = vadd.f32 %v1594, %v1655
        %1657 = vmatmul.f32.gmra.mxu0 %v1490
        %v1658 = vpop.f32.mrf.mxu0
        %v1659 = vadd.f32 %v1597, %v1658
        %1660 = vmatmul.f32.gmra.mxu0 %v1493
        %v1661 = vpop.f32.mrf.mxu0
        %v1662 = vadd.f32 %v1600, %v1661
        %1663 = vdwg.mxu0
        %1664 = vmatpush.msra.mxu0 0.0
        %1665 = vmatpush.msra.mxu0 0.0
        %1666 = vmatpush.msra.mxu0 0.0
        %1667 = vmatpush.msra.mxu0 0.0
        %1668 = vmatpush.msra.mxu0 0.0
        %1669 = vmatpush.msra.mxu0 0.0
        %1670 = vmatpush.msra.mxu0 0.0
        %1671 = vmatpush.msra.mxu0 0.0
        %1672 = vmatpush.msra.mxu0 0.0
        %1673 = vmatpush.msra.mxu0 0.0
        %1674 = vmatpush.msra.mxu0 0.0
        %1675 = vmatpush.msra.mxu0 0.0
        %1676 = vmatpush.msra.mxu0 %v587
        %1677 = vmatpush.msra.mxu0 %v586
        %1678 = vmatpush.msra.mxu0 %v585
        %1679 = vmatpush.msra.mxu0 %v584
        %1680 = vmatmul.f32.gmra.mxu0 %v1496
        %v1681 = vpop.f32.mrf.mxu0
        %v1682 = vadd.f32 %v1620, %v1681
        %1683 = vmatmul.f32.gmra.mxu0 %v1499
        %v1684 = vpop.f32.mrf.mxu0
        %v1685 = vadd.f32 %v1623, %v1684
        %1686 = vmatmul.f32.gmra.mxu0 %v1502
        %v1687 = vpop.f32.mrf.mxu0
        %v1688 = vadd.f32 %v1626, %v1687
        %1689 = vmatmul.f32.gmra.mxu0 %v1505
        %v1690 = vpop.f32.mrf.mxu0
        %v1691 = vadd.f32 %v1629, %v1690
        %1692 = vmatmul.f32.gmra.mxu0 %v1508
        %v1693 = vpop.f32.mrf.mxu0
        %v1694 = vadd.f32 %v1632, %v1693
        %1695 = vmatmul.f32.gmra.mxu0 %v1511
        %v1696 = vpop.f32.mrf.mxu0
        %v1697 = vadd.f32 %v1635, %v1696
        %1698 = vmatmul.f32.gmra.mxu0 %v1514
        %v1699 = vpop.f32.mrf.mxu0
        %v1700 = vadd.f32 %v1638, %v1699
        %1701 = vmatmul.f32.gmra.mxu0 %v1517
        %v1702 = vpop.f32.mrf.mxu0
        %v1703 = vadd.f32 %v1641, %v1702
        %1704 = vmatmul.f32.gmra.mxu0 %v1520
        %v1705 = vpop.f32.mrf.mxu0
        %v1706 = vadd.f32 %v1644, %v1705
        %1707 = vmatmul.f32.gmra.mxu0 %v1523
        %v1708 = vpop.f32.mrf.mxu0
        %v1709 = vadd.f32 %v1647, %v1708
        %1710 = vmatmul.f32.gmra.mxu0 %v1526
        %v1711 = vpop.f32.mrf.mxu0
        %v1712 = vadd.f32 %v1650, %v1711
        %1713 = vmatmul.f32.gmra.mxu0 %v1529
        %v1714 = vpop.f32.mrf.mxu0
        %v1715 = vadd.f32 %v1653, %v1714
        %1716 = vmatmul.f32.gmra.mxu0 %v1532
        %v1717 = vpop.f32.mrf.mxu0
        %v1718 = vadd.f32 %v1656, %v1717
        %1719 = vmatmul.f32.gmra.mxu0 %v1535
        %v1720 = vpop.f32.mrf.mxu0
        %v1721 = vadd.f32 %v1659, %v1720
        %1722 = vmatmul.f32.gmra.mxu0 %v1538
        %v1723 = vpop.f32.mrf.mxu0
        %v1724 = vadd.f32 %v1662, %v1723
        %1725 = vdwg.mxu0
        %v1726 = vmax.f32 %v1434, %v1682
        %v1727 = vmax.f32 %v1435, %v1685
        %v1728 = vmax.f32 %v1436, %v1688
        %v1729 = vmax.f32 %v1437, %v1691
        %v1730 = vmax.f32 %v1438, %v1694
        %v1731 = vmax.f32 %v1439, %v1697
        %v1732 = vmax.f32 %v1440, %v1700
        %v1733 = vmax.f32 %v1441, %v1703
        %v1734 = vmax.f32 %v1442, %v1706
        %v1735 = vmax.f32 %v1443, %v1709
        %v1736 = vmax.f32 %v1444, %v1712
        %v1737 = vmax.f32 %v1445, %v1715
        %v1738 = vmax.f32 %v1446, %v1718
        %v1739 = vmax.f32 %v1447, %v1721
        %v1740 = vmax.f32 %v1448, %v1724
        %v1741 = vld [vmem:[%s2] sm:$0x1]
        %v1743 = vperm.slane %v1741, 0
        %v1745 = vadd.f32 %v1726, %v1743
        %v1746 = vadd.f32 %v1727, %v1743
        %v1747 = vadd.f32 %v1728, %v1743
        %v1748 = vadd.f32 %v1729, %v1743
        %v1749 = vadd.f32 %v1730, %v1743
        %v1750 = vadd.f32 %v1731, %v1743
        %v1751 = vadd.f32 %v1732, %v1743
        %v1752 = vadd.f32 %v1733, %v1743
        %v1753 = vadd.f32 %v1734, %v1743
        %v1754 = vadd.f32 %v1735, %v1743
        %v1755 = vadd.f32 %v1736, %v1743
        %v1756 = vadd.f32 %v1737, %v1743
        %v1757 = vadd.f32 %v1738, %v1743
        %v1758 = vadd.f32 %v1739, %v1743
        %v1759 = vadd.f32 %v1740, %v1743
        %v1760 = vmax.f32 %v1745, 0.0
        %v1761 = vmax.f32 %v1746, 0.0
        %v1762 = vmax.f32 %v1747, 0.0
        %v1763 = vmax.f32 %v1748, 0.0
        %v1764 = vmax.f32 %v1749, 0.0
        %v1765 = vmax.f32 %v1750, 0.0
        %v1766 = vmax.f32 %v1751, 0.0
        %v1767 = vmax.f32 %v1752, 0.0
        %v1768 = vmax.f32 %v1753, 0.0
        %v1769 = vmax.f32 %v1754, 0.0
        %v1770 = vmax.f32 %v1755, 0.0
        %v1771 = vmax.f32 %v1756, 0.0
        %v1772 = vmax.f32 %v1757, 0.0
        %v1773 = vmax.f32 %v1758, 0.0
        %v1774 = vmax.f32 %v1759, 0.0
        %1775 = vst.msk [vmem:[%s550] sm:$0xff] %vm633, %v1760
        %1776 = vst.msk [vmem:[%s550 + $0x8] sm:$0xff] %vm633, %v1761
        %1777 = vst.msk [vmem:[%s550 + $0x10] sm:$0xff] %vm633, %v1762
        %1778 = vst.msk [vmem:[%s550 + $0x18] sm:$0xff] %vm633, %v1763
        %1779 = vst.msk [vmem:[%s550 + $0x20] sm:$0xff] %vm633, %v1764
        %1780 = vst.msk [vmem:[%s550 + $0x28] sm:$0xff] %vm633, %v1765
        %1781 = vst.msk [vmem:[%s550 + $0x30] sm:$0xff] %vm633, %v1766
        %1782 = vst.msk [vmem:[%s550 + $0x38] sm:$0xff] %vm633, %v1767
        %1783 = vst.msk [vmem:[%s550 + $0x40] sm:$0xff] %vm633, %v1768
        %1784 = vst.msk [vmem:[%s550 + $0x48] sm:$0xff] %vm633, %v1769
        %1785 = vst.msk [vmem:[%s550 + $0x50] sm:$0xff] %vm633, %v1770
        %1786 = vst.msk [vmem:[%s550 + $0x58] sm:$0xff] %vm633, %v1771
        %1787 = vst.msk [vmem:[%s550 + $0x60] sm:$0xff] %vm633, %v1772
        %1788 = vst.msk [vmem:[%s550 + $0x68] sm:$0xff] %vm633, %v1773
        %1789 = vst.msk [vmem:[%s550 + $0x70] sm:$0xff] %vm633, %v1774
        %s1790 = smul.u32 15, %s14
        %p1791 = scmp.lt.s32.totalorder %s1790, 29
        %s1792 = scalar_select %p1791, %s1790, 29
        %s1793 = smul.addr %s1792, 8
        %s1794 = scalar_lea.vmem %s3, %s1793
        // Predicated region
        $region56: #{hypnet_forward.6} parent=50 // pred_check
          %p1795 = pneg %p100
        $region57: #{hypnet_forward.6} parent=50 // pred_check_branch
          %1797 = sbr.rel (%p1795) target = $region59
        $region58: #{hypnet_forward.6} parent=50 // pred_region
          %s1798 = smul.u32 15, %s14
        $region59: #{hypnet_forward.6} parent=50 // pred_fallthru
          _
      $region51: #{hypnet_forward.6} parent=5 // pred_fallthru
        _
      %p1799 = scmp.le.s32.totalorder 2, %s9
      // Predicated region
      $region60: #{hypnet_forward.6} parent=5 // pred_check
        %p1800 = pneg %p1799
      $region61: #{hypnet_forward.6} parent=5 // pred_check_branch
        %1802 = sbr.rel (%p1800) target = $region63
      $region62: #{hypnet_forward.6} parent=5 // pred_region
        %s1803 = ssub.s32 %s9, 2
        // Predicated region
        $region64: #{hypnet_forward.6} parent=62 // pred_check
          %p1804 = pneg %p106
        $region65: #{hypnet_forward.6} parent=62 // pred_check_branch
          %1806 = sbr.rel (%p1804) target = $region67
        $region66: #{hypnet_forward.6} parent=62 // pred_region
          %s1807 = smul.u32 15, %s15
          %p1808 = scmp.lt.s32.totalorder %s1807, 29
          %s1809 = scalar_select %p1808, %s1807, 29
          %s1810 = smul.addr %s1809, 8
          %s1811 = scalar_lea.vmem %s3, %s1810
        $region67: #{hypnet_forward.6} parent=62 // pred_fallthru
          _
      $region63: #{hypnet_forward.6} parent=5 // pred_fallthru
        _
    $region6: #{hypnet_forward.6} parent=1 // loop_footer
      %s13 = sadd.s32 1, %s9
    $region7: #{hypnet_forward.6} parent=1 // loop_footer_branch
      %8 = sbr.rel target = $region3
    $region8: #{hypnet_forward.6} parent=1 // loop_exit
      _

// kernel: hypnet_forward.7
$region0: #{hypnet_forward.7}
  #allocation0 [shape = 'u32[]', space=smem, size = 0x4, offset = 0x4, fixed_abs, tag = 'smem constant byte address 0x4 - core index']
  #allocation1 [shape = 'u32[72,128]{1,0:T(1,128)}', space=vmem, size = 0x9000, scoped, tag = 'internal scratch']
  %s0 = inlined_call_operand.vmem [shape: f32[4,60,288], index: 0, kind: input, shape index: {}]
  %s1 = inlined_call_operand.vmem [shape: f32[288,32], index: 1, kind: input, shape index: {}]
  %s2 = inlined_call_operand.vmem [shape: f32[1,32], index: 2, kind: input, shape index: {}]
  %s3 = inlined_call_operand.vmem [shape: f32[60,32], index: 3, kind: output, shape index: {}]
  %s4 = sld [smem:[#allocation0]]
  $region22: #{hypnet_forward.7} parent=0
    _
  %s6 = ssub.s32 1, %s4
  %s7 = scalar_select 0, %s6, %s4
  // Predicated region
  $region2: #{hypnet_forward.7} parent=0 // pred_check
    _
  $region3: #{hypnet_forward.7} parent=0 // pred_check_branch
    %9 = sbr.rel (0) target = $region5
  $region4: #{hypnet_forward.7} parent=0 // pred_region
    _
  $region5: #{hypnet_forward.7} parent=0 // pred_fallthru
    _
  // Predicated region
  $region6: #{hypnet_forward.7} parent=0 // pred_check
    _
  $region7: #{hypnet_forward.7} parent=0 // pred_check_branch
    %11 = sbr.rel (0) target = $region9
  $region8: #{hypnet_forward.7} parent=0 // pred_region
    _
  $region9: #{hypnet_forward.7} parent=0 // pred_fallthru
    _
  // Predicated region
  $region10: #{hypnet_forward.7} parent=0 // pred_check
    _
  $region11: #{hypnet_forward.7} parent=0 // pred_check_branch
    %13 = sbr.rel (0) target = $region13
  $region12: #{hypnet_forward.7} parent=0 // pred_region
    _
  $region13: #{hypnet_forward.7} parent=0 // pred_fallthru
    _
  %v14 = vld [vmem:[%s1] sm:$0xff]
  %v15 = vld [vmem:[%s1 + $0x8] sm:$0xff]
  %v16 = vld [vmem:[%s1 + $0x10] sm:$0xff]
  %v17 = vld [vmem:[%s1 + $0x18] sm:$0xff]
  %v18 = vld [vmem:[%s1 + $0x20] sm:$0xff]
  %v19 = vld [vmem:[%s1 + $0x28] sm:$0xff]
  %v20 = vld [vmem:[%s1 + $0x30] sm:$0xff]
  %v21 = vld [vmem:[%s1 + $0x38] sm:$0xff]
  %v22 = vld [vmem:[%s1 + $0x40] sm:$0xff]
  %v23 = vld [vmem:[%s1 + $0x48] sm:$0xff]
  %v24 = vld [vmem:[%s1 + $0x50] sm:$0xff]
  %v25 = vld [vmem:[%s1 + $0x58] sm:$0xff]
  %v26 = vld [vmem:[%s1 + $0x60] sm:$0xff]
  %v27 = vld [vmem:[%s1 + $0x68] sm:$0xff]
  %v28 = vld [vmem:[%s1 + $0x70] sm:$0xff]
  %v29 = vld [vmem:[%s1 + $0x78] sm:$0xff]
  %v30 = vld [vmem:[%s1 + $0x80] sm:$0xff]
  %v31 = vld [vmem:[%s1 + $0x88] sm:$0xff]
  %v32 = vld [vmem:[%s1 + $0x90] sm:$0xff]
  %v33 = vld [vmem:[%s1 + $0x98] sm:$0xff]
  %v34 = vld [vmem:[%s1 + $0xa0] sm:$0xff]
  %v35 = vld [vmem:[%s1 + $0xa8] sm:$0xff]
  %v36 = vld [vmem:[%s1 + $0xb0] sm:$0xff]
  %v37 = vld [vmem:[%s1 + $0xb8] sm:$0xff]
  %v38 = vld [vmem:[%s1 + $0xc0] sm:$0xff]
  %v39 = vld [vmem:[%s1 + $0xc8] sm:$0xff]
  %v40 = vld [vmem:[%s1 + $0xd0] sm:$0xff]
  %v41 = vld [vmem:[%s1 + $0xd8] sm:$0xff]
  %v42 = vld [vmem:[%s1 + $0xe0] sm:$0xff]
  %v43 = vld [vmem:[%s1 + $0xe8] sm:$0xff]
  %v44 = vld [vmem:[%s1 + $0xf0] sm:$0xff]
  %v45 = vld [vmem:[%s1 + $0xf8] sm:$0xff]
  %v46 = vld [vmem:[%s1 + $0x100] sm:$0xff]
  %v47 = vld [vmem:[%s1 + $0x108] sm:$0xff]
  %v48 = vld [vmem:[%s1 + $0x110] sm:$0xff]
  %v49 = vld [vmem:[%s1 + $0x118] sm:$0xff]
  %v50 = vld [vmem:[%s0] sm:$0xff]
  %v51 = vld [vmem:[%s0 + $0x8] sm:$0xff]
  %v52 = vld [vmem:[%s0 + $0x10] sm:$0xff]
  %v53 = vld [vmem:[%s0 + $0x18] sm:$0xff]
  %v54 = vld [vmem:[%s0 + $0x20] sm:$0xff]
  %v55 = vld [vmem:[%s0 + $0x28] sm:$0xff]
  %v56 = vld [vmem:[%s0 + $0x30] sm:$0xff]
  %v57 = vld [vmem:[%s0 + $0x38] sm:$0xff]
  %v58 = vld [vmem:[%s0 + $0x40] sm:$0xff]
  %v59 = vld [vmem:[%s0 + $0x48] sm:$0xff]
  %v60 = vld [vmem:[%s0 + $0x50] sm:$0xff]
  %v61 = vld [vmem:[%s0 + $0x58] sm:$0xff]
  %v62 = vld [vmem:[%s0 + $0x60] sm:$0xff]
  %v63 = vld [vmem:[%s0 + $0x68] sm:$0xff]
  %v64 = vld [vmem:[%s0 + $0x70] sm:$0xff]
  %v65 = vld [vmem:[%s0 + $0x78] sm:$0xff]
  %v66 = vld [vmem:[%s0 + $0x80] sm:$0xff]
  %v67 = vld [vmem:[%s0 + $0x88] sm:$0xff]
  %v68 = vld [vmem:[%s0 + $0x90] sm:$0xff]
  %v69 = vld [vmem:[%s0 + $0x98] sm:$0xff]
  %v70 = vld [vmem:[%s0 + $0xa0] sm:$0xff]
  %v71 = vld [vmem:[%s0 + $0xa8] sm:$0xf]
  %v72 = vld [vmem:[%s0 + $0xb0] sm:$0xf]
  %v73 = vld [vmem:[%s0 + $0xb8] sm:$0xf]
  %vm74 = vcmask 261120
  %v76 = vsel %vm74, %v52, 0
  %v79 = vsel %vm74, %v55, 0
  %v82 = vsel %vm74, %v58, 0
  %v85 = vsel %vm74, %v61, 0
  %v88 = vsel %vm74, %v64, 0
  %v91 = vsel %vm74, %v67, 0
  %v94 = vsel %vm74, %v70, 0
  %v97 = vsel %vm74, %v73, 0
  %99 = vmatpush.msra.mxu0 %v29
  %100 = vmatpush.msra.mxu0 %v28
  %101 = vmatpush.msra.mxu0 %v27
  %102 = vmatpush.msra.mxu0 %v26
  %103 = vmatpush.msra.mxu0 %v25
  %104 = vmatpush.msra.mxu0 %v24
  %105 = vmatpush.msra.mxu0 %v23
  %106 = vmatpush.msra.mxu0 %v22
  %107 = vmatpush.msra.mxu0 %v21
  %108 = vmatpush.msra.mxu0 %v20
  %109 = vmatpush.msra.mxu0 %v19
  %110 = vmatpush.msra.mxu0 %v18
  %111 = vmatpush.msra.mxu0 %v17
  %112 = vmatpush.msra.mxu0 %v16
  %113 = vmatpush.msra.mxu0 %v15
  %114 = vmatpush.msra.mxu0 %v14
  %115 = vmatmul.f32.gmra.mxu0 %v50
  %v116 = vpop.f32.mrf.mxu0
  %v117 = vadd.f32 0.0, %v116
  %118 = vmatmul.f32.gmra.mxu0 %v53
  %v119 = vpop.f32.mrf.mxu0
  %v120 = vadd.f32 0.0, %v119
  %121 = vmatmul.f32.gmra.mxu0 %v56
  %v122 = vpop.f32.mrf.mxu0
  %v123 = vadd.f32 0.0, %v122
  %124 = vmatmul.f32.gmra.mxu0 %v59
  %v125 = vpop.f32.mrf.mxu0
  %v126 = vadd.f32 0.0, %v125
  %127 = vmatmul.f32.gmra.mxu0 %v62
  %v128 = vpop.f32.mrf.mxu0
  %v129 = vadd.f32 0.0, %v128
  %130 = vmatmul.f32.gmra.mxu0 %v65
  %v131 = vpop.f32.mrf.mxu0
  %v132 = vadd.f32 0.0, %v131
  %133 = vmatmul.f32.gmra.mxu0 %v68
  %v134 = vpop.f32.mrf.mxu0
  %v135 = vadd.f32 0.0, %v134
  %136 = vmatmul.f32.gmra.mxu0 %v71
  %v137 = vpop.f32.mrf.mxu0
  %v138 = vadd.f32 0.0, %v137
  %139 = vdwg.mxu0
  %140 = vmatpush.msra.mxu0 %v45
  %141 = vmatpush.msra.mxu0 %v44
  %142 = vmatpush.msra.mxu0 %v43
  %143 = vmatpush.msra.mxu0 %v42
  %144 = vmatpush.msra.mxu0 %v41
  %145 = vmatpush.msra.mxu0 %v40
  %146 = vmatpush.msra.mxu0 %v39
  %147 = vmatpush.msra.mxu0 %v38
  %148 = vmatpush.msra.mxu0 %v37
  %149 = vmatpush.msra.mxu0 %v36
  %150 = vmatpush.msra.mxu0 %v35
  %151 = vmatpush.msra.mxu0 %v34
  %152 = vmatpush.msra.mxu0 %v33
  %153 = vmatpush.msra.mxu0 %v32
  %154 = vmatpush.msra.mxu0 %v31
  %155 = vmatpush.msra.mxu0 %v30
  %156 = vmatmul.f32.gmra.mxu0 %v51
  %v157 = vpop.f32.mrf.mxu0
  %v158 = vadd.f32 %v117, %v157
  %159 = vmatmul.f32.gmra.mxu0 %v54
  %v160 = vpop.f32.mrf.mxu0
  %v161 = vadd.f32 %v120, %v160
  %162 = vmatmul.f32.gmra.mxu0 %v57
  %v163 = vpop.f32.mrf.mxu0
  %v164 = vadd.f32 %v123, %v163
  %165 = vmatmul.f32.gmra.mxu0 %v60
  %v166 = vpop.f32.mrf.mxu0
  %v167 = vadd.f32 %v126, %v166
  %168 = vmatmul.f32.gmra.mxu0 %v63
  %v169 = vpop.f32.mrf.mxu0
  %v170 = vadd.f32 %v129, %v169
  %171 = vmatmul.f32.gmra.mxu0 %v66
  %v172 = vpop.f32.mrf.mxu0
  %v173 = vadd.f32 %v132, %v172
  %174 = vmatmul.f32.gmra.mxu0 %v69
  %v175 = vpop.f32.mrf.mxu0
  %v176 = vadd.f32 %v135, %v175
  %177 = vmatmul.f32.gmra.mxu0 %v72
  %v178 = vpop.f32.mrf.mxu0
  %v179 = vadd.f32 %v138, %v178
  %180 = vdwg.mxu0
  %181 = vmatpush.msra.mxu0 0.0
  %182 = vmatpush.msra.mxu0 0.0
  %183 = vmatpush.msra.mxu0 0.0
  %184 = vmatpush.msra.mxu0 0.0
  %185 = vmatpush.msra.mxu0 0.0
  %186 = vmatpush.msra.mxu0 0.0
  %187 = vmatpush.msra.mxu0 0.0
  %188 = vmatpush.msra.mxu0 0.0
  %189 = vmatpush.msra.mxu0 0.0
  %190 = vmatpush.msra.mxu0 0.0
  %191 = vmatpush.msra.mxu0 0.0
  %192 = vmatpush.msra.mxu0 0.0
  %193 = vmatpush.msra.mxu0 %v49
  %194 = vmatpush.msra.mxu0 %v48
  %195 = vmatpush.msra.mxu0 %v47
  %196 = vmatpush.msra.mxu0 %v46
  %197 = vmatmul.f32.gmra.mxu0 %v76
  %v198 = vpop.f32.mrf.mxu0
  %v199 = vadd.f32 %v158, %v198
  %200 = vmatmul.f32.gmra.mxu0 %v79
  %v201 = vpop.f32.mrf.mxu0
  %v202 = vadd.f32 %v161, %v201
  %203 = vmatmul.f32.gmra.mxu0 %v82
  %v204 = vpop.f32.mrf.mxu0
  %v205 = vadd.f32 %v164, %v204
  %206 = vmatmul.f32.gmra.mxu0 %v85
  %v207 = vpop.f32.mrf.mxu0
  %v208 = vadd.f32 %v167, %v207
  %209 = vmatmul.f32.gmra.mxu0 %v88
  %v210 = vpop.f32.mrf.mxu0
  %v211 = vadd.f32 %v170, %v210
  %212 = vmatmul.f32.gmra.mxu0 %v91
  %v213 = vpop.f32.mrf.mxu0
  %v214 = vadd.f32 %v173, %v213
  %215 = vmatmul.f32.gmra.mxu0 %v94
  %v216 = vpop.f32.mrf.mxu0
  %v217 = vadd.f32 %v176, %v216
  %218 = vmatmul.f32.gmra.mxu0 %v97
  %v219 = vpop.f32.mrf.mxu0
  %v220 = vadd.f32 %v179, %v219
  %221 = vdwg.mxu0
  %s222 = scalar_lea.vmem %s0, 192
  %v223 = vld [vmem:[%s222] sm:$0xff]
  %v224 = vld [vmem:[%s222 + $0x8] sm:$0xff]
  %v225 = vld [vmem:[%s222 + $0x10] sm:$0xff]
  %v226 = vld [vmem:[%s222 + $0x18] sm:$0xff]
  %v227 = vld [vmem:[%s222 + $0x20] sm:$0xff]
  %v228 = vld [vmem:[%s222 + $0x28] sm:$0xff]
  %v229 = vld [vmem:[%s222 + $0x30] sm:$0xff]
  %v230 = vld [vmem:[%s222 + $0x38] sm:$0xff]
  %v231 = vld [vmem:[%s222 + $0x40] sm:$0xff]
  %v232 = vld [vmem:[%s222 + $0x48] sm:$0xff]
  %v233 = vld [vmem:[%s222 + $0x50] sm:$0xff]
  %v234 = vld [vmem:[%s222 + $0x58] sm:$0xff]
  %v235 = vld [vmem:[%s222 + $0x60] sm:$0xff]
  %v236 = vld [vmem:[%s222 + $0x68] sm:$0xff]
  %v237 = vld [vmem:[%s222 + $0x70] sm:$0xff]
  %v238 = vld [vmem:[%s222 + $0x78] sm:$0xff]
  %v239 = vld [vmem:[%s222 + $0x80] sm:$0xff]
  %v240 = vld [vmem:[%s222 + $0x88] sm:$0xff]
  %v241 = vld [vmem:[%s222 + $0x90] sm:$0xff]
  %v242 = vld [vmem:[%s222 + $0x98] sm:$0xff]
  %v243 = vld [vmem:[%s222 + $0xa0] sm:$0xff]
  %v244 = vld [vmem:[%s222 + $0xa8] sm:$0xf]
  %v245 = vld [vmem:[%s222 + $0xb0] sm:$0xf]
  %v246 = vld [vmem:[%s222 + $0xb8] sm:$0xf]
  %v248 = vsel %vm74, %v225, 0
  %v251 = vsel %vm74, %v228, 0
  %v254 = vsel %vm74, %v231, 0
  %v257 = vsel %vm74, %v234, 0
  %v260 = vsel %vm74, %v237, 0
  %v263 = vsel %vm74, %v240, 0
  %v266 = vsel %vm74, %v243, 0
  %v269 = vsel %vm74, %v246, 0
  %271 = vmatpush.msra.mxu0 %v29
  %272 = vmatpush.msra.mxu0 %v28
  %273 = vmatpush.msra.mxu0 %v27
  %274 = vmatpush.msra.mxu0 %v26
  %275 = vmatpush.msra.mxu0 %v25
  %276 = vmatpush.msra.mxu0 %v24
  %277 = vmatpush.msra.mxu0 %v23
  %278 = vmatpush.msra.mxu0 %v22
  %279 = vmatpush.msra.mxu0 %v21
  %280 = vmatpush.msra.mxu0 %v20
  %281 = vmatpush.msra.mxu0 %v19
  %282 = vmatpush.msra.mxu0 %v18
  %283 = vmatpush.msra.mxu0 %v17
  %284 = vmatpush.msra.mxu0 %v16
  %285 = vmatpush.msra.mxu0 %v15
  %286 = vmatpush.msra.mxu0 %v14
  %287 = vmatmul.f32.gmra.mxu0 %v223
  %v288 = vpop.f32.mrf.mxu0
  %v289 = vadd.f32 0.0, %v288
  %290 = vmatmul.f32.gmra.mxu0 %v226
  %v291 = vpop.f32.mrf.mxu0
  %v292 = vadd.f32 0.0, %v291
  %293 = vmatmul.f32.gmra.mxu0 %v229
  %v294 = vpop.f32.mrf.mxu0
  %v295 = vadd.f32 0.0, %v294
  %296 = vmatmul.f32.gmra.mxu0 %v232
  %v297 = vpop.f32.mrf.mxu0
  %v298 = vadd.f32 0.0, %v297
  %299 = vmatmul.f32.gmra.mxu0 %v235
  %v300 = vpop.f32.mrf.mxu0
  %v301 = vadd.f32 0.0, %v300
  %302 = vmatmul.f32.gmra.mxu0 %v238
  %v303 = vpop.f32.mrf.mxu0
  %v304 = vadd.f32 0.0, %v303
  %305 = vmatmul.f32.gmra.mxu0 %v241
  %v306 = vpop.f32.mrf.mxu0
  %v307 = vadd.f32 0.0, %v306
  %308 = vmatmul.f32.gmra.mxu0 %v244
  %v309 = vpop.f32.mrf.mxu0
  %v310 = vadd.f32 0.0, %v309
  %311 = vdwg.mxu0
  %312 = vmatpush.msra.mxu0 %v45
  %313 = vmatpush.msra.mxu0 %v44
  %314 = vmatpush.msra.mxu0 %v43
  %315 = vmatpush.msra.mxu0 %v42
  %316 = vmatpush.msra.mxu0 %v41
  %317 = vmatpush.msra.mxu0 %v40
  %318 = vmatpush.msra.mxu0 %v39
  %319 = vmatpush.msra.mxu0 %v38
  %320 = vmatpush.msra.mxu0 %v37
  %321 = vmatpush.msra.mxu0 %v36
  %322 = vmatpush.msra.mxu0 %v35
  %323 = vmatpush.msra.mxu0 %v34
  %324 = vmatpush.msra.mxu0 %v33
  %325 = vmatpush.msra.mxu0 %v32
  %326 = vmatpush.msra.mxu0 %v31
  %327 = vmatpush.msra.mxu0 %v30
  %328 = vmatmul.f32.gmra.mxu0 %v224
  %v329 = vpop.f32.mrf.mxu0
  %v330 = vadd.f32 %v289, %v329
  %331 = vmatmul.f32.gmra.mxu0 %v227
  %v332 = vpop.f32.mrf.mxu0
  %v333 = vadd.f32 %v292, %v332
  %334 = vmatmul.f32.gmra.mxu0 %v230
  %v335 = vpop.f32.mrf.mxu0
  %v336 = vadd.f32 %v295, %v335
  %337 = vmatmul.f32.gmra.mxu0 %v233
  %v338 = vpop.f32.mrf.mxu0
  %v339 = vadd.f32 %v298, %v338
  %340 = vmatmul.f32.gmra.mxu0 %v236
  %v341 = vpop.f32.mrf.mxu0
  %v342 = vadd.f32 %v301, %v341
  %343 = vmatmul.f32.gmra.mxu0 %v239
  %v344 = vpop.f32.mrf.mxu0
  %v345 = vadd.f32 %v304, %v344
  %346 = vmatmul.f32.gmra.mxu0 %v242
  %v347 = vpop.f32.mrf.mxu0
  %v348 = vadd.f32 %v307, %v347
  %349 = vmatmul.f32.gmra.mxu0 %v245
  %v350 = vpop.f32.mrf.mxu0
  %v351 = vadd.f32 %v310, %v350
  %352 = vdwg.mxu0
  %353 = vmatpush.msra.mxu0 0.0
  %354 = vmatpush.msra.mxu0 0.0
  %355 = vmatpush.msra.mxu0 0.0
  %356 = vmatpush.msra.mxu0 0.0
  %357 = vmatpush.msra.mxu0 0.0
  %358 = vmatpush.msra.mxu0 0.0
  %359 = vmatpush.msra.mxu0 0.0
  %360 = vmatpush.msra.mxu0 0.0
  %361 = vmatpush.msra.mxu0 0.0
  %362 = vmatpush.msra.mxu0 0.0
  %363 = vmatpush.msra.mxu0 0.0
  %364 = vmatpush.msra.mxu0 0.0
  %365 = vmatpush.msra.mxu0 %v49
  %366 = vmatpush.msra.mxu0 %v48
  %367 = vmatpush.msra.mxu0 %v47
  %368 = vmatpush.msra.mxu0 %v46
  %369 = vmatmul.f32.gmra.mxu0 %v248
  %v370 = vpop.f32.mrf.mxu0
  %v371 = vadd.f32 %v330, %v370
  %372 = vmatmul.f32.gmra.mxu0 %v251
  %v373 = vpop.f32.mrf.mxu0
  %v374 = vadd.f32 %v333, %v373
  %375 = vmatmul.f32.gmra.mxu0 %v254
  %v376 = vpop.f32.mrf.mxu0
  %v377 = vadd.f32 %v336, %v376
  %378 = vmatmul.f32.gmra.mxu0 %v257
  %v379 = vpop.f32.mrf.mxu0
  %v380 = vadd.f32 %v339, %v379
  %381 = vmatmul.f32.gmra.mxu0 %v260
  %v382 = vpop.f32.mrf.mxu0
  %v383 = vadd.f32 %v342, %v382
  %384 = vmatmul.f32.gmra.mxu0 %v263
  %v385 = vpop.f32.mrf.mxu0
  %v386 = vadd.f32 %v345, %v385
  %387 = vmatmul.f32.gmra.mxu0 %v266
  %v388 = vpop.f32.mrf.mxu0
  %v389 = vadd.f32 %v348, %v388
  %390 = vmatmul.f32.gmra.mxu0 %v269
  %v391 = vpop.f32.mrf.mxu0
  %v392 = vadd.f32 %v351, %v391
  %393 = vdwg.mxu0
  %v394 = vmax.f32 %v199, %v371
  %v395 = vmax.f32 %v202, %v374
  %v396 = vmax.f32 %v205, %v377
  %v397 = vmax.f32 %v208, %v380
  %v398 = vmax.f32 %v211, %v383
  %v399 = vmax.f32 %v214, %v386
  %v400 = vmax.f32 %v217, %v389
  %v401 = vmax.f32 %v220, %v392
  %s402 = scalar_lea.vmem %s0, 384
  %v403 = vld [vmem:[%s402] sm:$0xff]
  %v404 = vld [vmem:[%s402 + $0x8] sm:$0xff]
  %v405 = vld [vmem:[%s402 + $0x10] sm:$0xff]
  %v406 = vld [vmem:[%s402 + $0x18] sm:$0xff]
  %v407 = vld [vmem:[%s402 + $0x20] sm:$0xff]
  %v408 = vld [vmem:[%s402 + $0x28] sm:$0xff]
  %v409 = vld [vmem:[%s402 + $0x30] sm:$0xff]
  %v410 = vld [vmem:[%s402 + $0x38] sm:$0xff]
  %v411 = vld [vmem:[%s402 + $0x40] sm:$0xff]
  %v412 = vld [vmem:[%s402 + $0x48] sm:$0xff]
  %v413 = vld [vmem:[%s402 + $0x50] sm:$0xff]
  %v414 = vld [vmem:[%s402 + $0x58] sm:$0xff]
  %v415 = vld [vmem:[%s402 + $0x60] sm:$0xff]
  %v416 = vld [vmem:[%s402 + $0x68] sm:$0xff]
  %v417 = vld [vmem:[%s402 + $0x70] sm:$0xff]
  %v418 = vld [vmem:[%s402 + $0x78] sm:$0xff]
  %v419 = vld [vmem:[%s402 + $0x80] sm:$0xff]
  %v420 = vld [vmem:[%s402 + $0x88] sm:$0xff]
  %v421 = vld [vmem:[%s402 + $0x90] sm:$0xff]
  %v422 = vld [vmem:[%s402 + $0x98] sm:$0xff]
  %v423 = vld [vmem:[%s402 + $0xa0] sm:$0xff]
  %v424 = vld [vmem:[%s402 + $0xa8] sm:$0xf]
  %v425 = vld [vmem:[%s402 + $0xb0] sm:$0xf]
  %v426 = vld [vmem:[%s402 + $0xb8] sm:$0xf]
  %v428 = vsel %vm74, %v405, 0
  %v431 = vsel %vm74, %v408, 0
  %v434 = vsel %vm74, %v411, 0
  %v437 = vsel %vm74, %v414, 0
  %v440 = vsel %vm74, %v417, 0
  %v443 = vsel %vm74, %v420, 0
  %v446 = vsel %vm74, %v423, 0
  %v449 = vsel %vm74, %v426, 0
  %451 = vmatpush.msra.mxu0 %v29
  %452 = vmatpush.msra.mxu0 %v28
  %453 = vmatpush.msra.mxu0 %v27
  %454 = vmatpush.msra.mxu0 %v26
  %455 = vmatpush.msra.mxu0 %v25
  %456 = vmatpush.msra.mxu0 %v24
  %457 = vmatpush.msra.mxu0 %v23
  %458 = vmatpush.msra.mxu0 %v22
  %459 = vmatpush.msra.mxu0 %v21
  %460 = vmatpush.msra.mxu0 %v20
  %461 = vmatpush.msra.mxu0 %v19
  %462 = vmatpush.msra.mxu0 %v18
  %463 = vmatpush.msra.mxu0 %v17
  %464 = vmatpush.msra.mxu0 %v16
  %465 = vmatpush.msra.mxu0 %v15
  %466 = vmatpush.msra.mxu0 %v14
  %467 = vmatmul.f32.gmra.mxu0 %v403
  %v468 = vpop.f32.mrf.mxu0
  %v469 = vadd.f32 0.0, %v468
  %470 = vmatmul.f32.gmra.mxu0 %v406
  %v471 = vpop.f32.mrf.mxu0
  %v472 = vadd.f32 0.0, %v471
  %473 = vmatmul.f32.gmra.mxu0 %v409
  %v474 = vpop.f32.mrf.mxu0
  %v475 = vadd.f32 0.0, %v474
  %476 = vmatmul.f32.gmra.mxu0 %v412
  %v477 = vpop.f32.mrf.mxu0
  %v478 = vadd.f32 0.0, %v477
  %479 = vmatmul.f32.gmra.mxu0 %v415
  %v480 = vpop.f32.mrf.mxu0
  %v481 = vadd.f32 0.0, %v480
  %482 = vmatmul.f32.gmra.mxu0 %v418
  %v483 = vpop.f32.mrf.mxu0
  %v484 = vadd.f32 0.0, %v483
  %485 = vmatmul.f32.gmra.mxu0 %v421
  %v486 = vpop.f32.mrf.mxu0
  %v487 = vadd.f32 0.0, %v486
  %488 = vmatmul.f32.gmra.mxu0 %v424
  %v489 = vpop.f32.mrf.mxu0
  %v490 = vadd.f32 0.0, %v489
  %491 = vdwg.mxu0
  %492 = vmatpush.msra.mxu0 %v45
  %493 = vmatpush.msra.mxu0 %v44
  %494 = vmatpush.msra.mxu0 %v43
  %495 = vmatpush.msra.mxu0 %v42
  %496 = vmatpush.msra.mxu0 %v41
  %497 = vmatpush.msra.mxu0 %v40
  %498 = vmatpush.msra.mxu0 %v39
  %499 = vmatpush.msra.mxu0 %v38
  %500 = vmatpush.msra.mxu0 %v37
  %501 = vmatpush.msra.mxu0 %v36
  %502 = vmatpush.msra.mxu0 %v35
  %503 = vmatpush.msra.mxu0 %v34
  %504 = vmatpush.msra.mxu0 %v33
  %505 = vmatpush.msra.mxu0 %v32
  %506 = vmatpush.msra.mxu0 %v31
  %507 = vmatpush.msra.mxu0 %v30
  %508 = vmatmul.f32.gmra.mxu0 %v404
  %v509 = vpop.f32.mrf.mxu0
  %v510 = vadd.f32 %v469, %v509
  %511 = vmatmul.f32.gmra.mxu0 %v407
  %v512 = vpop.f32.mrf.mxu0
  %v513 = vadd.f32 %v472, %v512
  %514 = vmatmul.f32.gmra.mxu0 %v410
  %v515 = vpop.f32.mrf.mxu0
  %v516 = vadd.f32 %v475, %v515
  %517 = vmatmul.f32.gmra.mxu0 %v413
  %v518 = vpop.f32.mrf.mxu0
  %v519 = vadd.f32 %v478, %v518
  %520 = vmatmul.f32.gmra.mxu0 %v416
  %v521 = vpop.f32.mrf.mxu0
  %v522 = vadd.f32 %v481, %v521
  %523 = vmatmul.f32.gmra.mxu0 %v419
  %v524 = vpop.f32.mrf.mxu0
  %v525 = vadd.f32 %v484, %v524
  %526 = vmatmul.f32.gmra.mxu0 %v422
  %v527 = vpop.f32.mrf.mxu0
  %v528 = vadd.f32 %v487, %v527
  %529 = vmatmul.f32.gmra.mxu0 %v425
  %v530 = vpop.f32.mrf.mxu0
  %v531 = vadd.f32 %v490, %v530
  %532 = vdwg.mxu0
  %533 = vmatpush.msra.mxu0 0.0
  %534 = vmatpush.msra.mxu0 0.0
  %535 = vmatpush.msra.mxu0 0.0
  %536 = vmatpush.msra.mxu0 0.0
  %537 = vmatpush.msra.mxu0 0.0
  %538 = vmatpush.msra.mxu0 0.0
  %539 = vmatpush.msra.mxu0 0.0
  %540 = vmatpush.msra.mxu0 0.0
  %541 = vmatpush.msra.mxu0 0.0
  %542 = vmatpush.msra.mxu0 0.0
  %543 = vmatpush.msra.mxu0 0.0
  %544 = vmatpush.msra.mxu0 0.0
  %545 = vmatpush.msra.mxu0 %v49
  %546 = vmatpush.msra.mxu0 %v48
  %547 = vmatpush.msra.mxu0 %v47
  %548 = vmatpush.msra.mxu0 %v46
  %549 = vmatmul.f32.gmra.mxu0 %v428
  %v550 = vpop.f32.mrf.mxu0
  %v551 = vadd.f32 %v510, %v550
  %552 = vmatmul.f32.gmra.mxu0 %v431
  %v553 = vpop.f32.mrf.mxu0
  %v554 = vadd.f32 %v513, %v553
  %555 = vmatmul.f32.gmra.mxu0 %v434
  %v556 = vpop.f32.mrf.mxu0
  %v557 = vadd.f32 %v516, %v556
  %558 = vmatmul.f32.gmra.mxu0 %v437
  %v559 = vpop.f32.mrf.mxu0
  %v560 = vadd.f32 %v519, %v559
  %561 = vmatmul.f32.gmra.mxu0 %v440
  %v562 = vpop.f32.mrf.mxu0
  %v563 = vadd.f32 %v522, %v562
  %564 = vmatmul.f32.gmra.mxu0 %v443
  %v565 = vpop.f32.mrf.mxu0
  %v566 = vadd.f32 %v525, %v565
  %567 = vmatmul.f32.gmra.mxu0 %v446
  %v568 = vpop.f32.mrf.mxu0
  %v569 = vadd.f32 %v528, %v568
  %570 = vmatmul.f32.gmra.mxu0 %v449
  %v571 = vpop.f32.mrf.mxu0
  %v572 = vadd.f32 %v531, %v571
  %573 = vdwg.mxu0
  %v574 = vmax.f32 %v394, %v551
  %v575 = vmax.f32 %v395, %v554
  %v576 = vmax.f32 %v396, %v557
  %v577 = vmax.f32 %v397, %v560
  %v578 = vmax.f32 %v398, %v563
  %v579 = vmax.f32 %v399, %v566
  %v580 = vmax.f32 %v400, %v569
  %v581 = vmax.f32 %v401, %v572
  %s582 = scalar_lea.vmem %s0, 576
  %v583 = vld [vmem:[%s582] sm:$0xff]
  %v584 = vld [vmem:[%s582 + $0x8] sm:$0xff]
  %v585 = vld [vmem:[%s582 + $0x10] sm:$0xff]
  %v586 = vld [vmem:[%s582 + $0x18] sm:$0xff]
  %v587 = vld [vmem:[%s582 + $0x20] sm:$0xff]
  %v588 = vld [vmem:[%s582 + $0x28] sm:$0xff]
  %v589 = vld [vmem:[%s582 + $0x30] sm:$0xff]
  %v590 = vld [vmem:[%s582 + $0x38] sm:$0xff]
  %v591 = vld [vmem:[%s582 + $0x40] sm:$0xff]
  %v592 = vld [vmem:[%s582 + $0x48] sm:$0xff]
  %v593 = vld [vmem:[%s582 + $0x50] sm:$0xff]
  %v594 = vld [vmem:[%s582 + $0x58] sm:$0xff]
  %v595 = vld [vmem:[%s582 + $0x60] sm:$0xff]
  %v596 = vld [vmem:[%s582 + $0x68] sm:$0xff]
  %v597 = vld [vmem:[%s582 + $0x70] sm:$0xff]
  %v598 = vld [vmem:[%s582 + $0x78] sm:$0xff]
  %v599 = vld [vmem:[%s582 + $0x80] sm:$0xff]
  %v600 = vld [vmem:[%s582 + $0x88] sm:$0xff]
  %v601 = vld [vmem:[%s582 + $0x90] sm:$0xff]
  %v602 = vld [vmem:[%s582 + $0x98] sm:$0xff]
  %v603 = vld [vmem:[%s582 + $0xa0] sm:$0xff]
  %v604 = vld [vmem:[%s582 + $0xa8] sm:$0xf]
  %v605 = vld [vmem:[%s582 + $0xb0] sm:$0xf]
  %v606 = vld [vmem:[%s582 + $0xb8] sm:$0xf]
  %v608 = vsel %vm74, %v585, 0
  %v611 = vsel %vm74, %v588, 0
  %v614 = vsel %vm74, %v591, 0
  %v617 = vsel %vm74, %v594, 0
  %v620 = vsel %vm74, %v597, 0
  %v623 = vsel %vm74, %v600, 0
  %v626 = vsel %vm74, %v603, 0
  %v629 = vsel %vm74, %v606, 0
  %631 = vmatpush.msra.mxu0 %v29
  %632 = vmatpush.msra.mxu0 %v28
  %633 = vmatpush.msra.mxu0 %v27
  %634 = vmatpush.msra.mxu0 %v26
  %635 = vmatpush.msra.mxu0 %v25
  %636 = vmatpush.msra.mxu0 %v24
  %637 = vmatpush.msra.mxu0 %v23
  %638 = vmatpush.msra.mxu0 %v22
  %639 = vmatpush.msra.mxu0 %v21
  %640 = vmatpush.msra.mxu0 %v20
  %641 = vmatpush.msra.mxu0 %v19
  %642 = vmatpush.msra.mxu0 %v18
  %643 = vmatpush.msra.mxu0 %v17
  %644 = vmatpush.msra.mxu0 %v16
  %645 = vmatpush.msra.mxu0 %v15
  %646 = vmatpush.msra.mxu0 %v14
  %647 = vmatmul.f32.gmra.mxu0 %v583
  %v648 = vpop.f32.mrf.mxu0
  %v649 = vadd.f32 0.0, %v648
  %650 = vmatmul.f32.gmra.mxu0 %v586
  %v651 = vpop.f32.mrf.mxu0
  %v652 = vadd.f32 0.0, %v651
  %653 = vmatmul.f32.gmra.mxu0 %v589
  %v654 = vpop.f32.mrf.mxu0
  %v655 = vadd.f32 0.0, %v654
  %656 = vmatmul.f32.gmra.mxu0 %v592
  %v657 = vpop.f32.mrf.mxu0
  %v658 = vadd.f32 0.0, %v657
  %659 = vmatmul.f32.gmra.mxu0 %v595
  %v660 = vpop.f32.mrf.mxu0
  %v661 = vadd.f32 0.0, %v660
  %662 = vmatmul.f32.gmra.mxu0 %v598
  %v663 = vpop.f32.mrf.mxu0
  %v664 = vadd.f32 0.0, %v663
  %665 = vmatmul.f32.gmra.mxu0 %v601
  %v666 = vpop.f32.mrf.mxu0
  %v667 = vadd.f32 0.0, %v666
  %668 = vmatmul.f32.gmra.mxu0 %v604
  %v669 = vpop.f32.mrf.mxu0
  %v670 = vadd.f32 0.0, %v669
  %671 = vdwg.mxu0
  %672 = vmatpush.msra.mxu0 %v45
  %673 = vmatpush.msra.mxu0 %v44
  %674 = vmatpush.msra.mxu0 %v43
  %675 = vmatpush.msra.mxu0 %v42
  %676 = vmatpush.msra.mxu0 %v41
  %677 = vmatpush.msra.mxu0 %v40
  %678 = vmatpush.msra.mxu0 %v39
  %679 = vmatpush.msra.mxu0 %v38
  %680 = vmatpush.msra.mxu0 %v37
  %681 = vmatpush.msra.mxu0 %v36
  %682 = vmatpush.msra.mxu0 %v35
  %683 = vmatpush.msra.mxu0 %v34
  %684 = vmatpush.msra.mxu0 %v33
  %685 = vmatpush.msra.mxu0 %v32
  %686 = vmatpush.msra.mxu0 %v31
  %687 = vmatpush.msra.mxu0 %v30
  %688 = vmatmul.f32.gmra.mxu0 %v584
  %v689 = vpop.f32.mrf.mxu0
  %v690 = vadd.f32 %v649, %v689
  %691 = vmatmul.f32.gmra.mxu0 %v587
  %v692 = vpop.f32.mrf.mxu0
  %v693 = vadd.f32 %v652, %v692
  %694 = vmatmul.f32.gmra.mxu0 %v590
  %v695 = vpop.f32.mrf.mxu0
  %v696 = vadd.f32 %v655, %v695
  %697 = vmatmul.f32.gmra.mxu0 %v593
  %v698 = vpop.f32.mrf.mxu0
  %v699 = vadd.f32 %v658, %v698
  %700 = vmatmul.f32.gmra.mxu0 %v596
  %v701 = vpop.f32.mrf.mxu0
  %v702 = vadd.f32 %v661, %v701
  %703 = vmatmul.f32.gmra.mxu0 %v599
  %v704 = vpop.f32.mrf.mxu0
  %v705 = vadd.f32 %v664, %v704
  %706 = vmatmul.f32.gmra.mxu0 %v602
  %v707 = vpop.f32.mrf.mxu0
  %v708 = vadd.f32 %v667, %v707
  %709 = vmatmul.f32.gmra.mxu0 %v605
  %v710 = vpop.f32.mrf.mxu0
  %v711 = vadd.f32 %v670, %v710
  %712 = vdwg.mxu0
  %713 = vmatpush.msra.mxu0 0.0
  %714 = vmatpush.msra.mxu0 0.0
  %715 = vmatpush.msra.mxu0 0.0
  %716 = vmatpush.msra.mxu0 0.0
  %717 = vmatpush.msra.mxu0 0.0
  %718 = vmatpush.msra.mxu0 0.0
  %719 = vmatpush.msra.mxu0 0.0
  %720 = vmatpush.msra.mxu0 0.0
  %721 = vmatpush.msra.mxu0 0.0
  %722 = vmatpush.msra.mxu0 0.0
  %723 = vmatpush.msra.mxu0 0.0
  %724 = vmatpush.msra.mxu0 0.0
  %725 = vmatpush.msra.mxu0 %v49
  %726 = vmatpush.msra.mxu0 %v48
  %727 = vmatpush.msra.mxu0 %v47
  %728 = vmatpush.msra.mxu0 %v46
  %729 = vmatmul.f32.gmra.mxu0 %v608
  %v730 = vpop.f32.mrf.mxu0
  %v731 = vadd.f32 %v690, %v730
  %732 = vmatmul.f32.gmra.mxu0 %v611
  %v733 = vpop.f32.mrf.mxu0
  %v734 = vadd.f32 %v693, %v733
  %735 = vmatmul.f32.gmra.mxu0 %v614
  %v736 = vpop.f32.mrf.mxu0
  %v737 = vadd.f32 %v696, %v736
  %738 = vmatmul.f32.gmra.mxu0 %v617
  %v739 = vpop.f32.mrf.mxu0
  %v740 = vadd.f32 %v699, %v739
  %741 = vmatmul.f32.gmra.mxu0 %v620
  %v742 = vpop.f32.mrf.mxu0
  %v743 = vadd.f32 %v702, %v742
  %744 = vmatmul.f32.gmra.mxu0 %v623
  %v745 = vpop.f32.mrf.mxu0
  %v746 = vadd.f32 %v705, %v745
  %747 = vmatmul.f32.gmra.mxu0 %v626
  %v748 = vpop.f32.mrf.mxu0
  %v749 = vadd.f32 %v708, %v748
  %750 = vmatmul.f32.gmra.mxu0 %v629
  %v751 = vpop.f32.mrf.mxu0
  %v752 = vadd.f32 %v711, %v751
  %753 = vdwg.mxu0
  %v754 = vmax.f32 %v574, %v731
  %v755 = vmax.f32 %v575, %v734
  %v756 = vmax.f32 %v576, %v737
  %v757 = vmax.f32 %v577, %v740
  %v758 = vmax.f32 %v578, %v743
  %v759 = vmax.f32 %v579, %v746
  %v760 = vmax.f32 %v580, %v749
  %v761 = vmax.f32 %v581, %v752
  %v762 = vld [vmem:[%s2] sm:$0x1]
  %v764 = vperm.slane %v762, 0
  %v766 = vadd.f32 %v754, %v764
  %v767 = vadd.f32 %v755, %v764
  %v768 = vadd.f32 %v756, %v764
  %v769 = vadd.f32 %v757, %v764
  %v770 = vadd.f32 %v758, %v764
  %v771 = vadd.f32 %v759, %v764
  %v772 = vadd.f32 %v760, %v764
  %v773 = vadd.f32 %v761, %v764
  %v774 = vmax.f32 %v766, 0.0
  %v775 = vmax.f32 %v767, 0.0
  %v776 = vmax.f32 %v768, 0.0
  %v777 = vmax.f32 %v769, 0.0
  %v778 = vmax.f32 %v770, 0.0
  %v779 = vmax.f32 %v771, 0.0
  %v780 = vmax.f32 %v772, 0.0
  %v781 = vmax.f32 %v773, 0.0
  %782 = vst.msk [vmem:[%s3] sm:$0xff] %vm74, %v774
  %783 = vst.msk [vmem:[%s3 + $0x8] sm:$0xff] %vm74, %v775
  %784 = vst.msk [vmem:[%s3 + $0x10] sm:$0xff] %vm74, %v776
  %785 = vst.msk [vmem:[%s3 + $0x18] sm:$0xff] %vm74, %v777
  %786 = vst.msk [vmem:[%s3 + $0x20] sm:$0xff] %vm74, %v778
  %787 = vst.msk [vmem:[%s3 + $0x28] sm:$0xff] %vm74, %v779
  %788 = vst.msk [vmem:[%s3 + $0x30] sm:$0xff] %vm74, %v780
  %vm789 = vcmask 257024
  %790 = vst.msk [vmem:[%s3 + $0x38] sm:$0xf] %vm789, %v781
  // Predicated region
  $region14: #{hypnet_forward.7} parent=0 // pred_check
    _
  $region15: #{hypnet_forward.7} parent=0 // pred_check_branch
    %792 = sbr.rel (0) target = $region17
  $region16: #{hypnet_forward.7} parent=0 // pred_region
    _
  $region17: #{hypnet_forward.7} parent=0 // pred_fallthru
    _
  // Predicated region
  $region18: #{hypnet_forward.7} parent=0 // pred_check
    _
  $region19: #{hypnet_forward.7} parent=0 // pred_check_branch
    %794 = sbr.rel (0) target = $region21
  $region20: #{hypnet_forward.7} parent=0 // pred_region
    _
  $region21: #{hypnet_forward.7} parent=0 // pred_fallthru
    _

// kernel: hypnet_forward.8
$region0: #{hypnet_forward.8}
  #allocation0 [shape = 'u32[]', space=smem, size = 0x4, offset = 0x4, fixed_abs, tag = 'smem constant byte address 0x4 - core index']
  #allocation1 [shape = 'u32[72,128]{1,0:T(1,128)}', space=vmem, size = 0x9000, scoped, tag = 'internal scratch']
  %s0 = inlined_call_operand.vmem [shape: f32[4,15,288], index: 0, kind: input, shape index: {}]
  %s1 = inlined_call_operand.vmem [shape: f32[288,32], index: 1, kind: input, shape index: {}]
  %s2 = inlined_call_operand.vmem [shape: f32[1,32], index: 2, kind: input, shape index: {}]
  %s3 = inlined_call_operand.vmem [shape: f32[15,32], index: 3, kind: output, shape index: {}]
  %s4 = sld [smem:[#allocation0]]
  $region22: #{hypnet_forward.8} parent=0
    _
  %s6 = ssub.s32 1, %s4
  %s7 = scalar_select 0, %s6, %s4
  // Predicated region
  $region2: #{hypnet_forward.8} parent=0 // pred_check
    _
  $region3: #{hypnet_forward.8} parent=0 // pred_check_branch
    %9 = sbr.rel (0) target = $region5
  $region4: #{hypnet_forward.8} parent=0 // pred_region
    _
  $region5: #{hypnet_forward.8} parent=0 // pred_fallthru
    _
  // Predicated region
  $region6: #{hypnet_forward.8} parent=0 // pred_check
    _
  $region7: #{hypnet_forward.8} parent=0 // pred_check_branch
    %11 = sbr.rel (0) target = $region9
  $region8: #{hypnet_forward.8} parent=0 // pred_region
    _
  $region9: #{hypnet_forward.8} parent=0 // pred_fallthru
    _
  // Predicated region
  $region10: #{hypnet_forward.8} parent=0 // pred_check
    _
  $region11: #{hypnet_forward.8} parent=0 // pred_check_branch
    %13 = sbr.rel (0) target = $region13
  $region12: #{hypnet_forward.8} parent=0 // pred_region
    _
  $region13: #{hypnet_forward.8} parent=0 // pred_fallthru
    _
  %v14 = vld [vmem:[%s1] sm:$0xff]
  %v15 = vld [vmem:[%s1 + $0x8] sm:$0xff]
  %v16 = vld [vmem:[%s1 + $0x10] sm:$0xff]
  %v17 = vld [vmem:[%s1 + $0x18] sm:$0xff]
  %v18 = vld [vmem:[%s1 + $0x20] sm:$0xff]
  %v19 = vld [vmem:[%s1 + $0x28] sm:$0xff]
  %v20 = vld [vmem:[%s1 + $0x30] sm:$0xff]
  %v21 = vld [vmem:[%s1 + $0x38] sm:$0xff]
  %v22 = vld [vmem:[%s1 + $0x40] sm:$0xff]
  %v23 = vld [vmem:[%s1 + $0x48] sm:$0xff]
  %v24 = vld [vmem:[%s1 + $0x50] sm:$0xff]
  %v25 = vld [vmem:[%s1 + $0x58] sm:$0xff]
  %v26 = vld [vmem:[%s1 + $0x60] sm:$0xff]
  %v27 = vld [vmem:[%s1 + $0x68] sm:$0xff]
  %v28 = vld [vmem:[%s1 + $0x70] sm:$0xff]
  %v29 = vld [vmem:[%s1 + $0x78] sm:$0xff]
  %v30 = vld [vmem:[%s1 + $0x80] sm:$0xff]
  %v31 = vld [vmem:[%s1 + $0x88] sm:$0xff]
  %v32 = vld [vmem:[%s1 + $0x90] sm:$0xff]
  %v33 = vld [vmem:[%s1 + $0x98] sm:$0xff]
  %v34 = vld [vmem:[%s1 + $0xa0] sm:$0xff]
  %v35 = vld [vmem:[%s1 + $0xa8] sm:$0xff]
  %v36 = vld [vmem:[%s1 + $0xb0] sm:$0xff]
  %v37 = vld [vmem:[%s1 + $0xb8] sm:$0xff]
  %v38 = vld [vmem:[%s1 + $0xc0] sm:$0xff]
  %v39 = vld [vmem:[%s1 + $0xc8] sm:$0xff]
  %v40 = vld [vmem:[%s1 + $0xd0] sm:$0xff]
  %v41 = vld [vmem:[%s1 + $0xd8] sm:$0xff]
  %v42 = vld [vmem:[%s1 + $0xe0] sm:$0xff]
  %v43 = vld [vmem:[%s1 + $0xe8] sm:$0xff]
  %v44 = vld [vmem:[%s1 + $0xf0] sm:$0xff]
  %v45 = vld [vmem:[%s1 + $0xf8] sm:$0xff]
  %v46 = vld [vmem:[%s1 + $0x100] sm:$0xff]
  %v47 = vld [vmem:[%s1 + $0x108] sm:$0xff]
  %v48 = vld [vmem:[%s1 + $0x110] sm:$0xff]
  %v49 = vld [vmem:[%s1 + $0x118] sm:$0xff]
  %v50 = vld [vmem:[%s0] sm:$0xff]
  %v51 = vld [vmem:[%s0 + $0x8] sm:$0xff]
  %v52 = vld [vmem:[%s0 + $0x10] sm:$0xff]
  %v53 = vld [vmem:[%s0 + $0x18] sm:$0x7f]
  %v54 = vld [vmem:[%s0 + $0x20] sm:$0x7f]
  %v55 = vld [vmem:[%s0 + $0x28] sm:$0x7f]
  %vm56 = vcmask 261120
  %v58 = vsel %vm56, %v52, 0
  %v61 = vsel %vm56, %v55, 0
  %63 = vmatpush.msra.mxu0 %v29
  %64 = vmatpush.msra.mxu0 %v28
  %65 = vmatpush.msra.mxu0 %v27
  %66 = vmatpush.msra.mxu0 %v26
  %67 = vmatpush.msra.mxu0 %v25
  %68 = vmatpush.msra.mxu0 %v24
  %69 = vmatpush.msra.mxu0 %v23
  %70 = vmatpush.msra.mxu0 %v22
  %71 = vmatpush.msra.mxu0 %v21
  %72 = vmatpush.msra.mxu0 %v20
  %73 = vmatpush.msra.mxu0 %v19
  %74 = vmatpush.msra.mxu0 %v18
  %75 = vmatpush.msra.mxu0 %v17
  %76 = vmatpush.msra.mxu0 %v16
  %77 = vmatpush.msra.mxu0 %v15
  %78 = vmatpush.msra.mxu0 %v14
  %79 = vmatmul.f32.gmra.mxu0 %v50
  %v80 = vpop.f32.mrf.mxu0
  %v81 = vadd.f32 0.0, %v80
  %82 = vmatmul.f32.gmra.mxu0 %v53
  %v83 = vpop.f32.mrf.mxu0
  %v84 = vadd.f32 0.0, %v83
  %85 = vdwg.mxu0
  %86 = vmatpush.msra.mxu0 %v45
  %87 = vmatpush.msra.mxu0 %v44
  %88 = vmatpush.msra.mxu0 %v43
  %89 = vmatpush.msra.mxu0 %v42
  %90 = vmatpush.msra.mxu0 %v41
  %91 = vmatpush.msra.mxu0 %v40
  %92 = vmatpush.msra.mxu0 %v39
  %93 = vmatpush.msra.mxu0 %v38
  %94 = vmatpush.msra.mxu0 %v37
  %95 = vmatpush.msra.mxu0 %v36
  %96 = vmatpush.msra.mxu0 %v35
  %97 = vmatpush.msra.mxu0 %v34
  %98 = vmatpush.msra.mxu0 %v33
  %99 = vmatpush.msra.mxu0 %v32
  %100 = vmatpush.msra.mxu0 %v31
  %101 = vmatpush.msra.mxu0 %v30
  %102 = vmatmul.f32.gmra.mxu0 %v51
  %v103 = vpop.f32.mrf.mxu0
  %v104 = vadd.f32 %v81, %v103
  %105 = vmatmul.f32.gmra.mxu0 %v54
  %v106 = vpop.f32.mrf.mxu0
  %v107 = vadd.f32 %v84, %v106
  %108 = vdwg.mxu0
  %109 = vmatpush.msra.mxu0 0.0
  %110 = vmatpush.msra.mxu0 0.0
  %111 = vmatpush.msra.mxu0 0.0
  %112 = vmatpush.msra.mxu0 0.0
  %113 = vmatpush.msra.mxu0 0.0
  %114 = vmatpush.msra.mxu0 0.0
  %115 = vmatpush.msra.mxu0 0.0
  %116 = vmatpush.msra.mxu0 0.0
  %117 = vmatpush.msra.mxu0 0.0
  %118 = vmatpush.msra.mxu0 0.0
  %119 = vmatpush.msra.mxu0 0.0
  %120 = vmatpush.msra.mxu0 0.0
  %121 = vmatpush.msra.mxu0 %v49
  %122 = vmatpush.msra.mxu0 %v48
  %123 = vmatpush.msra.mxu0 %v47
  %124 = vmatpush.msra.mxu0 %v46
  %125 = vmatmul.f32.gmra.mxu0 %v58
  %v126 = vpop.f32.mrf.mxu0
  %v127 = vadd.f32 %v104, %v126
  %128 = vmatmul.f32.gmra.mxu0 %v61
  %v129 = vpop.f32.mrf.mxu0
  %v130 = vadd.f32 %v107, %v129
  %131 = vdwg.mxu0
  %s132 = scalar_lea.vmem %s0, 48
  %v133 = vld [vmem:[%s132] sm:$0xff]
  %v134 = vld [vmem:[%s132 + $0x8] sm:$0xff]
  %v135 = vld [vmem:[%s132 + $0x10] sm:$0xff]
  %v136 = vld [vmem:[%s132 + $0x18] sm:$0x7f]
  %v137 = vld [vmem:[%s132 + $0x20] sm:$0x7f]
  %v138 = vld [vmem:[%s132 + $0x28] sm:$0x7f]
  %v140 = vsel %vm56, %v135, 0
  %v143 = vsel %vm56, %v138, 0
  %145 = vmatpush.msra.mxu0 %v29
  %146 = vmatpush.msra.mxu0 %v28
  %147 = vmatpush.msra.mxu0 %v27
  %148 = vmatpush.msra.mxu0 %v26
  %149 = vmatpush.msra.mxu0 %v25
  %150 = vmatpush.msra.mxu0 %v24
  %151 = vmatpush.msra.mxu0 %v23
  %152 = vmatpush.msra.mxu0 %v22
  %153 = vmatpush.msra.mxu0 %v21
  %154 = vmatpush.msra.mxu0 %v20
  %155 = vmatpush.msra.mxu0 %v19
  %156 = vmatpush.msra.mxu0 %v18
  %157 = vmatpush.msra.mxu0 %v17
  %158 = vmatpush.msra.mxu0 %v16
  %159 = vmatpush.msra.mxu0 %v15
  %160 = vmatpush.msra.mxu0 %v14
  %161 = vmatmul.f32.gmra.mxu0 %v133
  %v162 = vpop.f32.mrf.mxu0
  %v163 = vadd.f32 0.0, %v162
  %164 = vmatmul.f32.gmra.mxu0 %v136
  %v165 = vpop.f32.mrf.mxu0
  %v166 = vadd.f32 0.0, %v165
  %167 = vdwg.mxu0
  %168 = vmatpush.msra.mxu0 %v45
  %169 = vmatpush.msra.mxu0 %v44
  %170 = vmatpush.msra.mxu0 %v43
  %171 = vmatpush.msra.mxu0 %v42
  %172 = vmatpush.msra.mxu0 %v41
  %173 = vmatpush.msra.mxu0 %v40
  %174 = vmatpush.msra.mxu0 %v39
  %175 = vmatpush.msra.mxu0 %v38
  %176 = vmatpush.msra.mxu0 %v37
  %177 = vmatpush.msra.mxu0 %v36
  %178 = vmatpush.msra.mxu0 %v35
  %179 = vmatpush.msra.mxu0 %v34
  %180 = vmatpush.msra.mxu0 %v33
  %181 = vmatpush.msra.mxu0 %v32
  %182 = vmatpush.msra.mxu0 %v31
  %183 = vmatpush.msra.mxu0 %v30
  %184 = vmatmul.f32.gmra.mxu0 %v134
  %v185 = vpop.f32.mrf.mxu0
  %v186 = vadd.f32 %v163, %v185
  %187 = vmatmul.f32.gmra.mxu0 %v137
  %v188 = vpop.f32.mrf.mxu0
  %v189 = vadd.f32 %v166, %v188
  %190 = vdwg.mxu0
  %191 = vmatpush.msra.mxu0 0.0
  %192 = vmatpush.msra.mxu0 0.0
  %193 = vmatpush.msra.mxu0 0.0
  %194 = vmatpush.msra.mxu0 0.0
  %195 = vmatpush.msra.mxu0 0.0
  %196 = vmatpush.msra.mxu0 0.0
  %197 = vmatpush.msra.mxu0 0.0
  %198 = vmatpush.msra.mxu0 0.0
  %199 = vmatpush.msra.mxu0 0.0
  %200 = vmatpush.msra.mxu0 0.0
  %201 = vmatpush.msra.mxu0 0.0
  %202 = vmatpush.msra.mxu0 0.0
  %203 = vmatpush.msra.mxu0 %v49
  %204 = vmatpush.msra.mxu0 %v48
  %205 = vmatpush.msra.mxu0 %v47
  %206 = vmatpush.msra.mxu0 %v46
  %207 = vmatmul.f32.gmra.mxu0 %v140
  %v208 = vpop.f32.mrf.mxu0
  %v209 = vadd.f32 %v186, %v208
  %210 = vmatmul.f32.gmra.mxu0 %v143
  %v211 = vpop.f32.mrf.mxu0
  %v212 = vadd.f32 %v189, %v211
  %213 = vdwg.mxu0
  %v214 = vmax.f32 %v127, %v209
  %v215 = vmax.f32 %v130, %v212
  %s216 = scalar_lea.vmem %s0, 96
  %v217 = vld [vmem:[%s216] sm:$0xff]
  %v218 = vld [vmem:[%s216 + $0x8] sm:$0xff]
  %v219 = vld [vmem:[%s216 + $0x10] sm:$0xff]
  %v220 = vld [vmem:[%s216 + $0x18] sm:$0x7f]
  %v221 = vld [vmem:[%s216 + $0x20] sm:$0x7f]
  %v222 = vld [vmem:[%s216 + $0x28] sm:$0x7f]
  %v224 = vsel %vm56, %v219, 0
  %v227 = vsel %vm56, %v222, 0
  %229 = vmatpush.msra.mxu0 %v29
  %230 = vmatpush.msra.mxu0 %v28
  %231 = vmatpush.msra.mxu0 %v27
  %232 = vmatpush.msra.mxu0 %v26
  %233 = vmatpush.msra.mxu0 %v25
  %234 = vmatpush.msra.mxu0 %v24
  %235 = vmatpush.msra.mxu0 %v23
  %236 = vmatpush.msra.mxu0 %v22
  %237 = vmatpush.msra.mxu0 %v21
  %238 = vmatpush.msra.mxu0 %v20
  %239 = vmatpush.msra.mxu0 %v19
  %240 = vmatpush.msra.mxu0 %v18
  %241 = vmatpush.msra.mxu0 %v17
  %242 = vmatpush.msra.mxu0 %v16
  %243 = vmatpush.msra.mxu0 %v15
  %244 = vmatpush.msra.mxu0 %v14
  %245 = vmatmul.f32.gmra.mxu0 %v217
  %v246 = vpop.f32.mrf.mxu0
  %v247 = vadd.f32 0.0, %v246
  %248 = vmatmul.f32.gmra.mxu0 %v220
  %v249 = vpop.f32.mrf.mxu0
  %v250 = vadd.f32 0.0, %v249
  %251 = vdwg.mxu0
  %252 = vmatpush.msra.mxu0 %v45
  %253 = vmatpush.msra.mxu0 %v44
  %254 = vmatpush.msra.mxu0 %v43
  %255 = vmatpush.msra.mxu0 %v42
  %256 = vmatpush.msra.mxu0 %v41
  %257 = vmatpush.msra.mxu0 %v40
  %258 = vmatpush.msra.mxu0 %v39
  %259 = vmatpush.msra.mxu0 %v38
  %260 = vmatpush.msra.mxu0 %v37
  %261 = vmatpush.msra.mxu0 %v36
  %262 = vmatpush.msra.mxu0 %v35
  %263 = vmatpush.msra.mxu0 %v34
  %264 = vmatpush.msra.mxu0 %v33
  %265 = vmatpush.msra.mxu0 %v32
  %266 = vmatpush.msra.mxu0 %v31
  %267 = vmatpush.msra.mxu0 %v30
  %268 = vmatmul.f32.gmra.mxu0 %v218
  %v269 = vpop.f32.mrf.mxu0
  %v270 = vadd.f32 %v247, %v269
  %271 = vmatmul.f32.gmra.mxu0 %v221
  %v272 = vpop.f32.mrf.mxu0
  %v273 = vadd.f32 %v250, %v272
  %274 = vdwg.mxu0
  %275 = vmatpush.msra.mxu0 0.0
  %276 = vmatpush.msra.mxu0 0.0
  %277 = vmatpush.msra.mxu0 0.0
  %278 = vmatpush.msra.mxu0 0.0
  %279 = vmatpush.msra.mxu0 0.0
  %280 = vmatpush.msra.mxu0 0.0
  %281 = vmatpush.msra.mxu0 0.0
  %282 = vmatpush.msra.mxu0 0.0
  %283 = vmatpush.msra.mxu0 0.0
  %284 = vmatpush.msra.mxu0 0.0
  %285 = vmatpush.msra.mxu0 0.0
  %286 = vmatpush.msra.mxu0 0.0
  %287 = vmatpush.msra.mxu0 %v49
  %288 = vmatpush.msra.mxu0 %v48
  %289 = vmatpush.msra.mxu0 %v47
  %290 = vmatpush.msra.mxu0 %v46
  %291 = vmatmul.f32.gmra.mxu0 %v224
  %v292 = vpop.f32.mrf.mxu0
  %v293 = vadd.f32 %v270, %v292
  %294 = vmatmul.f32.gmra.mxu0 %v227
  %v295 = vpop.f32.mrf.mxu0
  %v296 = vadd.f32 %v273, %v295
  %297 = vdwg.mxu0
  %v298 = vmax.f32 %v214, %v293
  %v299 = vmax.f32 %v215, %v296
  %s300 = scalar_lea.vmem %s0, 144
  %v301 = vld [vmem:[%s300] sm:$0xff]
  %v302 = vld [vmem:[%s300 + $0x8] sm:$0xff]
  %v303 = vld [vmem:[%s300 + $0x10] sm:$0xff]
  %v304 = vld [vmem:[%s300 + $0x18] sm:$0x7f]
  %v305 = vld [vmem:[%s300 + $0x20] sm:$0x7f]
  %v306 = vld [vmem:[%s300 + $0x28] sm:$0x7f]
  %v308 = vsel %vm56, %v303, 0
  %v311 = vsel %vm56, %v306, 0
  %313 = vmatpush.msra.mxu0 %v29
  %314 = vmatpush.msra.mxu0 %v28
  %315 = vmatpush.msra.mxu0 %v27
  %316 = vmatpush.msra.mxu0 %v26
  %317 = vmatpush.msra.mxu0 %v25
  %318 = vmatpush.msra.mxu0 %v24
  %319 = vmatpush.msra.mxu0 %v23
  %320 = vmatpush.msra.mxu0 %v22
  %321 = vmatpush.msra.mxu0 %v21
  %322 = vmatpush.msra.mxu0 %v20
  %323 = vmatpush.msra.mxu0 %v19
  %324 = vmatpush.msra.mxu0 %v18
  %325 = vmatpush.msra.mxu0 %v17
  %326 = vmatpush.msra.mxu0 %v16
  %327 = vmatpush.msra.mxu0 %v15
  %328 = vmatpush.msra.mxu0 %v14
  %329 = vmatmul.f32.gmra.mxu0 %v301
  %v330 = vpop.f32.mrf.mxu0
  %v331 = vadd.f32 0.0, %v330
  %332 = vmatmul.f32.gmra.mxu0 %v304
  %v333 = vpop.f32.mrf.mxu0
  %v334 = vadd.f32 0.0, %v333
  %335 = vdwg.mxu0
  %336 = vmatpush.msra.mxu0 %v45
  %337 = vmatpush.msra.mxu0 %v44
  %338 = vmatpush.msra.mxu0 %v43
  %339 = vmatpush.msra.mxu0 %v42
  %340 = vmatpush.msra.mxu0 %v41
  %341 = vmatpush.msra.mxu0 %v40
  %342 = vmatpush.msra.mxu0 %v39
  %343 = vmatpush.msra.mxu0 %v38
  %344 = vmatpush.msra.mxu0 %v37
  %345 = vmatpush.msra.mxu0 %v36
  %346 = vmatpush.msra.mxu0 %v35
  %347 = vmatpush.msra.mxu0 %v34
  %348 = vmatpush.msra.mxu0 %v33
  %349 = vmatpush.msra.mxu0 %v32
  %350 = vmatpush.msra.mxu0 %v31
  %351 = vmatpush.msra.mxu0 %v30
  %352 = vmatmul.f32.gmra.mxu0 %v302
  %v353 = vpop.f32.mrf.mxu0
  %v354 = vadd.f32 %v331, %v353
  %355 = vmatmul.f32.gmra.mxu0 %v305
  %v356 = vpop.f32.mrf.mxu0
  %v357 = vadd.f32 %v334, %v356
  %358 = vdwg.mxu0
  %359 = vmatpush.msra.mxu0 0.0
  %360 = vmatpush.msra.mxu0 0.0
  %361 = vmatpush.msra.mxu0 0.0
  %362 = vmatpush.msra.mxu0 0.0
  %363 = vmatpush.msra.mxu0 0.0
  %364 = vmatpush.msra.mxu0 0.0
  %365 = vmatpush.msra.mxu0 0.0
  %366 = vmatpush.msra.mxu0 0.0
  %367 = vmatpush.msra.mxu0 0.0
  %368 = vmatpush.msra.mxu0 0.0
  %369 = vmatpush.msra.mxu0 0.0
  %370 = vmatpush.msra.mxu0 0.0
  %371 = vmatpush.msra.mxu0 %v49
  %372 = vmatpush.msra.mxu0 %v48
  %373 = vmatpush.msra.mxu0 %v47
  %374 = vmatpush.msra.mxu0 %v46
  %375 = vmatmul.f32.gmra.mxu0 %v308
  %v376 = vpop.f32.mrf.mxu0
  %v377 = vadd.f32 %v354, %v376
  %378 = vmatmul.f32.gmra.mxu0 %v311
  %v379 = vpop.f32.mrf.mxu0
  %v380 = vadd.f32 %v357, %v379
  %381 = vdwg.mxu0
  %v382 = vmax.f32 %v298, %v377
  %v383 = vmax.f32 %v299, %v380
  %v384 = vld [vmem:[%s2] sm:$0x1]
  %v386 = vperm.slane %v384, 0
  %v388 = vadd.f32 %v382, %v386
  %v389 = vadd.f32 %v383, %v386
  %v390 = vmax.f32 %v388, 0.0
  %v391 = vmax.f32 %v389, 0.0
  %392 = vst.msk [vmem:[%s3] sm:$0xff] %vm56, %v390
  %vm393 = vcmask 260096
  %394 = vst.msk [vmem:[%s3 + $0x8] sm:$0x7f] %vm393, %v391
  // Predicated region
  $region14: #{hypnet_forward.8} parent=0 // pred_check
    _
  $region15: #{hypnet_forward.8} parent=0 // pred_check_branch
    %396 = sbr.rel (0) target = $region17
  $region16: #{hypnet_forward.8} parent=0 // pred_region
    _
  $region17: #{hypnet_forward.8} parent=0 // pred_fallthru
    _
  // Predicated region
  $region18: #{hypnet_forward.8} parent=0 // pred_check
    _
  $region19: #{hypnet_forward.8} parent=0 // pred_check_branch
    %398 = sbr.rel (0) target = $region21
  $region20: #{hypnet_forward.8} parent=0 // pred_region
    _
  $region21: #{hypnet_forward.8} parent=0 // pred_fallthru
    _

// kernel: hypnet_forward.9
$region0: #{hypnet_forward.9}
  #allocation0 [shape = 'u32[]', space=smem, size = 0x4, offset = 0x4, fixed_abs, tag = 'smem constant byte address 0x4 - core index']
  #allocation1 [shape = 'u32[72,128]{1,0:T(1,128)}', space=vmem, size = 0x9000, scoped, tag = 'internal scratch']
  %s0 = inlined_call_operand.vmem [shape: f32[1,5,32], index: 0, kind: input, shape index: {}]
  %s1 = inlined_call_operand.vmem [shape: f32[10,1,32], index: 1, kind: input, shape index: {}]
  %s2 = inlined_call_operand.vmem [shape: f32[10,5,1], index: 2, kind: output, shape index: {}]
  %s3 = sld [smem:[#allocation0]]
  $region18: #{hypnet_forward.9} parent=0
    _
  %s5 = ssub.s32 1, %s3
  %s6 = scalar_select 0, %s5, %s3
  // Predicated region
  $region2: #{hypnet_forward.9} parent=0 // pred_check
    _
  $region3: #{hypnet_forward.9} parent=0 // pred_check_branch
    %8 = sbr.rel (0) target = $region5
  $region4: #{hypnet_forward.9} parent=0 // pred_region
    _
  $region5: #{hypnet_forward.9} parent=0 // pred_fallthru
    _
  // Predicated region
  $region6: #{hypnet_forward.9} parent=0 // pred_check
    _
  $region7: #{hypnet_forward.9} parent=0 // pred_check_branch
    %10 = sbr.rel (0) target = $region9
  $region8: #{hypnet_forward.9} parent=0 // pred_region
    _
  $region9: #{hypnet_forward.9} parent=0 // pred_fallthru
    _
  %v11 = vld [vmem:[%s0] sm:$0x1f]
  %v12 = vld [vmem:[%s1] sm:$0x1]
  %v13 = vld [vmem:[%s1 + $0x1] sm:$0x1]
  %v14 = vld [vmem:[%s1 + $0x2] sm:$0x1]
  %v15 = vld [vmem:[%s1 + $0x3] sm:$0x1]
  %v16 = vld [vmem:[%s1 + $0x4] sm:$0x1]
  %v17 = vld [vmem:[%s1 + $0x5] sm:$0x1]
  %v18 = vld [vmem:[%s1 + $0x6] sm:$0x1]
  %v19 = vld [vmem:[%s1 + $0x7] sm:$0x1]
  %v20 = vld [vmem:[%s1 + $0x8] sm:$0x1]
  %v21 = vld [vmem:[%s1 + $0x9] sm:$0x1]
  %v22 = vmul.f32 %v11, %v11
  %vm23 = vcmask 258048
  %v24 = vsel %vm23, %v22, 0.0
  %25 = vadd.xlane.f32.xlu0 %v24
  %v26 = vpop.xlane.xlu0 %25
  %v27 = vmul.f32 %v11, 2.0
  %v28 = vmul.f32 %v26, 0.01
  %v29 = vadd.f32 %v28, 1.0
  %v30 = vrcp.pop %v29
  %v31 = vmul.f32 %v29, %v30
  %v32 = vsub.f32 1.0, %v31
  %v33 = vmul.f32 %v30, %v32
  %v34 = vadd.f32 %v30, %v33
  %vm35 = vweird.f32 %v29
  %vm36 = vweird.f32 %v30
  %vm37 = vmor %vm35, %vm36
  %v38 = vsel %vm37, %v30, %v34
  %v39 = vand.u32 2147483647, %v29
  %vm40 = vcmp.eq.f32.partialorder %v39, 8.507059e+37
  %v41 = vand.u32 %v29, 2147483648
  %v42 = vor.u32 1.1754944e-38, %v41
  %v43 = vsel %vm40, %v42, %v38
  %v44 = vmul.f32 %v27, %v43
  %v45 = vmul.f32 %v44, %v44
  %v46 = vsel %vm23, %v45, 0.0
  %47 = vadd.xlane.f32.xlu0 %v46
  %v48 = vpop.xlane.xlu0 %47
  %v49 = vmul.f32 %v48, 0.01
  %v50 = vsub.f32 1.0, %v49
  %v51 = vmax.f32 %v50, 1e-10
  %v52 = vrsqrt.pop %v51
  %v53 = vmul.f32 %v52, %v51
  %v54 = vmul.f32 %v53, %v52
  %v55 = vmul.f32 0.5, %v54
  %v56 = vsub.f32 1.5, %v55
  %v57 = vmul.f32 %v52, %v56
  %vm58 = vweird.f32 %v51
  %vm59 = vweird.f32 %v52
  %vm60 = vmor %vm58, %vm59
  %v61 = vsel %vm60, %v52, %v57
  %v62 = vmul.f32 %v61, %v44
  %v63 = vrcp.pop %v61
  %v64 = vmul.f32 %v61, %v63
  %v65 = vsub.f32 1.0, %v64
  %v66 = vmul.f32 %v63, %v65
  %v67 = vadd.f32 %v63, %v66
  %vm68 = vweird.f32 %v61
  %vm69 = vweird.f32 %v63
  %vm70 = vmor %vm68, %vm69
  %v71 = vsel %vm70, %v63, %v67
  %v72 = vand.u32 2147483647, %v61
  %vm73 = vcmp.eq.f32.partialorder %v72, 8.507059e+37
  %v74 = vand.u32 %v61, 2147483648
  %v75 = vor.u32 1.1754944e-38, %v74
  %v76 = vsel %vm73, %v75, %v71
  %v77 = vmul.f32 %v62, %v76
  %v78 = vmul.f32 %v77, %v77
  %v79 = vsel %vm23, %v78, 0.0
  %80 = vadd.xlane.f32.xlu0 %v79
  %v81 = vpop.xlane.xlu0 %80
  %v82 = vmul.f32 %v81, 0.01
  %v83 = vsub.f32 1.0, %v82
  %v84 = vmax.f32 %v83, 0.0
  %v85 = vrsqrt.pop %v84
  %v86 = vmul.f32 %v85, %v84
  %v87 = vmul.f32 %v86, %v85
  %v88 = vmul.f32 0.5, %v87
  %v89 = vsub.f32 1.5, %v88
  %v90 = vmul.f32 %v85, %v89
  %v91 = vmul.f32 %v84, %v90
  %vm92 = vcmp.eq.f32.partialorder %v84, inf
  %v93 = vsel %vm92, %v84, %v91
  %vm94 = vcmp.eq.f32.partialorder %v84, 0.0
  %v95 = vand.u32 %v84, 2147483648
  %v96 = vsel %vm94, %v95, %v93
  %v97 = vadd.f32 %v96, 1.0
  %v98 = vrcp.pop %v97
  %v99 = vmul.f32 %v97, %v98
  %v100 = vsub.f32 1.0, %v99
  %v101 = vmul.f32 %v98, %v100
  %v102 = vadd.f32 %v98, %v101
  %vm103 = vweird.f32 %v97
  %vm104 = vweird.f32 %v98
  %vm105 = vmor %vm103, %vm104
  %v106 = vsel %vm105, %v98, %v102
  %v107 = vand.u32 2147483647, %v97
  %vm108 = vcmp.eq.f32.partialorder %v107, 8.507059e+37
  %v109 = vand.u32 %v97, 2147483648
  %v110 = vor.u32 1.1754944e-38, %v109
  %v111 = vsel %vm108, %v110, %v106
  %v112 = vmul.f32 %v77, %v111
  %v113 = vsub.f32 0.0, %v12
  %v114 = vsub.f32 0.0, %v13
  %v115 = vsub.f32 0.0, %v14
  %v116 = vsub.f32 0.0, %v15
  %v117 = vsub.f32 0.0, %v16
  %v118 = vsub.f32 0.0, %v17
  %v119 = vsub.f32 0.0, %v18
  %v120 = vsub.f32 0.0, %v19
  %v121 = vsub.f32 0.0, %v20
  %v122 = vsub.f32 0.0, %v21
  %v133 = vperm.slane %v113, 0
  %v134 = vperm.slane %v114, 0
  %v135 = vperm.slane %v115, 0
  %v136 = vperm.slane %v116, 0
  %v137 = vperm.slane %v117, 0
  %v138 = vperm.slane %v118, 0
  %v139 = vperm.slane %v119, 0
  %v140 = vperm.slane %v120, 0
  %v141 = vperm.slane %v121, 0
  %v142 = vperm.slane %v122, 0
  %v153 = vmul.f32 %v133, %v112
  %v154 = vmul.f32 %v134, %v112
  %v155 = vmul.f32 %v135, %v112
  %v156 = vmul.f32 %v136, %v112
  %v157 = vmul.f32 %v137, %v112
  %v158 = vmul.f32 %v138, %v112
  %v159 = vmul.f32 %v139, %v112
  %v160 = vmul.f32 %v140, %v112
  %v161 = vmul.f32 %v141, %v112
  %v162 = vmul.f32 %v142, %v112
  %v163 = vsel %vm23, %v153, 0.0
  %164 = vadd.xlane.f32.xlu0 %v163
  %v165 = vpop.xlane.xlu0 %164
  %v166 = vsel %vm23, %v154, 0.0
  %167 = vadd.xlane.f32.xlu0 %v166
  %v168 = vpop.xlane.xlu0 %167
  %v169 = vsel %vm23, %v155, 0.0
  %170 = vadd.xlane.f32.xlu0 %v169
  %v171 = vpop.xlane.xlu0 %170
  %v172 = vsel %vm23, %v156, 0.0
  %173 = vadd.xlane.f32.xlu0 %v172
  %v174 = vpop.xlane.xlu0 %173
  %v175 = vsel %vm23, %v157, 0.0
  %176 = vadd.xlane.f32.xlu0 %v175
  %v177 = vpop.xlane.xlu0 %176
  %v178 = vsel %vm23, %v158, 0.0
  %179 = vadd.xlane.f32.xlu0 %v178
  %v180 = vpop.xlane.xlu0 %179
  %v181 = vsel %vm23, %v159, 0.0
  %182 = vadd.xlane.f32.xlu0 %v181
  %v183 = vpop.xlane.xlu0 %182
  %v184 = vsel %vm23, %v160, 0.0
  %185 = vadd.xlane.f32.xlu0 %v184
  %v186 = vpop.xlane.xlu0 %185
  %v187 = vsel %vm23, %v161, 0.0
  %188 = vadd.xlane.f32.xlu0 %v187
  %v189 = vpop.xlane.xlu0 %188
  %v190 = vsel %vm23, %v162, 0.0
  %191 = vadd.xlane.f32.xlu0 %v190
  %v192 = vpop.xlane.xlu0 %191
  %v193 = vmul.f32 %v113, %v113
  %v194 = vmul.f32 %v114, %v114
  %v195 = vmul.f32 %v115, %v115
  %v196 = vmul.f32 %v116, %v116
  %v197 = vmul.f32 %v117, %v117
  %v198 = vmul.f32 %v118, %v118
  %v199 = vmul.f32 %v119, %v119
  %v200 = vmul.f32 %v120, %v120
  %v201 = vmul.f32 %v121, %v121
  %v202 = vmul.f32 %v122, %v122
  %vm203 = vcmask 253952
  %v204 = vsel %vm203, %v193, 0.0
  %205 = vadd.xlane.f32.xlu0 %v204
  %v206 = vpop.xlane.xlu0 %205
  %v207 = vsel %vm203, %v194, 0.0
  %208 = vadd.xlane.f32.xlu0 %v207
  %v209 = vpop.xlane.xlu0 %208
  %v210 = vsel %vm203, %v195, 0.0
  %211 = vadd.xlane.f32.xlu0 %v210
  %v212 = vpop.xlane.xlu0 %211
  %v213 = vsel %vm203, %v196, 0.0
  %214 = vadd.xlane.f32.xlu0 %v213
  %v215 = vpop.xlane.xlu0 %214
  %v216 = vsel %vm203, %v197, 0.0
  %217 = vadd.xlane.f32.xlu0 %v216
  %v218 = vpop.xlane.xlu0 %217
  %v219 = vsel %vm203, %v198, 0.0
  %220 = vadd.xlane.f32.xlu0 %v219
  %v221 = vpop.xlane.xlu0 %220
  %v222 = vsel %vm203, %v199, 0.0
  %223 = vadd.xlane.f32.xlu0 %v222
  %v224 = vpop.xlane.xlu0 %223
  %v225 = vsel %vm203, %v200, 0.0
  %226 = vadd.xlane.f32.xlu0 %v225
  %v227 = vpop.xlane.xlu0 %226
  %v228 = vsel %vm203, %v201, 0.0
  %229 = vadd.xlane.f32.xlu0 %v228
  %v230 = vpop.xlane.xlu0 %229
  %v231 = vsel %vm203, %v202, 0.0
  %232 = vadd.xlane.f32.xlu0 %v231
  %v233 = vpop.xlane.xlu0 %232
  %v234 = vmul.f32 %v112, %v112
  %v235 = vsel %vm23, %v234, 0.0
  %236 = vadd.xlane.f32.xlu0 %v235
  %v237 = vpop.xlane.xlu0 %236
  %v238 = vmul.f32 %v165, 0.02
  %v239 = vmul.f32 %v168, 0.02
  %v240 = vmul.f32 %v171, 0.02
  %v241 = vmul.f32 %v174, 0.02
  %v242 = vmul.f32 %v177, 0.02
  %v243 = vmul.f32 %v180, 0.02
  %v244 = vmul.f32 %v183, 0.02
  %v245 = vmul.f32 %v186, 0.02
  %v246 = vmul.f32 %v189, 0.02
  %v247 = vmul.f32 %v192, 0.02
  %v248 = vadd.f32 %v238, 1.0
  %v249 = vadd.f32 %v239, 1.0
  %v250 = vadd.f32 %v240, 1.0
  %v251 = vadd.f32 %v241, 1.0
  %v252 = vadd.f32 %v242, 1.0
  %v253 = vadd.f32 %v243, 1.0
  %v254 = vadd.f32 %v244, 1.0
  %v255 = vadd.f32 %v245, 1.0
  %v256 = vadd.f32 %v246, 1.0
  %v257 = vadd.f32 %v247, 1.0
  %v258 = vmul.f32 %v237, 0.01
  %v259 = vadd.f32 %v248, %v258
  %v260 = vadd.f32 %v249, %v258
  %v261 = vadd.f32 %v250, %v258
  %v262 = vadd.f32 %v251, %v258
  %v263 = vadd.f32 %v252, %v258
  %v264 = vadd.f32 %v253, %v258
  %v265 = vadd.f32 %v254, %v258
  %v266 = vadd.f32 %v255, %v258
  %v267 = vadd.f32 %v256, %v258
  %v268 = vadd.f32 %v257, %v258
  %v269 = vmul.f32 %v206, 0.01
  %v270 = vmul.f32 %v209, 0.01
  %v271 = vmul.f32 %v212, 0.01
  %v272 = vmul.f32 %v215, 0.01
  %v273 = vmul.f32 %v218, 0.01
  %v274 = vmul.f32 %v221, 0.01
  %v275 = vmul.f32 %v224, 0.01
  %v276 = vmul.f32 %v227, 0.01
  %v277 = vmul.f32 %v230, 0.01
  %v278 = vmul.f32 %v233, 0.01
  %v279 = vsub.f32 1.0, %v269
  %v280 = vsub.f32 1.0, %v270
  %v281 = vsub.f32 1.0, %v271
  %v282 = vsub.f32 1.0, %v272
  %v283 = vsub.f32 1.0, %v273
  %v284 = vsub.f32 1.0, %v274
  %v285 = vsub.f32 1.0, %v275
  %v286 = vsub.f32 1.0, %v276
  %v287 = vsub.f32 1.0, %v277
  %v288 = vsub.f32 1.0, %v278
  %v289 = vmul.f32 %v259, %v133
  %v290 = vmul.f32 %v260, %v134
  %v291 = vmul.f32 %v261, %v135
  %v292 = vmul.f32 %v262, %v136
  %v293 = vmul.f32 %v263, %v137
  %v294 = vmul.f32 %v264, %v138
  %v295 = vmul.f32 %v265, %v139
  %v296 = vmul.f32 %v266, %v140
  %v297 = vmul.f32 %v267, %v141
  %v298 = vmul.f32 %v268, %v142
  %v299 = vperm.slane %v279, 0
  %v300 = vperm.slane %v280, 0
  %v301 = vperm.slane %v281, 0
  %v302 = vperm.slane %v282, 0
  %v303 = vperm.slane %v283, 0
  %v304 = vperm.slane %v284, 0
  %v305 = vperm.slane %v285, 0
  %v306 = vperm.slane %v286, 0
  %v307 = vperm.slane %v287, 0
  %v308 = vperm.slane %v288, 0
  %v309 = vmul.f32 %v299, %v112
  %v310 = vmul.f32 %v300, %v112
  %v311 = vmul.f32 %v301, %v112
  %v312 = vmul.f32 %v302, %v112
  %v313 = vmul.f32 %v303, %v112
  %v314 = vmul.f32 %v304, %v112
  %v315 = vmul.f32 %v305, %v112
  %v316 = vmul.f32 %v306, %v112
  %v317 = vmul.f32 %v307, %v112
  %v318 = vmul.f32 %v308, %v112
  %v319 = vadd.f32 %v289, %v309
  %v320 = vadd.f32 %v290, %v310
  %v321 = vadd.f32 %v291, %v311
  %v322 = vadd.f32 %v292, %v312
  %v323 = vadd.f32 %v293, %v313
  %v324 = vadd.f32 %v294, %v314
  %v325 = vadd.f32 %v295, %v315
  %v326 = vadd.f32 %v296, %v316
  %v327 = vadd.f32 %v297, %v317
  %v328 = vadd.f32 %v298, %v318
  %v329 = vmul.f32 %v206, 0.0001
  %v330 = vmul.f32 %v209, 0.0001
  %v331 = vmul.f32 %v212, 0.0001
  %v332 = vmul.f32 %v215, 0.0001
  %v333 = vmul.f32 %v218, 0.0001
  %v334 = vmul.f32 %v221, 0.0001
  %v335 = vmul.f32 %v224, 0.0001
  %v336 = vmul.f32 %v227, 0.0001
  %v337 = vmul.f32 %v230, 0.0001
  %v338 = vmul.f32 %v233, 0.0001
  %v339 = vperm.slane %v329, 0
  %v340 = vperm.slane %v330, 0
  %v341 = vperm.slane %v331, 0
  %v342 = vperm.slane %v332, 0
  %v343 = vperm.slane %v333, 0
  %v344 = vperm.slane %v334, 0
  %v345 = vperm.slane %v335, 0
  %v346 = vperm.slane %v336, 0
  %v347 = vperm.slane %v337, 0
  %v348 = vperm.slane %v338, 0
  %v349 = vmul.f32 %v339, %v237
  %v350 = vmul.f32 %v340, %v237
  %v351 = vmul.f32 %v341, %v237
  %v352 = vmul.f32 %v342, %v237
  %v353 = vmul.f32 %v343, %v237
  %v354 = vmul.f32 %v344, %v237
  %v355 = vmul.f32 %v345, %v237
  %v356 = vmul.f32 %v346, %v237
  %v357 = vmul.f32 %v347, %v237
  %v358 = vmul.f32 %v348, %v237
  %v359 = vadd.f32 %v248, %v349
  %v360 = vadd.f32 %v249, %v350
  %v361 = vadd.f32 %v250, %v351
  %v362 = vadd.f32 %v251, %v352
  %v363 = vadd.f32 %v252, %v353
  %v364 = vadd.f32 %v253, %v354
  %v365 = vadd.f32 %v254, %v355
  %v366 = vadd.f32 %v255, %v356
  %v367 = vadd.f32 %v256, %v357
  %v368 = vadd.f32 %v257, %v358
  %v369 = vmul.f32 %v319, %v319
  %v370 = vmul.f32 %v320, %v320
  %v371 = vmul.f32 %v321, %v321
  %v372 = vmul.f32 %v322, %v322
  %v373 = vmul.f32 %v323, %v323
  %v374 = vmul.f32 %v324, %v324
  %v375 = vmul.f32 %v325, %v325
  %v376 = vmul.f32 %v326, %v326
  %v377 = vmul.f32 %v327, %v327
  %v378 = vmul.f32 %v328, %v328
  %v379 = vsel %vm23, %v369, 0.0
  %380 = vadd.xlane.f32.xlu0 %v379
  %v381 = vpop.xlane.xlu0 %380
  %v382 = vsel %vm23, %v370, 0.0
  %383 = vadd.xlane.f32.xlu0 %v382
  %v384 = vpop.xlane.xlu0 %383
  %v385 = vsel %vm23, %v371, 0.0
  %386 = vadd.xlane.f32.xlu0 %v385
  %v387 = vpop.xlane.xlu0 %386
  %v388 = vsel %vm23, %v372, 0.0
  %389 = vadd.xlane.f32.xlu0 %v388
  %v390 = vpop.xlane.xlu0 %389
  %v391 = vsel %vm23, %v373, 0.0
  %392 = vadd.xlane.f32.xlu0 %v391
  %v393 = vpop.xlane.xlu0 %392
  %v394 = vsel %vm23, %v374, 0.0
  %395 = vadd.xlane.f32.xlu0 %v394
  %v396 = vpop.xlane.xlu0 %395
  %v397 = vsel %vm23, %v375, 0.0
  %398 = vadd.xlane.f32.xlu0 %v397
  %v399 = vpop.xlane.xlu0 %398
  %v400 = vsel %vm23, %v376, 0.0
  %401 = vadd.xlane.f32.xlu0 %v400
  %v402 = vpop.xlane.xlu0 %401
  %v403 = vsel %vm23, %v377, 0.0
  %404 = vadd.xlane.f32.xlu0 %v403
  %v405 = vpop.xlane.xlu0 %404
  %v406 = vsel %vm23, %v378, 0.0
  %407 = vadd.xlane.f32.xlu0 %v406
  %v408 = vpop.xlane.xlu0 %407
  %v409 = vrsqrt.pop %v381
  %v410 = vmul.f32 %v409, %v381
  %v411 = vmul.f32 %v410, %v409
  %v412 = vmul.f32 0.5, %v411
  %v413 = vsub.f32 1.5, %v412
  %v414 = vmul.f32 %v409, %v413
  %v415 = vmul.f32 %v381, %v414
  %vm416 = vcmp.eq.f32.partialorder %v381, inf
  %v417 = vsel %vm416, %v381, %v415
  %vm418 = vcmp.eq.f32.partialorder %v381, 0.0
  %v419 = vand.u32 %v381, 2147483648
  %v420 = vsel %vm418, %v419, %v417
  %v421 = vrsqrt.pop %v384
  %v422 = vmul.f32 %v421, %v384
  %v423 = vmul.f32 %v422, %v421
  %v424 = vmul.f32 0.5, %v423
  %v425 = vsub.f32 1.5, %v424
  %v426 = vmul.f32 %v421, %v425
  %v427 = vmul.f32 %v384, %v426
  %vm428 = vcmp.eq.f32.partialorder %v384, inf
  %v429 = vsel %vm428, %v384, %v427
  %vm430 = vcmp.eq.f32.partialorder %v384, 0.0
  %v431 = vand.u32 %v384, 2147483648
  %v432 = vsel %vm430, %v431, %v429
  %v433 = vrsqrt.pop %v387
  %v434 = vmul.f32 %v433, %v387
  %v435 = vmul.f32 %v434, %v433
  %v436 = vmul.f32 0.5, %v435
  %v437 = vsub.f32 1.5, %v436
  %v438 = vmul.f32 %v433, %v437
  %v439 = vmul.f32 %v387, %v438
  %vm440 = vcmp.eq.f32.partialorder %v387, inf
  %v441 = vsel %vm440, %v387, %v439
  %vm442 = vcmp.eq.f32.partialorder %v387, 0.0
  %v443 = vand.u32 %v387, 2147483648
  %v444 = vsel %vm442, %v443, %v441
  %v445 = vrsqrt.pop %v390
  %v446 = vmul.f32 %v445, %v390
  %v447 = vmul.f32 %v446, %v445
  %v448 = vmul.f32 0.5, %v447
  %v449 = vsub.f32 1.5, %v448
  %v450 = vmul.f32 %v445, %v449
  %v451 = vmul.f32 %v390, %v450
  %vm452 = vcmp.eq.f32.partialorder %v390, inf
  %v453 = vsel %vm452, %v390, %v451
  %vm454 = vcmp.eq.f32.partialorder %v390, 0.0
  %v455 = vand.u32 %v390, 2147483648
  %v456 = vsel %vm454, %v455, %v453
  %v457 = vrsqrt.pop %v393
  %v458 = vmul.f32 %v457, %v393
  %v459 = vmul.f32 %v458, %v457
  %v460 = vmul.f32 0.5, %v459
  %v461 = vsub.f32 1.5, %v460
  %v462 = vmul.f32 %v457, %v461
  %v463 = vmul.f32 %v393, %v462
  %vm464 = vcmp.eq.f32.partialorder %v393, inf
  %v465 = vsel %vm464, %v393, %v463
  %vm466 = vcmp.eq.f32.partialorder %v393, 0.0
  %v467 = vand.u32 %v393, 2147483648
  %v468 = vsel %vm466, %v467, %v465
  %v469 = vrsqrt.pop %v396
  %v470 = vmul.f32 %v469, %v396
  %v471 = vmul.f32 %v470, %v469
  %v472 = vmul.f32 0.5, %v471
  %v473 = vsub.f32 1.5, %v472
  %v474 = vmul.f32 %v469, %v473
  %v475 = vmul.f32 %v396, %v474
  %vm476 = vcmp.eq.f32.partialorder %v396, inf
  %v477 = vsel %vm476, %v396, %v475
  %vm478 = vcmp.eq.f32.partialorder %v396, 0.0
  %v479 = vand.u32 %v396, 2147483648
  %v480 = vsel %vm478, %v479, %v477
  %v481 = vrsqrt.pop %v399
  %v482 = vmul.f32 %v481, %v399
  %v483 = vmul.f32 %v482, %v481
  %v484 = vmul.f32 0.5, %v483
  %v485 = vsub.f32 1.5, %v484
  %v486 = vmul.f32 %v481, %v485
  %v487 = vmul.f32 %v399, %v486
  %vm488 = vcmp.eq.f32.partialorder %v399, inf
  %v489 = vsel %vm488, %v399, %v487
  %vm490 = vcmp.eq.f32.partialorder %v399, 0.0
  %v491 = vand.u32 %v399, 2147483648
  %v492 = vsel %vm490, %v491, %v489
  %v493 = vrsqrt.pop %v402
  %v494 = vmul.f32 %v493, %v402
  %v495 = vmul.f32 %v494, %v493
  %v496 = vmul.f32 0.5, %v495
  %v497 = vsub.f32 1.5, %v496
  %v498 = vmul.f32 %v493, %v497
  %v499 = vmul.f32 %v402, %v498
  %vm500 = vcmp.eq.f32.partialorder %v402, inf
  %v501 = vsel %vm500, %v402, %v499
  %vm502 = vcmp.eq.f32.partialorder %v402, 0.0
  %v503 = vand.u32 %v402, 2147483648
  %v504 = vsel %vm502, %v503, %v501
  %v505 = vrsqrt.pop %v405
  %v506 = vmul.f32 %v505, %v405
  %v507 = vmul.f32 %v506, %v505
  %v508 = vmul.f32 0.5, %v507
  %v509 = vsub.f32 1.5, %v508
  %v510 = vmul.f32 %v505, %v509
  %v511 = vmul.f32 %v405, %v510
  %vm512 = vcmp.eq.f32.partialorder %v405, inf
  %v513 = vsel %vm512, %v405, %v511
  %vm514 = vcmp.eq.f32.partialorder %v405, 0.0
  %v515 = vand.u32 %v405, 2147483648
  %v516 = vsel %vm514, %v515, %v513
  %v517 = vrsqrt.pop %v408
  %v518 = vmul.f32 %v517, %v408
  %v519 = vmul.f32 %v518, %v517
  %v520 = vmul.f32 0.5, %v519
  %v521 = vsub.f32 1.5, %v520
  %v522 = vmul.f32 %v517, %v521
  %v523 = vmul.f32 %v408, %v522
  %vm524 = vcmp.eq.f32.partialorder %v408, inf
  %v525 = vsel %vm524, %v408, %v523
  %vm526 = vcmp.eq.f32.partialorder %v408, 0.0
  %v527 = vand.u32 %v408, 2147483648
  %v528 = vsel %vm526, %v527, %v525
  %v529 = vadd.f32 %v359, 1e-05
  %v530 = vadd.f32 %v360, 1e-05
  %v531 = vadd.f32 %v361, 1e-05
  %v532 = vadd.f32 %v362, 1e-05
  %v533 = vadd.f32 %v363, 1e-05
  %v534 = vadd.f32 %v364, 1e-05
  %v535 = vadd.f32 %v365, 1e-05
  %v536 = vadd.f32 %v366, 1e-05
  %v537 = vadd.f32 %v367, 1e-05
  %v538 = vadd.f32 %v368, 1e-05
  %v539 = vrcp.pop %v529
  %v540 = vrcp.pop %v530
  %v541 = vrcp.pop %v531
  %v542 = vrcp.pop %v532
  %v543 = vrcp.pop %v533
  %v544 = vrcp.pop %v534
  %v545 = vrcp.pop %v535
  %v546 = vrcp.pop %v536
  %v547 = vrcp.pop %v537
  %v548 = vrcp.pop %v538
  %v549 = vmul.f32 %v420, %v539
  %v550 = vmul.f32 %v432, %v540
  %v551 = vmul.f32 %v444, %v541
  %v552 = vmul.f32 %v456, %v542
  %v553 = vmul.f32 %v468, %v543
  %v554 = vmul.f32 %v480, %v544
  %v555 = vmul.f32 %v492, %v545
  %v556 = vmul.f32 %v504, %v546
  %v557 = vmul.f32 %v516, %v547
  %v558 = vmul.f32 %v528, %v548
  %v559 = vmul.f32 %v549, 0.1
  %v560 = vmul.f32 %v550, 0.1
  %v561 = vmul.f32 %v551, 0.1
  %v562 = vmul.f32 %v552, 0.1
  %v563 = vmul.f32 %v553, 0.1
  %v564 = vmul.f32 %v554, 0.1
  %v565 = vmul.f32 %v555, 0.1
  %v566 = vmul.f32 %v556, 0.1
  %v567 = vmul.f32 %v557, 0.1
  %v568 = vmul.f32 %v558, 0.1
  %v569 = vmax.f32 %v559, -0.99999
  %v570 = vmax.f32 %v560, -0.99999
  %v571 = vmax.f32 %v561, -0.99999
  %v572 = vmax.f32 %v562, -0.99999
  %v573 = vmax.f32 %v563, -0.99999
  %v574 = vmax.f32 %v564, -0.99999
  %v575 = vmax.f32 %v565, -0.99999
  %v576 = vmax.f32 %v566, -0.99999
  %v577 = vmax.f32 %v567, -0.99999
  %v578 = vmax.f32 %v568, -0.99999
  %v579 = vmin.f32 %v569, 0.99999
  %v580 = vmin.f32 %v570, 0.99999
  %v581 = vmin.f32 %v571, 0.99999
  %v582 = vmin.f32 %v572, 0.99999
  %v583 = vmin.f32 %v573, 0.99999
  %v584 = vmin.f32 %v574, 0.99999
  %v585 = vmin.f32 %v575, 0.99999
  %v586 = vmin.f32 %v576, 0.99999
  %v587 = vmin.f32 %v577, 0.99999
  %v588 = vmin.f32 %v578, 0.99999
  %v589 = vadd.f32 %v579, 1.0
  %v590 = vlog2.pop %v589
  %v591 = vmul.f32 %v590, 0.6931472
  %v592 = vmul.f32 -0.5, %v579
  %v593 = vadd.f32 %v592, 1.0
  %v594 = vmul.f32 %v593, %v579
  %v595 = vand.u32 2147483647, %v579
  %vm596 = vcmp.lt.f32.partialorder %v595, 0.0004427343
  %v597 = vsel %vm596, %v594, %v591
  %v598 = vadd.f32 %v580, 1.0
  %v599 = vlog2.pop %v598
  %v600 = vmul.f32 %v599, 0.6931472
  %v601 = vmul.f32 -0.5, %v580
  %v602 = vadd.f32 %v601, 1.0
  %v603 = vmul.f32 %v602, %v580
  %v604 = vand.u32 2147483647, %v580
  %vm605 = vcmp.lt.f32.partialorder %v604, 0.0004427343
  %v606 = vsel %vm605, %v603, %v600
  %v607 = vadd.f32 %v581, 1.0
  %v608 = vlog2.pop %v607
  %v609 = vmul.f32 %v608, 0.6931472
  %v610 = vmul.f32 -0.5, %v581
  %v611 = vadd.f32 %v610, 1.0
  %v612 = vmul.f32 %v611, %v581
  %v613 = vand.u32 2147483647, %v581
  %vm614 = vcmp.lt.f32.partialorder %v613, 0.0004427343
  %v615 = vsel %vm614, %v612, %v609
  %v616 = vadd.f32 %v582, 1.0
  %v617 = vlog2.pop %v616
  %v618 = vmul.f32 %v617, 0.6931472
  %v619 = vmul.f32 -0.5, %v582
  %v620 = vadd.f32 %v619, 1.0
  %v621 = vmul.f32 %v620, %v582
  %v622 = vand.u32 2147483647, %v582
  %vm623 = vcmp.lt.f32.partialorder %v622, 0.0004427343
  %v624 = vsel %vm623, %v621, %v618
  %v625 = vadd.f32 %v583, 1.0
  %v626 = vlog2.pop %v625
  %v627 = vmul.f32 %v626, 0.6931472
  %v628 = vmul.f32 -0.5, %v583
  %v629 = vadd.f32 %v628, 1.0
  %v630 = vmul.f32 %v629, %v583
  %v631 = vand.u32 2147483647, %v583
  %vm632 = vcmp.lt.f32.partialorder %v631, 0.0004427343
  %v633 = vsel %vm632, %v630, %v627
  %v634 = vadd.f32 %v584, 1.0
  %v635 = vlog2.pop %v634
  %v636 = vmul.f32 %v635, 0.6931472
  %v637 = vmul.f32 -0.5, %v584
  %v638 = vadd.f32 %v637, 1.0
  %v639 = vmul.f32 %v638, %v584
  %v640 = vand.u32 2147483647, %v584
  %vm641 = vcmp.lt.f32.partialorder %v640, 0.0004427343
  %v642 = vsel %vm641, %v639, %v636
  %v643 = vadd.f32 %v585, 1.0
  %v644 = vlog2.pop %v643
  %v645 = vmul.f32 %v644, 0.6931472
  %v646 = vmul.f32 -0.5, %v585
  %v647 = vadd.f32 %v646, 1.0
  %v648 = vmul.f32 %v647, %v585
  %v649 = vand.u32 2147483647, %v585
  %vm650 = vcmp.lt.f32.partialorder %v649, 0.0004427343
  %v651 = vsel %vm650, %v648, %v645
  %v652 = vadd.f32 %v586, 1.0
  %v653 = vlog2.pop %v652
  %v654 = vmul.f32 %v653, 0.6931472
  %v655 = vmul.f32 -0.5, %v586
  %v656 = vadd.f32 %v655, 1.0
  %v657 = vmul.f32 %v656, %v586
  %v658 = vand.u32 2147483647, %v586
  %vm659 = vcmp.lt.f32.partialorder %v658, 0.0004427343
  %v660 = vsel %vm659, %v657, %v654
  %v661 = vadd.f32 %v587, 1.0
  %v662 = vlog2.pop %v661
  %v663 = vmul.f32 %v662, 0.6931472
  %v664 = vmul.f32 -0.5, %v587
  %v665 = vadd.f32 %v664, 1.0
  %v666 = vmul.f32 %v665, %v587
  %v667 = vand.u32 2147483647, %v587
  %vm668 = vcmp.lt.f32.partialorder %v667, 0.0004427343
  %v669 = vsel %vm668, %v666, %v663
  %v670 = vadd.f32 %v588, 1.0
  %v671 = vlog2.pop %v670
  %v672 = vmul.f32 %v671, 0.6931472
  %v673 = vmul.f32 -0.5, %v588
  %v674 = vadd.f32 %v673, 1.0
  %v675 = vmul.f32 %v674, %v588
  %v676 = vand.u32 2147483647, %v588
  %vm677 = vcmp.lt.f32.partialorder %v676, 0.0004427343
  %v678 = vsel %vm677, %v675, %v672
  %v679 = vsub.f32 0.0, %v579
  %v680 = vsub.f32 0.0, %v580
  %v681 = vsub.f32 0.0, %v581
  %v682 = vsub.f32 0.0, %v582
  %v683 = vsub.f32 0.0, %v583
  %v684 = vsub.f32 0.0, %v584
  %v685 = vsub.f32 0.0, %v585
  %v686 = vsub.f32 0.0, %v586
  %v687 = vsub.f32 0.0, %v587
  %v688 = vsub.f32 0.0, %v588
  %v689 = vadd.f32 %v679, 1.0
  %v690 = vlog2.pop %v689
  %v691 = vmul.f32 %v690, 0.6931472
  %v692 = vmul.f32 -0.5, %v679
  %v693 = vadd.f32 %v692, 1.0
  %v694 = vmul.f32 %v693, %v679
  %v695 = vand.u32 2147483647, %v679
  %vm696 = vcmp.lt.f32.partialorder %v695, 0.0004427343
  %v697 = vsel %vm696, %v694, %v691
  %v698 = vadd.f32 %v680, 1.0
  %v699 = vlog2.pop %v698
  %v700 = vmul.f32 %v699, 0.6931472
  %v701 = vmul.f32 -0.5, %v680
  %v702 = vadd.f32 %v701, 1.0
  %v703 = vmul.f32 %v702, %v680
  %v704 = vand.u32 2147483647, %v680
  %vm705 = vcmp.lt.f32.partialorder %v704, 0.0004427343
  %v706 = vsel %vm705, %v703, %v700
  %v707 = vadd.f32 %v681, 1.0
  %v708 = vlog2.pop %v707
  %v709 = vmul.f32 %v708, 0.6931472
  %v710 = vmul.f32 -0.5, %v681
  %v711 = vadd.f32 %v710, 1.0
  %v712 = vmul.f32 %v711, %v681
  %v713 = vand.u32 2147483647, %v681
  %vm714 = vcmp.lt.f32.partialorder %v713, 0.0004427343
  %v715 = vsel %vm714, %v712, %v709
  %v716 = vadd.f32 %v682, 1.0
  %v717 = vlog2.pop %v716
  %v718 = vmul.f32 %v717, 0.6931472
  %v719 = vmul.f32 -0.5, %v682
  %v720 = vadd.f32 %v719, 1.0
  %v721 = vmul.f32 %v720, %v682
  %v722 = vand.u32 2147483647, %v682
  %vm723 = vcmp.lt.f32.partialorder %v722, 0.0004427343
  %v724 = vsel %vm723, %v721, %v718
  %v725 = vadd.f32 %v683, 1.0
  %v726 = vlog2.pop %v725
  %v727 = vmul.f32 %v726, 0.6931472
  %v728 = vmul.f32 -0.5, %v683
  %v729 = vadd.f32 %v728, 1.0
  %v730 = vmul.f32 %v729, %v683
  %v731 = vand.u32 2147483647, %v683
  %vm732 = vcmp.lt.f32.partialorder %v731, 0.0004427343
  %v733 = vsel %vm732, %v730, %v727
  %v734 = vadd.f32 %v684, 1.0
  %v735 = vlog2.pop %v734
  %v736 = vmul.f32 %v735, 0.6931472
  %v737 = vmul.f32 -0.5, %v684
  %v738 = vadd.f32 %v737, 1.0
  %v739 = vmul.f32 %v738, %v684
  %v740 = vand.u32 2147483647, %v684
  %vm741 = vcmp.lt.f32.partialorder %v740, 0.0004427343
  %v742 = vsel %vm741, %v739, %v736
  %v743 = vadd.f32 %v685, 1.0
  %v744 = vlog2.pop %v743
  %v745 = vmul.f32 %v744, 0.6931472
  %v746 = vmul.f32 -0.5, %v685
  %v747 = vadd.f32 %v746, 1.0
  %v748 = vmul.f32 %v747, %v685
  %v749 = vand.u32 2147483647, %v685
  %vm750 = vcmp.lt.f32.partialorder %v749, 0.0004427343
  %v751 = vsel %vm750, %v748, %v745
  %v752 = vadd.f32 %v686, 1.0
  %v753 = vlog2.pop %v752
  %v754 = vmul.f32 %v753, 0.6931472
  %v755 = vmul.f32 -0.5, %v686
  %v756 = vadd.f32 %v755, 1.0
  %v757 = vmul.f32 %v756, %v686
  %v758 = vand.u32 2147483647, %v686
  %vm759 = vcmp.lt.f32.partialorder %v758, 0.0004427343
  %v760 = vsel %vm759, %v757, %v754
  %v761 = vadd.f32 %v687, 1.0
  %v762 = vlog2.pop %v761
  %v763 = vmul.f32 %v762, 0.6931472
  %v764 = vmul.f32 -0.5, %v687
  %v765 = vadd.f32 %v764, 1.0
  %v766 = vmul.f32 %v765, %v687
  %v767 = vand.u32 2147483647, %v687
  %vm768 = vcmp.lt.f32.partialorder %v767, 0.0004427343
  %v769 = vsel %vm768, %v766, %v763
  %v770 = vadd.f32 %v688, 1.0
  %v771 = vlog2.pop %v770
  %v772 = vmul.f32 %v771, 0.6931472
  %v773 = vmul.f32 -0.5, %v688
  %v774 = vadd.f32 %v773, 1.0
  %v775 = vmul.f32 %v774, %v688
  %v776 = vand.u32 2147483647, %v688
  %vm777 = vcmp.lt.f32.partialorder %v776, 0.0004427343
  %v778 = vsel %vm777, %v775, %v772
  %v779 = vsub.f32 %v597, %v697
  %v780 = vsub.f32 %v606, %v706
  %v781 = vsub.f32 %v615, %v715
  %v782 = vsub.f32 %v624, %v724
  %v783 = vsub.f32 %v633, %v733
  %v784 = vsub.f32 %v642, %v742
  %v785 = vsub.f32 %v651, %v751
  %v786 = vsub.f32 %v660, %v760
  %v787 = vsub.f32 %v669, %v769
  %v788 = vsub.f32 %v678, %v778
  %v789 = vmul.f32 %v779, 0.5
  %v790 = vmul.f32 %v780, 0.5
  %v791 = vmul.f32 %v781, 0.5
  %v792 = vmul.f32 %v782, 0.5
  %v793 = vmul.f32 %v783, 0.5
  %v794 = vmul.f32 %v784, 0.5
  %v795 = vmul.f32 %v785, 0.5
  %v796 = vmul.f32 %v786, 0.5
  %v797 = vmul.f32 %v787, 0.5
  %v798 = vmul.f32 %v788, 0.5
  %v799 = vmul.f32 %v789, -20.0
  %v800 = vmul.f32 %v790, -20.0
  %v801 = vmul.f32 %v791, -20.0
  %v802 = vmul.f32 %v792, -20.0
  %v803 = vmul.f32 %v793, -20.0
  %v804 = vmul.f32 %v794, -20.0
  %v805 = vmul.f32 %v795, -20.0
  %v806 = vmul.f32 %v796, -20.0
  %v807 = vmul.f32 %v797, -20.0
  %v808 = vmul.f32 %v798, -20.0
  %vm809 = vcmask 4096
  %810 = vst.msk [vmem:[%s2] sm:$0x1f] %vm809, %v799
  %811 = vst.msk [vmem:[%s2 + $0x8] sm:$0x1f] %vm809, %v800
  %812 = vst.msk [vmem:[%s2 + $0x10] sm:$0x1f] %vm809, %v801
  %813 = vst.msk [vmem:[%s2 + $0x18] sm:$0x1f] %vm809, %v802
  %814 = vst.msk [vmem:[%s2 + $0x20] sm:$0x1f] %vm809, %v803
  %815 = vst.msk [vmem:[%s2 + $0x28] sm:$0x1f] %vm809, %v804
  %816 = vst.msk [vmem:[%s2 + $0x30] sm:$0x1f] %vm809, %v805
  %817 = vst.msk [vmem:[%s2 + $0x38] sm:$0x1f] %vm809, %v806
  %818 = vst.msk [vmem:[%s2 + $0x40] sm:$0x1f] %vm809, %v807
  %819 = vst.msk [vmem:[%s2 + $0x48] sm:$0x1f] %vm809, %v808
  // Predicated region
  $region10: #{hypnet_forward.9} parent=0 // pred_check
    _
  $region11: #{hypnet_forward.9} parent=0 // pred_check_branch
    %821 = sbr.rel (0) target = $region13
  $region12: #{hypnet_forward.9} parent=0 // pred_region
    _
  $region13: #{hypnet_forward.9} parent=0 // pred_fallthru
    _
  // Predicated region
  $region14: #{hypnet_forward.9} parent=0 // pred_check
    _
  $region15: #{hypnet_forward.9} parent=0 // pred_check_branch
    %823 = sbr.rel (0) target = $region17
  $region16: #{hypnet_forward.9} parent=0 // pred_region
    _
  $region17: #{hypnet_forward.9} parent=0 // pred_fallthru
    _

</llo_original>
